<compile_context>
chip_gen: v5e
topology: v5e:2x2
jax: 0.10.0
libtpu: 0.0.40
codegen_flags: <defaults>
</compile_context>

<pallas_src>
import math

import jax
import jax.numpy as jnp
from jax import lax
from jax.experimental import pallas as pl
from jax.experimental.pallas import tpu as pltpu

DIRECTIONALITY = 4


# ----------------------------------------------------------------------------
# Pallas kernel: fused matmul + bias, tiled over M  (im2col input conv)
# ----------------------------------------------------------------------------
def _matmul_bias_kernel(x_ref, w_ref, b_ref, o_ref):
    o_ref[...] = (
        jnp.dot(x_ref[...], w_ref[...], preferred_element_type=jnp.float32)
        + b_ref[...]
    )


def matmul_bias(x, w, b, block_m=128):
    # x: (M, K), w: (K, N), b: (N,) -> (M, N)
    M, K = x.shape
    N = w.shape[1]
    tm = min(block_m, M)
    pad = (-M) % tm
    if pad:
        x = jnp.pad(x, ((0, pad), (0, 0)))
    Mp = M + pad
    out = pl.pallas_call(
        _matmul_bias_kernel,
        out_shape=jax.ShapeDtypeStruct((Mp, N), jnp.float32),
        grid=(Mp // tm,),
        in_specs=[
            pl.BlockSpec((tm, K), lambda i: (i, 0)),
            pl.BlockSpec((K, N), lambda i: (0, 0)),
            pl.BlockSpec((1, N), lambda i: (0, 0)),
        ],
        out_specs=pl.BlockSpec((tm, N), lambda i: (i, 0)),
        compiler_params=pltpu.CompilerParams(dimension_semantics=("parallel",)),
    )(x, w, b.reshape(1, N))
    return out[:M] if pad else out


# ----------------------------------------------------------------------------
# Pallas kernel: whole DiagonalQuadLSTM recurrence, one grid step per direction
# ----------------------------------------------------------------------------
def _quad_dlstm_kernel(i2s_ref, w_ref, b_ref, upw_ref, upb_ref, o_ref):
    # i2s_ref : (newW, B, 4n)   flat input2state, h-major / channel-minor
    # w_ref   : (2n, 5n)        block-banded [cell2cell | state2state] transition
    # b_ref   : (1, 5n)
    # upw_ref : (n, 2n)         block-diag upsampling (1x1 conv hidden->2*hidden)
    # upb_ref : (1, 2n)
    # o_ref   : (newW, B, 2n)   upsampled outputs in skew space
    newW, B, n4 = i2s_ref.shape
    n = n4 // 4

    # hoist biases (pre-broadcast once, not per step)
    b = jnp.broadcast_to(b_ref[...], (B, 5 * n))
    upb = jnp.broadcast_to(upb_ref[...], (B, 2 * n))

    def step(t, st):
        # st = [c_flat | h_flat], lane-dense (B, 2n); one matmul gives
        # cs = [c2c_flat (n) | s2s_flat (4n)] (conv1d(k=2) shift folded into W).
        cs = jnp.dot(st, w_ref[...], preferred_element_type=jnp.float32) + b
        gates = jax.nn.sigmoid(i2s_ref[t] + cs[:, n:])          # (B, 4n)
        # chunk order (i, g, f, o) over the flat H*4*hidden axis, exactly as the
        # reference's .split(hidden*height, 1) (it splits the flat axis).
        c = gates[:, 2 * n:3 * n] * cs[:, :n] + gates[:, :n] * gates[:, n:2 * n]
        h = gates[:, 3 * n:] * jnp.tanh(c)
        # fused upsampling, lane-dense (B, 2n) store
        o_ref[t] = (
            jnp.dot(h, upw_ref[...], preferred_element_type=jnp.float32) + upb
        ).astype(o_ref.dtype)
        return jnp.concatenate([c, h], axis=-1)

    lax.fori_loop(0, newW, step, jnp.zeros((B, 2 * n), jnp.float32), unroll=True)


def _expand_dir_mats(lp, H, hidden):
    # Build per-direction block-banded transition / block-diag upsample matrices.
    # Constant-folded by XLA since params are closure constants under jit.
    n = H * hidden
    eye_h = jnp.eye(H, dtype=jnp.float32)
    shf_h = jnp.eye(H, k=1, dtype=jnp.float32)   # input row j feeds output row j+1

    def one(wc0, wc1, ws0, ws1, bc, bs, uw, ub):
        wc_big = jnp.kron(eye_h, wc1) + jnp.kron(shf_h, wc0)       # (n, n)
        ws_big = jnp.kron(eye_h, ws1) + jnp.kron(shf_h, ws0)       # (n, 4n)
        w_all = jnp.zeros((2 * n, 5 * n), jnp.float32)
        w_all = w_all.at[:n, :n].set(wc_big)
        w_all = w_all.at[n:, n:].set(ws_big)
        b_all = jnp.concatenate([jnp.tile(bc, H), jnp.tile(bs, H)])[None, :]
        up_big = jnp.kron(eye_h, uw)                                # (n, 2n)
        upb = jnp.tile(ub, H)[None, :]                              # (1, 2n)
        return w_all, b_all, up_big, upb

    return jax.vmap(one)(lp['c2c_w0'], lp['c2c_w1'], lp['s2s_w0'], lp['s2s_w1'],
                         lp['c2c_b'], lp['s2s_b'], lp['up_w'], lp['up_b'])


# ----------------------------------------------------------------------------
# Glue: redirect / vectorized skew / unskew / im2col conv (plain JAX)
# ----------------------------------------------------------------------------
def redirect(x, direction):
    if direction == 0:
        return x
    dims = []
    if direction // 2 == 1:
        dims.append(2)
    if direction % 2 == 1:
        dims.append(3)
    return jnp.flip(x, axis=tuple(dims))


def skew(x):
    # x: (..., H, W) -> (..., H, H+W-1); out[..., h, t] = x[..., h, t-h] (else 0)
    H, W = x.shape[-2], x.shape[-1]
    new_w = H + W - 1
    xp = jnp.pad(x, [(0, 0)] * (x.ndim - 1) + [(0, H - 1)])
    idx = (jnp.arange(new_w)[None, :] - jnp.arange(H)[:, None]) % new_w
    idx = jnp.broadcast_to(idx, xp.shape)
    return jnp.take_along_axis(xp, idx, axis=-1)


def unskew(x, width):
    # x: (..., H, newW) -> (..., H, W); out[..., h, w] = x[..., h, w+h]
    H = x.shape[-2]
    idx = jnp.arange(width)[None, :] + jnp.arange(H)[:, None]
    idx = jnp.broadcast_to(idx, x.shape[:-1] + (width,))
    return jnp.take_along_axis(x, idx, axis=-1)


def cross_conv2d(x, w, b):
    # TODO(synk): CrossConv2d is undefined in the source; treated as a dense conv,
    #             kernel (2H-1, 2W-1), padding (H-1, W-1), stride 1 (same H, W).
    B, Cin, H, W = x.shape
    Cout, _, KH, KW = w.shape
    ph, pw = KH // 2, KW // 2
    xp = jnp.pad(x, ((0, 0), (0, 0), (ph, ph), (pw, pw)))
    patches = []
    for ky in range(KH):
        for kx in range(KW):
            patches.append(xp[:, :, ky:ky + H, kx:kx + W])        # (B, Cin, H, W)
    patches = jnp.stack(patches, axis=-1)                          # (B,Cin,H,W,KH*KW)
    patches = patches.transpose(0, 2, 3, 1, 4).reshape(B * H * W, Cin * KH * KW)
    wmat = w.reshape(Cout, Cin * KH * KW).T
    y = matmul_bias(patches, wmat, b)                              # (B*H*W, Cout)
    return y.reshape(B, H, W, Cout).transpose(0, 3, 1, 2)


# ----------------------------------------------------------------------------
# Model forward
# ----------------------------------------------------------------------------
def diagonal_quad_lstm(x, lp, hidden):
    B, C, H, W = x.shape
    n = H * hidden
    new_w = H + W - 1
    D = DIRECTIONALITY

    # redirect + skew all 4 directions (cheap XLA flips + one gather)
    xd = jnp.stack([redirect(x, d) for d in range(D)], axis=0)     # (D,B,C,H,W)
    xs = skew(xd)                                                  # (D,B,C,H,newW)

    # input2state 1x1 conv for all directions (tiny matmul -> leave to XLA)
    i2s = jnp.einsum('dbcht,dck->dtbhk', xs, lp['i2s_w'])
    i2s = i2s + lp['i2s_b'][:, None, None, None, :]
    i2s = i2s.reshape(D, new_w, B, 4 * n)                          # flat, h-major

    w_all, b_all, up_big, upb_all = _expand_dir_mats(lp, H, hidden)

    out = pl.pallas_call(
        _quad_dlstm_kernel,
        out_shape=jax.ShapeDtypeStruct((D, new_w, B, 2 * n), jnp.float32),
        grid_spec=pltpu.PrefetchScalarGridSpec(
            num_scalar_prefetch=0,
            grid=(D,),
            in_specs=[
                pl.BlockSpec((None, new_w, B, 4 * n), lambda d: (d, 0, 0, 0)),
                pl.BlockSpec((None, 2 * n, 5 * n), lambda d: (d, 0, 0)),
                pl.BlockSpec((None, 1, 5 * n), lambda d: (d, 0, 0)),
                pl.BlockSpec((None, n, 2 * n), lambda d: (d, 0, 0)),
                pl.BlockSpec((None, 1, 2 * n), lambda d: (d, 0, 0)),
            ],
            out_specs=pl.BlockSpec((None, new_w, B, 2 * n), lambda d: (d, 0, 0, 0)),
        ),
        compiler_params=pltpu.CompilerParams(dimension_semantics=("parallel",)),
    )(i2s, w_all, b_all, up_big, upb_all)                          # (D,newW,B,2n)

    # unskew + redirect back + directional weighted sum (plain JAX; tiny)
    up_sk = out.reshape(D, new_w, B, H, 2 * hidden).transpose(0, 2, 4, 3, 1)
    y = unskew(up_sk, W)                                           # (D,B,2h,H,W)
    y = jnp.stack([redirect(y[d], d) for d in range(D)], axis=0)
    dw = lp['directional_weights'][:, None, None, :, :]
    return jnp.sum(y * dw, axis=0)                                 # (B,2h,H,W)


def pixelrnn_forward(x, params, hidden):
    # Dropout2d(p=0) from the reference is identity in forward -> omitted.
    y = cross_conv2d(x, params['input_conv_w'], params['input_conv_b'])
    for lp in params['layers']:
        y = diagonal_quad_lstm(y, lp, hidden)
    return jnp.concatenate([y, x], axis=1)                         # classifier=False


# ----------------------------------------------------------------------------
# Deterministic parameter initialization
# ----------------------------------------------------------------------------
def _init_layer_params(key, in_ch, hidden, H, W):
    ks = jax.random.split(key, 11)
    D = DIRECTIONALITY

    def rnd(k, shape, fan_in):
        return jax.random.normal(k, shape, jnp.float32) * (1.0 / math.sqrt(fan_in))

    xav = math.sqrt(6.0 / (H + W))  # xavier_uniform-ish scale for (4, H, W)
    return {
        'i2s_w': rnd(ks[0], (D, in_ch, 4 * hidden), in_ch),
        'i2s_b': rnd(ks[1], (D, 4 * hidden), in_ch) * 0.1,
        's2s_w0': rnd(ks[2], (D, hidden, 4 * hidden), 2 * hidden),
        's2s_w1': rnd(ks[3], (D, hidden, 4 * hidden), 2 * hidden),
        's2s_b': rnd(ks[4], (D, 4 * hidden), 2 * hidden) * 0.1,
        'c2c_w0': rnd(ks[5], (D, hidden, hidden), 2 * hidden),
        'c2c_w1': rnd(ks[6], (D, hidden, hidden), 2 * hidden),
        'c2c_b': rnd(ks[7], (D, hidden), 2 * hidden) * 0.1,
        'up_w': rnd(ks[8], (D, hidden, 2 * hidden), hidden),
        'up_b': rnd(ks[9], (D, 2 * hidden), hidden) * 0.1,
        'directional_weights': jax.random.uniform(
            ks[10], (D, H, W), jnp.float32, minval=-xav, maxval=xav),
    }


def init_params(key, inplane, H, W, hidden, num_layers):
    keys = jax.random.split(key, 2 + num_layers)
    KH, KW = 2 * H - 1, 2 * W - 1
    return {
        'input_conv_w': jax.random.normal(
            keys[0], (2 * hidden, inplane, KH, KW), jnp.float32)
        * (1.0 / math.sqrt(inplane * KH * KW)),
        'input_conv_b': jax.random.normal(keys[1], (2 * hidden,), jnp.float32) * 0.01,
        'layers': [_init_layer_params(keys[2 + i], 2 * hidden, hidden, H, W)
                   for i in range(num_layers)],
    }


# ----------------------------------------------------------------------------
# Main
# ----------------------------------------------------------------------------
if __name__ == "__main__":
    B, inplane = 2, 4
    H, W = 8, 8                 # table_size_limit
    hidden = 16                 # hidden_size (H*hidden = 128 -> lane-dense state)
    num_lstm_layers = 1

    key = jax.random.PRNGKey(0)
    kx, kp = jax.random.split(key)
    x = jax.random.normal(kx, (B, inplane, H, W), jnp.float32)
    params = init_params(kp, inplane, H, W, hidden, num_lstm_layers)

    fwd = jax.jit(lambda inp: pixelrnn_forward(inp, params, hidden))
    out = jax.block_until_ready(fwd(x))

    assert out.shape == (B, 2 * hidden + inplane, H, W), out.shape
    assert out.dtype == jnp.float32
    assert bool(jnp.all(jnp.isfinite(out)))
    print("KERNEL_OK")
</pallas_src>

<mosaic_0001>
module attributes {stable_mosaic.version = 11 : i64} {
  func.func @_matmul_bias_kernel(%arg0: i32, %arg1: memref<128x900xf32, #tpu.memory_space<vmem>>, %arg2: memref<900x32xf32, #tpu.memory_space<vmem>>, %arg3: memref<1x32xf32, #tpu.memory_space<vmem>>, %arg4: memref<128x32xf32, #tpu.memory_space<vmem>>) attributes {dimension_semantics = [#tpu.dimension_semantics<parallel>], iteration_bounds = array<i64: 1>, scalar_prefetch = 0 : i64, scratch_operands = 0 : i64, tpu.core_type = #tpu.core_type<tc>, window_params = [{transform_indices = @transform_0, window_bounds = array<i64: 128, 900>}, {pipeline_mode = #tpu.pipeline_mode<synchronous>, transform_indices = @transform_1, window_bounds = array<i64: 900, 32>}, {pipeline_mode = #tpu.pipeline_mode<synchronous>, transform_indices = @transform_2, window_bounds = array<i64: 1, 32>}, {transform_indices = @transform_3, window_bounds = array<i64: 128, 32>}]} {
    %c0 = arith.constant 0 : index
    %c0_0 = arith.constant 0 : index
    %0 = vector.load %arg1[%c0, %c0_0] : memref<128x900xf32, #tpu.memory_space<vmem>>, vector<128x900xf32>
    %c0_1 = arith.constant 0 : index
    %c0_2 = arith.constant 0 : index
    %1 = vector.load %arg2[%c0_1, %c0_2] : memref<900x32xf32, #tpu.memory_space<vmem>>, vector<900x32xf32>
    %cst = arith.constant dense<0.000000e+00> : vector<128x32xf32>
    %2 = tpu.matmul %0, %1, %cst {dimension_numbers = #tpu.dot_dimension_numbers<[1], [0], [0], [1], [0, 0, 1, 1], [], []>} : vector<128x900xf32>, vector<900x32xf32>, vector<128x32xf32> -> vector<128x32xf32>
    %c0_3 = arith.constant 0 : index
    %c0_4 = arith.constant 0 : index
    %3 = vector.load %arg3[%c0_3, %c0_4] : memref<1x32xf32, #tpu.memory_space<vmem>>, vector<1x32xf32>
    %4 = vector.broadcast %3 : vector<1x32xf32> to vector<128x32xf32>
    %5 = arith.addf %2, %4 : vector<128x32xf32>
    %c0_5 = arith.constant 0 : index
    %c0_6 = arith.constant 0 : index
    %6 = vector.load %arg4[%c0_5, %c0_6] : memref<128x32xf32, #tpu.memory_space<vmem>>, vector<128x32xf32>
    tpu.vector_store %arg4[%c0_5, %c0_6], %5 {strides = array<i32>} : memref<128x32xf32, #tpu.memory_space<vmem>>, vector<128x32xf32>,
    return
  }
  func.func @transform_0(%arg0: i32) -> (i32, i32) {
    %c0_i32 = arith.constant 0 : i32
    %c0_i32_0 = arith.constant 0 : i32
    return %arg0, %c0_i32 : i32, i32
  }
  func.func @transform_1(%arg0: i32) -> (i32, i32) {
    %c0_i32 = arith.constant 0 : i32
    %c0_i32_0 = arith.constant 0 : i32
    %c0_i32_1 = arith.constant 0 : i32
    return %c0_i32, %c0_i32_0 : i32, i32
  }
  func.func @transform_2(%arg0: i32) -> (i32, i32) {
    %c0_i32 = arith.constant 0 : i32
    %c0_i32_0 = arith.constant 0 : i32
    %c0_i32_1 = arith.constant 0 : i32
    return %c0_i32, %c0_i32_0 : i32, i32
  }
  func.func @transform_3(%arg0: i32) -> (i32, i32) {
    %c0_i32 = arith.constant 0 : i32
    %c0_i32_0 = arith.constant 0 : i32
    return %arg0, %c0_i32 : i32, i32
  }
}

module attributes {stable_mosaic.version = 11 : i64} {
  func.func @_quad_dlstm_kernel(%arg0: i32, %arg1: memref<1x15x2x512xf32, #tpu.memory_space<vmem>>, %arg2: memref<1x256x640xf32, #tpu.memory_space<vmem>>, %arg3: memref<1x1x640xf32, #tpu.memory_space<vmem>>, %arg4: memref<1x128x256xf32, #tpu.memory_space<vmem>>, %arg5: memref<1x1x256xf32, #tpu.memory_space<vmem>>, %arg6: memref<1x15x2x256xf32, #tpu.memory_space<vmem>>) attributes {dimension_semantics = [#tpu.dimension_semantics<parallel>], iteration_bounds = array<i64: 4>, scalar_prefetch = 0 : i64, scratch_operands = 0 : i64, tpu.core_type = #tpu.core_type<tc>, window_params = [{transform_indices = @transform_0, window_bounds = array<i64: 1, 15, 2, 512>}, {transform_indices = @transform_1, window_bounds = array<i64: 1, 256, 640>}, {transform_indices = @transform_2, window_bounds = array<i64: 1, 1, 640>}, {transform_indices = @transform_3, window_bounds = array<i64: 1, 128, 256>}, {transform_indices = @transform_4, window_bounds = array<i64: 1, 1, 256>}, {transform_indices = @transform_5, window_bounds = array<i64: 1, 15, 2, 256>}]} {
    %c0 = arith.constant 0 : index
    %c0_0 = arith.constant 0 : index
    %c0_1 = arith.constant 0 : index
    %0 = vector.load %arg3[%c0, %c0_0, %c0_1] : memref<1x1x640xf32, #tpu.memory_space<vmem>>, vector<1x1x640xf32>
    %1 = vector.shape_cast %0 : vector<1x1x640xf32> to vector<1x640xf32>
    %2 = vector.shape_cast %1 : vector<1x640xf32> to vector<1x640xf32>
    %3 = vector.broadcast %2 : vector<1x640xf32> to vector<2x640xf32>
    %c0_2 = arith.constant 0 : index
    %c0_3 = arith.constant 0 : index
    %c0_4 = arith.constant 0 : index
    %4 = vector.load %arg5[%c0_2, %c0_3, %c0_4] : memref<1x1x256xf32, #tpu.memory_space<vmem>>, vector<1x1x256xf32>
    %5 = vector.shape_cast %4 : vector<1x1x256xf32> to vector<1x256xf32>
    %6 = vector.shape_cast %5 : vector<1x256xf32> to vector<1x256xf32>
    %7 = vector.broadcast %6 : vector<1x256xf32> to vector<2x256xf32>
    %cst = arith.constant 0.000000e+00 : f32
    %8 = vector.broadcast %cst : f32 to vector<2x256xf32>
    %c0_i32 = arith.constant 0 : i32
    %c0_5 = arith.constant 0 : index
    %c0_6 = arith.constant 0 : index
    %c0_7 = arith.constant 0 : index
    %9 = vector.load %arg2[%c0_5, %c0_6, %c0_7] : memref<1x256x640xf32, #tpu.memory_space<vmem>>, vector<1x256x640xf32>
    %10 = vector.shape_cast %9 : vector<1x256x640xf32> to vector<256x640xf32>
    %cst_8 = arith.constant dense<0.000000e+00> : vector<2x640xf32>
    %11 = tpu.matmul %8, %10, %cst_8 {dimension_numbers = #tpu.dot_dimension_numbers<[1], [0], [0], [1], [0, 0, 1, 1], [], []>} : vector<2x256xf32>, vector<256x640xf32>, vector<2x640xf32> -> vector<2x640xf32>
    %12 = arith.addf %11, %3 : vector<2x640xf32>
    %c0_9 = arith.constant 0 : index
    %13 = arith.index_cast %c0_i32 : i32 to index
    %c0_10 = arith.constant 0 : index
    %c0_11 = arith.constant 0 : index
    %14 = vector.load %arg1[%c0_9, %13, %c0_10, %c0_11] : memref<1x15x2x512xf32, #tpu.memory_space<vmem>>, vector<1x1x2x512xf32>
    %15 = vector.shape_cast %14 : vector<1x1x2x512xf32> to vector<2x512xf32>
    %16 = vector.extract_strided_slice %12 {offsets = [0, 128], sizes = [2, 512], strides = [1, 1]} : vector<2x640xf32> to vector<2x512xf32>
    %17 = arith.addf %15, %16 : vector<2x512xf32>
    %18 = arith.negf %17 : vector<2x512xf32>
    %19 = math.exp %18 : vector<2x512xf32>
    %cst_12 = arith.constant 1.000000e+00 : f32
    %20 = vector.broadcast %cst_12 : f32 to vector<2x512xf32>
    %21 = arith.addf %20, %19 : vector<2x512xf32>
    %22 = arith.divf %20, %21 : vector<2x512xf32>
    %23 = vector.extract_strided_slice %22 {offsets = [0, 256], sizes = [2, 128], strides = [1, 1]} : vector<2x512xf32> to vector<2x128xf32>
    %24 = vector.extract_strided_slice %12 {offsets = [0, 0], sizes = [2, 128], strides = [1, 1]} : vector<2x640xf32> to vector<2x128xf32>
    %25 = arith.mulf %23, %24 : vector<2x128xf32>
    %26 = vector.extract_strided_slice %22 {offsets = [0, 0], sizes = [2, 128], strides = [1, 1]} : vector<2x512xf32> to vector<2x128xf32>
    %27 = vector.extract_strided_slice %22 {offsets = [0, 128], sizes = [2, 128], strides = [1, 1]} : vector<2x512xf32> to vector<2x128xf32>
    %28 = arith.mulf %26, %27 : vector<2x128xf32>
    %29 = arith.addf %25, %28 : vector<2x128xf32>
    %30 = vector.extract_strided_slice %22 {offsets = [0, 384], sizes = [2, 128], strides = [1, 1]} : vector<2x512xf32> to vector<2x128xf32>
    %31 = math.tanh %29 : vector<2x128xf32>
    %32 = arith.mulf %30, %31 : vector<2x128xf32>
    %c0_13 = arith.constant 0 : index
    %c0_14 = arith.constant 0 : index
    %c0_15 = arith.constant 0 : index
    %33 = vector.load %arg4[%c0_13, %c0_14, %c0_15] : memref<1x128x256xf32, #tpu.memory_space<vmem>>, vector<1x128x256xf32>
    %34 = vector.shape_cast %33 : vector<1x128x256xf32> to vector<128x256xf32>
    %cst_16 = arith.constant dense<0.000000e+00> : vector<2x256xf32>
    %35 = tpu.matmul %32, %34, %cst_16 {dimension_numbers = #tpu.dot_dimension_numbers<[1], [0], [0], [1], [0, 0, 1, 1], [], []>} : vector<2x128xf32>, vector<128x256xf32>, vector<2x256xf32> -> vector<2x256xf32>
    %36 = arith.addf %35, %7 : vector<2x256xf32>
    %c0_17 = arith.constant 0 : index
    %37 = arith.index_cast %c0_i32 : i32 to index
    %c0_18 = arith.constant 0 : index
    %c0_19 = arith.constant 0 : index
    %38 = vector.load %arg6[%c0_17, %37, %c0_18, %c0_19] : memref<1x15x2x256xf32, #tpu.memory_space<vmem>>, vector<1x1x2x256xf32>
    %39 = vector.shape_cast %38 : vector<1x1x2x256xf32> to vector<2x256xf32>
    %40 = vector.shape_cast %36 : vector<2x256xf32> to vector<1x1x2x256xf32>
    tpu.vector_store %arg6[%c0_17, %37, %c0_18, %c0_19], %40 {strides = array<i32>} : memref<1x15x2x256xf32, #tpu.memory_space<vmem>>, vector<1x1x2x256xf32>,
    %41 = tpu.concatenate %29, %32 in 1 : vector<2x128xf32>, vector<2x128xf32> -> vector<2x256xf32>
    %c1_i32 = arith.constant 1 : i32
    %c0_20 = arith.constant 0 : index
    %c0_21 = arith.constant 0 : index
    %c0_22 = arith.constant 0 : index
    %42 = vector.load %arg2[%c0_20, %c0_21, %c0_22] : memref<1x256x640xf32, #tpu.memory_space<vmem>>, vector<1x256x640xf32>
    %43 = vector.shape_cast %42 : vector<1x256x640xf32> to vector<256x640xf32>
    %cst_23 = arith.constant dense<0.000000e+00> : vector<2x640xf32>
    %44 = tpu.matmul %41, %43, %cst_23 {dimension_numbers = #tpu.dot_dimension_numbers<[1], [0], [0], [1], [0, 0, 1, 1], [], []>} : vector<2x256xf32>, vector<256x640xf32>, vector<2x640xf32> -> vector<2x640xf32>
    %45 = arith.addf %44, %3 : vector<2x640xf32>
    %c0_24 = arith.constant 0 : index
    %46 = arith.index_cast %c1_i32 : i32 to index
    %c0_25 = arith.constant 0 : index
    %c0_26 = arith.constant 0 : index
    %47 = vector.load %arg1[%c0_24, %46, %c0_25, %c0_26] : memref<1x15x2x512xf32, #tpu.memory_space<vmem>>, vector<1x1x2x512xf32>
    %48 = vector.shape_cast %47 : vector<1x1x2x512xf32> to vector<2x512xf32>
    %49 = vector.extract_strided_slice %45 {offsets = [0, 128], sizes = [2, 512], strides = [1, 1]} : vector<2x640xf32> to vector<2x512xf32>
    %50 = arith.addf %48, %49 : vector<2x512xf32>
    %51 = arith.negf %50 : vector<2x512xf32>
    %52 = math.exp %51 : vector<2x512xf32>
    %cst_27 = arith.constant 1.000000e+00 : f32
    %53 = vector.broadcast %cst_27 : f32 to vector<2x512xf32>
    %54 = arith.addf %53, %52 : vector<2x512xf32>
    %55 = arith.divf %53, %54 : vector<2x512xf32>
    %56 = vector.extract_strided_slice %55 {offsets = [0, 256], sizes = [2, 128], strides = [1, 1]} : vector<2x512xf32> to vector<2x128xf32>
    %57 = vector.extract_strided_slice %45 {offsets = [0, 0], sizes = [2, 128], strides = [1, 1]} : vector<2x640xf32> to vector<2x128xf32>
    %58 = arith.mulf %56, %57 : vector<2x128xf32>
    %59 = vector.extract_strided_slice %55 {offsets = [0, 0], sizes = [2, 128], strides = [1, 1]} : vector<2x512xf32> to vector<2x128xf32>
    %60 = vector.extract_strided_slice %55 {offsets = [0, 128], sizes = [2, 128], strides = [1, 1]} : vector<2x512xf32> to vector<2x128xf32>
    %61 = arith.mulf %59, %60 : vector<2x128xf32>
    %62 = arith.addf %58, %61 : vector<2x128xf32>
    %63 = vector.extract_strided_slice %55 {offsets = [0, 384], sizes = [2, 128], strides = [1, 1]} : vector<2x512xf32> to vector<2x128xf32>
    %64 = math.tanh %62 : vector<2x128xf32>
    %65 = arith.mulf %63, %64 : vector<2x128xf32>
    %c0_28 = arith.constant 0 : index
    %c0_29 = arith.constant 0 : index
    %c0_30 = arith.constant 0 : index
    %66 = vector.load %arg4[%c0_28, %c0_29, %c0_30] : memref<1x128x256xf32, #tpu.memory_space<vmem>>, vector<1x128x256xf32>
    %67 = vector.shape_cast %66 : vector<1x128x256xf32> to vector<128x256xf32>
    %cst_31 = arith.constant dense<0.000000e+00> : vector<2x256xf32>
    %68 = tpu.matmul %65, %67, %cst_31 {dimension_numbers = #tpu.dot_dimension_numbers<[1], [0], [0], [1], [0, 0, 1, 1], [], []>} : vector<2x128xf32>, vector<128x256xf32>, vector<2x256xf32> -> vector<2x256xf32>
    %69 = arith.addf %68, %7 : vector<2x256xf32>
    %c0_32 = arith.constant 0 : index
    %70 = arith.index_cast %c1_i32 : i32 to index
    %c0_33 = arith.constant 0 : index
    %c0_34 = arith.constant 0 : index
    %71 = vector.load %arg6[%c0_32, %70, %c0_33, %c0_34] : memref<1x15x2x256xf32, #tpu.memory_space<vmem>>, vector<1x1x2x256xf32>
    %72 = vector.shape_cast %71 : vector<1x1x2x256xf32> to vector<2x256xf32>
    %73 = vector.shape_cast %69 : vector<2x256xf32> to vector<1x1x2x256xf32>
    tpu.vector_store %arg6[%c0_32, %70, %c0_33, %c0_34], %73 {strides = array<i32>} : memref<1x15x2x256xf32, #tpu.memory_space<vmem>>, vector<1x1x2x256xf32>,
    %74 = tpu.concatenate %62, %65 in 1 : vector<2x128xf32>, vector<2x128xf32> -> vector<2x256xf32>
    %c2_i32 = arith.constant 2 : i32
    %c0_35 = arith.constant 0 : index
    %c0_36 = arith.constant 0 : index
    %c0_37 = arith.constant 0 : index
    %75 = vector.load %arg2[%c0_35, %c0_36, %c0_37] : memref<1x256x640xf32, #tpu.memory_space<vmem>>, vector<1x256x640xf32>
    %76 = vector.shape_cast %75 : vector<1x256x640xf32> to vector<256x640xf32>
    %cst_38 = arith.constant dense<0.000000e+00> : vector<2x640xf32>
    %77 = tpu.matmul %74, %76, %cst_38 {dimension_numbers = #tpu.dot_dimension_numbers<[1], [0], [0], [1], [0, 0, 1, 1], [], []>} : vector<2x256xf32>, vector<256x640xf32>, vector<2x640xf32> -> vector<2x640xf32>
    %78 = arith.addf %77, %3 : vector<2x640xf32>
    %c0_39 = arith.constant 0 : index
    %79 = arith.index_cast %c2_i32 : i32 to index
    %c0_40 = arith.constant 0 : index
    %c0_41 = arith.constant 0 : index
    %80 = vector.load %arg1[%c0_39, %79, %c0_40, %c0_41] : memref<1x15x2x512xf32, #tpu.memory_space<vmem>>, vector<1x1x2x512xf32>
    %81 = vector.shape_cast %80 : vector<1x1x2x512xf32> to vector<2x512xf32>
    %82 = vector.extract_strided_slice %78 {offsets = [0, 128], sizes = [2, 512], strides = [1, 1]} : vector<2x640xf32> to vector<2x512xf32>
    %83 = arith.addf %81, %82 : vector<2x512xf32>
    %84 = arith.negf %83 : vector<2x512xf32>
    %85 = math.exp %84 : vector<2x512xf32>
    %cst_42 = arith.constant 1.000000e+00 : f32
    %86 = vector.broadcast %cst_42 : f32 to vector<2x512xf32>
    %87 = arith.addf %86, %85 : vector<2x512xf32>
    %88 = arith.divf %86, %87 : vector<2x512xf32>
    %89 = vector.extract_strided_slice %88 {offsets = [0, 256], sizes = [2, 128], strides = [1, 1]} : vector<2x512xf32> to vector<2x128xf32>
    %90 = vector.extract_strided_slice %78 {offsets = [0, 0], sizes = [2, 128], strides = [1, 1]} : vector<2x640xf32> to vector<2x128xf32>
    %91 = arith.mulf %89, %90 : vector<2x128xf32>
    %92 = vector.extract_strided_slice %88 {offsets = [0, 0], sizes = [2, 128], strides = [1, 1]} : vector<2x512xf32> to vector<2x128xf32>
    %93 = vector.extract_strided_slice %88 {offsets = [0, 128], sizes = [2, 128], strides = [1, 1]} : vector<2x512xf32> to vector<2x128xf32>
    %94 = arith.mulf %92, %93 : vector<2x128xf32>
    %95 = arith.addf %91, %94 : vector<2x128xf32>
    %96 = vector.extract_strided_slice %88 {offsets = [0, 384], sizes = [2, 128], strides = [1, 1]} : vector<2x512xf32> to vector<2x128xf32>
    %97 = math.tanh %95 : vector<2x128xf32>
    %98 = arith.mulf %96, %97 : vector<2x128xf32>
    %c0_43 = arith.constant 0 : index
    %c0_44 = arith.constant 0 : index
    %c0_45 = arith.constant 0 : index
    %99 = vector.load %arg4[%c0_43, %c0_44, %c0_45] : memref<1x128x256xf32, #tpu.memory_space<vmem>>, vector<1x128x256xf32>
    %100 = vector.shape_cast %99 : vector<1x128x256xf32> to vector<128x256xf32>
    %cst_46 = arith.constant dense<0.000000e+00> : vector<2x256xf32>
    %101 = tpu.matmul %98, %100, %cst_46 {dimension_numbers = #tpu.dot_dimension_numbers<[1], [0], [0], [1], [0, 0, 1, 1], [], []>} : vector<2x128xf32>, vector<128x256xf32>, vector<2x256xf32> -> vector<2x256xf32>
    %102 = arith.addf %101, %7 : vector<2x256xf32>
    %c0_47 = arith.constant 0 : index
    %103 = arith.index_cast %c2_i32 : i32 to index
    %c0_48 = arith.constant 0 : index
    %c0_49 = arith.constant 0 : index
    %104 = vector.load %arg6[%c0_47, %103, %c0_48, %c0_49] : memref<1x15x2x256xf32, #tpu.memory_space<vmem>>, vector<1x1x2x256xf32>
    %105 = vector.shape_cast %104 : vector<1x1x2x256xf32> to vector<2x256xf32>
    %106 = vector.shape_cast %102 : vector<2x256xf32> to vector<1x1x2x256xf32>
    tpu.vector_store %arg6[%c0_47, %103, %c0_48, %c0_49], %106 {strides = array<i32>} : memref<1x15x2x256xf32, #tpu.memory_space<vmem>>, vector<1x1x2x256xf32>,
    %107 = tpu.concatenate %95, %98 in 1 : vector<2x128xf32>, vector<2x128xf32> -> vector<2x256xf32>
    %c3_i32 = arith.constant 3 : i32
    %c0_50 = arith.constant 0 : index
    %c0_51 = arith.constant 0 : index
    %c0_52 = arith.constant 0 : index
    %108 = vector.load %arg2[%c0_50, %c0_51, %c0_52] : memref<1x256x640xf32, #tpu.memory_space<vmem>>, vector<1x256x640xf32>
    %109 = vector.shape_cast %108 : vector<1x256x640xf32> to vector<256x640xf32>
    %cst_53 = arith.constant dense<0.000000e+00> : vector<2x640xf32>
    %110 = tpu.matmul %107, %109, %cst_53 {dimension_numbers = #tpu.dot_dimension_numbers<[1], [0], [0], [1], [0, 0, 1, 1], [], []>} : vector<2x256xf32>, vector<256x640xf32>, vector<2x640xf32> -> vector<2x640xf32>
    %111 = arith.addf %110, %3 : vector<2x640xf32>
    %c0_54 = arith.constant 0 : index
    %112 = arith.index_cast %c3_i32 : i32 to index
    %c0_55 = arith.constant 0 : index
    %c0_56 = arith.constant 0 : index
    %113 = vector.load %arg1[%c0_54, %112, %c0_55, %c0_56] : memref<1x15x2x512xf32, #tpu.memory_space<vmem>>, vector<1x1x2x512xf32>
    %114 = vector.shape_cast %113 : vector<1x1x2x512xf32> to vector<2x512xf32>
    %115 = vector.extract_strided_slice %111 {offsets = [0, 128], sizes = [2, 512], strides = [1, 1]} : vector<2x640xf32> to vector<2x512xf32>
    %116 = arith.addf %114, %115 : vector<2x512xf32>
    %117 = arith.negf %116 : vector<2x512xf32>
    %118 = math.exp %117 : vector<2x512xf32>
    %cst_57 = arith.constant 1.000000e+00 : f32
    %119 = vector.broadcast %cst_57 : f32 to vector<2x512xf32>
    %120 = arith.addf %119, %118 : vector<2x512xf32>
    %121 = arith.divf %119, %120 : vector<2x512xf32>
    %122 = vector.extract_strided_slice %121 {offsets = [0, 256], sizes = [2, 128], strides = [1, 1]} : vector<2x512xf32> to vector<2x128xf32>
    %123 = vector.extract_strided_slice %111 {offsets = [0, 0], sizes = [2, 128], strides = [1, 1]} : vector<2x640xf32> to vector<2x128xf32>
    %124 = arith.mulf %122, %123 : vector<2x128xf32>
    %125 = vector.extract_strided_slice %121 {offsets = [0, 0], sizes = [2, 128], strides = [1, 1]} : vector<2x512xf32> to vector<2x128xf32>
    %126 = vector.extract_strided_slice %121 {offsets = [0, 128], sizes = [2, 128], strides = [1, 1]} : vector<2x512xf32> to vector<2x128xf32>
    %127 = arith.mulf %125, %126 : vector<2x128xf32>
    %128 = arith.addf %124, %127 : vector<2x128xf32>
    %129 = vector.extract_strided_slice %121 {offsets = [0, 384], sizes = [2, 128], strides = [1, 1]} : vector<2x512xf32> to vector<2x128xf32>
    %130 = math.tanh %128 : vector<2x128xf32>
    %131 = arith.mulf %129, %130 : vector<2x128xf32>
    %c0_58 = arith.constant 0 : index
    %c0_59 = arith.constant 0 : index
    %c0_60 = arith.constant 0 : index
    %132 = vector.load %arg4[%c0_58, %c0_59, %c0_60] : memref<1x128x256xf32, #tpu.memory_space<vmem>>, vector<1x128x256xf32>
    %133 = vector.shape_cast %132 : vector<1x128x256xf32> to vector<128x256xf32>
    %cst_61 = arith.constant dense<0.000000e+00> : vector<2x256xf32>
    %134 = tpu.matmul %131, %133, %cst_61 {dimension_numbers = #tpu.dot_dimension_numbers<[1], [0], [0], [1], [0, 0, 1, 1], [], []>} : vector<2x128xf32>, vector<128x256xf32>, vector<2x256xf32> -> vector<2x256xf32>
    %135 = arith.addf %134, %7 : vector<2x256xf32>
    %c0_62 = arith.constant 0 : index
    %136 = arith.index_cast %c3_i32 : i32 to index
    %c0_63 = arith.constant 0 : index
    %c0_64 = arith.constant 0 : index
    %137 = vector.load %arg6[%c0_62, %136, %c0_63, %c0_64] : memref<1x15x2x256xf32, #tpu.memory_space<vmem>>, vector<1x1x2x256xf32>
    %138 = vector.shape_cast %137 : vector<1x1x2x256xf32> to vector<2x256xf32>
    %139 = vector.shape_cast %135 : vector<2x256xf32> to vector<1x1x2x256xf32>
    tpu.vector_store %arg6[%c0_62, %136, %c0_63, %c0_64], %139 {strides = array<i32>} : memref<1x15x2x256xf32, #tpu.memory_space<vmem>>, vector<1x1x2x256xf32>,
    %140 = tpu.concatenate %128, %131 in 1 : vector<2x128xf32>, vector<2x128xf32> -> vector<2x256xf32>
    %c4_i32 = arith.constant 4 : i32
    %c0_65 = arith.constant 0 : index
    %c0_66 = arith.constant 0 : index
    %c0_67 = arith.constant 0 : index
    %141 = vector.load %arg2[%c0_65, %c0_66, %c0_67] : memref<1x256x640xf32, #tpu.memory_space<vmem>>, vector<1x256x640xf32>
    %142 = vector.shape_cast %141 : vector<1x256x640xf32> to vector<256x640xf32>
    %cst_68 = arith.constant dense<0.000000e+00> : vector<2x640xf32>
    %143 = tpu.matmul %140, %142, %cst_68 {dimension_numbers = #tpu.dot_dimension_numbers<[1], [0], [0], [1], [0, 0, 1, 1], [], []>} : vector<2x256xf32>, vector<256x640xf32>, vector<2x640xf32> -> vector<2x640xf32>
    %144 = arith.addf %143, %3 : vector<2x640xf32>
    %c0_69 = arith.constant 0 : index
    %145 = arith.index_cast %c4_i32 : i32 to index
    %c0_70 = arith.constant 0 : index
    %c0_71 = arith.constant 0 : index
    %146 = vector.load %arg1[%c0_69, %145, %c0_70, %c0_71] : memref<1x15x2x512xf32, #tpu.memory_space<vmem>>, vector<1x1x2x512xf32>
    %147 = vector.shape_cast %146 : vector<1x1x2x512xf32> to vector<2x512xf32>
    %148 = vector.extract_strided_slice %144 {offsets = [0, 128], sizes = [2, 512], strides = [1, 1]} : vector<2x640xf32> to vector<2x512xf32>
    %149 = arith.addf %147, %148 : vector<2x512xf32>
    %150 = arith.negf %149 : vector<2x512xf32>
    %151 = math.exp %150 : vector<2x512xf32>
    %cst_72 = arith.constant 1.000000e+00 : f32
    %152 = vector.broadcast %cst_72 : f32 to vector<2x512xf32>
    %153 = arith.addf %152, %151 : vector<2x512xf32>
    %154 = arith.divf %152, %153 : vector<2x512xf32>
    %155 = vector.extract_strided_slice %154 {offsets = [0, 256], sizes = [2, 128], strides = [1, 1]} : vector<2x512xf32> to vector<2x128xf32>
    %156 = vector.extract_strided_slice %144 {offsets = [0, 0], sizes = [2, 128], strides = [1, 1]} : vector<2x640xf32> to vector<2x128xf32>
    %157 = arith.mulf %155, %156 : vector<2x128xf32>
    %158 = vector.extract_strided_slice %154 {offsets = [0, 0], sizes = [2, 128], strides = [1, 1]} : vector<2x512xf32> to vector<2x128xf32>
    %159 = vector.extract_strided_slice %154 {offsets = [0, 128], sizes = [2, 128], strides = [1, 1]} : vector<2x512xf32> to vector<2x128xf32>
    %160 = arith.mulf %158, %159 : vector<2x128xf32>
    %161 = arith.addf %157, %160 : vector<2x128xf32>
    %162 = vector.extract_strided_slice %154 {offsets = [0, 384], sizes = [2, 128], strides = [1, 1]} : vector<2x512xf32> to vector<2x128xf32>
    %163 = math.tanh %161 : vector<2x128xf32>
    %164 = arith.mulf %162, %163 : vector<2x128xf32>
    %c0_73 = arith.constant 0 : index
    %c0_74 = arith.constant 0 : index
    %c0_75 = arith.constant 0 : index
    %165 = vector.load %arg4[%c0_73, %c0_74, %c0_75] : memref<1x128x256xf32, #tpu.memory_space<vmem>>, vector<1x128x256xf32>
    %166 = vector.shape_cast %165 : vector<1x128x256xf32> to vector<128x256xf32>
    %cst_76 = arith.constant dense<0.000000e+00> : vector<2x256xf32>
    %167 = tpu.matmul %164, %166, %cst_76 {dimension_numbers = #tpu.dot_dimension_numbers<[1], [0], [0], [1], [0, 0, 1, 1], [], []>} : vector<2x128xf32>, vector<128x256xf32>, vector<2x256xf32> -> vector<2x256xf32>
    %168 = arith.addf %167, %7 : vector<2x256xf32>
    %c0_77 = arith.constant 0 : index
    %169 = arith.index_cast %c4_i32 : i32 to index
    %c0_78 = arith.constant 0 : index
    %c0_79 = arith.constant 0 : index
    %170 = vector.load %arg6[%c0_77, %169, %c0_78, %c0_79] : memref<1x15x2x256xf32, #tpu.memory_space<vmem>>, vector<1x1x2x256xf32>
    %171 = vector.shape_cast %170 : vector<1x1x2x256xf32> to vector<2x256xf32>
    %172 = vector.shape_cast %168 : vector<2x256xf32> to vector<1x1x2x256xf32>
    tpu.vector_store %arg6[%c0_77, %169, %c0_78, %c0_79], %172 {strides = array<i32>} : memref<1x15x2x256xf32, #tpu.memory_space<vmem>>, vector<1x1x2x256xf32>,
    %173 = tpu.concatenate %161, %164 in 1 : vector<2x128xf32>, vector<2x128xf32> -> vector<2x256xf32>
    %c5_i32 = arith.constant 5 : i32
    %c0_80 = arith.constant 0 : index
    %c0_81 = arith.constant 0 : index
    %c0_82 = arith.constant 0 : index
    %174 = vector.load %arg2[%c0_80, %c0_81, %c0_82] : memref<1x256x640xf32, #tpu.memory_space<vmem>>, vector<1x256x640xf32>
    %175 = vector.shape_cast %174 : vector<1x256x640xf32> to vector<256x640xf32>
    %cst_83 = arith.constant dense<0.000000e+00> : vector<2x640xf32>
    %176 = tpu.matmul %173, %175, %cst_83 {dimension_numbers = #tpu.dot_dimension_numbers<[1], [0], [0], [1], [0, 0, 1, 1], [], []>} : vector<2x256xf32>, vector<256x640xf32>, vector<2x640xf32> -> vector<2x640xf32>
    %177 = arith.addf %176, %3 : vector<2x640xf32>
    %c0_84 = arith.constant 0 : index
    %178 = arith.index_cast %c5_i32 : i32 to index
    %c0_85 = arith.constant 0 : index
    %c0_86 = arith.constant 0 : index
    %179 = vector.load %arg1[%c0_84, %178, %c0_85, %c0_86] : memref<1x15x2x512xf32, #tpu.memory_space<vmem>>, vector<1x1x2x512xf32>
    %180 = vector.shape_cast %179 : vector<1x1x2x512xf32> to vector<2x512xf32>
    %181 = vector.extract_strided_slice %177 {offsets = [0, 128], sizes = [2, 512], strides = [1, 1]} : vector<2x640xf32> to vector<2x512xf32>
    %182 = arith.addf %180, %181 : vector<2x512xf32>
    %183 = arith.negf %182 : vector<2x512xf32>
    %184 = math.exp %183 : vector<2x512xf32>
    %cst_87 = arith.constant 1.000000e+00 : f32
    %185 = vector.broadcast %cst_87 : f32 to vector<2x512xf32>
    %186 = arith.addf %185, %184 : vector<2x512xf32>
    %187 = arith.divf %185, %186 : vector<2x512xf32>
    %188 = vector.extract_strided_slice %187 {offsets = [0, 256], sizes = [2, 128], strides = [1, 1]} : vector<2x512xf32> to vector<2x128xf32>
    %189 = vector.extract_strided_slice %177 {offsets = [0, 0], sizes = [2, 128], strides = [1, 1]} : vector<2x640xf32> to vector<2x128xf32>
    %190 = arith.mulf %188, %189 : vector<2x128xf32>
    %191 = vector.extract_strided_slice %187 {offsets = [0, 0], sizes = [2, 128], strides = [1, 1]} : vector<2x512xf32> to vector<2x128xf32>
    %192 = vector.extract_strided_slice %187 {offsets = [0, 128], sizes = [2, 128], strides = [1, 1]} : vector<2x512xf32> to vector<2x128xf32>
    %193 = arith.mulf %191, %192 : vector<2x128xf32>
    %194 = arith.addf %190, %193 : vector<2x128xf32>
    %195 = vector.extract_strided_slice %187 {offsets = [0, 384], sizes = [2, 128], strides = [1, 1]} : vector<2x512xf32> to vector<2x128xf32>
    %196 = math.tanh %194 : vector<2x128xf32>
    %197 = arith.mulf %195, %196 : vector<2x128xf32>
    %c0_88 = arith.constant 0 : index
    %c0_89 = arith.constant 0 : index
    %c0_90 = arith.constant 0 : index
    %198 = vector.load %arg4[%c0_88, %c0_89, %c0_90] : memref<1x128x256xf32, #tpu.memory_space<vmem>>, vector<1x128x256xf32>
    %199 = vector.shape_cast %198 : vector<1x128x256xf32> to vector<128x256xf32>
    %cst_91 = arith.constant dense<0.000000e+00> : vector<2x256xf32>
    %200 = tpu.matmul %197, %199, %cst_91 {dimension_numbers = #tpu.dot_dimension_numbers<[1], [0], [0], [1], [0, 0, 1, 1], [], []>} : vector<2x128xf32>, vector<128x256xf32>, vector<2x256xf32> -> vector<2x256xf32>
    %201 = arith.addf %200, %7 : vector<2x256xf32>
    %c0_92 = arith.constant 0 : index
    %202 = arith.index_cast %c5_i32 : i32 to index
    %c0_93 = arith.constant 0 : index
    %c0_94 = arith.constant 0 : index
    %203 = vector.load %arg6[%c0_92, %202, %c0_93, %c0_94] : memref<1x15x2x256xf32, #tpu.memory_space<vmem>>, vector<1x1x2x256xf32>
    %204 = vector.shape_cast %203 : vector<1x1x2x256xf32> to vector<2x256xf32>
    %205 = vector.shape_cast %201 : vector<2x256xf32> to vector<1x1x2x256xf32>
    tpu.vector_store %arg6[%c0_92, %202, %c0_93, %c0_94], %205 {strides = array<i32>} : memref<1x15x2x256xf32, #tpu.memory_space<vmem>>, vector<1x1x2x256xf32>,
    %206 = tpu.concatenate %194, %197 in 1 : vector<2x128xf32>, vector<2x128xf32> -> vector<2x256xf32>
    %c6_i32 = arith.constant 6 : i32
    %c0_95 = arith.constant 0 : index
    %c0_96 = arith.constant 0 : index
    %c0_97 = arith.constant 0 : index
    %207 = vector.load %arg2[%c0_95, %c0_96, %c0_97] : memref<1x256x640xf32, #tpu.memory_space<vmem>>, vector<1x256x640xf32>
    %208 = vector.shape_cast %207 : vector<1x256x640xf32> to vector<256x640xf32>
    %cst_98 = arith.constant dense<0.000000e+00> : vector<2x640xf32>
    %209 = tpu.matmul %206, %208, %cst_98 {dimension_numbers = #tpu.dot_dimension_numbers<[1], [0], [0], [1], [0, 0, 1, 1], [], []>} : vector<2x256xf32>, vector<256x640xf32>, vector<2x640xf32> -> vector<2x640xf32>
    %210 = arith.addf %209, %3 : vector<2x640xf32>
    %c0_99 = arith.constant 0 : index
    %211 = arith.index_cast %c6_i32 : i32 to index
    %c0_100 = arith.constant 0 : index
    %c0_101 = arith.constant 0 : index
    %212 = vector.load %arg1[%c0_99, %211, %c0_100, %c0_101] : memref<1x15x2x512xf32, #tpu.memory_space<vmem>>, vector<1x1x2x512xf32>
    %213 = vector.shape_cast %212 : vector<1x1x2x512xf32> to vector<2x512xf32>
    %214 = vector.extract_strided_slice %210 {offsets = [0, 128], sizes = [2, 512], strides = [1, 1]} : vector<2x640xf32> to vector<2x512xf32>
    %215 = arith.addf %213, %214 : vector<2x512xf32>
    %216 = arith.negf %215 : vector<2x512xf32>
    %217 = math.exp %216 : vector<2x512xf32>
    %cst_102 = arith.constant 1.000000e+00 : f32
    %218 = vector.broadcast %cst_102 : f32 to vector<2x512xf32>
    %219 = arith.addf %218, %217 : vector<2x512xf32>
    %220 = arith.divf %218, %219 : vector<2x512xf32>
    %221 = vector.extract_strided_slice %220 {offsets = [0, 256], sizes = [2, 128], strides = [1, 1]} : vector<2x512xf32> to vector<2x128xf32>
    %222 = vector.extract_strided_slice %210 {offsets = [0, 0], sizes = [2, 128], strides = [1, 1]} : vector<2x640xf32> to vector<2x128xf32>
    %223 = arith.mulf %221, %222 : vector<2x128xf32>
    %224 = vector.extract_strided_slice %220 {offsets = [0, 0], sizes = [2, 128], strides = [1, 1]} : vector<2x512xf32> to vector<2x128xf32>
    %225 = vector.extract_strided_slice %220 {offsets = [0, 128], sizes = [2, 128], strides = [1, 1]} : vector<2x512xf32> to vector<2x128xf32>
    %226 = arith.mulf %224, %225 : vector<2x128xf32>
    %227 = arith.addf %223, %226 : vector<2x128xf32>
    %228 = vector.extract_strided_slice %220 {offsets = [0, 384], sizes = [2, 128], strides = [1, 1]} : vector<2x512xf32> to vector<2x128xf32>
    %229 = math.tanh %227 : vector<2x128xf32>
    %230 = arith.mulf %228, %229 : vector<2x128xf32>
    %c0_103 = arith.constant 0 : index
    %c0_104 = arith.constant 0 : index
    %c0_105 = arith.constant 0 : index
    %231 = vector.load %arg4[%c0_103, %c0_104, %c0_105] : memref<1x128x256xf32, #tpu.memory_space<vmem>>, vector<1x128x256xf32>
    %232 = vector.shape_cast %231 : vector<1x128x256xf32> to vector<128x256xf32>
    %cst_106 = arith.constant dense<0.000000e+00> : vector<2x256xf32>
    %233 = tpu.matmul %230, %232, %cst_106 {dimension_numbers = #tpu.dot_dimension_numbers<[1], [0], [0], [1], [0, 0, 1, 1], [], []>} : vector<2x128xf32>, vector<128x256xf32>, vector<2x256xf32> -> vector<2x256xf32>
    %234 = arith.addf %233, %7 : vector<2x256xf32>
    %c0_107 = arith.constant 0 : index
    %235 = arith.index_cast %c6_i32 : i32 to index
    %c0_108 = arith.constant 0 : index
    %c0_109 = arith.constant 0 : index
    %236 = vector.load %arg6[%c0_107, %235, %c0_108, %c0_109] : memref<1x15x2x256xf32, #tpu.memory_space<vmem>>, vector<1x1x2x256xf32>
    %237 = vector.shape_cast %236 : vector<1x1x2x256xf32> to vector<2x256xf32>
    %238 = vector.shape_cast %234 : vector<2x256xf32> to vector<1x1x2x256xf32>
    tpu.vector_store %arg6[%c0_107, %235, %c0_108, %c0_109], %238 {strides = array<i32>} : memref<1x15x2x256xf32, #tpu.memory_space<vmem>>, vector<1x1x2x256xf32>,
    %239 = tpu.concatenate %227, %230 in 1 : vector<2x128xf32>, vector<2x128xf32> -> vector<2x256xf32>
    %c7_i32 = arith.constant 7 : i32
    %c0_110 = arith.constant 0 : index
    %c0_111 = arith.constant 0 : index
    %c0_112 = arith.constant 0 : index
    %240 = vector.load %arg2[%c0_110, %c0_111, %c0_112] : memref<1x256x640xf32, #tpu.memory_space<vmem>>, vector<1x256x640xf32>
    %241 = vector.shape_cast %240 : vector<1x256x640xf32> to vector<256x640xf32>
    %cst_113 = arith.constant dense<0.000000e+00> : vector<2x640xf32>
    %242 = tpu.matmul %239, %241, %cst_113 {dimension_numbers = #tpu.dot_dimension_numbers<[1], [0], [0], [1], [0, 0, 1, 1], [], []>} : vector<2x256xf32>, vector<256x640xf32>, vector<2x640xf32> -> vector<2x640xf32>
    %243 = arith.addf %242, %3 : vector<2x640xf32>
    %c0_114 = arith.constant 0 : index
    %244 = arith.index_cast %c7_i32 : i32 to index
    %c0_115 = arith.constant 0 : index
    %c0_116 = arith.constant 0 : index
    %245 = vector.load %arg1[%c0_114, %244, %c0_115, %c0_116] : memref<1x15x2x512xf32, #tpu.memory_space<vmem>>, vector<1x1x2x512xf32>
    %246 = vector.shape_cast %245 : vector<1x1x2x512xf32> to vector<2x512xf32>
    %247 = vector.extract_strided_slice %243 {offsets = [0, 128], sizes = [2, 512], strides = [1, 1]} : vector<2x640xf32> to vector<2x512xf32>
    %248 = arith.addf %246, %247 : vector<2x512xf32>
    %249 = arith.negf %248 : vector<2x512xf32>
    %250 = math.exp %249 : vector<2x512xf32>
    %cst_117 = arith.constant 1.000000e+00 : f32
    %251 = vector.broadcast %cst_117 : f32 to vector<2x512xf32>
    %252 = arith.addf %251, %250 : vector<2x512xf32>
    %253 = arith.divf %251, %252 : vector<2x512xf32>
    %254 = vector.extract_strided_slice %253 {offsets = [0, 256], sizes = [2, 128], strides = [1, 1]} : vector<2x512xf32> to vector<2x128xf32>
    %255 = vector.extract_strided_slice %243 {offsets = [0, 0], sizes = [2, 128], strides = [1, 1]} : vector<2x640xf32> to vector<2x128xf32>
    %256 = arith.mulf %254, %255 : vector<2x128xf32>
    %257 = vector.extract_strided_slice %253 {offsets = [0, 0], sizes = [2, 128], strides = [1, 1]} : vector<2x512xf32> to vector<2x128xf32>
    %258 = vector.extract_strided_slice %253 {offsets = [0, 128], sizes = [2, 128], strides = [1, 1]} : vector<2x512xf32> to vector<2x128xf32>
    %259 = arith.mulf %257, %258 : vector<2x128xf32>
    %260 = arith.addf %256, %259 : vector<2x128xf32>
    %261 = vector.extract_strided_slice %253 {offsets = [0, 384], sizes = [2, 128], strides = [1, 1]} : vector<2x512xf32> to vector<2x128xf32>
    %262 = math.tanh %260 : vector<2x128xf32>
    %263 = arith.mulf %261, %262 : vector<2x128xf32>
    %c0_118 = arith.constant 0 : index
    %c0_119 = arith.constant 0 : index
    %c0_120 = arith.constant 0 : index
    %264 = vector.load %arg4[%c0_118, %c0_119, %c0_120] : memref<1x128x256xf32, #tpu.memory_space<vmem>>, vector<1x128x256xf32>
    %265 = vector.shape_cast %264 : vector<1x128x256xf32> to vector<128x256xf32>
    %cst_121 = arith.constant dense<0.000000e+00> : vector<2x256xf32>
    %266 = tpu.matmul %263, %265, %cst_121 {dimension_numbers = #tpu.dot_dimension_numbers<[1], [0], [0], [1], [0, 0, 1, 1], [], []>} : vector<2x128xf32>, vector<128x256xf32>, vector<2x256xf32> -> vector<2x256xf32>
    %267 = arith.addf %266, %7 : vector<2x256xf32>
    %c0_122 = arith.constant 0 : index
    %268 = arith.index_cast %c7_i32 : i32 to index
    %c0_123 = arith.constant 0 : index
    %c0_124 = arith.constant 0 : index
    %269 = vector.load %arg6[%c0_122, %268, %c0_123, %c0_124] : memref<1x15x2x256xf32, #tpu.memory_space<vmem>>, vector<1x1x2x256xf32>
    %270 = vector.shape_cast %269 : vector<1x1x2x256xf32> to vector<2x256xf32>
    %271 = vector.shape_cast %267 : vector<2x256xf32> to vector<1x1x2x256xf32>
    tpu.vector_store %arg6[%c0_122, %268, %c0_123, %c0_124], %271 {strides = array<i32>} : memref<1x15x2x256xf32, #tpu.memory_space<vmem>>, vector<1x1x2x256xf32>,
    %272 = tpu.concatenate %260, %263 in 1 : vector<2x128xf32>, vector<2x128xf32> -> vector<2x256xf32>
    %c8_i32 = arith.constant 8 : i32
    %c0_125 = arith.constant 0 : index
    %c0_126 = arith.constant 0 : index
    %c0_127 = arith.constant 0 : index
    %273 = vector.load %arg2[%c0_125, %c0_126, %c0_127] : memref<1x256x640xf32, #tpu.memory_space<vmem>>, vector<1x256x640xf32>
    %274 = vector.shape_cast %273 : vector<1x256x640xf32> to vector<256x640xf32>
    %cst_128 = arith.constant dense<0.000000e+00> : vector<2x640xf32>
    %275 = tpu.matmul %272, %274, %cst_128 {dimension_numbers = #tpu.dot_dimension_numbers<[1], [0], [0], [1], [0, 0, 1, 1], [], []>} : vector<2x256xf32>, vector<256x640xf32>, vector<2x640xf32> -> vector<2x640xf32>
    %276 = arith.addf %275, %3 : vector<2x640xf32>
    %c0_129 = arith.constant 0 : index
    %277 = arith.index_cast %c8_i32 : i32 to index
    %c0_130 = arith.constant 0 : index
    %c0_131 = arith.constant 0 : index
    %278 = vector.load %arg1[%c0_129, %277, %c0_130, %c0_131] : memref<1x15x2x512xf32, #tpu.memory_space<vmem>>, vector<1x1x2x512xf32>
    %279 = vector.shape_cast %278 : vector<1x1x2x512xf32> to vector<2x512xf32>
    %280 = vector.extract_strided_slice %276 {offsets = [0, 128], sizes = [2, 512], strides = [1, 1]} : vector<2x640xf32> to vector<2x512xf32>
    %281 = arith.addf %279, %280 : vector<2x512xf32>
    %282 = arith.negf %281 : vector<2x512xf32>
    %283 = math.exp %282 : vector<2x512xf32>
    %cst_132 = arith.constant 1.000000e+00 : f32
    %284 = vector.broadcast %cst_132 : f32 to vector<2x512xf32>
    %285 = arith.addf %284, %283 : vector<2x512xf32>
    %286 = arith.divf %284, %285 : vector<2x512xf32>
    %287 = vector.extract_strided_slice %286 {offsets = [0, 256], sizes = [2, 128], strides = [1, 1]} : vector<2x512xf32> to vector<2x128xf32>
    %288 = vector.extract_strided_slice %276 {offsets = [0, 0], sizes = [2, 128], strides = [1, 1]} : vector<2x640xf32> to vector<2x128xf32>
    %289 = arith.mulf %287, %288 : vector<2x128xf32>
    %290 = vector.extract_strided_slice %286 {offsets = [0, 0], sizes = [2, 128], strides = [1, 1]} : vector<2x512xf32> to vector<2x128xf32>
    %291 = vector.extract_strided_slice %286 {offsets = [0, 128], sizes = [2, 128], strides = [1, 1]} : vector<2x512xf32> to vector<2x128xf32>
    %292 = arith.mulf %290, %291 : vector<2x128xf32>
    %293 = arith.addf %289, %292 : vector<2x128xf32>
    %294 = vector.extract_strided_slice %286 {offsets = [0, 384], sizes = [2, 128], strides = [1, 1]} : vector<2x512xf32> to vector<2x128xf32>
    %295 = math.tanh %293 : vector<2x128xf32>
    %296 = arith.mulf %294, %295 : vector<2x128xf32>
    %c0_133 = arith.constant 0 : index
    %c0_134 = arith.constant 0 : index
    %c0_135 = arith.constant 0 : index
    %297 = vector.load %arg4[%c0_133, %c0_134, %c0_135] : memref<1x128x256xf32, #tpu.memory_space<vmem>>, vector<1x128x256xf32>
    %298 = vector.shape_cast %297 : vector<1x128x256xf32> to vector<128x256xf32>
    %cst_136 = arith.constant dense<0.000000e+00> : vector<2x256xf32>
    %299 = tpu.matmul %296, %298, %cst_136 {dimension_numbers = #tpu.dot_dimension_numbers<[1], [0], [0], [1], [0, 0, 1, 1], [], []>} : vector<2x128xf32>, vector<128x256xf32>, vector<2x256xf32> -> vector<2x256xf32>
    %300 = arith.addf %299, %7 : vector<2x256xf32>
    %c0_137 = arith.constant 0 : index
    %301 = arith.index_cast %c8_i32 : i32 to index
    %c0_138 = arith.constant 0 : index
    %c0_139 = arith.constant 0 : index
    %302 = vector.load %arg6[%c0_137, %301, %c0_138, %c0_139] : memref<1x15x2x256xf32, #tpu.memory_space<vmem>>, vector<1x1x2x256xf32>
    %303 = vector.shape_cast %302 : vector<1x1x2x256xf32> to vector<2x256xf32>
    %304 = vector.shape_cast %300 : vector<2x256xf32> to vector<1x1x2x256xf32>
    tpu.vector_store %arg6[%c0_137, %301, %c0_138, %c0_139], %304 {strides = array<i32>} : memref<1x15x2x256xf32, #tpu.memory_space<vmem>>, vector<1x1x2x256xf32>,
    %305 = tpu.concatenate %293, %296 in 1 : vector<2x128xf32>, vector<2x128xf32> -> vector<2x256xf32>
    %c9_i32 = arith.constant 9 : i32
    %c0_140 = arith.constant 0 : index
    %c0_141 = arith.constant 0 : index
    %c0_142 = arith.constant 0 : index
    %306 = vector.load %arg2[%c0_140, %c0_141, %c0_142] : memref<1x256x640xf32, #tpu.memory_space<vmem>>, vector<1x256x640xf32>
    %307 = vector.shape_cast %306 : vector<1x256x640xf32> to vector<256x640xf32>
    %cst_143 = arith.constant dense<0.000000e+00> : vector<2x640xf32>
    %308 = tpu.matmul %305, %307, %cst_143 {dimension_numbers = #tpu.dot_dimension_numbers<[1], [0], [0], [1], [0, 0, 1, 1], [], []>} : vector<2x256xf32>, vector<256x640xf32>, vector<2x640xf32> -> vector<2x640xf32>
    %309 = arith.addf %308, %3 : vector<2x640xf32>
    %c0_144 = arith.constant 0 : index
    %310 = arith.index_cast %c9_i32 : i32 to index
    %c0_145 = arith.constant 0 : index
    %c0_146 = arith.constant 0 : index
    %311 = vector.load %arg1[%c0_144, %310, %c0_145, %c0_146] : memref<1x15x2x512xf32, #tpu.memory_space<vmem>>, vector<1x1x2x512xf32>
    %312 = vector.shape_cast %311 : vector<1x1x2x512xf32> to vector<2x512xf32>
    %313 = vector.extract_strided_slice %309 {offsets = [0, 128], sizes = [2, 512], strides = [1, 1]} : vector<2x640xf32> to vector<2x512xf32>
    %314 = arith.addf %312, %313 : vector<2x512xf32>
    %315 = arith.negf %314 : vector<2x512xf32>
    %316 = math.exp %315 : vector<2x512xf32>
    %cst_147 = arith.constant 1.000000e+00 : f32
    %317 = vector.broadcast %cst_147 : f32 to vector<2x512xf32>
    %318 = arith.addf %317, %316 : vector<2x512xf32>
    %319 = arith.divf %317, %318 : vector<2x512xf32>
    %320 = vector.extract_strided_slice %319 {offsets = [0, 256], sizes = [2, 128], strides = [1, 1]} : vector<2x512xf32> to vector<2x128xf32>
    %321 = vector.extract_strided_slice %309 {offsets = [0, 0], sizes = [2, 128], strides = [1, 1]} : vector<2x640xf32> to vector<2x128xf32>
    %322 = arith.mulf %320, %321 : vector<2x128xf32>
    %323 = vector.extract_strided_slice %319 {offsets = [0, 0], sizes = [2, 128], strides = [1, 1]} : vector<2x512xf32> to vector<2x128xf32>
    %324 = vector.extract_strided_slice %319 {offsets = [0, 128], sizes = [2, 128], strides = [1, 1]} : vector<2x512xf32> to vector<2x128xf32>
    %325 = arith.mulf %323, %324 : vector<2x128xf32>
    %326 = arith.addf %322, %325 : vector<2x128xf32>
    %327 = vector.extract_strided_slice %319 {offsets = [0, 384], sizes = [2, 128], strides = [1, 1]} : vector<2x512xf32> to vector<2x128xf32>
    %328 = math.tanh %326 : vector<2x128xf32>
    %329 = arith.mulf %327, %328 : vector<2x128xf32>
    %c0_148 = arith.constant 0 : index
    %c0_149 = arith.constant 0 : index
    %c0_150 = arith.constant 0 : index
    %330 = vector.load %arg4[%c0_148, %c0_149, %c0_150] : memref<1x128x256xf32, #tpu.memory_space<vmem>>, vector<1x128x256xf32>
    %331 = vector.shape_cast %330 : vector<1x128x256xf32> to vector<128x256xf32>
    %cst_151 = arith.constant dense<0.000000e+00> : vector<2x256xf32>
    %332 = tpu.matmul %329, %331, %cst_151 {dimension_numbers = #tpu.dot_dimension_numbers<[1], [0], [0], [1], [0, 0, 1, 1], [], []>} : vector<2x128xf32>, vector<128x256xf32>, vector<2x256xf32> -> vector<2x256xf32>
    %333 = arith.addf %332, %7 : vector<2x256xf32>
    %c0_152 = arith.constant 0 : index
    %334 = arith.index_cast %c9_i32 : i32 to index
    %c0_153 = arith.constant 0 : index
    %c0_154 = arith.constant 0 : index
    %335 = vector.load %arg6[%c0_152, %334, %c0_153, %c0_154] : memref<1x15x2x256xf32, #tpu.memory_space<vmem>>, vector<1x1x2x256xf32>
    %336 = vector.shape_cast %335 : vector<1x1x2x256xf32> to vector<2x256xf32>
    %337 = vector.shape_cast %333 : vector<2x256xf32> to vector<1x1x2x256xf32>
    tpu.vector_store %arg6[%c0_152, %334, %c0_153, %c0_154], %337 {strides = array<i32>} : memref<1x15x2x256xf32, #tpu.memory_space<vmem>>, vector<1x1x2x256xf32>,
    %338 = tpu.concatenate %326, %329 in 1 : vector<2x128xf32>, vector<2x128xf32> -> vector<2x256xf32>
    %c10_i32 = arith.constant 10 : i32
    %c0_155 = arith.constant 0 : index
    %c0_156 = arith.constant 0 : index
    %c0_157 = arith.constant 0 : index
    %339 = vector.load %arg2[%c0_155, %c0_156, %c0_157] : memref<1x256x640xf32, #tpu.memory_space<vmem>>, vector<1x256x640xf32>
    %340 = vector.shape_cast %339 : vector<1x256x640xf32> to vector<256x640xf32>
    %cst_158 = arith.constant dense<0.000000e+00> : vector<2x640xf32>
    %341 = tpu.matmul %338, %340, %cst_158 {dimension_numbers = #tpu.dot_dimension_numbers<[1], [0], [0], [1], [0, 0, 1, 1], [], []>} : vector<2x256xf32>, vector<256x640xf32>, vector<2x640xf32> -> vector<2x640xf32>
    %342 = arith.addf %341, %3 : vector<2x640xf32>
    %c0_159 = arith.constant 0 : index
    %343 = arith.index_cast %c10_i32 : i32 to index
    %c0_160 = arith.constant 0 : index
    %c0_161 = arith.constant 0 : index
    %344 = vector.load %arg1[%c0_159, %343, %c0_160, %c0_161] : memref<1x15x2x512xf32, #tpu.memory_space<vmem>>, vector<1x1x2x512xf32>
    %345 = vector.shape_cast %344 : vector<1x1x2x512xf32> to vector<2x512xf32>
    %346 = vector.extract_strided_slice %342 {offsets = [0, 128], sizes = [2, 512], strides = [1, 1]} : vector<2x640xf32> to vector<2x512xf32>
    %347 = arith.addf %345, %346 : vector<2x512xf32>
    %348 = arith.negf %347 : vector<2x512xf32>
    %349 = math.exp %348 : vector<2x512xf32>
    %cst_162 = arith.constant 1.000000e+00 : f32
    %350 = vector.broadcast %cst_162 : f32 to vector<2x512xf32>
    %351 = arith.addf %350, %349 : vector<2x512xf32>
    %352 = arith.divf %350, %351 : vector<2x512xf32>
    %353 = vector.extract_strided_slice %352 {offsets = [0, 256], sizes = [2, 128], strides = [1, 1]} : vector<2x512xf32> to vector<2x128xf32>
    %354 = vector.extract_strided_slice %342 {offsets = [0, 0], sizes = [2, 128], strides = [1, 1]} : vector<2x640xf32> to vector<2x128xf32>
    %355 = arith.mulf %353, %354 : vector<2x128xf32>
    %356 = vector.extract_strided_slice %352 {offsets = [0, 0], sizes = [2, 128], strides = [1, 1]} : vector<2x512xf32> to vector<2x128xf32>
    %357 = vector.extract_strided_slice %352 {offsets = [0, 128], sizes = [2, 128], strides = [1, 1]} : vector<2x512xf32> to vector<2x128xf32>
    %358 = arith.mulf %356, %357 : vector<2x128xf32>
    %359 = arith.addf %355, %358 : vector<2x128xf32>
    %360 = vector.extract_strided_slice %352 {offsets = [0, 384], sizes = [2, 128], strides = [1, 1]} : vector<2x512xf32> to vector<2x128xf32>
    %361 = math.tanh %359 : vector<2x128xf32>
    %362 = arith.mulf %360, %361 : vector<2x128xf32>
    %c0_163 = arith.constant 0 : index
    %c0_164 = arith.constant 0 : index
    %c0_165 = arith.constant 0 : index
    %363 = vector.load %arg4[%c0_163, %c0_164, %c0_165] : memref<1x128x256xf32, #tpu.memory_space<vmem>>, vector<1x128x256xf32>
    %364 = vector.shape_cast %363 : vector<1x128x256xf32> to vector<128x256xf32>
    %cst_166 = arith.constant dense<0.000000e+00> : vector<2x256xf32>
    %365 = tpu.matmul %362, %364, %cst_166 {dimension_numbers = #tpu.dot_dimension_numbers<[1], [0], [0], [1], [0, 0, 1, 1], [], []>} : vector<2x128xf32>, vector<128x256xf32>, vector<2x256xf32> -> vector<2x256xf32>
    %366 = arith.addf %365, %7 : vector<2x256xf32>
    %c0_167 = arith.constant 0 : index
    %367 = arith.index_cast %c10_i32 : i32 to index
    %c0_168 = arith.constant 0 : index
    %c0_169 = arith.constant 0 : index
    %368 = vector.load %arg6[%c0_167, %367, %c0_168, %c0_169] : memref<1x15x2x256xf32, #tpu.memory_space<vmem>>, vector<1x1x2x256xf32>
    %369 = vector.shape_cast %368 : vector<1x1x2x256xf32> to vector<2x256xf32>
    %370 = vector.shape_cast %366 : vector<2x256xf32> to vector<1x1x2x256xf32>
    tpu.vector_store %arg6[%c0_167, %367, %c0_168, %c0_169], %370 {strides = array<i32>} : memref<1x15x2x256xf32, #tpu.memory_space<vmem>>, vector<1x1x2x256xf32>,
    %371 = tpu.concatenate %359, %362 in 1 : vector<2x128xf32>, vector<2x128xf32> -> vector<2x256xf32>
    %c11_i32 = arith.constant 11 : i32
    %c0_170 = arith.constant 0 : index
    %c0_171 = arith.constant 0 : index
    %c0_172 = arith.constant 0 : index
    %372 = vector.load %arg2[%c0_170, %c0_171, %c0_172] : memref<1x256x640xf32, #tpu.memory_space<vmem>>, vector<1x256x640xf32>
    %373 = vector.shape_cast %372 : vector<1x256x640xf32> to vector<256x640xf32>
    %cst_173 = arith.constant dense<0.000000e+00> : vector<2x640xf32>
    %374 = tpu.matmul %371, %373, %cst_173 {dimension_numbers = #tpu.dot_dimension_numbers<[1], [0], [0], [1], [0, 0, 1, 1], [], []>} : vector<2x256xf32>, vector<256x640xf32>, vector<2x640xf32> -> vector<2x640xf32>
    %375 = arith.addf %374, %3 : vector<2x640xf32>
    %c0_174 = arith.constant 0 : index
    %376 = arith.index_cast %c11_i32 : i32 to index
    %c0_175 = arith.constant 0 : index
    %c0_176 = arith.constant 0 : index
    %377 = vector.load %arg1[%c0_174, %376, %c0_175, %c0_176] : memref<1x15x2x512xf32, #tpu.memory_space<vmem>>, vector<1x1x2x512xf32>
    %378 = vector.shape_cast %377 : vector<1x1x2x512xf32> to vector<2x512xf32>
    %379 = vector.extract_strided_slice %375 {offsets = [0, 128], sizes = [2, 512], strides = [1, 1]} : vector<2x640xf32> to vector<2x512xf32>
    %380 = arith.addf %378, %379 : vector<2x512xf32>
    %381 = arith.negf %380 : vector<2x512xf32>
    %382 = math.exp %381 : vector<2x512xf32>
    %cst_177 = arith.constant 1.000000e+00 : f32
    %383 = vector.broadcast %cst_177 : f32 to vector<2x512xf32>
    %384 = arith.addf %383, %382 : vector<2x512xf32>
    %385 = arith.divf %383, %384 : vector<2x512xf32>
    %386 = vector.extract_strided_slice %385 {offsets = [0, 256], sizes = [2, 128], strides = [1, 1]} : vector<2x512xf32> to vector<2x128xf32>
    %387 = vector.extract_strided_slice %375 {offsets = [0, 0], sizes = [2, 128], strides = [1, 1]} : vector<2x640xf32> to vector<2x128xf32>
    %388 = arith.mulf %386, %387 : vector<2x128xf32>
    %389 = vector.extract_strided_slice %385 {offsets = [0, 0], sizes = [2, 128], strides = [1, 1]} : vector<2x512xf32> to vector<2x128xf32>
    %390 = vector.extract_strided_slice %385 {offsets = [0, 128], sizes = [2, 128], strides = [1, 1]} : vector<2x512xf32> to vector<2x128xf32>
    %391 = arith.mulf %389, %390 : vector<2x128xf32>
    %392 = arith.addf %388, %391 : vector<2x128xf32>
    %393 = vector.extract_strided_slice %385 {offsets = [0, 384], sizes = [2, 128], strides = [1, 1]} : vector<2x512xf32> to vector<2x128xf32>
    %394 = math.tanh %392 : vector<2x128xf32>
    %395 = arith.mulf %393, %394 : vector<2x128xf32>
    %c0_178 = arith.constant 0 : index
    %c0_179 = arith.constant 0 : index
    %c0_180 = arith.constant 0 : index
    %396 = vector.load %arg4[%c0_178, %c0_179, %c0_180] : memref<1x128x256xf32, #tpu.memory_space<vmem>>, vector<1x128x256xf32>
    %397 = vector.shape_cast %396 : vector<1x128x256xf32> to vector<128x256xf32>
    %cst_181 = arith.constant dense<0.000000e+00> : vector<2x256xf32>
    %398 = tpu.matmul %395, %397, %cst_181 {dimension_numbers = #tpu.dot_dimension_numbers<[1], [0], [0], [1], [0, 0, 1, 1], [], []>} : vector<2x128xf32>, vector<128x256xf32>, vector<2x256xf32> -> vector<2x256xf32>
    %399 = arith.addf %398, %7 : vector<2x256xf32>
    %c0_182 = arith.constant 0 : index
    %400 = arith.index_cast %c11_i32 : i32 to index
    %c0_183 = arith.constant 0 : index
    %c0_184 = arith.constant 0 : index
    %401 = vector.load %arg6[%c0_182, %400, %c0_183, %c0_184] : memref<1x15x2x256xf32, #tpu.memory_space<vmem>>, vector<1x1x2x256xf32>
    %402 = vector.shape_cast %401 : vector<1x1x2x256xf32> to vector<2x256xf32>
    %403 = vector.shape_cast %399 : vector<2x256xf32> to vector<1x1x2x256xf32>
    tpu.vector_store %arg6[%c0_182, %400, %c0_183, %c0_184], %403 {strides = array<i32>} : memref<1x15x2x256xf32, #tpu.memory_space<vmem>>, vector<1x1x2x256xf32>,
    %404 = tpu.concatenate %392, %395 in 1 : vector<2x128xf32>, vector<2x128xf32> -> vector<2x256xf32>
    %c12_i32 = arith.constant 12 : i32
    %c0_185 = arith.constant 0 : index
    %c0_186 = arith.constant 0 : index
    %c0_187 = arith.constant 0 : index
    %405 = vector.load %arg2[%c0_185, %c0_186, %c0_187] : memref<1x256x640xf32, #tpu.memory_space<vmem>>, vector<1x256x640xf32>
    %406 = vector.shape_cast %405 : vector<1x256x640xf32> to vector<256x640xf32>
    %cst_188 = arith.constant dense<0.000000e+00> : vector<2x640xf32>
    %407 = tpu.matmul %404, %406, %cst_188 {dimension_numbers = #tpu.dot_dimension_numbers<[1], [0], [0], [1], [0, 0, 1, 1], [], []>} : vector<2x256xf32>, vector<256x640xf32>, vector<2x640xf32> -> vector<2x640xf32>
    %408 = arith.addf %407, %3 : vector<2x640xf32>
    %c0_189 = arith.constant 0 : index
    %409 = arith.index_cast %c12_i32 : i32 to index
    %c0_190 = arith.constant 0 : index
    %c0_191 = arith.constant 0 : index
    %410 = vector.load %arg1[%c0_189, %409, %c0_190, %c0_191] : memref<1x15x2x512xf32, #tpu.memory_space<vmem>>, vector<1x1x2x512xf32>
    %411 = vector.shape_cast %410 : vector<1x1x2x512xf32> to vector<2x512xf32>
    %412 = vector.extract_strided_slice %408 {offsets = [0, 128], sizes = [2, 512], strides = [1, 1]} : vector<2x640xf32> to vector<2x512xf32>
    %413 = arith.addf %411, %412 : vector<2x512xf32>
    %414 = arith.negf %413 : vector<2x512xf32>
    %415 = math.exp %414 : vector<2x512xf32>
    %cst_192 = arith.constant 1.000000e+00 : f32
    %416 = vector.broadcast %cst_192 : f32 to vector<2x512xf32>
    %417 = arith.addf %416, %415 : vector<2x512xf32>
    %418 = arith.divf %416, %417 : vector<2x512xf32>
    %419 = vector.extract_strided_slice %418 {offsets = [0, 256], sizes = [2, 128], strides = [1, 1]} : vector<2x512xf32> to vector<2x128xf32>
    %420 = vector.extract_strided_slice %408 {offsets = [0, 0], sizes = [2, 128], strides = [1, 1]} : vector<2x640xf32> to vector<2x128xf32>
    %421 = arith.mulf %419, %420 : vector<2x128xf32>
    %422 = vector.extract_strided_slice %418 {offsets = [0, 0], sizes = [2, 128], strides = [1, 1]} : vector<2x512xf32> to vector<2x128xf32>
    %423 = vector.extract_strided_slice %418 {offsets = [0, 128], sizes = [2, 128], strides = [1, 1]} : vector<2x512xf32> to vector<2x128xf32>
    %424 = arith.mulf %422, %423 : vector<2x128xf32>
    %425 = arith.addf %421, %424 : vector<2x128xf32>
    %426 = vector.extract_strided_slice %418 {offsets = [0, 384], sizes = [2, 128], strides = [1, 1]} : vector<2x512xf32> to vector<2x128xf32>
    %427 = math.tanh %425 : vector<2x128xf32>
    %428 = arith.mulf %426, %427 : vector<2x128xf32>
    %c0_193 = arith.constant 0 : index
    %c0_194 = arith.constant 0 : index
    %c0_195 = arith.constant 0 : index
    %429 = vector.load %arg4[%c0_193, %c0_194, %c0_195] : memref<1x128x256xf32, #tpu.memory_space<vmem>>, vector<1x128x256xf32>
    %430 = vector.shape_cast %429 : vector<1x128x256xf32> to vector<128x256xf32>
    %cst_196 = arith.constant dense<0.000000e+00> : vector<2x256xf32>
    %431 = tpu.matmul %428, %430, %cst_196 {dimension_numbers = #tpu.dot_dimension_numbers<[1], [0], [0], [1], [0, 0, 1, 1], [], []>} : vector<2x128xf32>, vector<128x256xf32>, vector<2x256xf32> -> vector<2x256xf32>
    %432 = arith.addf %431, %7 : vector<2x256xf32>
    %c0_197 = arith.constant 0 : index
    %433 = arith.index_cast %c12_i32 : i32 to index
    %c0_198 = arith.constant 0 : index
    %c0_199 = arith.constant 0 : index
    %434 = vector.load %arg6[%c0_197, %433, %c0_198, %c0_199] : memref<1x15x2x256xf32, #tpu.memory_space<vmem>>, vector<1x1x2x256xf32>
    %435 = vector.shape_cast %434 : vector<1x1x2x256xf32> to vector<2x256xf32>
    %436 = vector.shape_cast %432 : vector<2x256xf32> to vector<1x1x2x256xf32>
    tpu.vector_store %arg6[%c0_197, %433, %c0_198, %c0_199], %436 {strides = array<i32>} : memref<1x15x2x256xf32, #tpu.memory_space<vmem>>, vector<1x1x2x256xf32>,
    %437 = tpu.concatenate %425, %428 in 1 : vector<2x128xf32>, vector<2x128xf32> -> vector<2x256xf32>
    %c13_i32 = arith.constant 13 : i32
    %c0_200 = arith.constant 0 : index
    %c0_201 = arith.constant 0 : index
    %c0_202 = arith.constant 0 : index
    %438 = vector.load %arg2[%c0_200, %c0_201, %c0_202] : memref<1x256x640xf32, #tpu.memory_space<vmem>>, vector<1x256x640xf32>
    %439 = vector.shape_cast %438 : vector<1x256x640xf32> to vector<256x640xf32>
    %cst_203 = arith.constant dense<0.000000e+00> : vector<2x640xf32>
    %440 = tpu.matmul %437, %439, %cst_203 {dimension_numbers = #tpu.dot_dimension_numbers<[1], [0], [0], [1], [0, 0, 1, 1], [], []>} : vector<2x256xf32>, vector<256x640xf32>, vector<2x640xf32> -> vector<2x640xf32>
    %441 = arith.addf %440, %3 : vector<2x640xf32>
    %c0_204 = arith.constant 0 : index
    %442 = arith.index_cast %c13_i32 : i32 to index
    %c0_205 = arith.constant 0 : index
    %c0_206 = arith.constant 0 : index
    %443 = vector.load %arg1[%c0_204, %442, %c0_205, %c0_206] : memref<1x15x2x512xf32, #tpu.memory_space<vmem>>, vector<1x1x2x512xf32>
    %444 = vector.shape_cast %443 : vector<1x1x2x512xf32> to vector<2x512xf32>
    %445 = vector.extract_strided_slice %441 {offsets = [0, 128], sizes = [2, 512], strides = [1, 1]} : vector<2x640xf32> to vector<2x512xf32>
    %446 = arith.addf %444, %445 : vector<2x512xf32>
    %447 = arith.negf %446 : vector<2x512xf32>
    %448 = math.exp %447 : vector<2x512xf32>
    %cst_207 = arith.constant 1.000000e+00 : f32
    %449 = vector.broadcast %cst_207 : f32 to vector<2x512xf32>
    %450 = arith.addf %449, %448 : vector<2x512xf32>
    %451 = arith.divf %449, %450 : vector<2x512xf32>
    %452 = vector.extract_strided_slice %451 {offsets = [0, 256], sizes = [2, 128], strides = [1, 1]} : vector<2x512xf32> to vector<2x128xf32>
    %453 = vector.extract_strided_slice %441 {offsets = [0, 0], sizes = [2, 128], strides = [1, 1]} : vector<2x640xf32> to vector<2x128xf32>
    %454 = arith.mulf %452, %453 : vector<2x128xf32>
    %455 = vector.extract_strided_slice %451 {offsets = [0, 0], sizes = [2, 128], strides = [1, 1]} : vector<2x512xf32> to vector<2x128xf32>
    %456 = vector.extract_strided_slice %451 {offsets = [0, 128], sizes = [2, 128], strides = [1, 1]} : vector<2x512xf32> to vector<2x128xf32>
    %457 = arith.mulf %455, %456 : vector<2x128xf32>
    %458 = arith.addf %454, %457 : vector<2x128xf32>
    %459 = vector.extract_strided_slice %451 {offsets = [0, 384], sizes = [2, 128], strides = [1, 1]} : vector<2x512xf32> to vector<2x128xf32>
    %460 = math.tanh %458 : vector<2x128xf32>
    %461 = arith.mulf %459, %460 : vector<2x128xf32>
    %c0_208 = arith.constant 0 : index
    %c0_209 = arith.constant 0 : index
    %c0_210 = arith.constant 0 : index
    %462 = vector.load %arg4[%c0_208, %c0_209, %c0_210] : memref<1x128x256xf32, #tpu.memory_space<vmem>>, vector<1x128x256xf32>
    %463 = vector.shape_cast %462 : vector<1x128x256xf32> to vector<128x256xf32>
    %cst_211 = arith.constant dense<0.000000e+00> : vector<2x256xf32>
    %464 = tpu.matmul %461, %463, %cst_211 {dimension_numbers = #tpu.dot_dimension_numbers<[1], [0], [0], [1], [0, 0, 1, 1], [], []>} : vector<2x128xf32>, vector<128x256xf32>, vector<2x256xf32> -> vector<2x256xf32>
    %465 = arith.addf %464, %7 : vector<2x256xf32>
    %c0_212 = arith.constant 0 : index
    %466 = arith.index_cast %c13_i32 : i32 to index
    %c0_213 = arith.constant 0 : index
    %c0_214 = arith.constant 0 : index
    %467 = vector.load %arg6[%c0_212, %466, %c0_213, %c0_214] : memref<1x15x2x256xf32, #tpu.memory_space<vmem>>, vector<1x1x2x256xf32>
    %468 = vector.shape_cast %467 : vector<1x1x2x256xf32> to vector<2x256xf32>
    %469 = vector.shape_cast %465 : vector<2x256xf32> to vector<1x1x2x256xf32>
    tpu.vector_store %arg6[%c0_212, %466, %c0_213, %c0_214], %469 {strides = array<i32>} : memref<1x15x2x256xf32, #tpu.memory_space<vmem>>, vector<1x1x2x256xf32>,
    %470 = tpu.concatenate %458, %461 in 1 : vector<2x128xf32>, vector<2x128xf32> -> vector<2x256xf32>
    %c14_i32 = arith.constant 14 : i32
    %c0_215 = arith.constant 0 : index
    %c0_216 = arith.constant 0 : index
    %c0_217 = arith.constant 0 : index
    %471 = vector.load %arg2[%c0_215, %c0_216, %c0_217] : memref<1x256x640xf32, #tpu.memory_space<vmem>>, vector<1x256x640xf32>
    %472 = vector.shape_cast %471 : vector<1x256x640xf32> to vector<256x640xf32>
    %cst_218 = arith.constant dense<0.000000e+00> : vector<2x640xf32>
    %473 = tpu.matmul %470, %472, %cst_218 {dimension_numbers = #tpu.dot_dimension_numbers<[1], [0], [0], [1], [0, 0, 1, 1], [], []>} : vector<2x256xf32>, vector<256x640xf32>, vector<2x640xf32> -> vector<2x640xf32>
    %474 = arith.addf %473, %3 : vector<2x640xf32>
    %c0_219 = arith.constant 0 : index
    %475 = arith.index_cast %c14_i32 : i32 to index
    %c0_220 = arith.constant 0 : index
    %c0_221 = arith.constant 0 : index
    %476 = vector.load %arg1[%c0_219, %475, %c0_220, %c0_221] : memref<1x15x2x512xf32, #tpu.memory_space<vmem>>, vector<1x1x2x512xf32>
    %477 = vector.shape_cast %476 : vector<1x1x2x512xf32> to vector<2x512xf32>
    %478 = vector.extract_strided_slice %474 {offsets = [0, 128], sizes = [2, 512], strides = [1, 1]} : vector<2x640xf32> to vector<2x512xf32>
    %479 = arith.addf %477, %478 : vector<2x512xf32>
    %480 = arith.negf %479 : vector<2x512xf32>
    %481 = math.exp %480 : vector<2x512xf32>
    %cst_222 = arith.constant 1.000000e+00 : f32
    %482 = vector.broadcast %cst_222 : f32 to vector<2x512xf32>
    %483 = arith.addf %482, %481 : vector<2x512xf32>
    %484 = arith.divf %482, %483 : vector<2x512xf32>
    %485 = vector.extract_strided_slice %484 {offsets = [0, 256], sizes = [2, 128], strides = [1, 1]} : vector<2x512xf32> to vector<2x128xf32>
    %486 = vector.extract_strided_slice %474 {offsets = [0, 0], sizes = [2, 128], strides = [1, 1]} : vector<2x640xf32> to vector<2x128xf32>
    %487 = arith.mulf %485, %486 : vector<2x128xf32>
    %488 = vector.extract_strided_slice %484 {offsets = [0, 0], sizes = [2, 128], strides = [1, 1]} : vector<2x512xf32> to vector<2x128xf32>
    %489 = vector.extract_strided_slice %484 {offsets = [0, 128], sizes = [2, 128], strides = [1, 1]} : vector<2x512xf32> to vector<2x128xf32>
    %490 = arith.mulf %488, %489 : vector<2x128xf32>
    %491 = arith.addf %487, %490 : vector<2x128xf32>
    %492 = vector.extract_strided_slice %484 {offsets = [0, 384], sizes = [2, 128], strides = [1, 1]} : vector<2x512xf32> to vector<2x128xf32>
    %493 = math.tanh %491 : vector<2x128xf32>
    %494 = arith.mulf %492, %493 : vector<2x128xf32>
    %c0_223 = arith.constant 0 : index
    %c0_224 = arith.constant 0 : index
    %c0_225 = arith.constant 0 : index
    %495 = vector.load %arg4[%c0_223, %c0_224, %c0_225] : memref<1x128x256xf32, #tpu.memory_space<vmem>>, vector<1x128x256xf32>
    %496 = vector.shape_cast %495 : vector<1x128x256xf32> to vector<128x256xf32>
    %cst_226 = arith.constant dense<0.000000e+00> : vector<2x256xf32>
    %497 = tpu.matmul %494, %496, %cst_226 {dimension_numbers = #tpu.dot_dimension_numbers<[1], [0], [0], [1], [0, 0, 1, 1], [], []>} : vector<2x128xf32>, vector<128x256xf32>, vector<2x256xf32> -> vector<2x256xf32>
    %498 = arith.addf %497, %7 : vector<2x256xf32>
    %c0_227 = arith.constant 0 : index
    %499 = arith.index_cast %c14_i32 : i32 to index
    %c0_228 = arith.constant 0 : index
    %c0_229 = arith.constant 0 : index
    %500 = vector.load %arg6[%c0_227, %499, %c0_228, %c0_229] : memref<1x15x2x256xf32, #tpu.memory_space<vmem>>, vector<1x1x2x256xf32>
    %501 = vector.shape_cast %500 : vector<1x1x2x256xf32> to vector<2x256xf32>
    %502 = vector.shape_cast %498 : vector<2x256xf32> to vector<1x1x2x256xf32>
    tpu.vector_store %arg6[%c0_227, %499, %c0_228, %c0_229], %502 {strides = array<i32>} : memref<1x15x2x256xf32, #tpu.memory_space<vmem>>, vector<1x1x2x256xf32>,
    %503 = tpu.concatenate %491, %494 in 1 : vector<2x128xf32>, vector<2x128xf32> -> vector<2x256xf32>
    %c15_i32 = arith.constant 15 : i32
    return
  }
  func.func @transform_0(%arg0: i32) -> (i32, i32, i32, i32) {
    %c0_i32 = arith.constant 0 : i32
    %c0_i32_0 = arith.constant 0 : i32
    %c0_i32_1 = arith.constant 0 : i32
    %c0_i32_2 = arith.constant 0 : i32
    return %arg0, %c0_i32, %c0_i32_0, %c0_i32_1 : i32, i32, i32, i32
  }
  func.func @transform_1(%arg0: i32) -> (i32, i32, i32) {
    %c0_i32 = arith.constant 0 : i32
    %c0_i32_0 = arith.constant 0 : i32
    %c0_i32_1 = arith.constant 0 : i32
    return %arg0, %c0_i32, %c0_i32_0 : i32, i32, i32
  }
  func.func @transform_2(%arg0: i32) -> (i32, i32, i32) {
    %c0_i32 = arith.constant 0 : i32
    %c0_i32_0 = arith.constant 0 : i32
    %c0_i32_1 = arith.constant 0 : i32
    return %arg0, %c0_i32, %c0_i32_0 : i32, i32, i32
  }
  func.func @transform_3(%arg0: i32) -> (i32, i32, i32) {
    %c0_i32 = arith.constant 0 : i32
    %c0_i32_0 = arith.constant 0 : i32
    %c0_i32_1 = arith.constant 0 : i32
    return %arg0, %c0_i32, %c0_i32_0 : i32, i32, i32
  }
  func.func @transform_4(%arg0: i32) -> (i32, i32, i32) {
    %c0_i32 = arith.constant 0 : i32
    %c0_i32_0 = arith.constant 0 : i32
    %c0_i32_1 = arith.constant 0 : i32
    return %arg0, %c0_i32, %c0_i32_0 : i32, i32, i32
  }
  func.func @transform_5(%arg0: i32) -> (i32, i32, i32, i32) {
    %c0_i32 = arith.constant 0 : i32
    %c0_i32_0 = arith.constant 0 : i32
    %c0_i32_1 = arith.constant 0 : i32
    %c0_i32_2 = arith.constant 0 : i32
    return %arg0, %c0_i32, %c0_i32_0, %c0_i32_1 : i32, i32, i32, i32
  }
}

</mosaic_0001>

<llo_original>
// kernel: _lambda_.2
$region0: #{_lambda_.2}
  #allocation0 [shape = 'u32[]', space=smem, size = 0x4, offset = 0x4, fixed_abs, tag = 'smem constant byte address 0x4 - core index']
  #allocation1 [shape = 'u32[72,128]{1,0:T(1,128)}', space=vmem, size = 0x9000, scoped, tag = 'internal scratch']
  %s0 = inlined_call_operand.vmem [shape: f32[128,900], index: 0, kind: input, shape index: {}]
  %s1 = inlined_call_operand.vmem [shape: f32[900,32], index: 1, kind: input, shape index: {}]
  %s2 = inlined_call_operand.vmem [shape: f32[1,32], index: 2, kind: input, shape index: {}]
  %s3 = inlined_call_operand.vmem [shape: f32[128,32], index: 3, kind: output, shape index: {}]
  %s4 = sld [smem:[#allocation0]]
  $region22: #{_lambda_.2} parent=0
    _
  %s6 = ssub.s32 1, %s4
  %s7 = scalar_select 0, %s6, %s4
  // Predicated region
  $region2: #{_lambda_.2} parent=0 // pred_check
    _
  $region3: #{_lambda_.2} parent=0 // pred_check_branch
    %9 = sbr.rel (0) target = $region5
  $region4: #{_lambda_.2} parent=0 // pred_region
    _
  $region5: #{_lambda_.2} parent=0 // pred_fallthru
    _
  // Predicated region
  $region6: #{_lambda_.2} parent=0 // pred_check
    _
  $region7: #{_lambda_.2} parent=0 // pred_check_branch
    %11 = sbr.rel (0) target = $region9
  $region8: #{_lambda_.2} parent=0 // pred_region
    _
  $region9: #{_lambda_.2} parent=0 // pred_fallthru
    _
  // Predicated region
  $region10: #{_lambda_.2} parent=0 // pred_check
    _
  $region11: #{_lambda_.2} parent=0 // pred_check_branch
    %13 = sbr.rel (0) target = $region13
  $region12: #{_lambda_.2} parent=0 // pred_region
    _
  $region13: #{_lambda_.2} parent=0 // pred_fallthru
    _
  %v14 = vld [vmem:[%s0] sm:$0xff]
  %v15 = vld [vmem:[%s0 + $0x8] sm:$0xff]
  %v16 = vld [vmem:[%s0 + $0x10] sm:$0xff]
  %v17 = vld [vmem:[%s0 + $0x18] sm:$0xff]
  %v18 = vld [vmem:[%s0 + $0x20] sm:$0xff]
  %v19 = vld [vmem:[%s0 + $0x28] sm:$0xff]
  %v20 = vld [vmem:[%s0 + $0x30] sm:$0xff]
  %v21 = vld [vmem:[%s0 + $0x38] sm:$0xff]
  %v22 = vld [vmem:[%s0 + $0x40] sm:$0xff]
  %v23 = vld [vmem:[%s0 + $0x48] sm:$0xff]
  %v24 = vld [vmem:[%s0 + $0x50] sm:$0xff]
  %v25 = vld [vmem:[%s0 + $0x58] sm:$0xff]
  %v26 = vld [vmem:[%s0 + $0x60] sm:$0xff]
  %v27 = vld [vmem:[%s0 + $0x68] sm:$0xff]
  %v28 = vld [vmem:[%s0 + $0x70] sm:$0xff]
  %v29 = vld [vmem:[%s0 + $0x78] sm:$0xff]
  %v30 = vld [vmem:[%s0 + $0x80] sm:$0xff]
  %v31 = vld [vmem:[%s0 + $0x88] sm:$0xff]
  %v32 = vld [vmem:[%s0 + $0x90] sm:$0xff]
  %v33 = vld [vmem:[%s0 + $0x98] sm:$0xff]
  %v34 = vld [vmem:[%s0 + $0xa0] sm:$0xff]
  %v35 = vld [vmem:[%s0 + $0xa8] sm:$0xff]
  %v36 = vld [vmem:[%s0 + $0xb0] sm:$0xff]
  %v37 = vld [vmem:[%s0 + $0xb8] sm:$0xff]
  %v38 = vld [vmem:[%s0 + $0xc0] sm:$0xff]
  %v39 = vld [vmem:[%s0 + $0xc8] sm:$0xff]
  %v40 = vld [vmem:[%s0 + $0xd0] sm:$0xff]
  %v41 = vld [vmem:[%s0 + $0xd8] sm:$0xff]
  %v42 = vld [vmem:[%s0 + $0xe0] sm:$0xff]
  %v43 = vld [vmem:[%s0 + $0xe8] sm:$0xff]
  %v44 = vld [vmem:[%s0 + $0xf0] sm:$0xff]
  %v45 = vld [vmem:[%s0 + $0xf8] sm:$0xff]
  %v46 = vld [vmem:[%s0 + $0x100] sm:$0xff]
  %v47 = vld [vmem:[%s0 + $0x108] sm:$0xff]
  %v48 = vld [vmem:[%s0 + $0x110] sm:$0xff]
  %v49 = vld [vmem:[%s0 + $0x118] sm:$0xff]
  %v50 = vld [vmem:[%s0 + $0x120] sm:$0xff]
  %v51 = vld [vmem:[%s0 + $0x128] sm:$0xff]
  %v52 = vld [vmem:[%s0 + $0x130] sm:$0xff]
  %v53 = vld [vmem:[%s0 + $0x138] sm:$0xff]
  %v54 = vld [vmem:[%s0 + $0x140] sm:$0xff]
  %v55 = vld [vmem:[%s0 + $0x148] sm:$0xff]
  %v56 = vld [vmem:[%s0 + $0x150] sm:$0xff]
  %v57 = vld [vmem:[%s0 + $0x158] sm:$0xff]
  %v58 = vld [vmem:[%s0 + $0x160] sm:$0xff]
  %v59 = vld [vmem:[%s0 + $0x168] sm:$0xff]
  %v60 = vld [vmem:[%s0 + $0x170] sm:$0xff]
  %v61 = vld [vmem:[%s0 + $0x178] sm:$0xff]
  %v62 = vld [vmem:[%s0 + $0x180] sm:$0xff]
  %v63 = vld [vmem:[%s0 + $0x188] sm:$0xff]
  %v64 = vld [vmem:[%s0 + $0x190] sm:$0xff]
  %v65 = vld [vmem:[%s0 + $0x198] sm:$0xff]
  %v66 = vld [vmem:[%s0 + $0x1a0] sm:$0xff]
  %v67 = vld [vmem:[%s0 + $0x1a8] sm:$0xff]
  %v68 = vld [vmem:[%s0 + $0x1b0] sm:$0xff]
  %v69 = vld [vmem:[%s0 + $0x1b8] sm:$0xff]
  %v70 = vld [vmem:[%s0 + $0x1c0] sm:$0xff]
  %v71 = vld [vmem:[%s0 + $0x1c8] sm:$0xff]
  %v72 = vld [vmem:[%s0 + $0x1d0] sm:$0xff]
  %v73 = vld [vmem:[%s0 + $0x1d8] sm:$0xff]
  %v74 = vld [vmem:[%s0 + $0x1e0] sm:$0xff]
  %v75 = vld [vmem:[%s0 + $0x1e8] sm:$0xff]
  %v76 = vld [vmem:[%s0 + $0x1f0] sm:$0xff]
  %v77 = vld [vmem:[%s0 + $0x1f8] sm:$0xff]
  %v78 = vld [vmem:[%s0 + $0x200] sm:$0xff]
  %v79 = vld [vmem:[%s0 + $0x208] sm:$0xff]
  %v80 = vld [vmem:[%s0 + $0x210] sm:$0xff]
  %v81 = vld [vmem:[%s0 + $0x218] sm:$0xff]
  %v82 = vld [vmem:[%s0 + $0x220] sm:$0xff]
  %v83 = vld [vmem:[%s0 + $0x228] sm:$0xff]
  %v84 = vld [vmem:[%s0 + $0x230] sm:$0xff]
  %v85 = vld [vmem:[%s0 + $0x238] sm:$0xff]
  %v86 = vld [vmem:[%s0 + $0x240] sm:$0xff]
  %v87 = vld [vmem:[%s0 + $0x248] sm:$0xff]
  %v88 = vld [vmem:[%s0 + $0x250] sm:$0xff]
  %v89 = vld [vmem:[%s0 + $0x258] sm:$0xff]
  %v90 = vld [vmem:[%s0 + $0x260] sm:$0xff]
  %v91 = vld [vmem:[%s0 + $0x268] sm:$0xff]
  %v92 = vld [vmem:[%s0 + $0x270] sm:$0xff]
  %v93 = vld [vmem:[%s0 + $0x278] sm:$0xff]
  %v94 = vld [vmem:[%s0 + $0x280] sm:$0xff]
  %v95 = vld [vmem:[%s0 + $0x288] sm:$0xff]
  %v96 = vld [vmem:[%s0 + $0x290] sm:$0xff]
  %v97 = vld [vmem:[%s0 + $0x298] sm:$0xff]
  %v98 = vld [vmem:[%s0 + $0x2a0] sm:$0xff]
  %v99 = vld [vmem:[%s0 + $0x2a8] sm:$0xff]
  %v100 = vld [vmem:[%s0 + $0x2b0] sm:$0xff]
  %v101 = vld [vmem:[%s0 + $0x2b8] sm:$0xff]
  %v102 = vld [vmem:[%s0 + $0x2c0] sm:$0xff]
  %v103 = vld [vmem:[%s0 + $0x2c8] sm:$0xff]
  %v104 = vld [vmem:[%s0 + $0x2d0] sm:$0xff]
  %v105 = vld [vmem:[%s0 + $0x2d8] sm:$0xff]
  %v106 = vld [vmem:[%s0 + $0x2e0] sm:$0xff]
  %v107 = vld [vmem:[%s0 + $0x2e8] sm:$0xff]
  %v108 = vld [vmem:[%s0 + $0x2f0] sm:$0xff]
  %v109 = vld [vmem:[%s0 + $0x2f8] sm:$0xff]
  %v110 = vld [vmem:[%s0 + $0x300] sm:$0xff]
  %v111 = vld [vmem:[%s0 + $0x308] sm:$0xff]
  %v112 = vld [vmem:[%s0 + $0x310] sm:$0xff]
  %v113 = vld [vmem:[%s0 + $0x318] sm:$0xff]
  %v114 = vld [vmem:[%s0 + $0x320] sm:$0xff]
  %v115 = vld [vmem:[%s0 + $0x328] sm:$0xff]
  %v116 = vld [vmem:[%s0 + $0x330] sm:$0xff]
  %v117 = vld [vmem:[%s0 + $0x338] sm:$0xff]
  %v118 = vld [vmem:[%s0 + $0x340] sm:$0xff]
  %v119 = vld [vmem:[%s0 + $0x348] sm:$0xff]
  %v120 = vld [vmem:[%s0 + $0x350] sm:$0xff]
  %v121 = vld [vmem:[%s0 + $0x358] sm:$0xff]
  %v122 = vld [vmem:[%s0 + $0x360] sm:$0xff]
  %v123 = vld [vmem:[%s0 + $0x368] sm:$0xff]
  %v124 = vld [vmem:[%s0 + $0x370] sm:$0xff]
  %v125 = vld [vmem:[%s0 + $0x378] sm:$0xff]
  %v126 = vld [vmem:[%s0 + $0x380] sm:$0xff]
  %v127 = vld [vmem:[%s0 + $0x388] sm:$0xff]
  %v128 = vld [vmem:[%s0 + $0x390] sm:$0xff]
  %v129 = vld [vmem:[%s0 + $0x398] sm:$0xff]
  %v130 = vld [vmem:[%s0 + $0x3a0] sm:$0xff]
  %v131 = vld [vmem:[%s0 + $0x3a8] sm:$0xff]
  %v132 = vld [vmem:[%s0 + $0x3b0] sm:$0xff]
  %v133 = vld [vmem:[%s0 + $0x3b8] sm:$0xff]
  %v134 = vld [vmem:[%s0 + $0x3c0] sm:$0xff]
  %v135 = vld [vmem:[%s0 + $0x3c8] sm:$0xff]
  %v136 = vld [vmem:[%s0 + $0x3d0] sm:$0xff]
  %v137 = vld [vmem:[%s0 + $0x3d8] sm:$0xff]
  %v138 = vld [vmem:[%s0 + $0x3e0] sm:$0xff]
  %v139 = vld [vmem:[%s0 + $0x3e8] sm:$0xff]
  %v140 = vld [vmem:[%s0 + $0x3f0] sm:$0xff]
  %v141 = vld [vmem:[%s0 + $0x3f8] sm:$0xff]
  %v142 = vld [vmem:[%s1] sm:$0xff]
  %v143 = vld [vmem:[%s1 + $0x8] sm:$0xff]
  %v144 = vld [vmem:[%s1 + $0x10] sm:$0xff]
  %v145 = vld [vmem:[%s1 + $0x18] sm:$0xff]
  %v146 = vld [vmem:[%s1 + $0x20] sm:$0xff]
  %v147 = vld [vmem:[%s1 + $0x28] sm:$0xff]
  %v148 = vld [vmem:[%s1 + $0x30] sm:$0xff]
  %v149 = vld [vmem:[%s1 + $0x38] sm:$0xff]
  %v150 = vld [vmem:[%s1 + $0x40] sm:$0xff]
  %v151 = vld [vmem:[%s1 + $0x48] sm:$0xff]
  %v152 = vld [vmem:[%s1 + $0x50] sm:$0xff]
  %v153 = vld [vmem:[%s1 + $0x58] sm:$0xff]
  %v154 = vld [vmem:[%s1 + $0x60] sm:$0xff]
  %v155 = vld [vmem:[%s1 + $0x68] sm:$0xff]
  %v156 = vld [vmem:[%s1 + $0x70] sm:$0xff]
  %v157 = vld [vmem:[%s1 + $0x78] sm:$0xff]
  %v158 = vld [vmem:[%s1 + $0x80] sm:$0xff]
  %v159 = vld [vmem:[%s1 + $0x88] sm:$0xff]
  %v160 = vld [vmem:[%s1 + $0x90] sm:$0xff]
  %v161 = vld [vmem:[%s1 + $0x98] sm:$0xff]
  %v162 = vld [vmem:[%s1 + $0xa0] sm:$0xff]
  %v163 = vld [vmem:[%s1 + $0xa8] sm:$0xff]
  %v164 = vld [vmem:[%s1 + $0xb0] sm:$0xff]
  %v165 = vld [vmem:[%s1 + $0xb8] sm:$0xff]
  %v166 = vld [vmem:[%s1 + $0xc0] sm:$0xff]
  %v167 = vld [vmem:[%s1 + $0xc8] sm:$0xff]
  %v168 = vld [vmem:[%s1 + $0xd0] sm:$0xff]
  %v169 = vld [vmem:[%s1 + $0xd8] sm:$0xff]
  %v170 = vld [vmem:[%s1 + $0xe0] sm:$0xff]
  %v171 = vld [vmem:[%s1 + $0xe8] sm:$0xff]
  %v172 = vld [vmem:[%s1 + $0xf0] sm:$0xff]
  %v173 = vld [vmem:[%s1 + $0xf8] sm:$0xff]
  %v174 = vld [vmem:[%s1 + $0x100] sm:$0xff]
  %v175 = vld [vmem:[%s1 + $0x108] sm:$0xff]
  %v176 = vld [vmem:[%s1 + $0x110] sm:$0xff]
  %v177 = vld [vmem:[%s1 + $0x118] sm:$0xff]
  %v178 = vld [vmem:[%s1 + $0x120] sm:$0xff]
  %v179 = vld [vmem:[%s1 + $0x128] sm:$0xff]
  %v180 = vld [vmem:[%s1 + $0x130] sm:$0xff]
  %v181 = vld [vmem:[%s1 + $0x138] sm:$0xff]
  %v182 = vld [vmem:[%s1 + $0x140] sm:$0xff]
  %v183 = vld [vmem:[%s1 + $0x148] sm:$0xff]
  %v184 = vld [vmem:[%s1 + $0x150] sm:$0xff]
  %v185 = vld [vmem:[%s1 + $0x158] sm:$0xff]
  %v186 = vld [vmem:[%s1 + $0x160] sm:$0xff]
  %v187 = vld [vmem:[%s1 + $0x168] sm:$0xff]
  %v188 = vld [vmem:[%s1 + $0x170] sm:$0xff]
  %v189 = vld [vmem:[%s1 + $0x178] sm:$0xff]
  %v190 = vld [vmem:[%s1 + $0x180] sm:$0xff]
  %v191 = vld [vmem:[%s1 + $0x188] sm:$0xff]
  %v192 = vld [vmem:[%s1 + $0x190] sm:$0xff]
  %v193 = vld [vmem:[%s1 + $0x198] sm:$0xff]
  %v194 = vld [vmem:[%s1 + $0x1a0] sm:$0xff]
  %v195 = vld [vmem:[%s1 + $0x1a8] sm:$0xff]
  %v196 = vld [vmem:[%s1 + $0x1b0] sm:$0xff]
  %v197 = vld [vmem:[%s1 + $0x1b8] sm:$0xff]
  %v198 = vld [vmem:[%s1 + $0x1c0] sm:$0xff]
  %v199 = vld [vmem:[%s1 + $0x1c8] sm:$0xff]
  %v200 = vld [vmem:[%s1 + $0x1d0] sm:$0xff]
  %v201 = vld [vmem:[%s1 + $0x1d8] sm:$0xff]
  %v202 = vld [vmem:[%s1 + $0x1e0] sm:$0xff]
  %v203 = vld [vmem:[%s1 + $0x1e8] sm:$0xff]
  %v204 = vld [vmem:[%s1 + $0x1f0] sm:$0xff]
  %v205 = vld [vmem:[%s1 + $0x1f8] sm:$0xff]
  %v206 = vld [vmem:[%s1 + $0x200] sm:$0xff]
  %v207 = vld [vmem:[%s1 + $0x208] sm:$0xff]
  %v208 = vld [vmem:[%s1 + $0x210] sm:$0xff]
  %v209 = vld [vmem:[%s1 + $0x218] sm:$0xff]
  %v210 = vld [vmem:[%s1 + $0x220] sm:$0xff]
  %v211 = vld [vmem:[%s1 + $0x228] sm:$0xff]
  %v212 = vld [vmem:[%s1 + $0x230] sm:$0xff]
  %v213 = vld [vmem:[%s1 + $0x238] sm:$0xff]
  %v214 = vld [vmem:[%s1 + $0x240] sm:$0xff]
  %v215 = vld [vmem:[%s1 + $0x248] sm:$0xff]
  %v216 = vld [vmem:[%s1 + $0x250] sm:$0xff]
  %v217 = vld [vmem:[%s1 + $0x258] sm:$0xff]
  %v218 = vld [vmem:[%s1 + $0x260] sm:$0xff]
  %v219 = vld [vmem:[%s1 + $0x268] sm:$0xff]
  %v220 = vld [vmem:[%s1 + $0x270] sm:$0xff]
  %v221 = vld [vmem:[%s1 + $0x278] sm:$0xff]
  %v222 = vld [vmem:[%s1 + $0x280] sm:$0xff]
  %v223 = vld [vmem:[%s1 + $0x288] sm:$0xff]
  %v224 = vld [vmem:[%s1 + $0x290] sm:$0xff]
  %v225 = vld [vmem:[%s1 + $0x298] sm:$0xff]
  %v226 = vld [vmem:[%s1 + $0x2a0] sm:$0xff]
  %v227 = vld [vmem:[%s1 + $0x2a8] sm:$0xff]
  %v228 = vld [vmem:[%s1 + $0x2b0] sm:$0xff]
  %v229 = vld [vmem:[%s1 + $0x2b8] sm:$0xff]
  %v230 = vld [vmem:[%s1 + $0x2c0] sm:$0xff]
  %v231 = vld [vmem:[%s1 + $0x2c8] sm:$0xff]
  %v232 = vld [vmem:[%s1 + $0x2d0] sm:$0xff]
  %v233 = vld [vmem:[%s1 + $0x2d8] sm:$0xff]
  %v234 = vld [vmem:[%s1 + $0x2e0] sm:$0xff]
  %v235 = vld [vmem:[%s1 + $0x2e8] sm:$0xff]
  %v236 = vld [vmem:[%s1 + $0x2f0] sm:$0xff]
  %v237 = vld [vmem:[%s1 + $0x2f8] sm:$0xff]
  %v238 = vld [vmem:[%s1 + $0x300] sm:$0xff]
  %v239 = vld [vmem:[%s1 + $0x308] sm:$0xff]
  %v240 = vld [vmem:[%s1 + $0x310] sm:$0xff]
  %v241 = vld [vmem:[%s1 + $0x318] sm:$0xff]
  %v242 = vld [vmem:[%s1 + $0x320] sm:$0xff]
  %v243 = vld [vmem:[%s1 + $0x328] sm:$0xff]
  %v244 = vld [vmem:[%s1 + $0x330] sm:$0xff]
  %v245 = vld [vmem:[%s1 + $0x338] sm:$0xff]
  %v246 = vld [vmem:[%s1 + $0x340] sm:$0xff]
  %v247 = vld [vmem:[%s1 + $0x348] sm:$0xff]
  %v248 = vld [vmem:[%s1 + $0x350] sm:$0xff]
  %v249 = vld [vmem:[%s1 + $0x358] sm:$0xff]
  %v250 = vld [vmem:[%s1 + $0x360] sm:$0xff]
  %v251 = vld [vmem:[%s1 + $0x368] sm:$0xff]
  %v252 = vld [vmem:[%s1 + $0x370] sm:$0xff]
  %v253 = vld [vmem:[%s1 + $0x378] sm:$0xff]
  %v254 = vld [vmem:[%s1 + $0x380] sm:$0xf]
  %v255 = vld [vmem:[%s2] sm:$0x1]
  %v257 = vperm.slane %v255, 0
  %vm259 = vcmask 31744
  %v261 = vsel %vm259, %v21, 0
  %v264 = vsel %vm259, %v29, 0
  %v267 = vsel %vm259, %v37, 0
  %v270 = vsel %vm259, %v45, 0
  %v273 = vsel %vm259, %v53, 0
  %v276 = vsel %vm259, %v61, 0
  %v279 = vsel %vm259, %v69, 0
  %v282 = vsel %vm259, %v77, 0
  %v285 = vsel %vm259, %v85, 0
  %v288 = vsel %vm259, %v93, 0
  %v291 = vsel %vm259, %v101, 0
  %v294 = vsel %vm259, %v109, 0
  %v297 = vsel %vm259, %v117, 0
  %v300 = vsel %vm259, %v125, 0
  %v303 = vsel %vm259, %v133, 0
  %v306 = vsel %vm259, %v141, 0
  %vm308 = vcmask 1043456
  %v310 = vsel %vm308, %v254, 0
  %312 = vmatpush.msra.mxu0 %v157
  %313 = vmatpush.msra.mxu0 %v156
  %314 = vmatpush.msra.mxu0 %v155
  %315 = vmatpush.msra.mxu0 %v154
  %316 = vmatpush.msra.mxu0 %v153
  %317 = vmatpush.msra.mxu0 %v152
  %318 = vmatpush.msra.mxu0 %v151
  %319 = vmatpush.msra.mxu0 %v150
  %320 = vmatpush.msra.mxu0 %v149
  %321 = vmatpush.msra.mxu0 %v148
  %322 = vmatpush.msra.mxu0 %v147
  %323 = vmatpush.msra.mxu0 %v146
  %324 = vmatpush.msra.mxu0 %v145
  %325 = vmatpush.msra.mxu0 %v144
  %326 = vmatpush.msra.mxu0 %v143
  %327 = vmatpush.msra.mxu0 %v142
  %328 = vmatmul.f32.gmra.mxu0 %v14
  %v329 = vpop.f32.mrf.mxu0
  %v330 = vadd.f32 %v257, %v329
  %331 = vmatmul.f32.gmra.mxu0 %v22
  %v332 = vpop.f32.mrf.mxu0
  %v333 = vadd.f32 %v257, %v332
  %334 = vmatmul.f32.gmra.mxu0 %v30
  %v335 = vpop.f32.mrf.mxu0
  %v336 = vadd.f32 %v257, %v335
  %337 = vmatmul.f32.gmra.mxu0 %v38
  %v338 = vpop.f32.mrf.mxu0
  %v339 = vadd.f32 %v257, %v338
  %340 = vmatmul.f32.gmra.mxu0 %v46
  %v341 = vpop.f32.mrf.mxu0
  %v342 = vadd.f32 %v257, %v341
  %343 = vmatmul.f32.gmra.mxu0 %v54
  %v344 = vpop.f32.mrf.mxu0
  %v345 = vadd.f32 %v257, %v344
  %346 = vmatmul.f32.gmra.mxu0 %v62
  %v347 = vpop.f32.mrf.mxu0
  %v348 = vadd.f32 %v257, %v347
  %349 = vmatmul.f32.gmra.mxu0 %v70
  %v350 = vpop.f32.mrf.mxu0
  %v351 = vadd.f32 %v257, %v350
  %352 = vmatmul.f32.gmra.mxu0 %v78
  %v353 = vpop.f32.mrf.mxu0
  %v354 = vadd.f32 %v257, %v353
  %355 = vmatmul.f32.gmra.mxu0 %v86
  %v356 = vpop.f32.mrf.mxu0
  %v357 = vadd.f32 %v257, %v356
  %358 = vmatmul.f32.gmra.mxu0 %v94
  %v359 = vpop.f32.mrf.mxu0
  %v360 = vadd.f32 %v257, %v359
  %361 = vmatmul.f32.gmra.mxu0 %v102
  %v362 = vpop.f32.mrf.mxu0
  %v363 = vadd.f32 %v257, %v362
  %364 = vmatmul.f32.gmra.mxu0 %v110
  %v365 = vpop.f32.mrf.mxu0
  %v366 = vadd.f32 %v257, %v365
  %367 = vmatmul.f32.gmra.mxu0 %v118
  %v368 = vpop.f32.mrf.mxu0
  %v369 = vadd.f32 %v257, %v368
  %370 = vmatmul.f32.gmra.mxu0 %v126
  %v371 = vpop.f32.mrf.mxu0
  %v372 = vadd.f32 %v257, %v371
  %373 = vmatmul.f32.gmra.mxu0 %v134
  %v374 = vpop.f32.mrf.mxu0
  %v375 = vadd.f32 %v257, %v374
  %376 = vdwg.mxu0
  %377 = vmatpush.msra.mxu0 %v173
  %378 = vmatpush.msra.mxu0 %v172
  %379 = vmatpush.msra.mxu0 %v171
  %380 = vmatpush.msra.mxu0 %v170
  %381 = vmatpush.msra.mxu0 %v169
  %382 = vmatpush.msra.mxu0 %v168
  %383 = vmatpush.msra.mxu0 %v167
  %384 = vmatpush.msra.mxu0 %v166
  %385 = vmatpush.msra.mxu0 %v165
  %386 = vmatpush.msra.mxu0 %v164
  %387 = vmatpush.msra.mxu0 %v163
  %388 = vmatpush.msra.mxu0 %v162
  %389 = vmatpush.msra.mxu0 %v161
  %390 = vmatpush.msra.mxu0 %v160
  %391 = vmatpush.msra.mxu0 %v159
  %392 = vmatpush.msra.mxu0 %v158
  %393 = vmatmul.f32.gmra.mxu0 %v15
  %v394 = vpop.f32.mrf.mxu0
  %v395 = vadd.f32 %v330, %v394
  %396 = vmatmul.f32.gmra.mxu0 %v23
  %v397 = vpop.f32.mrf.mxu0
  %v398 = vadd.f32 %v333, %v397
  %399 = vmatmul.f32.gmra.mxu0 %v31
  %v400 = vpop.f32.mrf.mxu0
  %v401 = vadd.f32 %v336, %v400
  %402 = vmatmul.f32.gmra.mxu0 %v39
  %v403 = vpop.f32.mrf.mxu0
  %v404 = vadd.f32 %v339, %v403
  %405 = vmatmul.f32.gmra.mxu0 %v47
  %v406 = vpop.f32.mrf.mxu0
  %v407 = vadd.f32 %v342, %v406
  %408 = vmatmul.f32.gmra.mxu0 %v55
  %v409 = vpop.f32.mrf.mxu0
  %v410 = vadd.f32 %v345, %v409
  %411 = vmatmul.f32.gmra.mxu0 %v63
  %v412 = vpop.f32.mrf.mxu0
  %v413 = vadd.f32 %v348, %v412
  %414 = vmatmul.f32.gmra.mxu0 %v71
  %v415 = vpop.f32.mrf.mxu0
  %v416 = vadd.f32 %v351, %v415
  %417 = vmatmul.f32.gmra.mxu0 %v79
  %v418 = vpop.f32.mrf.mxu0
  %v419 = vadd.f32 %v354, %v418
  %420 = vmatmul.f32.gmra.mxu0 %v87
  %v421 = vpop.f32.mrf.mxu0
  %v422 = vadd.f32 %v357, %v421
  %423 = vmatmul.f32.gmra.mxu0 %v95
  %v424 = vpop.f32.mrf.mxu0
  %v425 = vadd.f32 %v360, %v424
  %426 = vmatmul.f32.gmra.mxu0 %v103
  %v427 = vpop.f32.mrf.mxu0
  %v428 = vadd.f32 %v363, %v427
  %429 = vmatmul.f32.gmra.mxu0 %v111
  %v430 = vpop.f32.mrf.mxu0
  %v431 = vadd.f32 %v366, %v430
  %432 = vmatmul.f32.gmra.mxu0 %v119
  %v433 = vpop.f32.mrf.mxu0
  %v434 = vadd.f32 %v369, %v433
  %435 = vmatmul.f32.gmra.mxu0 %v127
  %v436 = vpop.f32.mrf.mxu0
  %v437 = vadd.f32 %v372, %v436
  %438 = vmatmul.f32.gmra.mxu0 %v135
  %v439 = vpop.f32.mrf.mxu0
  %v440 = vadd.f32 %v375, %v439
  %441 = vdwg.mxu0
  %442 = vmatpush.msra.mxu0 %v189
  %443 = vmatpush.msra.mxu0 %v188
  %444 = vmatpush.msra.mxu0 %v187
  %445 = vmatpush.msra.mxu0 %v186
  %446 = vmatpush.msra.mxu0 %v185
  %447 = vmatpush.msra.mxu0 %v184
  %448 = vmatpush.msra.mxu0 %v183
  %449 = vmatpush.msra.mxu0 %v182
  %450 = vmatpush.msra.mxu0 %v181
  %451 = vmatpush.msra.mxu0 %v180
  %452 = vmatpush.msra.mxu0 %v179
  %453 = vmatpush.msra.mxu0 %v178
  %454 = vmatpush.msra.mxu0 %v177
  %455 = vmatpush.msra.mxu0 %v176
  %456 = vmatpush.msra.mxu0 %v175
  %457 = vmatpush.msra.mxu0 %v174
  %458 = vmatmul.f32.gmra.mxu0 %v16
  %v459 = vpop.f32.mrf.mxu0
  %v460 = vadd.f32 %v395, %v459
  %461 = vmatmul.f32.gmra.mxu0 %v24
  %v462 = vpop.f32.mrf.mxu0
  %v463 = vadd.f32 %v398, %v462
  %464 = vmatmul.f32.gmra.mxu0 %v32
  %v465 = vpop.f32.mrf.mxu0
  %v466 = vadd.f32 %v401, %v465
  %467 = vmatmul.f32.gmra.mxu0 %v40
  %v468 = vpop.f32.mrf.mxu0
  %v469 = vadd.f32 %v404, %v468
  %470 = vmatmul.f32.gmra.mxu0 %v48
  %v471 = vpop.f32.mrf.mxu0
  %v472 = vadd.f32 %v407, %v471
  %473 = vmatmul.f32.gmra.mxu0 %v56
  %v474 = vpop.f32.mrf.mxu0
  %v475 = vadd.f32 %v410, %v474
  %476 = vmatmul.f32.gmra.mxu0 %v64
  %v477 = vpop.f32.mrf.mxu0
  %v478 = vadd.f32 %v413, %v477
  %479 = vmatmul.f32.gmra.mxu0 %v72
  %v480 = vpop.f32.mrf.mxu0
  %v481 = vadd.f32 %v416, %v480
  %482 = vmatmul.f32.gmra.mxu0 %v80
  %v483 = vpop.f32.mrf.mxu0
  %v484 = vadd.f32 %v419, %v483
  %485 = vmatmul.f32.gmra.mxu0 %v88
  %v486 = vpop.f32.mrf.mxu0
  %v487 = vadd.f32 %v422, %v486
  %488 = vmatmul.f32.gmra.mxu0 %v96
  %v489 = vpop.f32.mrf.mxu0
  %v490 = vadd.f32 %v425, %v489
  %491 = vmatmul.f32.gmra.mxu0 %v104
  %v492 = vpop.f32.mrf.mxu0
  %v493 = vadd.f32 %v428, %v492
  %494 = vmatmul.f32.gmra.mxu0 %v112
  %v495 = vpop.f32.mrf.mxu0
  %v496 = vadd.f32 %v431, %v495
  %497 = vmatmul.f32.gmra.mxu0 %v120
  %v498 = vpop.f32.mrf.mxu0
  %v499 = vadd.f32 %v434, %v498
  %500 = vmatmul.f32.gmra.mxu0 %v128
  %v501 = vpop.f32.mrf.mxu0
  %v502 = vadd.f32 %v437, %v501
  %503 = vmatmul.f32.gmra.mxu0 %v136
  %v504 = vpop.f32.mrf.mxu0
  %v505 = vadd.f32 %v440, %v504
  %506 = vdwg.mxu0
  %507 = vmatpush.msra.mxu0 %v205
  %508 = vmatpush.msra.mxu0 %v204
  %509 = vmatpush.msra.mxu0 %v203
  %510 = vmatpush.msra.mxu0 %v202
  %511 = vmatpush.msra.mxu0 %v201
  %512 = vmatpush.msra.mxu0 %v200
  %513 = vmatpush.msra.mxu0 %v199
  %514 = vmatpush.msra.mxu0 %v198
  %515 = vmatpush.msra.mxu0 %v197
  %516 = vmatpush.msra.mxu0 %v196
  %517 = vmatpush.msra.mxu0 %v195
  %518 = vmatpush.msra.mxu0 %v194
  %519 = vmatpush.msra.mxu0 %v193
  %520 = vmatpush.msra.mxu0 %v192
  %521 = vmatpush.msra.mxu0 %v191
  %522 = vmatpush.msra.mxu0 %v190
  %523 = vmatmul.f32.gmra.mxu0 %v17
  %v524 = vpop.f32.mrf.mxu0
  %v525 = vadd.f32 %v460, %v524
  %526 = vmatmul.f32.gmra.mxu0 %v25
  %v527 = vpop.f32.mrf.mxu0
  %v528 = vadd.f32 %v463, %v527
  %529 = vmatmul.f32.gmra.mxu0 %v33
  %v530 = vpop.f32.mrf.mxu0
  %v531 = vadd.f32 %v466, %v530
  %532 = vmatmul.f32.gmra.mxu0 %v41
  %v533 = vpop.f32.mrf.mxu0
  %v534 = vadd.f32 %v469, %v533
  %535 = vmatmul.f32.gmra.mxu0 %v49
  %v536 = vpop.f32.mrf.mxu0
  %v537 = vadd.f32 %v472, %v536
  %538 = vmatmul.f32.gmra.mxu0 %v57
  %v539 = vpop.f32.mrf.mxu0
  %v540 = vadd.f32 %v475, %v539
  %541 = vmatmul.f32.gmra.mxu0 %v65
  %v542 = vpop.f32.mrf.mxu0
  %v543 = vadd.f32 %v478, %v542
  %544 = vmatmul.f32.gmra.mxu0 %v73
  %v545 = vpop.f32.mrf.mxu0
  %v546 = vadd.f32 %v481, %v545
  %547 = vmatmul.f32.gmra.mxu0 %v81
  %v548 = vpop.f32.mrf.mxu0
  %v549 = vadd.f32 %v484, %v548
  %550 = vmatmul.f32.gmra.mxu0 %v89
  %v551 = vpop.f32.mrf.mxu0
  %v552 = vadd.f32 %v487, %v551
  %553 = vmatmul.f32.gmra.mxu0 %v97
  %v554 = vpop.f32.mrf.mxu0
  %v555 = vadd.f32 %v490, %v554
  %556 = vmatmul.f32.gmra.mxu0 %v105
  %v557 = vpop.f32.mrf.mxu0
  %v558 = vadd.f32 %v493, %v557
  %559 = vmatmul.f32.gmra.mxu0 %v113
  %v560 = vpop.f32.mrf.mxu0
  %v561 = vadd.f32 %v496, %v560
  %562 = vmatmul.f32.gmra.mxu0 %v121
  %v563 = vpop.f32.mrf.mxu0
  %v564 = vadd.f32 %v499, %v563
  %565 = vmatmul.f32.gmra.mxu0 %v129
  %v566 = vpop.f32.mrf.mxu0
  %v567 = vadd.f32 %v502, %v566
  %568 = vmatmul.f32.gmra.mxu0 %v137
  %v569 = vpop.f32.mrf.mxu0
  %v570 = vadd.f32 %v505, %v569
  %571 = vdwg.mxu0
  %572 = vmatpush.msra.mxu0 %v221
  %573 = vmatpush.msra.mxu0 %v220
  %574 = vmatpush.msra.mxu0 %v219
  %575 = vmatpush.msra.mxu0 %v218
  %576 = vmatpush.msra.mxu0 %v217
  %577 = vmatpush.msra.mxu0 %v216
  %578 = vmatpush.msra.mxu0 %v215
  %579 = vmatpush.msra.mxu0 %v214
  %580 = vmatpush.msra.mxu0 %v213
  %581 = vmatpush.msra.mxu0 %v212
  %582 = vmatpush.msra.mxu0 %v211
  %583 = vmatpush.msra.mxu0 %v210
  %584 = vmatpush.msra.mxu0 %v209
  %585 = vmatpush.msra.mxu0 %v208
  %586 = vmatpush.msra.mxu0 %v207
  %587 = vmatpush.msra.mxu0 %v206
  %588 = vmatmul.f32.gmra.mxu0 %v18
  %v589 = vpop.f32.mrf.mxu0
  %v590 = vadd.f32 %v525, %v589
  %591 = vmatmul.f32.gmra.mxu0 %v26
  %v592 = vpop.f32.mrf.mxu0
  %v593 = vadd.f32 %v528, %v592
  %594 = vmatmul.f32.gmra.mxu0 %v34
  %v595 = vpop.f32.mrf.mxu0
  %v596 = vadd.f32 %v531, %v595
  %597 = vmatmul.f32.gmra.mxu0 %v42
  %v598 = vpop.f32.mrf.mxu0
  %v599 = vadd.f32 %v534, %v598
  %600 = vmatmul.f32.gmra.mxu0 %v50
  %v601 = vpop.f32.mrf.mxu0
  %v602 = vadd.f32 %v537, %v601
  %603 = vmatmul.f32.gmra.mxu0 %v58
  %v604 = vpop.f32.mrf.mxu0
  %v605 = vadd.f32 %v540, %v604
  %606 = vmatmul.f32.gmra.mxu0 %v66
  %v607 = vpop.f32.mrf.mxu0
  %v608 = vadd.f32 %v543, %v607
  %609 = vmatmul.f32.gmra.mxu0 %v74
  %v610 = vpop.f32.mrf.mxu0
  %v611 = vadd.f32 %v546, %v610
  %612 = vmatmul.f32.gmra.mxu0 %v82
  %v613 = vpop.f32.mrf.mxu0
  %v614 = vadd.f32 %v549, %v613
  %615 = vmatmul.f32.gmra.mxu0 %v90
  %v616 = vpop.f32.mrf.mxu0
  %v617 = vadd.f32 %v552, %v616
  %618 = vmatmul.f32.gmra.mxu0 %v98
  %v619 = vpop.f32.mrf.mxu0
  %v620 = vadd.f32 %v555, %v619
  %621 = vmatmul.f32.gmra.mxu0 %v106
  %v622 = vpop.f32.mrf.mxu0
  %v623 = vadd.f32 %v558, %v622
  %624 = vmatmul.f32.gmra.mxu0 %v114
  %v625 = vpop.f32.mrf.mxu0
  %v626 = vadd.f32 %v561, %v625
  %627 = vmatmul.f32.gmra.mxu0 %v122
  %v628 = vpop.f32.mrf.mxu0
  %v629 = vadd.f32 %v564, %v628
  %630 = vmatmul.f32.gmra.mxu0 %v130
  %v631 = vpop.f32.mrf.mxu0
  %v632 = vadd.f32 %v567, %v631
  %633 = vmatmul.f32.gmra.mxu0 %v138
  %v634 = vpop.f32.mrf.mxu0
  %v635 = vadd.f32 %v570, %v634
  %636 = vdwg.mxu0
  %637 = vmatpush.msra.mxu0 %v237
  %638 = vmatpush.msra.mxu0 %v236
  %639 = vmatpush.msra.mxu0 %v235
  %640 = vmatpush.msra.mxu0 %v234
  %641 = vmatpush.msra.mxu0 %v233
  %642 = vmatpush.msra.mxu0 %v232
  %643 = vmatpush.msra.mxu0 %v231
  %644 = vmatpush.msra.mxu0 %v230
  %645 = vmatpush.msra.mxu0 %v229
  %646 = vmatpush.msra.mxu0 %v228
  %647 = vmatpush.msra.mxu0 %v227
  %648 = vmatpush.msra.mxu0 %v226
  %649 = vmatpush.msra.mxu0 %v225
  %650 = vmatpush.msra.mxu0 %v224
  %651 = vmatpush.msra.mxu0 %v223
  %652 = vmatpush.msra.mxu0 %v222
  %653 = vmatmul.f32.gmra.mxu0 %v19
  %v654 = vpop.f32.mrf.mxu0
  %v655 = vadd.f32 %v590, %v654
  %656 = vmatmul.f32.gmra.mxu0 %v27
  %v657 = vpop.f32.mrf.mxu0
  %v658 = vadd.f32 %v593, %v657
  %659 = vmatmul.f32.gmra.mxu0 %v35
  %v660 = vpop.f32.mrf.mxu0
  %v661 = vadd.f32 %v596, %v660
  %662 = vmatmul.f32.gmra.mxu0 %v43
  %v663 = vpop.f32.mrf.mxu0
  %v664 = vadd.f32 %v599, %v663
  %665 = vmatmul.f32.gmra.mxu0 %v51
  %v666 = vpop.f32.mrf.mxu0
  %v667 = vadd.f32 %v602, %v666
  %668 = vmatmul.f32.gmra.mxu0 %v59
  %v669 = vpop.f32.mrf.mxu0
  %v670 = vadd.f32 %v605, %v669
  %671 = vmatmul.f32.gmra.mxu0 %v67
  %v672 = vpop.f32.mrf.mxu0
  %v673 = vadd.f32 %v608, %v672
  %674 = vmatmul.f32.gmra.mxu0 %v75
  %v675 = vpop.f32.mrf.mxu0
  %v676 = vadd.f32 %v611, %v675
  %677 = vmatmul.f32.gmra.mxu0 %v83
  %v678 = vpop.f32.mrf.mxu0
  %v679 = vadd.f32 %v614, %v678
  %680 = vmatmul.f32.gmra.mxu0 %v91
  %v681 = vpop.f32.mrf.mxu0
  %v682 = vadd.f32 %v617, %v681
  %683 = vmatmul.f32.gmra.mxu0 %v99
  %v684 = vpop.f32.mrf.mxu0
  %v685 = vadd.f32 %v620, %v684
  %686 = vmatmul.f32.gmra.mxu0 %v107
  %v687 = vpop.f32.mrf.mxu0
  %v688 = vadd.f32 %v623, %v687
  %689 = vmatmul.f32.gmra.mxu0 %v115
  %v690 = vpop.f32.mrf.mxu0
  %v691 = vadd.f32 %v626, %v690
  %692 = vmatmul.f32.gmra.mxu0 %v123
  %v693 = vpop.f32.mrf.mxu0
  %v694 = vadd.f32 %v629, %v693
  %695 = vmatmul.f32.gmra.mxu0 %v131
  %v696 = vpop.f32.mrf.mxu0
  %v697 = vadd.f32 %v632, %v696
  %698 = vmatmul.f32.gmra.mxu0 %v139
  %v699 = vpop.f32.mrf.mxu0
  %v700 = vadd.f32 %v635, %v699
  %701 = vdwg.mxu0
  %702 = vmatpush.msra.mxu0 %v253
  %703 = vmatpush.msra.mxu0 %v252
  %704 = vmatpush.msra.mxu0 %v251
  %705 = vmatpush.msra.mxu0 %v250
  %706 = vmatpush.msra.mxu0 %v249
  %707 = vmatpush.msra.mxu0 %v248
  %708 = vmatpush.msra.mxu0 %v247
  %709 = vmatpush.msra.mxu0 %v246
  %710 = vmatpush.msra.mxu0 %v245
  %711 = vmatpush.msra.mxu0 %v244
  %712 = vmatpush.msra.mxu0 %v243
  %713 = vmatpush.msra.mxu0 %v242
  %714 = vmatpush.msra.mxu0 %v241
  %715 = vmatpush.msra.mxu0 %v240
  %716 = vmatpush.msra.mxu0 %v239
  %717 = vmatpush.msra.mxu0 %v238
  %718 = vmatmul.f32.gmra.mxu0 %v20
  %v719 = vpop.f32.mrf.mxu0
  %v720 = vadd.f32 %v655, %v719
  %721 = vmatmul.f32.gmra.mxu0 %v28
  %v722 = vpop.f32.mrf.mxu0
  %v723 = vadd.f32 %v658, %v722
  %724 = vmatmul.f32.gmra.mxu0 %v36
  %v725 = vpop.f32.mrf.mxu0
  %v726 = vadd.f32 %v661, %v725
  %727 = vmatmul.f32.gmra.mxu0 %v44
  %v728 = vpop.f32.mrf.mxu0
  %v729 = vadd.f32 %v664, %v728
  %730 = vmatmul.f32.gmra.mxu0 %v52
  %v731 = vpop.f32.mrf.mxu0
  %v732 = vadd.f32 %v667, %v731
  %733 = vmatmul.f32.gmra.mxu0 %v60
  %v734 = vpop.f32.mrf.mxu0
  %v735 = vadd.f32 %v670, %v734
  %736 = vmatmul.f32.gmra.mxu0 %v68
  %v737 = vpop.f32.mrf.mxu0
  %v738 = vadd.f32 %v673, %v737
  %739 = vmatmul.f32.gmra.mxu0 %v76
  %v740 = vpop.f32.mrf.mxu0
  %v741 = vadd.f32 %v676, %v740
  %742 = vmatmul.f32.gmra.mxu0 %v84
  %v743 = vpop.f32.mrf.mxu0
  %v744 = vadd.f32 %v679, %v743
  %745 = vmatmul.f32.gmra.mxu0 %v92
  %v746 = vpop.f32.mrf.mxu0
  %v747 = vadd.f32 %v682, %v746
  %748 = vmatmul.f32.gmra.mxu0 %v100
  %v749 = vpop.f32.mrf.mxu0
  %v750 = vadd.f32 %v685, %v749
  %751 = vmatmul.f32.gmra.mxu0 %v108
  %v752 = vpop.f32.mrf.mxu0
  %v753 = vadd.f32 %v688, %v752
  %754 = vmatmul.f32.gmra.mxu0 %v116
  %v755 = vpop.f32.mrf.mxu0
  %v756 = vadd.f32 %v691, %v755
  %757 = vmatmul.f32.gmra.mxu0 %v124
  %v758 = vpop.f32.mrf.mxu0
  %v759 = vadd.f32 %v694, %v758
  %760 = vmatmul.f32.gmra.mxu0 %v132
  %v761 = vpop.f32.mrf.mxu0
  %v762 = vadd.f32 %v697, %v761
  %763 = vmatmul.f32.gmra.mxu0 %v140
  %v764 = vpop.f32.mrf.mxu0
  %v765 = vadd.f32 %v700, %v764
  %766 = vdwg.mxu0
  %767 = vmatpush.msra.mxu0 0.0
  %768 = vmatpush.msra.mxu0 0.0
  %769 = vmatpush.msra.mxu0 0.0
  %770 = vmatpush.msra.mxu0 0.0
  %771 = vmatpush.msra.mxu0 0.0
  %772 = vmatpush.msra.mxu0 0.0
  %773 = vmatpush.msra.mxu0 0.0
  %774 = vmatpush.msra.mxu0 0.0
  %775 = vmatpush.msra.mxu0 0.0
  %776 = vmatpush.msra.mxu0 0.0
  %777 = vmatpush.msra.mxu0 0.0
  %778 = vmatpush.msra.mxu0 0.0
  %779 = vmatpush.msra.mxu0 0.0
  %780 = vmatpush.msra.mxu0 0.0
  %781 = vmatpush.msra.mxu0 0.0
  %782 = vmatpush.msra.mxu0 %v310
  %783 = vmatmul.f32.gmra.mxu0 %v261
  %v784 = vpop.f32.mrf.mxu0
  %v785 = vadd.f32 %v720, %v784
  %786 = vmatmul.f32.gmra.mxu0 %v264
  %v787 = vpop.f32.mrf.mxu0
  %v788 = vadd.f32 %v723, %v787
  %789 = vmatmul.f32.gmra.mxu0 %v267
  %v790 = vpop.f32.mrf.mxu0
  %v791 = vadd.f32 %v726, %v790
  %792 = vmatmul.f32.gmra.mxu0 %v270
  %v793 = vpop.f32.mrf.mxu0
  %v794 = vadd.f32 %v729, %v793
  %795 = vmatmul.f32.gmra.mxu0 %v273
  %v796 = vpop.f32.mrf.mxu0
  %v797 = vadd.f32 %v732, %v796
  %798 = vmatmul.f32.gmra.mxu0 %v276
  %v799 = vpop.f32.mrf.mxu0
  %v800 = vadd.f32 %v735, %v799
  %801 = vmatmul.f32.gmra.mxu0 %v279
  %v802 = vpop.f32.mrf.mxu0
  %v803 = vadd.f32 %v738, %v802
  %804 = vmatmul.f32.gmra.mxu0 %v282
  %v805 = vpop.f32.mrf.mxu0
  %v806 = vadd.f32 %v741, %v805
  %807 = vmatmul.f32.gmra.mxu0 %v285
  %v808 = vpop.f32.mrf.mxu0
  %v809 = vadd.f32 %v744, %v808
  %810 = vmatmul.f32.gmra.mxu0 %v288
  %v811 = vpop.f32.mrf.mxu0
  %v812 = vadd.f32 %v747, %v811
  %813 = vmatmul.f32.gmra.mxu0 %v291
  %v814 = vpop.f32.mrf.mxu0
  %v815 = vadd.f32 %v750, %v814
  %816 = vmatmul.f32.gmra.mxu0 %v294
  %v817 = vpop.f32.mrf.mxu0
  %v818 = vadd.f32 %v753, %v817
  %819 = vmatmul.f32.gmra.mxu0 %v297
  %v820 = vpop.f32.mrf.mxu0
  %v821 = vadd.f32 %v756, %v820
  %822 = vmatmul.f32.gmra.mxu0 %v300
  %v823 = vpop.f32.mrf.mxu0
  %v824 = vadd.f32 %v759, %v823
  %825 = vmatmul.f32.gmra.mxu0 %v303
  %v826 = vpop.f32.mrf.mxu0
  %v827 = vadd.f32 %v762, %v826
  %828 = vmatmul.f32.gmra.mxu0 %v306
  %v829 = vpop.f32.mrf.mxu0
  %v830 = vadd.f32 %v765, %v829
  %831 = vdwg.mxu0
  %vm832 = vcmask 261120
  %833 = vst.msk [vmem:[%s3] sm:$0xff] %vm832, %v785
  %834 = vst.msk [vmem:[%s3 + $0x8] sm:$0xff] %vm832, %v788
  %835 = vst.msk [vmem:[%s3 + $0x10] sm:$0xff] %vm832, %v791
  %836 = vst.msk [vmem:[%s3 + $0x18] sm:$0xff] %vm832, %v794
  %837 = vst.msk [vmem:[%s3 + $0x20] sm:$0xff] %vm832, %v797
  %838 = vst.msk [vmem:[%s3 + $0x28] sm:$0xff] %vm832, %v800
  %839 = vst.msk [vmem:[%s3 + $0x30] sm:$0xff] %vm832, %v803
  %840 = vst.msk [vmem:[%s3 + $0x38] sm:$0xff] %vm832, %v806
  %841 = vst.msk [vmem:[%s3 + $0x40] sm:$0xff] %vm832, %v809
  %842 = vst.msk [vmem:[%s3 + $0x48] sm:$0xff] %vm832, %v812
  %843 = vst.msk [vmem:[%s3 + $0x50] sm:$0xff] %vm832, %v815
  %844 = vst.msk [vmem:[%s3 + $0x58] sm:$0xff] %vm832, %v818
  %845 = vst.msk [vmem:[%s3 + $0x60] sm:$0xff] %vm832, %v821
  %846 = vst.msk [vmem:[%s3 + $0x68] sm:$0xff] %vm832, %v824
  %847 = vst.msk [vmem:[%s3 + $0x70] sm:$0xff] %vm832, %v827
  %848 = vst.msk [vmem:[%s3 + $0x78] sm:$0xff] %vm832, %v830
  // Predicated region
  $region14: #{_lambda_.2} parent=0 // pred_check
    _
  $region15: #{_lambda_.2} parent=0 // pred_check_branch
    %850 = sbr.rel (0) target = $region17
  $region16: #{_lambda_.2} parent=0 // pred_region
    _
  $region17: #{_lambda_.2} parent=0 // pred_fallthru
    _
  // Predicated region
  $region18: #{_lambda_.2} parent=0 // pred_check
    _
  $region19: #{_lambda_.2} parent=0 // pred_check_branch
    %852 = sbr.rel (0) target = $region21
  $region20: #{_lambda_.2} parent=0 // pred_region
    _
  $region21: #{_lambda_.2} parent=0 // pred_fallthru
    _

// kernel: tile.19
$region0: #{tile.19}
  %s0 = inlined_call_operand.vmem [shape: f32[4,8,64], index: 0, kind: input, shape index: {}]
  %s1 = inlined_call_operand.vmem [shape: f32[4,512], index: 1, kind: output, shape index: {}]
  $region1: #{tile.19} parent=0
    #allocation0 [shape = 'u8[16384]{0}', space=vmem, size = 0x4000, scoped, tag = 'scoped mem for output reshape']
    %v2 = vld [vmem:[%s0] ss:$2 sm:$0xff]
    %vm3 = vcmask 523264
    %4 = vst.msk [vmem:[#allocation0] ss:$8 sm:$0xf] %vm3, %v2
    %s5 = scalar_lea.vmem [#allocation0], 4294967265
    %6 = vst.msk [vmem:[%s5] ss:$8 sm:$0xf0] %vm3, %v2
    %s7 = scalar_lea.vmem %s0, 16
    %v8 = vld [vmem:[%s7] ss:$2 sm:$0xff]
    %vm9 = vcmask 523264
    %s10 = scalar_lea.vmem [#allocation0], 2
    %11 = vst.msk [vmem:[%s10] ss:$8 sm:$0xf] %vm9, %v8
    %s12 = scalar_lea.vmem [#allocation0], 4294967267
    %13 = vst.msk [vmem:[%s12] ss:$8 sm:$0xf0] %vm9, %v8
    %s14 = scalar_lea.vmem %s0, 1
    %v15 = vld [vmem:[%s14] ss:$8 sm:$0xf]
    %s16 = scalar_lea.vmem %s0, 4294967267
    %v17 = vld [vmem:[%s16] ss:$8 sm:$0xf0]
    %vm18 = vcmask 1047556
    %v19 = vsel %vm18, %v17, %v15
    %20 = vrot.lane.b32.xlu0 %v19, 64
    %v21 = vpop.permute.xlu0 %20
    %vm22 = vcmask 1048064
    %23 = vst.msk [vmem:[#allocation0] sm:$0xf] %vm22, %v21
    %s24 = scalar_lea.vmem [#allocation0], 4
    %25 = vst.msk [vmem:[%s24] sm:$0xf0] %vm22, %v21
    %s26 = scalar_lea.vmem %s0, 5
    %v27 = vld [vmem:[%s26] ss:$8 sm:$0xf]
    %s28 = scalar_lea.vmem %s0, 4294967271
    %v29 = vld [vmem:[%s28] ss:$8 sm:$0xf0]
    %vm30 = vcmask 1047556
    %v31 = vsel %vm30, %v29, %v27
    %32 = vrot.lane.b32.xlu0 %v31, 64
    %v33 = vpop.permute.xlu0 %32
    %vm34 = vcmask 1048064
    %s35 = scalar_lea.vmem [#allocation0], 16
    %36 = vst.msk [vmem:[%s35] sm:$0xf] %vm34, %v33
    %s37 = scalar_lea.vmem [#allocation0], 20
    %38 = vst.msk [vmem:[%s37] sm:$0xf0] %vm34, %v33
    %s40 = ssub.s32 16, 1
    %v41 = vld [vmem:[#allocation0] sm:%s40]
    %s43 = ssub.s32 16, 1
    %44 = vst [vmem:[%s1] sm:%s43] %v41
    %s45 = scalar_lea.vmem [#allocation0], 8
    %v46 = vld [vmem:[%s45] sm:%s40]
    %s48 = ssub.s32 16, 1
    %s49 = scalar_lea.vmem %s1, 4
    %50 = vst [vmem:[%s49] sm:%s48] %v46
    %s51 = scalar_lea.vmem [#allocation0], 16
    %v52 = vld [vmem:[%s51] sm:%s40]
    %s54 = ssub.s32 16, 1
    %s55 = scalar_lea.vmem %s1, 8
    %56 = vst [vmem:[%s55] sm:%s54] %v52
    %s57 = scalar_lea.vmem [#allocation0], 24
    %v58 = vld [vmem:[%s57] sm:%s40]
    %s60 = ssub.s32 16, 1
    %s61 = scalar_lea.vmem %s1, 12
    %62 = vst [vmem:[%s61] sm:%s60] %v58

// kernel: tile.15
$region0: #{tile.15}
  %s0 = inlined_call_operand.vmem [shape: f32[4,8,16], index: 0, kind: input, shape index: {}]
  %s1 = inlined_call_operand.vmem [shape: f32[4,128], index: 1, kind: output, shape index: {}]
  $region1: #{tile.15} parent=0
    #allocation0 [shape = 'u8[4096]{0}', space=vmem, size = 0x1000, scoped, tag = 'scoped mem for output reshape']
    %v2 = vld [vmem:[%s0] ss:$8 sm:$0xf]
    %vm3 = vcmask 130048
    %4 = vst.msk [vmem:[#allocation0] sm:$0xf] %vm3, %v2
    %s5 = scalar_lea.vmem %s0, 7
    %v6 = vld [vmem:[%s5] ss:$8 sm:$0xf]
    %7 = vrot.lane.b32.xlu0 %v6, 112
    %v8 = vpop.permute.xlu0 %7
    %vm9 = vcmask 1048448
    %10 = vst.msk [vmem:[#allocation0] sm:$0xf] %vm9, %v8
    %s11 = scalar_lea.vmem %s0, 6
    %v12 = vld [vmem:[%s11] ss:$8 sm:$0xf]
    %13 = vrot.lane.b32.xlu0 %v12, 96
    %v14 = vpop.permute.xlu0 %13
    %vm15 = vcmask 917248
    %16 = vst.msk [vmem:[#allocation0] sm:$0xf] %vm15, %v14
    %s17 = scalar_lea.vmem %s0, 5
    %v18 = vld [vmem:[%s17] ss:$8 sm:$0xf]
    %19 = vrot.lane.b32.xlu0 %v18, 80
    %v20 = vpop.permute.xlu0 %19
    %vm21 = vcmask 786048
    %22 = vst.msk [vmem:[#allocation0] sm:$0xf] %vm21, %v20
    %s23 = scalar_lea.vmem %s0, 4
    %v24 = vld [vmem:[%s23] ss:$8 sm:$0xf]
    %25 = vrot.lane.b32.xlu0 %v24, 64
    %v26 = vpop.permute.xlu0 %25
    %vm27 = vcmask 654848
    %28 = vst.msk [vmem:[#allocation0] sm:$0xf] %vm27, %v26
    %s29 = scalar_lea.vmem %s0, 3
    %v30 = vld [vmem:[%s29] ss:$8 sm:$0xf]
    %31 = vrot.lane.b32.xlu0 %v30, 48
    %v32 = vpop.permute.xlu0 %31
    %vm33 = vcmask 523648
    %34 = vst.msk [vmem:[#allocation0] sm:$0xf] %vm33, %v32
    %s35 = scalar_lea.vmem %s0, 2
    %v36 = vld [vmem:[%s35] ss:$8 sm:$0xf]
    %37 = vrot.lane.b32.xlu0 %v36, 32
    %v38 = vpop.permute.xlu0 %37
    %vm39 = vcmask 392448
    %40 = vst.msk [vmem:[#allocation0] sm:$0xf] %vm39, %v38
    %s41 = scalar_lea.vmem %s0, 1
    %v42 = vld [vmem:[%s41] ss:$8 sm:$0xf]
    %43 = vrot.lane.b32.xlu0 %v42, 16
    %v44 = vpop.permute.xlu0 %43
    %vm45 = vcmask 261248
    %46 = vst.msk [vmem:[#allocation0] sm:$0xf] %vm45, %v44
    %s48 = ssub.s32 16, 1
    %v49 = vld [vmem:[#allocation0] sm:%s48]
    %s51 = ssub.s32 16, 1
    %52 = vst [vmem:[%s1] sm:%s51] %v49

// kernel: _lambda_.3
$region0: #{_lambda_.3}
  #allocation0 [shape = 'u32[]', space=smem, size = 0x4, offset = 0x4, fixed_abs, tag = 'smem constant byte address 0x4 - core index']
  #allocation1 [shape = 'u32[72,128]{1,0:T(1,128)}', space=vmem, size = 0x9000, scoped, tag = 'internal scratch']
  %s0 = inlined_call_operand.vmem [shape: f32[4,15,2,512], index: 0, kind: input, shape index: {}]
  %s1 = inlined_call_operand.vmem [shape: f32[4,256,640], index: 1, kind: input, shape index: {}]
  %s2 = inlined_call_operand.vmem [shape: f32[4,1,640], index: 2, kind: input, shape index: {}]
  %s3 = inlined_call_operand.vmem [shape: f32[4,128,256], index: 3, kind: input, shape index: {}]
  %s4 = inlined_call_operand.vmem [shape: f32[4,1,256], index: 4, kind: input, shape index: {}]
  %s5 = inlined_call_operand.vmem [shape: f32[4,15,2,256], index: 5, kind: output, shape index: {}]
  %s6 = sld [smem:[#allocation0]]
  $region53: #{_lambda_.3} parent=0
    _
  %s8 = ssub.s32 1, %s6
  %s9 = scalar_select 0, %s8, %s6
  loop: start=0, step=1, limit=6
  $region2: #{_lambda_.3} parent=0 // loop_pre_header
    _
  $region3: #{_lambda_.3} parent=0 // loop_header
    %s11 = sphi 0, %s15
    %p12 = scmp.ge.s32.totalorder %s11, 6
    %s21 = sphi 0, %s23
    %s24 = sphi 0, %s21
    %s25 = sphi 0, %s24
    %s41 = sphi 0, %s25
    %s47 = sphi 0, %s49
    %s50 = sphi 0, %s47
    %s51 = sphi 0, %s50
    %s67 = sphi 0, %s51
    %s73 = sphi 0, %s75
    %s76 = sphi 0, %s73
    %s77 = sphi 0, %s76
    %s93 = sphi 0, %s77
    %s99 = sphi 0, %s101
    %s102 = sphi 0, %s99
    %s103 = sphi 0, %s102
    %s119 = sphi 0, %s103
    %s125 = sphi 0, %s127
    %s128 = sphi 0, %s125
    %s129 = sphi 0, %s128
    %s145 = sphi 0, %s129
    %s151 = sphi 0, %s153
    %s154 = sphi 0, %s151
    %s155 = sphi 0, %s154
    %s171 = sphi 0, %s155
  $region4: #{_lambda_.3} parent=0 // loop_header_branch
    %14 = sbr.rel (%p12) target = $region8
  $region5: #{_lambda_.3} parent=0 // loop_body
    %s16 = ssub.s32 %s11, 1
    %s17 = ssub.s32 %s11, 2
    %s18 = sadd.s32 %s11, 1
    %s19 = ssub.s32 %s11, %s18
    %p20 = scmp.eq.s32.totalorder %s19, 0
    %s22 = sadd.s32 %s21, 1
    %s23 = scalar_select %p20, %s21, %s22
    %p26 = pneg %p20
    %p27 = scmp.eq.s32.totalorder %s11, 3
    %p28 = por %p26, %p27
    %p29 = scmp.ne.s32.totalorder %s21, %s24
    %p30 = scmp.eq.s32.totalorder %s11, 0
    %p31 = por %p29, %p30
    %p32 = scmp.ne.s32.totalorder %s21, %s24
    %p33 = scmp.eq.s32.totalorder %s16, 3
    %p34 = por %p32, %p33
    %p35 = scmp.ne.s32.totalorder %s24, %s25
    %p36 = scmp.eq.s32.totalorder %s16, 0
    %p37 = por %p35, %p36
    %p38 = scmp.ne.s32.totalorder %s24, %s25
    %p39 = scmp.eq.s32.totalorder %s17, 3
    %p40 = por %p38, %p39
    %p42 = scmp.ne.s32.totalorder %s25, %s41
    %p43 = scmp.eq.s32.totalorder %s17, 0
    %p44 = por %p42, %p43
    %s45 = ssub.s32 %s11, %s18
    %p46 = scmp.eq.s32.totalorder %s45, 0
    %s48 = sadd.s32 %s47, 1
    %s49 = scalar_select %p46, %s47, %s48
    %p52 = pneg %p46
    %p53 = scmp.eq.s32.totalorder %s11, 3
    %p54 = por %p52, %p53
    %p55 = scmp.ne.s32.totalorder %s47, %s50
    %p56 = scmp.eq.s32.totalorder %s11, 0
    %p57 = por %p55, %p56
    %p58 = scmp.ne.s32.totalorder %s47, %s50
    %p59 = scmp.eq.s32.totalorder %s16, 3
    %p60 = por %p58, %p59
    %p61 = scmp.ne.s32.totalorder %s50, %s51
    %p62 = scmp.eq.s32.totalorder %s16, 0
    %p63 = por %p61, %p62
    %p64 = scmp.ne.s32.totalorder %s50, %s51
    %p65 = scmp.eq.s32.totalorder %s17, 3
    %p66 = por %p64, %p65
    %p68 = scmp.ne.s32.totalorder %s51, %s67
    %p69 = scmp.eq.s32.totalorder %s17, 0
    %p70 = por %p68, %p69
    %s71 = ssub.s32 %s11, %s18
    %p72 = scmp.eq.s32.totalorder %s71, 0
    %s74 = sadd.s32 %s73, 1
    %s75 = scalar_select %p72, %s73, %s74
    %p78 = pneg %p72
    %p79 = scmp.eq.s32.totalorder %s11, 3
    %p80 = por %p78, %p79
    %p81 = scmp.ne.s32.totalorder %s73, %s76
    %p82 = scmp.eq.s32.totalorder %s11, 0
    %p83 = por %p81, %p82
    %p84 = scmp.ne.s32.totalorder %s73, %s76
    %p85 = scmp.eq.s32.totalorder %s16, 3
    %p86 = por %p84, %p85
    %p87 = scmp.ne.s32.totalorder %s76, %s77
    %p88 = scmp.eq.s32.totalorder %s16, 0
    %p89 = por %p87, %p88
    %p90 = scmp.ne.s32.totalorder %s76, %s77
    %p91 = scmp.eq.s32.totalorder %s17, 3
    %p92 = por %p90, %p91
    %p94 = scmp.ne.s32.totalorder %s77, %s93
    %p95 = scmp.eq.s32.totalorder %s17, 0
    %p96 = por %p94, %p95
    %s97 = ssub.s32 %s11, %s18
    %p98 = scmp.eq.s32.totalorder %s97, 0
    %s100 = sadd.s32 %s99, 1
    %s101 = scalar_select %p98, %s99, %s100
    %p104 = pneg %p98
    %p105 = scmp.eq.s32.totalorder %s11, 3
    %p106 = por %p104, %p105
    %p107 = scmp.ne.s32.totalorder %s99, %s102
    %p108 = scmp.eq.s32.totalorder %s11, 0
    %p109 = por %p107, %p108
    %p110 = scmp.ne.s32.totalorder %s99, %s102
    %p111 = scmp.eq.s32.totalorder %s16, 3
    %p112 = por %p110, %p111
    %p113 = scmp.ne.s32.totalorder %s102, %s103
    %p114 = scmp.eq.s32.totalorder %s16, 0
    %p115 = por %p113, %p114
    %p116 = scmp.ne.s32.totalorder %s102, %s103
    %p117 = scmp.eq.s32.totalorder %s17, 3
    %p118 = por %p116, %p117
    %p120 = scmp.ne.s32.totalorder %s103, %s119
    %p121 = scmp.eq.s32.totalorder %s17, 0
    %p122 = por %p120, %p121
    %s123 = ssub.s32 %s11, %s18
    %p124 = scmp.eq.s32.totalorder %s123, 0
    %s126 = sadd.s32 %s125, 1
    %s127 = scalar_select %p124, %s125, %s126
    %p130 = pneg %p124
    %p131 = scmp.eq.s32.totalorder %s11, 3
    %p132 = por %p130, %p131
    %p133 = scmp.ne.s32.totalorder %s125, %s128
    %p134 = scmp.eq.s32.totalorder %s11, 0
    %p135 = por %p133, %p134
    %p136 = scmp.ne.s32.totalorder %s125, %s128
    %p137 = scmp.eq.s32.totalorder %s16, 3
    %p138 = por %p136, %p137
    %p139 = scmp.ne.s32.totalorder %s128, %s129
    %p140 = scmp.eq.s32.totalorder %s16, 0
    %p141 = por %p139, %p140
    %p142 = scmp.ne.s32.totalorder %s128, %s129
    %p143 = scmp.eq.s32.totalorder %s17, 3
    %p144 = por %p142, %p143
    %p146 = scmp.ne.s32.totalorder %s129, %s145
    %p147 = scmp.eq.s32.totalorder %s17, 0
    %p148 = por %p146, %p147
    %s149 = ssub.s32 %s11, %s18
    %p150 = scmp.eq.s32.totalorder %s149, 0
    %s152 = sadd.s32 %s151, 1
    %s153 = scalar_select %p150, %s151, %s152
    %p156 = pneg %p150
    %p157 = scmp.eq.s32.totalorder %s11, 3
    %p158 = por %p156, %p157
    %p159 = scmp.ne.s32.totalorder %s151, %s154
    %p160 = scmp.eq.s32.totalorder %s11, 0
    %p161 = por %p159, %p160
    %p162 = scmp.ne.s32.totalorder %s151, %s154
    %p163 = scmp.eq.s32.totalorder %s16, 3
    %p164 = por %p162, %p163
    %p165 = scmp.ne.s32.totalorder %s154, %s155
    %p166 = scmp.eq.s32.totalorder %s16, 0
    %p167 = por %p165, %p166
    %p168 = scmp.ne.s32.totalorder %s154, %s155
    %p169 = scmp.eq.s32.totalorder %s17, 3
    %p170 = por %p168, %p169
    %p172 = scmp.ne.s32.totalorder %s155, %s171
    %p173 = scmp.eq.s32.totalorder %s17, 0
    %p174 = por %p172, %p173
    %p175 = scmp.le.s32.totalorder 1, %s11
    %p176 = scmp.lt.s32.totalorder %s11, 5
    %p177 = pnand %p175, %p176
    %p178 = pneg %p177
    // Predicated region
    $region9: #{_lambda_.3} parent=5 // pred_check
      _
    $region10: #{_lambda_.3} parent=5 // pred_check_branch
      %180 = sbr.rel (%p177) target = $region12
    $region11: #{_lambda_.3} parent=5 // pred_region
      %s181 = ssub.s32 %s11, 1
    $region12: #{_lambda_.3} parent=5 // pred_fallthru
      _
    %p182 = scmp.lt.s32.totalorder %s11, 4
    // Predicated region
    $region13: #{_lambda_.3} parent=5 // pred_check
      %p183 = pneg %p182
    $region14: #{_lambda_.3} parent=5 // pred_check_branch
      %185 = sbr.rel (%p183) target = $region16
    $region15: #{_lambda_.3} parent=5 // pred_region
      // Predicated region
      $region17: #{_lambda_.3} parent=15 // pred_check
        %p186 = pneg %p31
      $region18: #{_lambda_.3} parent=15 // pred_check_branch
        %188 = sbr.rel (%p186) target = $region20
      $region19: #{_lambda_.3} parent=15 // pred_region
        %p189 = scmp.lt.s32.totalorder %s11, 3
        %s190 = scalar_select %p189, %s11, 3
        %s191 = smul.addr %s190, 60
        %s192 = smul.addr %s191, 2
        %s193 = scalar_lea.vmem %s0, %s192
      $region20: #{_lambda_.3} parent=15 // pred_fallthru
        _
      // Predicated region
      $region21: #{_lambda_.3} parent=15 // pred_check
        %p194 = pneg %p57
      $region22: #{_lambda_.3} parent=15 // pred_check_branch
        %196 = sbr.rel (%p194) target = $region24
      $region23: #{_lambda_.3} parent=15 // pred_region
        %p197 = scmp.lt.s32.totalorder %s11, 3
        %s198 = scalar_select %p197, %s11, 3
        %s199 = smul.addr %s198, 160
        %s200 = smul.addr %s199, 8
        %s201 = scalar_lea.vmem %s1, %s200
      $region24: #{_lambda_.3} parent=15 // pred_fallthru
        _
      // Predicated region
      $region25: #{_lambda_.3} parent=15 // pred_check
        %p202 = pneg %p83
      $region26: #{_lambda_.3} parent=15 // pred_check_branch
        %204 = sbr.rel (%p202) target = $region28
      $region27: #{_lambda_.3} parent=15 // pred_region
        %p205 = scmp.lt.s32.totalorder %s11, 3
        %s206 = scalar_select %p205, %s11, 3
        %s207 = smul.addr %s206, 5
        %s208 = scalar_lea.vmem %s2, %s207
      $region28: #{_lambda_.3} parent=15 // pred_fallthru
        _
      // Predicated region
      $region29: #{_lambda_.3} parent=15 // pred_check
        %p209 = pneg %p109
      $region30: #{_lambda_.3} parent=15 // pred_check_branch
        %211 = sbr.rel (%p209) target = $region32
      $region31: #{_lambda_.3} parent=15 // pred_region
        %p212 = scmp.lt.s32.totalorder %s11, 3
        %s213 = scalar_select %p212, %s11, 3
        %s214 = smul.addr %s213, 32
        %s215 = smul.addr %s214, 8
        %s216 = scalar_lea.vmem %s3, %s215
      $region32: #{_lambda_.3} parent=15 // pred_fallthru
        _
      // Predicated region
      $region33: #{_lambda_.3} parent=15 // pred_check
        %p217 = pneg %p135
      $region34: #{_lambda_.3} parent=15 // pred_check_branch
        %219 = sbr.rel (%p217) target = $region36
      $region35: #{_lambda_.3} parent=15 // pred_region
        %p220 = scmp.lt.s32.totalorder %s11, 3
        %s221 = scalar_select %p220, %s11, 3
        %s222 = smul.addr %s221, 2
        %s223 = scalar_lea.vmem %s4, %s222
      $region36: #{_lambda_.3} parent=15 // pred_fallthru
        _
    $region16: #{_lambda_.3} parent=5 // pred_fallthru
      _
    %p224 = scmp.le.s32.totalorder 1, %s11
    %p225 = scmp.lt.s32.totalorder %s11, 5
    %p226 = pnand %p224, %p225
    %p227 = pneg %p226
    // Predicated region
    $region37: #{_lambda_.3} parent=5 // pred_check
      _
    $region38: #{_lambda_.3} parent=5 // pred_check_branch
      %229 = sbr.rel (%p226) target = $region40
    $region39: #{_lambda_.3} parent=5 // pred_region
      %s230 = ssub.s32 %s11, 1
      %p231 = scmp.lt.s32.totalorder %s16, 3
      %s232 = scalar_select %p231, %s16, 3
      %s233 = smul.addr %s232, 60
      %s234 = smul.addr %s233, 2
      %s235 = scalar_lea.vmem %s0, %s234
      %p236 = pneg %p37
      %p237 = pneg %p34
      %p238 = scmp.lt.s32.totalorder %s16, 3
      %s239 = scalar_select %p238, %s16, 3
      %s240 = smul.addr %s239, 160
      %s241 = smul.addr %s240, 8
      %s242 = scalar_lea.vmem %s1, %s241
      %p243 = pneg %p63
      %p244 = pneg %p60
      %p245 = scmp.lt.s32.totalorder %s16, 3
      %s246 = scalar_select %p245, %s16, 3
      %s247 = smul.addr %s246, 5
      %s248 = scalar_lea.vmem %s2, %s247
      %p249 = pneg %p89
      %p250 = pneg %p86
      %p251 = scmp.lt.s32.totalorder %s16, 3
      %s252 = scalar_select %p251, %s16, 3
      %s253 = smul.addr %s252, 32
      %s254 = smul.addr %s253, 8
      %s255 = scalar_lea.vmem %s3, %s254
      %p256 = pneg %p115
      %p257 = pneg %p112
      %p258 = scmp.lt.s32.totalorder %s16, 3
      %s259 = scalar_select %p258, %s16, 3
      %s260 = smul.addr %s259, 2
      %s261 = scalar_lea.vmem %s4, %s260
      %p262 = pneg %p141
      %p263 = pneg %p138
      %p264 = pneg %p167
      %p265 = pneg %p164
      %p266 = scmp.lt.s32.totalorder %s16, 3
      %s267 = scalar_select %p266, %s16, 3
      %s268 = smul.addr %s267, 30
      %s269 = smul.addr %s268, 2
      %s270 = scalar_lea.vmem %s5, %s269
      %p271 = scmp.lt.s32.totalorder %s16, 3
      %s272 = scalar_select %p271, %s16, 3
      %s273 = smul.addr %s272, 60
      %s274 = smul.addr %s273, 2
      %s275 = scalar_lea.vmem %s0, %s274
      %p276 = scmp.lt.s32.totalorder %s16, 3
      %s277 = scalar_select %p276, %s16, 3
      %s278 = smul.addr %s277, 160
      %s279 = smul.addr %s278, 8
      %s280 = scalar_lea.vmem %s1, %s279
      %p281 = scmp.lt.s32.totalorder %s16, 3
      %s282 = scalar_select %p281, %s16, 3
      %s283 = smul.addr %s282, 5
      %s284 = scalar_lea.vmem %s2, %s283
      %p285 = scmp.lt.s32.totalorder %s16, 3
      %s286 = scalar_select %p285, %s16, 3
      %s287 = smul.addr %s286, 32
      %s288 = smul.addr %s287, 8
      %s289 = scalar_lea.vmem %s3, %s288
      %p290 = scmp.lt.s32.totalorder %s16, 3
      %s291 = scalar_select %p290, %s16, 3
      %s292 = smul.addr %s291, 2
      %s293 = scalar_lea.vmem %s4, %s292
      %p294 = scmp.lt.s32.totalorder %s16, 3
      %s295 = scalar_select %p294, %s16, 3
      %s296 = smul.addr %s295, 30
      %s297 = smul.addr %s296, 2
      %s298 = scalar_lea.vmem %s5, %s297
      %v299 = vld [vmem:[%s284] sm:$0x1f]
      %v301 = vperm.slane %v299, 0
      %v302 = vperm.slane %v299, 1
      %v303 = vperm.slane %v299, 2
      %v304 = vperm.slane %v299, 3
      %v305 = vperm.slane %v299, 4
      %v311 = vld [vmem:[%s293] sm:$0x3]
      %v313 = vperm.slane %v311, 0
      %v314 = vperm.slane %v311, 1
      %v317 = vld [vmem:[%s280] sm:$0xff]
      %v318 = vld [vmem:[%s280 + $0x8] sm:$0xff]
      %v319 = vld [vmem:[%s280 + $0x10] sm:$0xff]
      %v320 = vld [vmem:[%s280 + $0x18] sm:$0xff]
      %v321 = vld [vmem:[%s280 + $0x20] sm:$0xff]
      %v322 = vld [vmem:[%s280 + $0x28] sm:$0xff]
      %v323 = vld [vmem:[%s280 + $0x30] sm:$0xff]
      %v324 = vld [vmem:[%s280 + $0x38] sm:$0xff]
      %v325 = vld [vmem:[%s280 + $0x40] sm:$0xff]
      %v326 = vld [vmem:[%s280 + $0x48] sm:$0xff]
      %v327 = vld [vmem:[%s280 + $0x50] sm:$0xff]
      %v328 = vld [vmem:[%s280 + $0x58] sm:$0xff]
      %v329 = vld [vmem:[%s280 + $0x60] sm:$0xff]
      %v330 = vld [vmem:[%s280 + $0x68] sm:$0xff]
      %v331 = vld [vmem:[%s280 + $0x70] sm:$0xff]
      %v332 = vld [vmem:[%s280 + $0x78] sm:$0xff]
      %v333 = vld [vmem:[%s280 + $0x80] sm:$0xff]
      %v334 = vld [vmem:[%s280 + $0x88] sm:$0xff]
      %v335 = vld [vmem:[%s280 + $0x90] sm:$0xff]
      %v336 = vld [vmem:[%s280 + $0x98] sm:$0xff]
      %v337 = vld [vmem:[%s280 + $0xa0] sm:$0xff]
      %v338 = vld [vmem:[%s280 + $0xa8] sm:$0xff]
      %v339 = vld [vmem:[%s280 + $0xb0] sm:$0xff]
      %v340 = vld [vmem:[%s280 + $0xb8] sm:$0xff]
      %v341 = vld [vmem:[%s280 + $0xc0] sm:$0xff]
      %v342 = vld [vmem:[%s280 + $0xc8] sm:$0xff]
      %v343 = vld [vmem:[%s280 + $0xd0] sm:$0xff]
      %v344 = vld [vmem:[%s280 + $0xd8] sm:$0xff]
      %v345 = vld [vmem:[%s280 + $0xe0] sm:$0xff]
      %v346 = vld [vmem:[%s280 + $0xe8] sm:$0xff]
      %v347 = vld [vmem:[%s280 + $0xf0] sm:$0xff]
      %v348 = vld [vmem:[%s280 + $0xf8] sm:$0xff]
      %v349 = vld [vmem:[%s280 + $0x100] sm:$0xff]
      %v350 = vld [vmem:[%s280 + $0x108] sm:$0xff]
      %v351 = vld [vmem:[%s280 + $0x110] sm:$0xff]
      %v352 = vld [vmem:[%s280 + $0x118] sm:$0xff]
      %v353 = vld [vmem:[%s280 + $0x120] sm:$0xff]
      %v354 = vld [vmem:[%s280 + $0x128] sm:$0xff]
      %v355 = vld [vmem:[%s280 + $0x130] sm:$0xff]
      %v356 = vld [vmem:[%s280 + $0x138] sm:$0xff]
      %v357 = vld [vmem:[%s280 + $0x140] sm:$0xff]
      %v358 = vld [vmem:[%s280 + $0x148] sm:$0xff]
      %v359 = vld [vmem:[%s280 + $0x150] sm:$0xff]
      %v360 = vld [vmem:[%s280 + $0x158] sm:$0xff]
      %v361 = vld [vmem:[%s280 + $0x160] sm:$0xff]
      %v362 = vld [vmem:[%s280 + $0x168] sm:$0xff]
      %v363 = vld [vmem:[%s280 + $0x170] sm:$0xff]
      %v364 = vld [vmem:[%s280 + $0x178] sm:$0xff]
      %v365 = vld [vmem:[%s280 + $0x180] sm:$0xff]
      %v366 = vld [vmem:[%s280 + $0x188] sm:$0xff]
      %v367 = vld [vmem:[%s280 + $0x190] sm:$0xff]
      %v368 = vld [vmem:[%s280 + $0x198] sm:$0xff]
      %v369 = vld [vmem:[%s280 + $0x1a0] sm:$0xff]
      %v370 = vld [vmem:[%s280 + $0x1a8] sm:$0xff]
      %v371 = vld [vmem:[%s280 + $0x1b0] sm:$0xff]
      %v372 = vld [vmem:[%s280 + $0x1b8] sm:$0xff]
      %v373 = vld [vmem:[%s280 + $0x1c0] sm:$0xff]
      %v374 = vld [vmem:[%s280 + $0x1c8] sm:$0xff]
      %v375 = vld [vmem:[%s280 + $0x1d0] sm:$0xff]
      %v376 = vld [vmem:[%s280 + $0x1d8] sm:$0xff]
      %v377 = vld [vmem:[%s280 + $0x1e0] sm:$0xff]
      %v378 = vld [vmem:[%s280 + $0x1e8] sm:$0xff]
      %v379 = vld [vmem:[%s280 + $0x1f0] sm:$0xff]
      %v380 = vld [vmem:[%s280 + $0x1f8] sm:$0xff]
      %v381 = vld [vmem:[%s280 + $0x200] sm:$0xff]
      %v382 = vld [vmem:[%s280 + $0x208] sm:$0xff]
      %v383 = vld [vmem:[%s280 + $0x210] sm:$0xff]
      %v384 = vld [vmem:[%s280 + $0x218] sm:$0xff]
      %v385 = vld [vmem:[%s280 + $0x220] sm:$0xff]
      %v386 = vld [vmem:[%s280 + $0x228] sm:$0xff]
      %v387 = vld [vmem:[%s280 + $0x230] sm:$0xff]
      %v388 = vld [vmem:[%s280 + $0x238] sm:$0xff]
      %v389 = vld [vmem:[%s280 + $0x240] sm:$0xff]
      %v390 = vld [vmem:[%s280 + $0x248] sm:$0xff]
      %v391 = vld [vmem:[%s280 + $0x250] sm:$0xff]
      %v392 = vld [vmem:[%s280 + $0x258] sm:$0xff]
      %v393 = vld [vmem:[%s280 + $0x260] sm:$0xff]
      %v394 = vld [vmem:[%s280 + $0x268] sm:$0xff]
      %v395 = vld [vmem:[%s280 + $0x270] sm:$0xff]
      %v396 = vld [vmem:[%s280 + $0x278] sm:$0xff]
      %v397 = vld [vmem:[%s280 + $0x280] sm:$0xff]
      %v398 = vld [vmem:[%s280 + $0x288] sm:$0xff]
      %v399 = vld [vmem:[%s280 + $0x290] sm:$0xff]
      %v400 = vld [vmem:[%s280 + $0x298] sm:$0xff]
      %v401 = vld [vmem:[%s280 + $0x2a0] sm:$0xff]
      %v402 = vld [vmem:[%s280 + $0x2a8] sm:$0xff]
      %v403 = vld [vmem:[%s280 + $0x2b0] sm:$0xff]
      %v404 = vld [vmem:[%s280 + $0x2b8] sm:$0xff]
      %v405 = vld [vmem:[%s280 + $0x2c0] sm:$0xff]
      %v406 = vld [vmem:[%s280 + $0x2c8] sm:$0xff]
      %v407 = vld [vmem:[%s280 + $0x2d0] sm:$0xff]
      %v408 = vld [vmem:[%s280 + $0x2d8] sm:$0xff]
      %v409 = vld [vmem:[%s280 + $0x2e0] sm:$0xff]
      %v410 = vld [vmem:[%s280 + $0x2e8] sm:$0xff]
      %v411 = vld [vmem:[%s280 + $0x2f0] sm:$0xff]
      %v412 = vld [vmem:[%s280 + $0x2f8] sm:$0xff]
      %v413 = vld [vmem:[%s280 + $0x300] sm:$0xff]
      %v414 = vld [vmem:[%s280 + $0x308] sm:$0xff]
      %v415 = vld [vmem:[%s280 + $0x310] sm:$0xff]
      %v416 = vld [vmem:[%s280 + $0x318] sm:$0xff]
      %v417 = vld [vmem:[%s280 + $0x320] sm:$0xff]
      %v418 = vld [vmem:[%s280 + $0x328] sm:$0xff]
      %v419 = vld [vmem:[%s280 + $0x330] sm:$0xff]
      %v420 = vld [vmem:[%s280 + $0x338] sm:$0xff]
      %v421 = vld [vmem:[%s280 + $0x340] sm:$0xff]
      %v422 = vld [vmem:[%s280 + $0x348] sm:$0xff]
      %v423 = vld [vmem:[%s280 + $0x350] sm:$0xff]
      %v424 = vld [vmem:[%s280 + $0x358] sm:$0xff]
      %v425 = vld [vmem:[%s280 + $0x360] sm:$0xff]
      %v426 = vld [vmem:[%s280 + $0x368] sm:$0xff]
      %v427 = vld [vmem:[%s280 + $0x370] sm:$0xff]
      %v428 = vld [vmem:[%s280 + $0x378] sm:$0xff]
      %v429 = vld [vmem:[%s280 + $0x380] sm:$0xff]
      %v430 = vld [vmem:[%s280 + $0x388] sm:$0xff]
      %v431 = vld [vmem:[%s280 + $0x390] sm:$0xff]
      %v432 = vld [vmem:[%s280 + $0x398] sm:$0xff]
      %v433 = vld [vmem:[%s280 + $0x3a0] sm:$0xff]
      %v434 = vld [vmem:[%s280 + $0x3a8] sm:$0xff]
      %v435 = vld [vmem:[%s280 + $0x3b0] sm:$0xff]
      %v436 = vld [vmem:[%s280 + $0x3b8] sm:$0xff]
      %v437 = vld [vmem:[%s280 + $0x3c0] sm:$0xff]
      %v438 = vld [vmem:[%s280 + $0x3c8] sm:$0xff]
      %v439 = vld [vmem:[%s280 + $0x3d0] sm:$0xff]
      %v440 = vld [vmem:[%s280 + $0x3d8] sm:$0xff]
      %v441 = vld [vmem:[%s280 + $0x3e0] sm:$0xff]
      %v442 = vld [vmem:[%s280 + $0x3e8] sm:$0xff]
      %v443 = vld [vmem:[%s280 + $0x3f0] sm:$0xff]
      %v444 = vld [vmem:[%s280 + $0x3f8] sm:$0xff]
      %v445 = vld [vmem:[%s280 + $0x400] sm:$0xff]
      %v446 = vld [vmem:[%s280 + $0x408] sm:$0xff]
      %v447 = vld [vmem:[%s280 + $0x410] sm:$0xff]
      %v448 = vld [vmem:[%s280 + $0x418] sm:$0xff]
      %v449 = vld [vmem:[%s280 + $0x420] sm:$0xff]
      %v450 = vld [vmem:[%s280 + $0x428] sm:$0xff]
      %v451 = vld [vmem:[%s280 + $0x430] sm:$0xff]
      %v452 = vld [vmem:[%s280 + $0x438] sm:$0xff]
      %v453 = vld [vmem:[%s280 + $0x440] sm:$0xff]
      %v454 = vld [vmem:[%s280 + $0x448] sm:$0xff]
      %v455 = vld [vmem:[%s280 + $0x450] sm:$0xff]
      %v456 = vld [vmem:[%s280 + $0x458] sm:$0xff]
      %v457 = vld [vmem:[%s280 + $0x460] sm:$0xff]
      %v458 = vld [vmem:[%s280 + $0x468] sm:$0xff]
      %v459 = vld [vmem:[%s280 + $0x470] sm:$0xff]
      %v460 = vld [vmem:[%s280 + $0x478] sm:$0xff]
      %v461 = vld [vmem:[%s280 + $0x480] sm:$0xff]
      %v462 = vld [vmem:[%s280 + $0x488] sm:$0xff]
      %v463 = vld [vmem:[%s280 + $0x490] sm:$0xff]
      %v464 = vld [vmem:[%s280 + $0x498] sm:$0xff]
      %v465 = vld [vmem:[%s280 + $0x4a0] sm:$0xff]
      %v466 = vld [vmem:[%s280 + $0x4a8] sm:$0xff]
      %v467 = vld [vmem:[%s280 + $0x4b0] sm:$0xff]
      %v468 = vld [vmem:[%s280 + $0x4b8] sm:$0xff]
      %v469 = vld [vmem:[%s280 + $0x4c0] sm:$0xff]
      %v470 = vld [vmem:[%s280 + $0x4c8] sm:$0xff]
      %v471 = vld [vmem:[%s280 + $0x4d0] sm:$0xff]
      %v472 = vld [vmem:[%s280 + $0x4d8] sm:$0xff]
      %v473 = vld [vmem:[%s280 + $0x4e0] sm:$0xff]
      %v474 = vld [vmem:[%s280 + $0x4e8] sm:$0xff]
      %v475 = vld [vmem:[%s280 + $0x4f0] sm:$0xff]
      %v476 = vld [vmem:[%s280 + $0x4f8] sm:$0xff]
      %477 = vmatpush.msra.mxu0 %v392
      %478 = vmatpush.msra.mxu0 %v387
      %479 = vmatpush.msra.mxu0 %v382
      %480 = vmatpush.msra.mxu0 %v377
      %481 = vmatpush.msra.mxu0 %v372
      %482 = vmatpush.msra.mxu0 %v367
      %483 = vmatpush.msra.mxu0 %v362
      %484 = vmatpush.msra.mxu0 %v357
      %485 = vmatpush.msra.mxu0 %v352
      %486 = vmatpush.msra.mxu0 %v347
      %487 = vmatpush.msra.mxu0 %v342
      %488 = vmatpush.msra.mxu0 %v337
      %489 = vmatpush.msra.mxu0 %v332
      %490 = vmatpush.msra.mxu0 %v327
      %491 = vmatpush.msra.mxu0 %v322
      %492 = vmatpush.msra.mxu0 %v317
      %493 = vmatmul.f32.gmra.mxu0 0.0
      %v494 = vpop.f32.mrf.mxu0
      %v495 = vadd.f32 %v301, %v494
      %496 = vdwg.mxu0
      %497 = vmatpush.msra.mxu0 %v472
      %498 = vmatpush.msra.mxu0 %v467
      %499 = vmatpush.msra.mxu0 %v462
      %500 = vmatpush.msra.mxu0 %v457
      %501 = vmatpush.msra.mxu0 %v452
      %502 = vmatpush.msra.mxu0 %v447
      %503 = vmatpush.msra.mxu0 %v442
      %504 = vmatpush.msra.mxu0 %v437
      %505 = vmatpush.msra.mxu0 %v432
      %506 = vmatpush.msra.mxu0 %v427
      %507 = vmatpush.msra.mxu0 %v422
      %508 = vmatpush.msra.mxu0 %v417
      %509 = vmatpush.msra.mxu0 %v412
      %510 = vmatpush.msra.mxu0 %v407
      %511 = vmatpush.msra.mxu0 %v402
      %512 = vmatpush.msra.mxu0 %v397
      %513 = vmatmul.f32.gmra.mxu0 0.0
      %v514 = vpop.f32.mrf.mxu0
      %v515 = vadd.f32 %v495, %v514
      %516 = vdwg.mxu0
      %517 = vmatpush.msra.mxu0 %v393
      %518 = vmatpush.msra.mxu0 %v388
      %519 = vmatpush.msra.mxu0 %v383
      %520 = vmatpush.msra.mxu0 %v378
      %521 = vmatpush.msra.mxu0 %v373
      %522 = vmatpush.msra.mxu0 %v368
      %523 = vmatpush.msra.mxu0 %v363
      %524 = vmatpush.msra.mxu0 %v358
      %525 = vmatpush.msra.mxu0 %v353
      %526 = vmatpush.msra.mxu0 %v348
      %527 = vmatpush.msra.mxu0 %v343
      %528 = vmatpush.msra.mxu0 %v338
      %529 = vmatpush.msra.mxu0 %v333
      %530 = vmatpush.msra.mxu0 %v328
      %531 = vmatpush.msra.mxu0 %v323
      %532 = vmatpush.msra.mxu0 %v318
      %533 = vmatmul.f32.gmra.mxu0 0.0
      %v534 = vpop.f32.mrf.mxu0
      %v535 = vadd.f32 %v302, %v534
      %536 = vdwg.mxu0
      %537 = vmatpush.msra.mxu0 %v473
      %538 = vmatpush.msra.mxu0 %v468
      %539 = vmatpush.msra.mxu0 %v463
      %540 = vmatpush.msra.mxu0 %v458
      %541 = vmatpush.msra.mxu0 %v453
      %542 = vmatpush.msra.mxu0 %v448
      %543 = vmatpush.msra.mxu0 %v443
      %544 = vmatpush.msra.mxu0 %v438
      %545 = vmatpush.msra.mxu0 %v433
      %546 = vmatpush.msra.mxu0 %v428
      %547 = vmatpush.msra.mxu0 %v423
      %548 = vmatpush.msra.mxu0 %v418
      %549 = vmatpush.msra.mxu0 %v413
      %550 = vmatpush.msra.mxu0 %v408
      %551 = vmatpush.msra.mxu0 %v403
      %552 = vmatpush.msra.mxu0 %v398
      %553 = vmatmul.f32.gmra.mxu0 0.0
      %v554 = vpop.f32.mrf.mxu0
      %v555 = vadd.f32 %v535, %v554
      %556 = vdwg.mxu0
      %557 = vmatpush.msra.mxu0 %v394
      %558 = vmatpush.msra.mxu0 %v389
      %559 = vmatpush.msra.mxu0 %v384
      %560 = vmatpush.msra.mxu0 %v379
      %561 = vmatpush.msra.mxu0 %v374
      %562 = vmatpush.msra.mxu0 %v369
      %563 = vmatpush.msra.mxu0 %v364
      %564 = vmatpush.msra.mxu0 %v359
      %565 = vmatpush.msra.mxu0 %v354
      %566 = vmatpush.msra.mxu0 %v349
      %567 = vmatpush.msra.mxu0 %v344
      %568 = vmatpush.msra.mxu0 %v339
      %569 = vmatpush.msra.mxu0 %v334
      %570 = vmatpush.msra.mxu0 %v329
      %571 = vmatpush.msra.mxu0 %v324
      %572 = vmatpush.msra.mxu0 %v319
      %573 = vmatmul.f32.gmra.mxu0 0.0
      %v574 = vpop.f32.mrf.mxu0
      %v575 = vadd.f32 %v303, %v574
      %576 = vdwg.mxu0
      %577 = vmatpush.msra.mxu0 %v474
      %578 = vmatpush.msra.mxu0 %v469
      %579 = vmatpush.msra.mxu0 %v464
      %580 = vmatpush.msra.mxu0 %v459
      %581 = vmatpush.msra.mxu0 %v454
      %582 = vmatpush.msra.mxu0 %v449
      %583 = vmatpush.msra.mxu0 %v444
      %584 = vmatpush.msra.mxu0 %v439
      %585 = vmatpush.msra.mxu0 %v434
      %586 = vmatpush.msra.mxu0 %v429
      %587 = vmatpush.msra.mxu0 %v424
      %588 = vmatpush.msra.mxu0 %v419
      %589 = vmatpush.msra.mxu0 %v414
      %590 = vmatpush.msra.mxu0 %v409
      %591 = vmatpush.msra.mxu0 %v404
      %592 = vmatpush.msra.mxu0 %v399
      %593 = vmatmul.f32.gmra.mxu0 0.0
      %v594 = vpop.f32.mrf.mxu0
      %v595 = vadd.f32 %v575, %v594
      %596 = vdwg.mxu0
      %597 = vmatpush.msra.mxu0 %v395
      %598 = vmatpush.msra.mxu0 %v390
      %599 = vmatpush.msra.mxu0 %v385
      %600 = vmatpush.msra.mxu0 %v380
      %601 = vmatpush.msra.mxu0 %v375
      %602 = vmatpush.msra.mxu0 %v370
      %603 = vmatpush.msra.mxu0 %v365
      %604 = vmatpush.msra.mxu0 %v360
      %605 = vmatpush.msra.mxu0 %v355
      %606 = vmatpush.msra.mxu0 %v350
      %607 = vmatpush.msra.mxu0 %v345
      %608 = vmatpush.msra.mxu0 %v340
      %609 = vmatpush.msra.mxu0 %v335
      %610 = vmatpush.msra.mxu0 %v330
      %611 = vmatpush.msra.mxu0 %v325
      %612 = vmatpush.msra.mxu0 %v320
      %613 = vmatmul.f32.gmra.mxu0 0.0
      %v614 = vpop.f32.mrf.mxu0
      %v615 = vadd.f32 %v304, %v614
      %616 = vdwg.mxu0
      %617 = vmatpush.msra.mxu0 %v475
      %618 = vmatpush.msra.mxu0 %v470
      %619 = vmatpush.msra.mxu0 %v465
      %620 = vmatpush.msra.mxu0 %v460
      %621 = vmatpush.msra.mxu0 %v455
      %622 = vmatpush.msra.mxu0 %v450
      %623 = vmatpush.msra.mxu0 %v445
      %624 = vmatpush.msra.mxu0 %v440
      %625 = vmatpush.msra.mxu0 %v435
      %626 = vmatpush.msra.mxu0 %v430
      %627 = vmatpush.msra.mxu0 %v425
      %628 = vmatpush.msra.mxu0 %v420
      %629 = vmatpush.msra.mxu0 %v415
      %630 = vmatpush.msra.mxu0 %v410
      %631 = vmatpush.msra.mxu0 %v405
      %632 = vmatpush.msra.mxu0 %v400
      %633 = vmatmul.f32.gmra.mxu0 0.0
      %v634 = vpop.f32.mrf.mxu0
      %v635 = vadd.f32 %v615, %v634
      %636 = vdwg.mxu0
      %637 = vmatpush.msra.mxu0 %v396
      %638 = vmatpush.msra.mxu0 %v391
      %639 = vmatpush.msra.mxu0 %v386
      %640 = vmatpush.msra.mxu0 %v381
      %641 = vmatpush.msra.mxu0 %v376
      %642 = vmatpush.msra.mxu0 %v371
      %643 = vmatpush.msra.mxu0 %v366
      %644 = vmatpush.msra.mxu0 %v361
      %645 = vmatpush.msra.mxu0 %v356
      %646 = vmatpush.msra.mxu0 %v351
      %647 = vmatpush.msra.mxu0 %v346
      %648 = vmatpush.msra.mxu0 %v341
      %649 = vmatpush.msra.mxu0 %v336
      %650 = vmatpush.msra.mxu0 %v331
      %651 = vmatpush.msra.mxu0 %v326
      %652 = vmatpush.msra.mxu0 %v321
      %653 = vmatmul.f32.gmra.mxu0 0.0
      %v654 = vpop.f32.mrf.mxu0
      %v655 = vadd.f32 %v305, %v654
      %656 = vdwg.mxu0
      %657 = vmatpush.msra.mxu0 %v476
      %658 = vmatpush.msra.mxu0 %v471
      %659 = vmatpush.msra.mxu0 %v466
      %660 = vmatpush.msra.mxu0 %v461
      %661 = vmatpush.msra.mxu0 %v456
      %662 = vmatpush.msra.mxu0 %v451
      %663 = vmatpush.msra.mxu0 %v446
      %664 = vmatpush.msra.mxu0 %v441
      %665 = vmatpush.msra.mxu0 %v436
      %666 = vmatpush.msra.mxu0 %v431
      %667 = vmatpush.msra.mxu0 %v426
      %668 = vmatpush.msra.mxu0 %v421
      %669 = vmatpush.msra.mxu0 %v416
      %670 = vmatpush.msra.mxu0 %v411
      %671 = vmatpush.msra.mxu0 %v406
      %672 = vmatpush.msra.mxu0 %v401
      %673 = vmatmul.f32.gmra.mxu0 0.0
      %v674 = vpop.f32.mrf.mxu0
      %v675 = vadd.f32 %v655, %v674
      %676 = vdwg.mxu0
      %v677 = vld [vmem:[%s275] sm:$0xff]
      %v682 = vrot.slane %v595, 6
      %v683 = vrot.slane %v635, 4
      %v684 = vrot.slane %v675, 2
      %vm685 = vcmask 1041408
      %v686 = vsel %vm685, %v555, %v682
      %vm687 = vcmask 1045508
      %v688 = vsel %vm687, %v683, %v684
      %vm689 = vcmask 1043456
      %v690 = vsel %vm689, %v686, %v688
      %v692 = vadd.f32 %v677, %v690
      %v693 = vxor.u32 %v692, 2147483648
      %v694 = vmul.f32 %v693, 1.442695
      %v695 = vpow.pop %v694
      %v696 = vadd.f32 %v695, 1.0
      %v697 = vrcp.pop %v696
      %v698 = vmul.f32 %v696, %v697
      %v699 = vsub.f32 1.0, %v698
      %v700 = vmul.f32 %v697, %v699
      %v701 = vadd.f32 %v697, %v700
      %vm702 = vweird.f32 %v696
      %vm703 = vweird.f32 %v697
      %vm704 = vmor %vm702, %vm703
      %v705 = vsel %vm704, %v697, %v701
      %v706 = vand.u32 2147483647, %v696
      %vm707 = vcmp.eq.f32.partialorder %v706, 8.507059e+37
      %v708 = vand.u32 %v696, 2147483648
      %v709 = vor.u32 1.1754944e-38, %v708
      %v710 = vsel %vm707, %v709, %v705
      %v711 = vmul.f32 1.0, %v710
      %v713 = vrot.slane %v711, 4
      %v715 = vmul.f32 %v713, %v515
      %v716 = vrot.slane %v711, 2
      %v718 = vmul.f32 %v711, %v716
      %v719 = vadd.f32 %v715, %v718
      %v720 = vtanh.pop %v719
      %v721 = vrot.slane %v711, 6
      %v723 = vmul.f32 %v721, %v720
      %v724 = vld [vmem:[%s289] sm:$0xff]
      %v725 = vld [vmem:[%s289 + $0x8] sm:$0xff]
      %v726 = vld [vmem:[%s289 + $0x10] sm:$0xff]
      %v727 = vld [vmem:[%s289 + $0x18] sm:$0xff]
      %v728 = vld [vmem:[%s289 + $0x20] sm:$0xff]
      %v729 = vld [vmem:[%s289 + $0x28] sm:$0xff]
      %v730 = vld [vmem:[%s289 + $0x30] sm:$0xff]
      %v731 = vld [vmem:[%s289 + $0x38] sm:$0xff]
      %v732 = vld [vmem:[%s289 + $0x40] sm:$0xff]
      %v733 = vld [vmem:[%s289 + $0x48] sm:$0xff]
      %v734 = vld [vmem:[%s289 + $0x50] sm:$0xff]
      %v735 = vld [vmem:[%s289 + $0x58] sm:$0xff]
      %v736 = vld [vmem:[%s289 + $0x60] sm:$0xff]
      %v737 = vld [vmem:[%s289 + $0x68] sm:$0xff]
      %v738 = vld [vmem:[%s289 + $0x70] sm:$0xff]
      %v739 = vld [vmem:[%s289 + $0x78] sm:$0xff]
      %v740 = vld [vmem:[%s289 + $0x80] sm:$0xff]
      %v741 = vld [vmem:[%s289 + $0x88] sm:$0xff]
      %v742 = vld [vmem:[%s289 + $0x90] sm:$0xff]
      %v743 = vld [vmem:[%s289 + $0x98] sm:$0xff]
      %v744 = vld [vmem:[%s289 + $0xa0] sm:$0xff]
      %v745 = vld [vmem:[%s289 + $0xa8] sm:$0xff]
      %v746 = vld [vmem:[%s289 + $0xb0] sm:$0xff]
      %v747 = vld [vmem:[%s289 + $0xb8] sm:$0xff]
      %v748 = vld [vmem:[%s289 + $0xc0] sm:$0xff]
      %v749 = vld [vmem:[%s289 + $0xc8] sm:$0xff]
      %v750 = vld [vmem:[%s289 + $0xd0] sm:$0xff]
      %v751 = vld [vmem:[%s289 + $0xd8] sm:$0xff]
      %v752 = vld [vmem:[%s289 + $0xe0] sm:$0xff]
      %v753 = vld [vmem:[%s289 + $0xe8] sm:$0xff]
      %v754 = vld [vmem:[%s289 + $0xf0] sm:$0xff]
      %v755 = vld [vmem:[%s289 + $0xf8] sm:$0xff]
      %756 = vmatpush.msra.mxu0 %v754
      %757 = vmatpush.msra.mxu0 %v752
      %758 = vmatpush.msra.mxu0 %v750
      %759 = vmatpush.msra.mxu0 %v748
      %760 = vmatpush.msra.mxu0 %v746
      %761 = vmatpush.msra.mxu0 %v744
      %762 = vmatpush.msra.mxu0 %v742
      %763 = vmatpush.msra.mxu0 %v740
      %764 = vmatpush.msra.mxu0 %v738
      %765 = vmatpush.msra.mxu0 %v736
      %766 = vmatpush.msra.mxu0 %v734
      %767 = vmatpush.msra.mxu0 %v732
      %768 = vmatpush.msra.mxu0 %v730
      %769 = vmatpush.msra.mxu0 %v728
      %770 = vmatpush.msra.mxu0 %v726
      %771 = vmatpush.msra.mxu0 %v724
      %772 = vmatmul.f32.gmra.mxu0 %v723
      %v773 = vpop.f32.mrf.mxu0
      %v774 = vadd.f32 %v313, %v773
      %775 = vdwg.mxu0
      %776 = vmatpush.msra.mxu0 %v755
      %777 = vmatpush.msra.mxu0 %v753
      %778 = vmatpush.msra.mxu0 %v751
      %779 = vmatpush.msra.mxu0 %v749
      %780 = vmatpush.msra.mxu0 %v747
      %781 = vmatpush.msra.mxu0 %v745
      %782 = vmatpush.msra.mxu0 %v743
      %783 = vmatpush.msra.mxu0 %v741
      %784 = vmatpush.msra.mxu0 %v739
      %785 = vmatpush.msra.mxu0 %v737
      %786 = vmatpush.msra.mxu0 %v735
      %787 = vmatpush.msra.mxu0 %v733
      %788 = vmatpush.msra.mxu0 %v731
      %789 = vmatpush.msra.mxu0 %v729
      %790 = vmatpush.msra.mxu0 %v727
      %791 = vmatpush.msra.mxu0 %v725
      %792 = vmatmul.f32.gmra.mxu0 %v723
      %v793 = vpop.f32.mrf.mxu0
      %v794 = vadd.f32 %v314, %v793
      %795 = vdwg.mxu0
      %v798 = vrot.slane %v794, 6
      %v799 = vsel %vm685, %v774, %v798
      %801 = vst [vmem:[%s298] sm:$0xf] %v799
      %v802 = vld [vmem:[%s280] sm:$0xff]
      %v803 = vld [vmem:[%s280 + $0x8] sm:$0xff]
      %v804 = vld [vmem:[%s280 + $0x10] sm:$0xff]
      %v805 = vld [vmem:[%s280 + $0x18] sm:$0xff]
      %v806 = vld [vmem:[%s280 + $0x20] sm:$0xff]
      %v807 = vld [vmem:[%s280 + $0x28] sm:$0xff]
      %v808 = vld [vmem:[%s280 + $0x30] sm:$0xff]
      %v809 = vld [vmem:[%s280 + $0x38] sm:$0xff]
      %v810 = vld [vmem:[%s280 + $0x40] sm:$0xff]
      %v811 = vld [vmem:[%s280 + $0x48] sm:$0xff]
      %v812 = vld [vmem:[%s280 + $0x50] sm:$0xff]
      %v813 = vld [vmem:[%s280 + $0x58] sm:$0xff]
      %v814 = vld [vmem:[%s280 + $0x60] sm:$0xff]
      %v815 = vld [vmem:[%s280 + $0x68] sm:$0xff]
      %v816 = vld [vmem:[%s280 + $0x70] sm:$0xff]
      %v817 = vld [vmem:[%s280 + $0x78] sm:$0xff]
      %v818 = vld [vmem:[%s280 + $0x80] sm:$0xff]
      %v819 = vld [vmem:[%s280 + $0x88] sm:$0xff]
      %v820 = vld [vmem:[%s280 + $0x90] sm:$0xff]
      %v821 = vld [vmem:[%s280 + $0x98] sm:$0xff]
      %v822 = vld [vmem:[%s280 + $0xa0] sm:$0xff]
      %v823 = vld [vmem:[%s280 + $0xa8] sm:$0xff]
      %v824 = vld [vmem:[%s280 + $0xb0] sm:$0xff]
      %v825 = vld [vmem:[%s280 + $0xb8] sm:$0xff]
      %v826 = vld [vmem:[%s280 + $0xc0] sm:$0xff]
      %v827 = vld [vmem:[%s280 + $0xc8] sm:$0xff]
      %v828 = vld [vmem:[%s280 + $0xd0] sm:$0xff]
      %v829 = vld [vmem:[%s280 + $0xd8] sm:$0xff]
      %v830 = vld [vmem:[%s280 + $0xe0] sm:$0xff]
      %v831 = vld [vmem:[%s280 + $0xe8] sm:$0xff]
      %v832 = vld [vmem:[%s280 + $0xf0] sm:$0xff]
      %v833 = vld [vmem:[%s280 + $0xf8] sm:$0xff]
      %v834 = vld [vmem:[%s280 + $0x100] sm:$0xff]
      %v835 = vld [vmem:[%s280 + $0x108] sm:$0xff]
      %v836 = vld [vmem:[%s280 + $0x110] sm:$0xff]
      %v837 = vld [vmem:[%s280 + $0x118] sm:$0xff]
      %v838 = vld [vmem:[%s280 + $0x120] sm:$0xff]
      %v839 = vld [vmem:[%s280 + $0x128] sm:$0xff]
      %v840 = vld [vmem:[%s280 + $0x130] sm:$0xff]
      %v841 = vld [vmem:[%s280 + $0x138] sm:$0xff]
      %v842 = vld [vmem:[%s280 + $0x140] sm:$0xff]
      %v843 = vld [vmem:[%s280 + $0x148] sm:$0xff]
      %v844 = vld [vmem:[%s280 + $0x150] sm:$0xff]
      %v845 = vld [vmem:[%s280 + $0x158] sm:$0xff]
      %v846 = vld [vmem:[%s280 + $0x160] sm:$0xff]
      %v847 = vld [vmem:[%s280 + $0x168] sm:$0xff]
      %v848 = vld [vmem:[%s280 + $0x170] sm:$0xff]
      %v849 = vld [vmem:[%s280 + $0x178] sm:$0xff]
      %v850 = vld [vmem:[%s280 + $0x180] sm:$0xff]
      %v851 = vld [vmem:[%s280 + $0x188] sm:$0xff]
      %v852 = vld [vmem:[%s280 + $0x190] sm:$0xff]
      %v853 = vld [vmem:[%s280 + $0x198] sm:$0xff]
      %v854 = vld [vmem:[%s280 + $0x1a0] sm:$0xff]
      %v855 = vld [vmem:[%s280 + $0x1a8] sm:$0xff]
      %v856 = vld [vmem:[%s280 + $0x1b0] sm:$0xff]
      %v857 = vld [vmem:[%s280 + $0x1b8] sm:$0xff]
      %v858 = vld [vmem:[%s280 + $0x1c0] sm:$0xff]
      %v859 = vld [vmem:[%s280 + $0x1c8] sm:$0xff]
      %v860 = vld [vmem:[%s280 + $0x1d0] sm:$0xff]
      %v861 = vld [vmem:[%s280 + $0x1d8] sm:$0xff]
      %v862 = vld [vmem:[%s280 + $0x1e0] sm:$0xff]
      %v863 = vld [vmem:[%s280 + $0x1e8] sm:$0xff]
      %v864 = vld [vmem:[%s280 + $0x1f0] sm:$0xff]
      %v865 = vld [vmem:[%s280 + $0x1f8] sm:$0xff]
      %v866 = vld [vmem:[%s280 + $0x200] sm:$0xff]
      %v867 = vld [vmem:[%s280 + $0x208] sm:$0xff]
      %v868 = vld [vmem:[%s280 + $0x210] sm:$0xff]
      %v869 = vld [vmem:[%s280 + $0x218] sm:$0xff]
      %v870 = vld [vmem:[%s280 + $0x220] sm:$0xff]
      %v871 = vld [vmem:[%s280 + $0x228] sm:$0xff]
      %v872 = vld [vmem:[%s280 + $0x230] sm:$0xff]
      %v873 = vld [vmem:[%s280 + $0x238] sm:$0xff]
      %v874 = vld [vmem:[%s280 + $0x240] sm:$0xff]
      %v875 = vld [vmem:[%s280 + $0x248] sm:$0xff]
      %v876 = vld [vmem:[%s280 + $0x250] sm:$0xff]
      %v877 = vld [vmem:[%s280 + $0x258] sm:$0xff]
      %v878 = vld [vmem:[%s280 + $0x260] sm:$0xff]
      %v879 = vld [vmem:[%s280 + $0x268] sm:$0xff]
      %v880 = vld [vmem:[%s280 + $0x270] sm:$0xff]
      %v881 = vld [vmem:[%s280 + $0x278] sm:$0xff]
      %v882 = vld [vmem:[%s280 + $0x280] sm:$0xff]
      %v883 = vld [vmem:[%s280 + $0x288] sm:$0xff]
      %v884 = vld [vmem:[%s280 + $0x290] sm:$0xff]
      %v885 = vld [vmem:[%s280 + $0x298] sm:$0xff]
      %v886 = vld [vmem:[%s280 + $0x2a0] sm:$0xff]
      %v887 = vld [vmem:[%s280 + $0x2a8] sm:$0xff]
      %v888 = vld [vmem:[%s280 + $0x2b0] sm:$0xff]
      %v889 = vld [vmem:[%s280 + $0x2b8] sm:$0xff]
      %v890 = vld [vmem:[%s280 + $0x2c0] sm:$0xff]
      %v891 = vld [vmem:[%s280 + $0x2c8] sm:$0xff]
      %v892 = vld [vmem:[%s280 + $0x2d0] sm:$0xff]
      %v893 = vld [vmem:[%s280 + $0x2d8] sm:$0xff]
      %v894 = vld [vmem:[%s280 + $0x2e0] sm:$0xff]
      %v895 = vld [vmem:[%s280 + $0x2e8] sm:$0xff]
      %v896 = vld [vmem:[%s280 + $0x2f0] sm:$0xff]
      %v897 = vld [vmem:[%s280 + $0x2f8] sm:$0xff]
      %v898 = vld [vmem:[%s280 + $0x300] sm:$0xff]
      %v899 = vld [vmem:[%s280 + $0x308] sm:$0xff]
      %v900 = vld [vmem:[%s280 + $0x310] sm:$0xff]
      %v901 = vld [vmem:[%s280 + $0x318] sm:$0xff]
      %v902 = vld [vmem:[%s280 + $0x320] sm:$0xff]
      %v903 = vld [vmem:[%s280 + $0x328] sm:$0xff]
      %v904 = vld [vmem:[%s280 + $0x330] sm:$0xff]
      %v905 = vld [vmem:[%s280 + $0x338] sm:$0xff]
      %v906 = vld [vmem:[%s280 + $0x340] sm:$0xff]
      %v907 = vld [vmem:[%s280 + $0x348] sm:$0xff]
      %v908 = vld [vmem:[%s280 + $0x350] sm:$0xff]
      %v909 = vld [vmem:[%s280 + $0x358] sm:$0xff]
      %v910 = vld [vmem:[%s280 + $0x360] sm:$0xff]
      %v911 = vld [vmem:[%s280 + $0x368] sm:$0xff]
      %v912 = vld [vmem:[%s280 + $0x370] sm:$0xff]
      %v913 = vld [vmem:[%s280 + $0x378] sm:$0xff]
      %v914 = vld [vmem:[%s280 + $0x380] sm:$0xff]
      %v915 = vld [vmem:[%s280 + $0x388] sm:$0xff]
      %v916 = vld [vmem:[%s280 + $0x390] sm:$0xff]
      %v917 = vld [vmem:[%s280 + $0x398] sm:$0xff]
      %v918 = vld [vmem:[%s280 + $0x3a0] sm:$0xff]
      %v919 = vld [vmem:[%s280 + $0x3a8] sm:$0xff]
      %v920 = vld [vmem:[%s280 + $0x3b0] sm:$0xff]
      %v921 = vld [vmem:[%s280 + $0x3b8] sm:$0xff]
      %v922 = vld [vmem:[%s280 + $0x3c0] sm:$0xff]
      %v923 = vld [vmem:[%s280 + $0x3c8] sm:$0xff]
      %v924 = vld [vmem:[%s280 + $0x3d0] sm:$0xff]
      %v925 = vld [vmem:[%s280 + $0x3d8] sm:$0xff]
      %v926 = vld [vmem:[%s280 + $0x3e0] sm:$0xff]
      %v927 = vld [vmem:[%s280 + $0x3e8] sm:$0xff]
      %v928 = vld [vmem:[%s280 + $0x3f0] sm:$0xff]
      %v929 = vld [vmem:[%s280 + $0x3f8] sm:$0xff]
      %v930 = vld [vmem:[%s280 + $0x400] sm:$0xff]
      %v931 = vld [vmem:[%s280 + $0x408] sm:$0xff]
      %v932 = vld [vmem:[%s280 + $0x410] sm:$0xff]
      %v933 = vld [vmem:[%s280 + $0x418] sm:$0xff]
      %v934 = vld [vmem:[%s280 + $0x420] sm:$0xff]
      %v935 = vld [vmem:[%s280 + $0x428] sm:$0xff]
      %v936 = vld [vmem:[%s280 + $0x430] sm:$0xff]
      %v937 = vld [vmem:[%s280 + $0x438] sm:$0xff]
      %v938 = vld [vmem:[%s280 + $0x440] sm:$0xff]
      %v939 = vld [vmem:[%s280 + $0x448] sm:$0xff]
      %v940 = vld [vmem:[%s280 + $0x450] sm:$0xff]
      %v941 = vld [vmem:[%s280 + $0x458] sm:$0xff]
      %v942 = vld [vmem:[%s280 + $0x460] sm:$0xff]
      %v943 = vld [vmem:[%s280 + $0x468] sm:$0xff]
      %v944 = vld [vmem:[%s280 + $0x470] sm:$0xff]
      %v945 = vld [vmem:[%s280 + $0x478] sm:$0xff]
      %v946 = vld [vmem:[%s280 + $0x480] sm:$0xff]
      %v947 = vld [vmem:[%s280 + $0x488] sm:$0xff]
      %v948 = vld [vmem:[%s280 + $0x490] sm:$0xff]
      %v949 = vld [vmem:[%s280 + $0x498] sm:$0xff]
      %v950 = vld [vmem:[%s280 + $0x4a0] sm:$0xff]
      %v951 = vld [vmem:[%s280 + $0x4a8] sm:$0xff]
      %v952 = vld [vmem:[%s280 + $0x4b0] sm:$0xff]
      %v953 = vld [vmem:[%s280 + $0x4b8] sm:$0xff]
      %v954 = vld [vmem:[%s280 + $0x4c0] sm:$0xff]
      %v955 = vld [vmem:[%s280 + $0x4c8] sm:$0xff]
      %v956 = vld [vmem:[%s280 + $0x4d0] sm:$0xff]
      %v957 = vld [vmem:[%s280 + $0x4d8] sm:$0xff]
      %v958 = vld [vmem:[%s280 + $0x4e0] sm:$0xff]
      %v959 = vld [vmem:[%s280 + $0x4e8] sm:$0xff]
      %v960 = vld [vmem:[%s280 + $0x4f0] sm:$0xff]
      %v961 = vld [vmem:[%s280 + $0x4f8] sm:$0xff]
      %962 = vmatpush.msra.mxu0 %v877
      %963 = vmatpush.msra.mxu0 %v872
      %964 = vmatpush.msra.mxu0 %v867
      %965 = vmatpush.msra.mxu0 %v862
      %966 = vmatpush.msra.mxu0 %v857
      %967 = vmatpush.msra.mxu0 %v852
      %968 = vmatpush.msra.mxu0 %v847
      %969 = vmatpush.msra.mxu0 %v842
      %970 = vmatpush.msra.mxu0 %v837
      %971 = vmatpush.msra.mxu0 %v832
      %972 = vmatpush.msra.mxu0 %v827
      %973 = vmatpush.msra.mxu0 %v822
      %974 = vmatpush.msra.mxu0 %v817
      %975 = vmatpush.msra.mxu0 %v812
      %976 = vmatpush.msra.mxu0 %v807
      %977 = vmatpush.msra.mxu0 %v802
      %978 = vmatmul.f32.gmra.mxu0 %v719
      %v979 = vpop.f32.mrf.mxu0
      %v980 = vadd.f32 %v301, %v979
      %981 = vdwg.mxu0
      %982 = vmatpush.msra.mxu0 %v957
      %983 = vmatpush.msra.mxu0 %v952
      %984 = vmatpush.msra.mxu0 %v947
      %985 = vmatpush.msra.mxu0 %v942
      %986 = vmatpush.msra.mxu0 %v937
      %987 = vmatpush.msra.mxu0 %v932
      %988 = vmatpush.msra.mxu0 %v927
      %989 = vmatpush.msra.mxu0 %v922
      %990 = vmatpush.msra.mxu0 %v917
      %991 = vmatpush.msra.mxu0 %v912
      %992 = vmatpush.msra.mxu0 %v907
      %993 = vmatpush.msra.mxu0 %v902
      %994 = vmatpush.msra.mxu0 %v897
      %995 = vmatpush.msra.mxu0 %v892
      %996 = vmatpush.msra.mxu0 %v887
      %997 = vmatpush.msra.mxu0 %v882
      %998 = vmatmul.f32.gmra.mxu0 %v723
      %v999 = vpop.f32.mrf.mxu0
      %v1000 = vadd.f32 %v980, %v999
      %1001 = vdwg.mxu0
      %1002 = vmatpush.msra.mxu0 %v878
      %1003 = vmatpush.msra.mxu0 %v873
      %1004 = vmatpush.msra.mxu0 %v868
      %1005 = vmatpush.msra.mxu0 %v863
      %1006 = vmatpush.msra.mxu0 %v858
      %1007 = vmatpush.msra.mxu0 %v853
      %1008 = vmatpush.msra.mxu0 %v848
      %1009 = vmatpush.msra.mxu0 %v843
      %1010 = vmatpush.msra.mxu0 %v838
      %1011 = vmatpush.msra.mxu0 %v833
      %1012 = vmatpush.msra.mxu0 %v828
      %1013 = vmatpush.msra.mxu0 %v823
      %1014 = vmatpush.msra.mxu0 %v818
      %1015 = vmatpush.msra.mxu0 %v813
      %1016 = vmatpush.msra.mxu0 %v808
      %1017 = vmatpush.msra.mxu0 %v803
      %1018 = vmatmul.f32.gmra.mxu0 %v719
      %v1019 = vpop.f32.mrf.mxu0
      %v1020 = vadd.f32 %v302, %v1019
      %1021 = vdwg.mxu0
      %1022 = vmatpush.msra.mxu0 %v958
      %1023 = vmatpush.msra.mxu0 %v953
      %1024 = vmatpush.msra.mxu0 %v948
      %1025 = vmatpush.msra.mxu0 %v943
      %1026 = vmatpush.msra.mxu0 %v938
      %1027 = vmatpush.msra.mxu0 %v933
      %1028 = vmatpush.msra.mxu0 %v928
      %1029 = vmatpush.msra.mxu0 %v923
      %1030 = vmatpush.msra.mxu0 %v918
      %1031 = vmatpush.msra.mxu0 %v913
      %1032 = vmatpush.msra.mxu0 %v908
      %1033 = vmatpush.msra.mxu0 %v903
      %1034 = vmatpush.msra.mxu0 %v898
      %1035 = vmatpush.msra.mxu0 %v893
      %1036 = vmatpush.msra.mxu0 %v888
      %1037 = vmatpush.msra.mxu0 %v883
      %1038 = vmatmul.f32.gmra.mxu0 %v723
      %v1039 = vpop.f32.mrf.mxu0
      %v1040 = vadd.f32 %v1020, %v1039
      %1041 = vdwg.mxu0
      %1042 = vmatpush.msra.mxu0 %v879
      %1043 = vmatpush.msra.mxu0 %v874
      %1044 = vmatpush.msra.mxu0 %v869
      %1045 = vmatpush.msra.mxu0 %v864
      %1046 = vmatpush.msra.mxu0 %v859
      %1047 = vmatpush.msra.mxu0 %v854
      %1048 = vmatpush.msra.mxu0 %v849
      %1049 = vmatpush.msra.mxu0 %v844
      %1050 = vmatpush.msra.mxu0 %v839
      %1051 = vmatpush.msra.mxu0 %v834
      %1052 = vmatpush.msra.mxu0 %v829
      %1053 = vmatpush.msra.mxu0 %v824
      %1054 = vmatpush.msra.mxu0 %v819
      %1055 = vmatpush.msra.mxu0 %v814
      %1056 = vmatpush.msra.mxu0 %v809
      %1057 = vmatpush.msra.mxu0 %v804
      %1058 = vmatmul.f32.gmra.mxu0 %v719
      %v1059 = vpop.f32.mrf.mxu0
      %v1060 = vadd.f32 %v303, %v1059
      %1061 = vdwg.mxu0
      %1062 = vmatpush.msra.mxu0 %v959
      %1063 = vmatpush.msra.mxu0 %v954
      %1064 = vmatpush.msra.mxu0 %v949
      %1065 = vmatpush.msra.mxu0 %v944
      %1066 = vmatpush.msra.mxu0 %v939
      %1067 = vmatpush.msra.mxu0 %v934
      %1068 = vmatpush.msra.mxu0 %v929
      %1069 = vmatpush.msra.mxu0 %v924
      %1070 = vmatpush.msra.mxu0 %v919
      %1071 = vmatpush.msra.mxu0 %v914
      %1072 = vmatpush.msra.mxu0 %v909
      %1073 = vmatpush.msra.mxu0 %v904
      %1074 = vmatpush.msra.mxu0 %v899
      %1075 = vmatpush.msra.mxu0 %v894
      %1076 = vmatpush.msra.mxu0 %v889
      %1077 = vmatpush.msra.mxu0 %v884
      %1078 = vmatmul.f32.gmra.mxu0 %v723
      %v1079 = vpop.f32.mrf.mxu0
      %v1080 = vadd.f32 %v1060, %v1079
      %1081 = vdwg.mxu0
      %1082 = vmatpush.msra.mxu0 %v880
      %1083 = vmatpush.msra.mxu0 %v875
      %1084 = vmatpush.msra.mxu0 %v870
      %1085 = vmatpush.msra.mxu0 %v865
      %1086 = vmatpush.msra.mxu0 %v860
      %1087 = vmatpush.msra.mxu0 %v855
      %1088 = vmatpush.msra.mxu0 %v850
      %1089 = vmatpush.msra.mxu0 %v845
      %1090 = vmatpush.msra.mxu0 %v840
      %1091 = vmatpush.msra.mxu0 %v835
      %1092 = vmatpush.msra.mxu0 %v830
      %1093 = vmatpush.msra.mxu0 %v825
      %1094 = vmatpush.msra.mxu0 %v820
      %1095 = vmatpush.msra.mxu0 %v815
      %1096 = vmatpush.msra.mxu0 %v810
      %1097 = vmatpush.msra.mxu0 %v805
      %1098 = vmatmul.f32.gmra.mxu0 %v719
      %v1099 = vpop.f32.mrf.mxu0
      %v1100 = vadd.f32 %v304, %v1099
      %1101 = vdwg.mxu0
      %1102 = vmatpush.msra.mxu0 %v960
      %1103 = vmatpush.msra.mxu0 %v955
      %1104 = vmatpush.msra.mxu0 %v950
      %1105 = vmatpush.msra.mxu0 %v945
      %1106 = vmatpush.msra.mxu0 %v940
      %1107 = vmatpush.msra.mxu0 %v935
      %1108 = vmatpush.msra.mxu0 %v930
      %1109 = vmatpush.msra.mxu0 %v925
      %1110 = vmatpush.msra.mxu0 %v920
      %1111 = vmatpush.msra.mxu0 %v915
      %1112 = vmatpush.msra.mxu0 %v910
      %1113 = vmatpush.msra.mxu0 %v905
      %1114 = vmatpush.msra.mxu0 %v900
      %1115 = vmatpush.msra.mxu0 %v895
      %1116 = vmatpush.msra.mxu0 %v890
      %1117 = vmatpush.msra.mxu0 %v885
      %1118 = vmatmul.f32.gmra.mxu0 %v723
      %v1119 = vpop.f32.mrf.mxu0
      %v1120 = vadd.f32 %v1100, %v1119
      %1121 = vdwg.mxu0
      %1122 = vmatpush.msra.mxu0 %v881
      %1123 = vmatpush.msra.mxu0 %v876
      %1124 = vmatpush.msra.mxu0 %v871
      %1125 = vmatpush.msra.mxu0 %v866
      %1126 = vmatpush.msra.mxu0 %v861
      %1127 = vmatpush.msra.mxu0 %v856
      %1128 = vmatpush.msra.mxu0 %v851
      %1129 = vmatpush.msra.mxu0 %v846
      %1130 = vmatpush.msra.mxu0 %v841
      %1131 = vmatpush.msra.mxu0 %v836
      %1132 = vmatpush.msra.mxu0 %v831
      %1133 = vmatpush.msra.mxu0 %v826
      %1134 = vmatpush.msra.mxu0 %v821
      %1135 = vmatpush.msra.mxu0 %v816
      %1136 = vmatpush.msra.mxu0 %v811
      %1137 = vmatpush.msra.mxu0 %v806
      %1138 = vmatmul.f32.gmra.mxu0 %v719
      %v1139 = vpop.f32.mrf.mxu0
      %v1140 = vadd.f32 %v305, %v1139
      %1141 = vdwg.mxu0
      %1142 = vmatpush.msra.mxu0 %v961
      %1143 = vmatpush.msra.mxu0 %v956
      %1144 = vmatpush.msra.mxu0 %v951
      %1145 = vmatpush.msra.mxu0 %v946
      %1146 = vmatpush.msra.mxu0 %v941
      %1147 = vmatpush.msra.mxu0 %v936
      %1148 = vmatpush.msra.mxu0 %v931
      %1149 = vmatpush.msra.mxu0 %v926
      %1150 = vmatpush.msra.mxu0 %v921
      %1151 = vmatpush.msra.mxu0 %v916
      %1152 = vmatpush.msra.mxu0 %v911
      %1153 = vmatpush.msra.mxu0 %v906
      %1154 = vmatpush.msra.mxu0 %v901
      %1155 = vmatpush.msra.mxu0 %v896
      %1156 = vmatpush.msra.mxu0 %v891
      %1157 = vmatpush.msra.mxu0 %v886
      %1158 = vmatmul.f32.gmra.mxu0 %v723
      %v1159 = vpop.f32.mrf.mxu0
      %v1160 = vadd.f32 %v1140, %v1159
      %1161 = vdwg.mxu0
      %s1162 = scalar_lea.vmem %s275, 8
      %v1163 = vld [vmem:[%s1162] sm:$0xff]
      %v1168 = vrot.slane %v1080, 6
      %v1169 = vrot.slane %v1120, 4
      %v1170 = vrot.slane %v1160, 2
      %v1171 = vsel %vm685, %v1040, %v1168
      %v1172 = vsel %vm687, %v1169, %v1170
      %v1173 = vsel %vm689, %v1171, %v1172
      %v1175 = vadd.f32 %v1163, %v1173
      %v1176 = vxor.u32 %v1175, 2147483648
      %v1177 = vmul.f32 %v1176, 1.442695
      %v1178 = vpow.pop %v1177
      %v1179 = vadd.f32 %v1178, 1.0
      %v1180 = vrcp.pop %v1179
      %v1181 = vmul.f32 %v1179, %v1180
      %v1182 = vsub.f32 1.0, %v1181
      %v1183 = vmul.f32 %v1180, %v1182
      %v1184 = vadd.f32 %v1180, %v1183
      %vm1185 = vweird.f32 %v1179
      %vm1186 = vweird.f32 %v1180
      %vm1187 = vmor %vm1185, %vm1186
      %v1188 = vsel %vm1187, %v1180, %v1184
      %v1189 = vand.u32 2147483647, %v1179
      %vm1190 = vcmp.eq.f32.partialorder %v1189, 8.507059e+37
      %v1191 = vand.u32 %v1179, 2147483648
      %v1192 = vor.u32 1.1754944e-38, %v1191
      %v1193 = vsel %vm1190, %v1192, %v1188
      %v1194 = vmul.f32 1.0, %v1193
      %v1196 = vrot.slane %v1194, 4
      %v1198 = vmul.f32 %v1196, %v1000
      %v1199 = vrot.slane %v1194, 2
      %v1201 = vmul.f32 %v1194, %v1199
      %v1202 = vadd.f32 %v1198, %v1201
      %v1203 = vtanh.pop %v1202
      %v1204 = vrot.slane %v1194, 6
      %v1206 = vmul.f32 %v1204, %v1203
      %v1207 = vld [vmem:[%s289] sm:$0xff]
      %v1208 = vld [vmem:[%s289 + $0x8] sm:$0xff]
      %v1209 = vld [vmem:[%s289 + $0x10] sm:$0xff]
      %v1210 = vld [vmem:[%s289 + $0x18] sm:$0xff]
      %v1211 = vld [vmem:[%s289 + $0x20] sm:$0xff]
      %v1212 = vld [vmem:[%s289 + $0x28] sm:$0xff]
      %v1213 = vld [vmem:[%s289 + $0x30] sm:$0xff]
      %v1214 = vld [vmem:[%s289 + $0x38] sm:$0xff]
      %v1215 = vld [vmem:[%s289 + $0x40] sm:$0xff]
      %v1216 = vld [vmem:[%s289 + $0x48] sm:$0xff]
      %v1217 = vld [vmem:[%s289 + $0x50] sm:$0xff]
      %v1218 = vld [vmem:[%s289 + $0x58] sm:$0xff]
      %v1219 = vld [vmem:[%s289 + $0x60] sm:$0xff]
      %v1220 = vld [vmem:[%s289 + $0x68] sm:$0xff]
      %v1221 = vld [vmem:[%s289 + $0x70] sm:$0xff]
      %v1222 = vld [vmem:[%s289 + $0x78] sm:$0xff]
      %v1223 = vld [vmem:[%s289 + $0x80] sm:$0xff]
      %v1224 = vld [vmem:[%s289 + $0x88] sm:$0xff]
      %v1225 = vld [vmem:[%s289 + $0x90] sm:$0xff]
      %v1226 = vld [vmem:[%s289 + $0x98] sm:$0xff]
      %v1227 = vld [vmem:[%s289 + $0xa0] sm:$0xff]
      %v1228 = vld [vmem:[%s289 + $0xa8] sm:$0xff]
      %v1229 = vld [vmem:[%s289 + $0xb0] sm:$0xff]
      %v1230 = vld [vmem:[%s289 + $0xb8] sm:$0xff]
      %v1231 = vld [vmem:[%s289 + $0xc0] sm:$0xff]
      %v1232 = vld [vmem:[%s289 + $0xc8] sm:$0xff]
      %v1233 = vld [vmem:[%s289 + $0xd0] sm:$0xff]
      %v1234 = vld [vmem:[%s289 + $0xd8] sm:$0xff]
      %v1235 = vld [vmem:[%s289 + $0xe0] sm:$0xff]
      %v1236 = vld [vmem:[%s289 + $0xe8] sm:$0xff]
      %v1237 = vld [vmem:[%s289 + $0xf0] sm:$0xff]
      %v1238 = vld [vmem:[%s289 + $0xf8] sm:$0xff]
      %1239 = vmatpush.msra.mxu0 %v1237
      %1240 = vmatpush.msra.mxu0 %v1235
      %1241 = vmatpush.msra.mxu0 %v1233
      %1242 = vmatpush.msra.mxu0 %v1231
      %1243 = vmatpush.msra.mxu0 %v1229
      %1244 = vmatpush.msra.mxu0 %v1227
      %1245 = vmatpush.msra.mxu0 %v1225
      %1246 = vmatpush.msra.mxu0 %v1223
      %1247 = vmatpush.msra.mxu0 %v1221
      %1248 = vmatpush.msra.mxu0 %v1219
      %1249 = vmatpush.msra.mxu0 %v1217
      %1250 = vmatpush.msra.mxu0 %v1215
      %1251 = vmatpush.msra.mxu0 %v1213
      %1252 = vmatpush.msra.mxu0 %v1211
      %1253 = vmatpush.msra.mxu0 %v1209
      %1254 = vmatpush.msra.mxu0 %v1207
      %1255 = vmatmul.f32.gmra.mxu0 %v1206
      %v1256 = vpop.f32.mrf.mxu0
      %v1257 = vadd.f32 %v313, %v1256
      %1258 = vdwg.mxu0
      %1259 = vmatpush.msra.mxu0 %v1238
      %1260 = vmatpush.msra.mxu0 %v1236
      %1261 = vmatpush.msra.mxu0 %v1234
      %1262 = vmatpush.msra.mxu0 %v1232
      %1263 = vmatpush.msra.mxu0 %v1230
      %1264 = vmatpush.msra.mxu0 %v1228
      %1265 = vmatpush.msra.mxu0 %v1226
      %1266 = vmatpush.msra.mxu0 %v1224
      %1267 = vmatpush.msra.mxu0 %v1222
      %1268 = vmatpush.msra.mxu0 %v1220
      %1269 = vmatpush.msra.mxu0 %v1218
      %1270 = vmatpush.msra.mxu0 %v1216
      %1271 = vmatpush.msra.mxu0 %v1214
      %1272 = vmatpush.msra.mxu0 %v1212
      %1273 = vmatpush.msra.mxu0 %v1210
      %1274 = vmatpush.msra.mxu0 %v1208
      %1275 = vmatmul.f32.gmra.mxu0 %v1206
      %v1276 = vpop.f32.mrf.mxu0
      %v1277 = vadd.f32 %v314, %v1276
      %1278 = vdwg.mxu0
      %v1281 = vrot.slane %v1277, 6
      %v1282 = vsel %vm685, %v1257, %v1281
      %s1284 = scalar_lea.vmem %s298, 4
      %1285 = vst [vmem:[%s1284] sm:$0xf] %v1282
      %v1286 = vld [vmem:[%s280] sm:$0xff]
      %v1287 = vld [vmem:[%s280 + $0x8] sm:$0xff]
      %v1288 = vld [vmem:[%s280 + $0x10] sm:$0xff]
      %v1289 = vld [vmem:[%s280 + $0x18] sm:$0xff]
      %v1290 = vld [vmem:[%s280 + $0x20] sm:$0xff]
      %v1291 = vld [vmem:[%s280 + $0x28] sm:$0xff]
      %v1292 = vld [vmem:[%s280 + $0x30] sm:$0xff]
      %v1293 = vld [vmem:[%s280 + $0x38] sm:$0xff]
      %v1294 = vld [vmem:[%s280 + $0x40] sm:$0xff]
      %v1295 = vld [vmem:[%s280 + $0x48] sm:$0xff]
      %v1296 = vld [vmem:[%s280 + $0x50] sm:$0xff]
      %v1297 = vld [vmem:[%s280 + $0x58] sm:$0xff]
      %v1298 = vld [vmem:[%s280 + $0x60] sm:$0xff]
      %v1299 = vld [vmem:[%s280 + $0x68] sm:$0xff]
      %v1300 = vld [vmem:[%s280 + $0x70] sm:$0xff]
      %v1301 = vld [vmem:[%s280 + $0x78] sm:$0xff]
      %v1302 = vld [vmem:[%s280 + $0x80] sm:$0xff]
      %v1303 = vld [vmem:[%s280 + $0x88] sm:$0xff]
      %v1304 = vld [vmem:[%s280 + $0x90] sm:$0xff]
      %v1305 = vld [vmem:[%s280 + $0x98] sm:$0xff]
      %v1306 = vld [vmem:[%s280 + $0xa0] sm:$0xff]
      %v1307 = vld [vmem:[%s280 + $0xa8] sm:$0xff]
      %v1308 = vld [vmem:[%s280 + $0xb0] sm:$0xff]
      %v1309 = vld [vmem:[%s280 + $0xb8] sm:$0xff]
      %v1310 = vld [vmem:[%s280 + $0xc0] sm:$0xff]
      %v1311 = vld [vmem:[%s280 + $0xc8] sm:$0xff]
      %v1312 = vld [vmem:[%s280 + $0xd0] sm:$0xff]
      %v1313 = vld [vmem:[%s280 + $0xd8] sm:$0xff]
      %v1314 = vld [vmem:[%s280 + $0xe0] sm:$0xff]
      %v1315 = vld [vmem:[%s280 + $0xe8] sm:$0xff]
      %v1316 = vld [vmem:[%s280 + $0xf0] sm:$0xff]
      %v1317 = vld [vmem:[%s280 + $0xf8] sm:$0xff]
      %v1318 = vld [vmem:[%s280 + $0x100] sm:$0xff]
      %v1319 = vld [vmem:[%s280 + $0x108] sm:$0xff]
      %v1320 = vld [vmem:[%s280 + $0x110] sm:$0xff]
      %v1321 = vld [vmem:[%s280 + $0x118] sm:$0xff]
      %v1322 = vld [vmem:[%s280 + $0x120] sm:$0xff]
      %v1323 = vld [vmem:[%s280 + $0x128] sm:$0xff]
      %v1324 = vld [vmem:[%s280 + $0x130] sm:$0xff]
      %v1325 = vld [vmem:[%s280 + $0x138] sm:$0xff]
      %v1326 = vld [vmem:[%s280 + $0x140] sm:$0xff]
      %v1327 = vld [vmem:[%s280 + $0x148] sm:$0xff]
      %v1328 = vld [vmem:[%s280 + $0x150] sm:$0xff]
      %v1329 = vld [vmem:[%s280 + $0x158] sm:$0xff]
      %v1330 = vld [vmem:[%s280 + $0x160] sm:$0xff]
      %v1331 = vld [vmem:[%s280 + $0x168] sm:$0xff]
      %v1332 = vld [vmem:[%s280 + $0x170] sm:$0xff]
      %v1333 = vld [vmem:[%s280 + $0x178] sm:$0xff]
      %v1334 = vld [vmem:[%s280 + $0x180] sm:$0xff]
      %v1335 = vld [vmem:[%s280 + $0x188] sm:$0xff]
      %v1336 = vld [vmem:[%s280 + $0x190] sm:$0xff]
      %v1337 = vld [vmem:[%s280 + $0x198] sm:$0xff]
      %v1338 = vld [vmem:[%s280 + $0x1a0] sm:$0xff]
      %v1339 = vld [vmem:[%s280 + $0x1a8] sm:$0xff]
      %v1340 = vld [vmem:[%s280 + $0x1b0] sm:$0xff]
      %v1341 = vld [vmem:[%s280 + $0x1b8] sm:$0xff]
      %v1342 = vld [vmem:[%s280 + $0x1c0] sm:$0xff]
      %v1343 = vld [vmem:[%s280 + $0x1c8] sm:$0xff]
      %v1344 = vld [vmem:[%s280 + $0x1d0] sm:$0xff]
      %v1345 = vld [vmem:[%s280 + $0x1d8] sm:$0xff]
      %v1346 = vld [vmem:[%s280 + $0x1e0] sm:$0xff]
      %v1347 = vld [vmem:[%s280 + $0x1e8] sm:$0xff]
      %v1348 = vld [vmem:[%s280 + $0x1f0] sm:$0xff]
      %v1349 = vld [vmem:[%s280 + $0x1f8] sm:$0xff]
      %v1350 = vld [vmem:[%s280 + $0x200] sm:$0xff]
      %v1351 = vld [vmem:[%s280 + $0x208] sm:$0xff]
      %v1352 = vld [vmem:[%s280 + $0x210] sm:$0xff]
      %v1353 = vld [vmem:[%s280 + $0x218] sm:$0xff]
      %v1354 = vld [vmem:[%s280 + $0x220] sm:$0xff]
      %v1355 = vld [vmem:[%s280 + $0x228] sm:$0xff]
      %v1356 = vld [vmem:[%s280 + $0x230] sm:$0xff]
      %v1357 = vld [vmem:[%s280 + $0x238] sm:$0xff]
      %v1358 = vld [vmem:[%s280 + $0x240] sm:$0xff]
      %v1359 = vld [vmem:[%s280 + $0x248] sm:$0xff]
      %v1360 = vld [vmem:[%s280 + $0x250] sm:$0xff]
      %v1361 = vld [vmem:[%s280 + $0x258] sm:$0xff]
      %v1362 = vld [vmem:[%s280 + $0x260] sm:$0xff]
      %v1363 = vld [vmem:[%s280 + $0x268] sm:$0xff]
      %v1364 = vld [vmem:[%s280 + $0x270] sm:$0xff]
      %v1365 = vld [vmem:[%s280 + $0x278] sm:$0xff]
      %v1366 = vld [vmem:[%s280 + $0x280] sm:$0xff]
      %v1367 = vld [vmem:[%s280 + $0x288] sm:$0xff]
      %v1368 = vld [vmem:[%s280 + $0x290] sm:$0xff]
      %v1369 = vld [vmem:[%s280 + $0x298] sm:$0xff]
      %v1370 = vld [vmem:[%s280 + $0x2a0] sm:$0xff]
      %v1371 = vld [vmem:[%s280 + $0x2a8] sm:$0xff]
      %v1372 = vld [vmem:[%s280 + $0x2b0] sm:$0xff]
      %v1373 = vld [vmem:[%s280 + $0x2b8] sm:$0xff]
      %v1374 = vld [vmem:[%s280 + $0x2c0] sm:$0xff]
      %v1375 = vld [vmem:[%s280 + $0x2c8] sm:$0xff]
      %v1376 = vld [vmem:[%s280 + $0x2d0] sm:$0xff]
      %v1377 = vld [vmem:[%s280 + $0x2d8] sm:$0xff]
      %v1378 = vld [vmem:[%s280 + $0x2e0] sm:$0xff]
      %v1379 = vld [vmem:[%s280 + $0x2e8] sm:$0xff]
      %v1380 = vld [vmem:[%s280 + $0x2f0] sm:$0xff]
      %v1381 = vld [vmem:[%s280 + $0x2f8] sm:$0xff]
      %v1382 = vld [vmem:[%s280 + $0x300] sm:$0xff]
      %v1383 = vld [vmem:[%s280 + $0x308] sm:$0xff]
      %v1384 = vld [vmem:[%s280 + $0x310] sm:$0xff]
      %v1385 = vld [vmem:[%s280 + $0x318] sm:$0xff]
      %v1386 = vld [vmem:[%s280 + $0x320] sm:$0xff]
      %v1387 = vld [vmem:[%s280 + $0x328] sm:$0xff]
      %v1388 = vld [vmem:[%s280 + $0x330] sm:$0xff]
      %v1389 = vld [vmem:[%s280 + $0x338] sm:$0xff]
      %v1390 = vld [vmem:[%s280 + $0x340] sm:$0xff]
      %v1391 = vld [vmem:[%s280 + $0x348] sm:$0xff]
      %v1392 = vld [vmem:[%s280 + $0x350] sm:$0xff]
      %v1393 = vld [vmem:[%s280 + $0x358] sm:$0xff]
      %v1394 = vld [vmem:[%s280 + $0x360] sm:$0xff]
      %v1395 = vld [vmem:[%s280 + $0x368] sm:$0xff]
      %v1396 = vld [vmem:[%s280 + $0x370] sm:$0xff]
      %v1397 = vld [vmem:[%s280 + $0x378] sm:$0xff]
      %v1398 = vld [vmem:[%s280 + $0x380] sm:$0xff]
      %v1399 = vld [vmem:[%s280 + $0x388] sm:$0xff]
      %v1400 = vld [vmem:[%s280 + $0x390] sm:$0xff]
      %v1401 = vld [vmem:[%s280 + $0x398] sm:$0xff]
      %v1402 = vld [vmem:[%s280 + $0x3a0] sm:$0xff]
      %v1403 = vld [vmem:[%s280 + $0x3a8] sm:$0xff]
      %v1404 = vld [vmem:[%s280 + $0x3b0] sm:$0xff]
      %v1405 = vld [vmem:[%s280 + $0x3b8] sm:$0xff]
      %v1406 = vld [vmem:[%s280 + $0x3c0] sm:$0xff]
      %v1407 = vld [vmem:[%s280 + $0x3c8] sm:$0xff]
      %v1408 = vld [vmem:[%s280 + $0x3d0] sm:$0xff]
      %v1409 = vld [vmem:[%s280 + $0x3d8] sm:$0xff]
      %v1410 = vld [vmem:[%s280 + $0x3e0] sm:$0xff]
      %v1411 = vld [vmem:[%s280 + $0x3e8] sm:$0xff]
      %v1412 = vld [vmem:[%s280 + $0x3f0] sm:$0xff]
      %v1413 = vld [vmem:[%s280 + $0x3f8] sm:$0xff]
      %v1414 = vld [vmem:[%s280 + $0x400] sm:$0xff]
      %v1415 = vld [vmem:[%s280 + $0x408] sm:$0xff]
      %v1416 = vld [vmem:[%s280 + $0x410] sm:$0xff]
      %v1417 = vld [vmem:[%s280 + $0x418] sm:$0xff]
      %v1418 = vld [vmem:[%s280 + $0x420] sm:$0xff]
      %v1419 = vld [vmem:[%s280 + $0x428] sm:$0xff]
      %v1420 = vld [vmem:[%s280 + $0x430] sm:$0xff]
      %v1421 = vld [vmem:[%s280 + $0x438] sm:$0xff]
      %v1422 = vld [vmem:[%s280 + $0x440] sm:$0xff]
      %v1423 = vld [vmem:[%s280 + $0x448] sm:$0xff]
      %v1424 = vld [vmem:[%s280 + $0x450] sm:$0xff]
      %v1425 = vld [vmem:[%s280 + $0x458] sm:$0xff]
      %v1426 = vld [vmem:[%s280 + $0x460] sm:$0xff]
      %v1427 = vld [vmem:[%s280 + $0x468] sm:$0xff]
      %v1428 = vld [vmem:[%s280 + $0x470] sm:$0xff]
      %v1429 = vld [vmem:[%s280 + $0x478] sm:$0xff]
      %v1430 = vld [vmem:[%s280 + $0x480] sm:$0xff]
      %v1431 = vld [vmem:[%s280 + $0x488] sm:$0xff]
      %v1432 = vld [vmem:[%s280 + $0x490] sm:$0xff]
      %v1433 = vld [vmem:[%s280 + $0x498] sm:$0xff]
      %v1434 = vld [vmem:[%s280 + $0x4a0] sm:$0xff]
      %v1435 = vld [vmem:[%s280 + $0x4a8] sm:$0xff]
      %v1436 = vld [vmem:[%s280 + $0x4b0] sm:$0xff]
      %v1437 = vld [vmem:[%s280 + $0x4b8] sm:$0xff]
      %v1438 = vld [vmem:[%s280 + $0x4c0] sm:$0xff]
      %v1439 = vld [vmem:[%s280 + $0x4c8] sm:$0xff]
      %v1440 = vld [vmem:[%s280 + $0x4d0] sm:$0xff]
      %v1441 = vld [vmem:[%s280 + $0x4d8] sm:$0xff]
      %v1442 = vld [vmem:[%s280 + $0x4e0] sm:$0xff]
      %v1443 = vld [vmem:[%s280 + $0x4e8] sm:$0xff]
      %v1444 = vld [vmem:[%s280 + $0x4f0] sm:$0xff]
      %v1445 = vld [vmem:[%s280 + $0x4f8] sm:$0xff]
      %1446 = vmatpush.msra.mxu0 %v1361
      %1447 = vmatpush.msra.mxu0 %v1356
      %1448 = vmatpush.msra.mxu0 %v1351
      %1449 = vmatpush.msra.mxu0 %v1346
      %1450 = vmatpush.msra.mxu0 %v1341
      %1451 = vmatpush.msra.mxu0 %v1336
      %1452 = vmatpush.msra.mxu0 %v1331
      %1453 = vmatpush.msra.mxu0 %v1326
      %1454 = vmatpush.msra.mxu0 %v1321
      %1455 = vmatpush.msra.mxu0 %v1316
      %1456 = vmatpush.msra.mxu0 %v1311
      %1457 = vmatpush.msra.mxu0 %v1306
      %1458 = vmatpush.msra.mxu0 %v1301
      %1459 = vmatpush.msra.mxu0 %v1296
      %1460 = vmatpush.msra.mxu0 %v1291
      %1461 = vmatpush.msra.mxu0 %v1286
      %1462 = vmatmul.f32.gmra.mxu0 %v1202
      %v1463 = vpop.f32.mrf.mxu0
      %v1464 = vadd.f32 %v301, %v1463
      %1465 = vdwg.mxu0
      %1466 = vmatpush.msra.mxu0 %v1441
      %1467 = vmatpush.msra.mxu0 %v1436
      %1468 = vmatpush.msra.mxu0 %v1431
      %1469 = vmatpush.msra.mxu0 %v1426
      %1470 = vmatpush.msra.mxu0 %v1421
      %1471 = vmatpush.msra.mxu0 %v1416
      %1472 = vmatpush.msra.mxu0 %v1411
      %1473 = vmatpush.msra.mxu0 %v1406
      %1474 = vmatpush.msra.mxu0 %v1401
      %1475 = vmatpush.msra.mxu0 %v1396
      %1476 = vmatpush.msra.mxu0 %v1391
      %1477 = vmatpush.msra.mxu0 %v1386
      %1478 = vmatpush.msra.mxu0 %v1381
      %1479 = vmatpush.msra.mxu0 %v1376
      %1480 = vmatpush.msra.mxu0 %v1371
      %1481 = vmatpush.msra.mxu0 %v1366
      %1482 = vmatmul.f32.gmra.mxu0 %v1206
      %v1483 = vpop.f32.mrf.mxu0
      %v1484 = vadd.f32 %v1464, %v1483
      %1485 = vdwg.mxu0
      %1486 = vmatpush.msra.mxu0 %v1362
      %1487 = vmatpush.msra.mxu0 %v1357
      %1488 = vmatpush.msra.mxu0 %v1352
      %1489 = vmatpush.msra.mxu0 %v1347
      %1490 = vmatpush.msra.mxu0 %v1342
      %1491 = vmatpush.msra.mxu0 %v1337
      %1492 = vmatpush.msra.mxu0 %v1332
      %1493 = vmatpush.msra.mxu0 %v1327
      %1494 = vmatpush.msra.mxu0 %v1322
      %1495 = vmatpush.msra.mxu0 %v1317
      %1496 = vmatpush.msra.mxu0 %v1312
      %1497 = vmatpush.msra.mxu0 %v1307
      %1498 = vmatpush.msra.mxu0 %v1302
      %1499 = vmatpush.msra.mxu0 %v1297
      %1500 = vmatpush.msra.mxu0 %v1292
      %1501 = vmatpush.msra.mxu0 %v1287
      %1502 = vmatmul.f32.gmra.mxu0 %v1202
      %v1503 = vpop.f32.mrf.mxu0
      %v1504 = vadd.f32 %v302, %v1503
      %1505 = vdwg.mxu0
      %1506 = vmatpush.msra.mxu0 %v1442
      %1507 = vmatpush.msra.mxu0 %v1437
      %1508 = vmatpush.msra.mxu0 %v1432
      %1509 = vmatpush.msra.mxu0 %v1427
      %1510 = vmatpush.msra.mxu0 %v1422
      %1511 = vmatpush.msra.mxu0 %v1417
      %1512 = vmatpush.msra.mxu0 %v1412
      %1513 = vmatpush.msra.mxu0 %v1407
      %1514 = vmatpush.msra.mxu0 %v1402
      %1515 = vmatpush.msra.mxu0 %v1397
      %1516 = vmatpush.msra.mxu0 %v1392
      %1517 = vmatpush.msra.mxu0 %v1387
      %1518 = vmatpush.msra.mxu0 %v1382
      %1519 = vmatpush.msra.mxu0 %v1377
      %1520 = vmatpush.msra.mxu0 %v1372
      %1521 = vmatpush.msra.mxu0 %v1367
      %1522 = vmatmul.f32.gmra.mxu0 %v1206
      %v1523 = vpop.f32.mrf.mxu0
      %v1524 = vadd.f32 %v1504, %v1523
      %1525 = vdwg.mxu0
      %1526 = vmatpush.msra.mxu0 %v1363
      %1527 = vmatpush.msra.mxu0 %v1358
      %1528 = vmatpush.msra.mxu0 %v1353
      %1529 = vmatpush.msra.mxu0 %v1348
      %1530 = vmatpush.msra.mxu0 %v1343
      %1531 = vmatpush.msra.mxu0 %v1338
      %1532 = vmatpush.msra.mxu0 %v1333
      %1533 = vmatpush.msra.mxu0 %v1328
      %1534 = vmatpush.msra.mxu0 %v1323
      %1535 = vmatpush.msra.mxu0 %v1318
      %1536 = vmatpush.msra.mxu0 %v1313
      %1537 = vmatpush.msra.mxu0 %v1308
      %1538 = vmatpush.msra.mxu0 %v1303
      %1539 = vmatpush.msra.mxu0 %v1298
      %1540 = vmatpush.msra.mxu0 %v1293
      %1541 = vmatpush.msra.mxu0 %v1288
      %1542 = vmatmul.f32.gmra.mxu0 %v1202
      %v1543 = vpop.f32.mrf.mxu0
      %v1544 = vadd.f32 %v303, %v1543
      %1545 = vdwg.mxu0
      %1546 = vmatpush.msra.mxu0 %v1443
      %1547 = vmatpush.msra.mxu0 %v1438
      %1548 = vmatpush.msra.mxu0 %v1433
      %1549 = vmatpush.msra.mxu0 %v1428
      %1550 = vmatpush.msra.mxu0 %v1423
      %1551 = vmatpush.msra.mxu0 %v1418
      %1552 = vmatpush.msra.mxu0 %v1413
      %1553 = vmatpush.msra.mxu0 %v1408
      %1554 = vmatpush.msra.mxu0 %v1403
      %1555 = vmatpush.msra.mxu0 %v1398
      %1556 = vmatpush.msra.mxu0 %v1393
      %1557 = vmatpush.msra.mxu0 %v1388
      %1558 = vmatpush.msra.mxu0 %v1383
      %1559 = vmatpush.msra.mxu0 %v1378
      %1560 = vmatpush.msra.mxu0 %v1373
      %1561 = vmatpush.msra.mxu0 %v1368
      %1562 = vmatmul.f32.gmra.mxu0 %v1206
      %v1563 = vpop.f32.mrf.mxu0
      %v1564 = vadd.f32 %v1544, %v1563
      %1565 = vdwg.mxu0
      %1566 = vmatpush.msra.mxu0 %v1364
      %1567 = vmatpush.msra.mxu0 %v1359
      %1568 = vmatpush.msra.mxu0 %v1354
      %1569 = vmatpush.msra.mxu0 %v1349
      %1570 = vmatpush.msra.mxu0 %v1344
      %1571 = vmatpush.msra.mxu0 %v1339
      %1572 = vmatpush.msra.mxu0 %v1334
      %1573 = vmatpush.msra.mxu0 %v1329
      %1574 = vmatpush.msra.mxu0 %v1324
      %1575 = vmatpush.msra.mxu0 %v1319
      %1576 = vmatpush.msra.mxu0 %v1314
      %1577 = vmatpush.msra.mxu0 %v1309
      %1578 = vmatpush.msra.mxu0 %v1304
      %1579 = vmatpush.msra.mxu0 %v1299
      %1580 = vmatpush.msra.mxu0 %v1294
      %1581 = vmatpush.msra.mxu0 %v1289
      %1582 = vmatmul.f32.gmra.mxu0 %v1202
      %v1583 = vpop.f32.mrf.mxu0
      %v1584 = vadd.f32 %v304, %v1583
      %1585 = vdwg.mxu0
      %1586 = vmatpush.msra.mxu0 %v1444
      %1587 = vmatpush.msra.mxu0 %v1439
      %1588 = vmatpush.msra.mxu0 %v1434
      %1589 = vmatpush.msra.mxu0 %v1429
      %1590 = vmatpush.msra.mxu0 %v1424
      %1591 = vmatpush.msra.mxu0 %v1419
      %1592 = vmatpush.msra.mxu0 %v1414
      %1593 = vmatpush.msra.mxu0 %v1409
      %1594 = vmatpush.msra.mxu0 %v1404
      %1595 = vmatpush.msra.mxu0 %v1399
      %1596 = vmatpush.msra.mxu0 %v1394
      %1597 = vmatpush.msra.mxu0 %v1389
      %1598 = vmatpush.msra.mxu0 %v1384
      %1599 = vmatpush.msra.mxu0 %v1379
      %1600 = vmatpush.msra.mxu0 %v1374
      %1601 = vmatpush.msra.mxu0 %v1369
      %1602 = vmatmul.f32.gmra.mxu0 %v1206
      %v1603 = vpop.f32.mrf.mxu0
      %v1604 = vadd.f32 %v1584, %v1603
      %1605 = vdwg.mxu0
      %1606 = vmatpush.msra.mxu0 %v1365
      %1607 = vmatpush.msra.mxu0 %v1360
      %1608 = vmatpush.msra.mxu0 %v1355
      %1609 = vmatpush.msra.mxu0 %v1350
      %1610 = vmatpush.msra.mxu0 %v1345
      %1611 = vmatpush.msra.mxu0 %v1340
      %1612 = vmatpush.msra.mxu0 %v1335
      %1613 = vmatpush.msra.mxu0 %v1330
      %1614 = vmatpush.msra.mxu0 %v1325
      %1615 = vmatpush.msra.mxu0 %v1320
      %1616 = vmatpush.msra.mxu0 %v1315
      %1617 = vmatpush.msra.mxu0 %v1310
      %1618 = vmatpush.msra.mxu0 %v1305
      %1619 = vmatpush.msra.mxu0 %v1300
      %1620 = vmatpush.msra.mxu0 %v1295
      %1621 = vmatpush.msra.mxu0 %v1290
      %1622 = vmatmul.f32.gmra.mxu0 %v1202
      %v1623 = vpop.f32.mrf.mxu0
      %v1624 = vadd.f32 %v305, %v1623
      %1625 = vdwg.mxu0
      %1626 = vmatpush.msra.mxu0 %v1445
      %1627 = vmatpush.msra.mxu0 %v1440
      %1628 = vmatpush.msra.mxu0 %v1435
      %1629 = vmatpush.msra.mxu0 %v1430
      %1630 = vmatpush.msra.mxu0 %v1425
      %1631 = vmatpush.msra.mxu0 %v1420
      %1632 = vmatpush.msra.mxu0 %v1415
      %1633 = vmatpush.msra.mxu0 %v1410
      %1634 = vmatpush.msra.mxu0 %v1405
      %1635 = vmatpush.msra.mxu0 %v1400
      %1636 = vmatpush.msra.mxu0 %v1395
      %1637 = vmatpush.msra.mxu0 %v1390
      %1638 = vmatpush.msra.mxu0 %v1385
      %1639 = vmatpush.msra.mxu0 %v1380
      %1640 = vmatpush.msra.mxu0 %v1375
      %1641 = vmatpush.msra.mxu0 %v1370
      %1642 = vmatmul.f32.gmra.mxu0 %v1206
      %v1643 = vpop.f32.mrf.mxu0
      %v1644 = vadd.f32 %v1624, %v1643
      %1645 = vdwg.mxu0
      %s1646 = scalar_lea.vmem %s275, 16
      %v1647 = vld [vmem:[%s1646] sm:$0xff]
      %v1652 = vrot.slane %v1564, 6
      %v1653 = vrot.slane %v1604, 4
      %v1654 = vrot.slane %v1644, 2
      %v1655 = vsel %vm685, %v1524, %v1652
      %v1656 = vsel %vm687, %v1653, %v1654
      %v1657 = vsel %vm689, %v1655, %v1656
      %v1659 = vadd.f32 %v1647, %v1657
      %v1660 = vxor.u32 %v1659, 2147483648
      %v1661 = vmul.f32 %v1660, 1.442695
      %v1662 = vpow.pop %v1661
      %v1663 = vadd.f32 %v1662, 1.0
      %v1664 = vrcp.pop %v1663
      %v1665 = vmul.f32 %v1663, %v1664
      %v1666 = vsub.f32 1.0, %v1665
      %v1667 = vmul.f32 %v1664, %v1666
      %v1668 = vadd.f32 %v1664, %v1667
      %vm1669 = vweird.f32 %v1663
      %vm1670 = vweird.f32 %v1664
      %vm1671 = vmor %vm1669, %vm1670
      %v1672 = vsel %vm1671, %v1664, %v1668
      %v1673 = vand.u32 2147483647, %v1663
      %vm1674 = vcmp.eq.f32.partialorder %v1673, 8.507059e+37
      %v1675 = vand.u32 %v1663, 2147483648
      %v1676 = vor.u32 1.1754944e-38, %v1675
      %v1677 = vsel %vm1674, %v1676, %v1672
      %v1678 = vmul.f32 1.0, %v1677
      %v1680 = vrot.slane %v1678, 4
      %v1682 = vmul.f32 %v1680, %v1484
      %v1683 = vrot.slane %v1678, 2
      %v1685 = vmul.f32 %v1678, %v1683
      %v1686 = vadd.f32 %v1682, %v1685
      %v1687 = vtanh.pop %v1686
      %v1688 = vrot.slane %v1678, 6
      %v1690 = vmul.f32 %v1688, %v1687
      %v1691 = vld [vmem:[%s289] sm:$0xff]
      %v1692 = vld [vmem:[%s289 + $0x8] sm:$0xff]
      %v1693 = vld [vmem:[%s289 + $0x10] sm:$0xff]
      %v1694 = vld [vmem:[%s289 + $0x18] sm:$0xff]
      %v1695 = vld [vmem:[%s289 + $0x20] sm:$0xff]
      %v1696 = vld [vmem:[%s289 + $0x28] sm:$0xff]
      %v1697 = vld [vmem:[%s289 + $0x30] sm:$0xff]
      %v1698 = vld [vmem:[%s289 + $0x38] sm:$0xff]
      %v1699 = vld [vmem:[%s289 + $0x40] sm:$0xff]
      %v1700 = vld [vmem:[%s289 + $0x48] sm:$0xff]
      %v1701 = vld [vmem:[%s289 + $0x50] sm:$0xff]
      %v1702 = vld [vmem:[%s289 + $0x58] sm:$0xff]
      %v1703 = vld [vmem:[%s289 + $0x60] sm:$0xff]
      %v1704 = vld [vmem:[%s289 + $0x68] sm:$0xff]
      %v1705 = vld [vmem:[%s289 + $0x70] sm:$0xff]
      %v1706 = vld [vmem:[%s289 + $0x78] sm:$0xff]
      %v1707 = vld [vmem:[%s289 + $0x80] sm:$0xff]
      %v1708 = vld [vmem:[%s289 + $0x88] sm:$0xff]
      %v1709 = vld [vmem:[%s289 + $0x90] sm:$0xff]
      %v1710 = vld [vmem:[%s289 + $0x98] sm:$0xff]
      %v1711 = vld [vmem:[%s289 + $0xa0] sm:$0xff]
      %v1712 = vld [vmem:[%s289 + $0xa8] sm:$0xff]
      %v1713 = vld [vmem:[%s289 + $0xb0] sm:$0xff]
      %v1714 = vld [vmem:[%s289 + $0xb8] sm:$0xff]
      %v1715 = vld [vmem:[%s289 + $0xc0] sm:$0xff]
      %v1716 = vld [vmem:[%s289 + $0xc8] sm:$0xff]
      %v1717 = vld [vmem:[%s289 + $0xd0] sm:$0xff]
      %v1718 = vld [vmem:[%s289 + $0xd8] sm:$0xff]
      %v1719 = vld [vmem:[%s289 + $0xe0] sm:$0xff]
      %v1720 = vld [vmem:[%s289 + $0xe8] sm:$0xff]
      %v1721 = vld [vmem:[%s289 + $0xf0] sm:$0xff]
      %v1722 = vld [vmem:[%s289 + $0xf8] sm:$0xff]
      %1723 = vmatpush.msra.mxu0 %v1721
      %1724 = vmatpush.msra.mxu0 %v1719
      %1725 = vmatpush.msra.mxu0 %v1717
      %1726 = vmatpush.msra.mxu0 %v1715
      %1727 = vmatpush.msra.mxu0 %v1713
      %1728 = vmatpush.msra.mxu0 %v1711
      %1729 = vmatpush.msra.mxu0 %v1709
      %1730 = vmatpush.msra.mxu0 %v1707
      %1731 = vmatpush.msra.mxu0 %v1705
      %1732 = vmatpush.msra.mxu0 %v1703
      %1733 = vmatpush.msra.mxu0 %v1701
      %1734 = vmatpush.msra.mxu0 %v1699
      %1735 = vmatpush.msra.mxu0 %v1697
      %1736 = vmatpush.msra.mxu0 %v1695
      %1737 = vmatpush.msra.mxu0 %v1693
      %1738 = vmatpush.msra.mxu0 %v1691
      %1739 = vmatmul.f32.gmra.mxu0 %v1690
      %v1740 = vpop.f32.mrf.mxu0
      %v1741 = vadd.f32 %v313, %v1740
      %1742 = vdwg.mxu0
      %1743 = vmatpush.msra.mxu0 %v1722
      %1744 = vmatpush.msra.mxu0 %v1720
      %1745 = vmatpush.msra.mxu0 %v1718
      %1746 = vmatpush.msra.mxu0 %v1716
      %1747 = vmatpush.msra.mxu0 %v1714
      %1748 = vmatpush.msra.mxu0 %v1712
      %1749 = vmatpush.msra.mxu0 %v1710
      %1750 = vmatpush.msra.mxu0 %v1708
      %1751 = vmatpush.msra.mxu0 %v1706
      %1752 = vmatpush.msra.mxu0 %v1704
      %1753 = vmatpush.msra.mxu0 %v1702
      %1754 = vmatpush.msra.mxu0 %v1700
      %1755 = vmatpush.msra.mxu0 %v1698
      %1756 = vmatpush.msra.mxu0 %v1696
      %1757 = vmatpush.msra.mxu0 %v1694
      %1758 = vmatpush.msra.mxu0 %v1692
      %1759 = vmatmul.f32.gmra.mxu0 %v1690
      %v1760 = vpop.f32.mrf.mxu0
      %v1761 = vadd.f32 %v314, %v1760
      %1762 = vdwg.mxu0
      %v1765 = vrot.slane %v1761, 6
      %v1766 = vsel %vm685, %v1741, %v1765
      %s1768 = scalar_lea.vmem %s298, 8
      %1769 = vst [vmem:[%s1768] sm:$0xf] %v1766
      %v1770 = vld [vmem:[%s280] sm:$0xff]
      %v1771 = vld [vmem:[%s280 + $0x8] sm:$0xff]
      %v1772 = vld [vmem:[%s280 + $0x10] sm:$0xff]
      %v1773 = vld [vmem:[%s280 + $0x18] sm:$0xff]
      %v1774 = vld [vmem:[%s280 + $0x20] sm:$0xff]
      %v1775 = vld [vmem:[%s280 + $0x28] sm:$0xff]
      %v1776 = vld [vmem:[%s280 + $0x30] sm:$0xff]
      %v1777 = vld [vmem:[%s280 + $0x38] sm:$0xff]
      %v1778 = vld [vmem:[%s280 + $0x40] sm:$0xff]
      %v1779 = vld [vmem:[%s280 + $0x48] sm:$0xff]
      %v1780 = vld [vmem:[%s280 + $0x50] sm:$0xff]
      %v1781 = vld [vmem:[%s280 + $0x58] sm:$0xff]
      %v1782 = vld [vmem:[%s280 + $0x60] sm:$0xff]
      %v1783 = vld [vmem:[%s280 + $0x68] sm:$0xff]
      %v1784 = vld [vmem:[%s280 + $0x70] sm:$0xff]
      %v1785 = vld [vmem:[%s280 + $0x78] sm:$0xff]
      %v1786 = vld [vmem:[%s280 + $0x80] sm:$0xff]
      %v1787 = vld [vmem:[%s280 + $0x88] sm:$0xff]
      %v1788 = vld [vmem:[%s280 + $0x90] sm:$0xff]
      %v1789 = vld [vmem:[%s280 + $0x98] sm:$0xff]
      %v1790 = vld [vmem:[%s280 + $0xa0] sm:$0xff]
      %v1791 = vld [vmem:[%s280 + $0xa8] sm:$0xff]
      %v1792 = vld [vmem:[%s280 + $0xb0] sm:$0xff]
      %v1793 = vld [vmem:[%s280 + $0xb8] sm:$0xff]
      %v1794 = vld [vmem:[%s280 + $0xc0] sm:$0xff]
      %v1795 = vld [vmem:[%s280 + $0xc8] sm:$0xff]
      %v1796 = vld [vmem:[%s280 + $0xd0] sm:$0xff]
      %v1797 = vld [vmem:[%s280 + $0xd8] sm:$0xff]
      %v1798 = vld [vmem:[%s280 + $0xe0] sm:$0xff]
      %v1799 = vld [vmem:[%s280 + $0xe8] sm:$0xff]
      %v1800 = vld [vmem:[%s280 + $0xf0] sm:$0xff]
      %v1801 = vld [vmem:[%s280 + $0xf8] sm:$0xff]
      %v1802 = vld [vmem:[%s280 + $0x100] sm:$0xff]
      %v1803 = vld [vmem:[%s280 + $0x108] sm:$0xff]
      %v1804 = vld [vmem:[%s280 + $0x110] sm:$0xff]
      %v1805 = vld [vmem:[%s280 + $0x118] sm:$0xff]
      %v1806 = vld [vmem:[%s280 + $0x120] sm:$0xff]
      %v1807 = vld [vmem:[%s280 + $0x128] sm:$0xff]
      %v1808 = vld [vmem:[%s280 + $0x130] sm:$0xff]
      %v1809 = vld [vmem:[%s280 + $0x138] sm:$0xff]
      %v1810 = vld [vmem:[%s280 + $0x140] sm:$0xff]
      %v1811 = vld [vmem:[%s280 + $0x148] sm:$0xff]
      %v1812 = vld [vmem:[%s280 + $0x150] sm:$0xff]
      %v1813 = vld [vmem:[%s280 + $0x158] sm:$0xff]
      %v1814 = vld [vmem:[%s280 + $0x160] sm:$0xff]
      %v1815 = vld [vmem:[%s280 + $0x168] sm:$0xff]
      %v1816 = vld [vmem:[%s280 + $0x170] sm:$0xff]
      %v1817 = vld [vmem:[%s280 + $0x178] sm:$0xff]
      %v1818 = vld [vmem:[%s280 + $0x180] sm:$0xff]
      %v1819 = vld [vmem:[%s280 + $0x188] sm:$0xff]
      %v1820 = vld [vmem:[%s280 + $0x190] sm:$0xff]
      %v1821 = vld [vmem:[%s280 + $0x198] sm:$0xff]
      %v1822 = vld [vmem:[%s280 + $0x1a0] sm:$0xff]
      %v1823 = vld [vmem:[%s280 + $0x1a8] sm:$0xff]
      %v1824 = vld [vmem:[%s280 + $0x1b0] sm:$0xff]
      %v1825 = vld [vmem:[%s280 + $0x1b8] sm:$0xff]
      %v1826 = vld [vmem:[%s280 + $0x1c0] sm:$0xff]
      %v1827 = vld [vmem:[%s280 + $0x1c8] sm:$0xff]
      %v1828 = vld [vmem:[%s280 + $0x1d0] sm:$0xff]
      %v1829 = vld [vmem:[%s280 + $0x1d8] sm:$0xff]
      %v1830 = vld [vmem:[%s280 + $0x1e0] sm:$0xff]
      %v1831 = vld [vmem:[%s280 + $0x1e8] sm:$0xff]
      %v1832 = vld [vmem:[%s280 + $0x1f0] sm:$0xff]
      %v1833 = vld [vmem:[%s280 + $0x1f8] sm:$0xff]
      %v1834 = vld [vmem:[%s280 + $0x200] sm:$0xff]
      %v1835 = vld [vmem:[%s280 + $0x208] sm:$0xff]
      %v1836 = vld [vmem:[%s280 + $0x210] sm:$0xff]
      %v1837 = vld [vmem:[%s280 + $0x218] sm:$0xff]
      %v1838 = vld [vmem:[%s280 + $0x220] sm:$0xff]
      %v1839 = vld [vmem:[%s280 + $0x228] sm:$0xff]
      %v1840 = vld [vmem:[%s280 + $0x230] sm:$0xff]
      %v1841 = vld [vmem:[%s280 + $0x238] sm:$0xff]
      %v1842 = vld [vmem:[%s280 + $0x240] sm:$0xff]
      %v1843 = vld [vmem:[%s280 + $0x248] sm:$0xff]
      %v1844 = vld [vmem:[%s280 + $0x250] sm:$0xff]
      %v1845 = vld [vmem:[%s280 + $0x258] sm:$0xff]
      %v1846 = vld [vmem:[%s280 + $0x260] sm:$0xff]
      %v1847 = vld [vmem:[%s280 + $0x268] sm:$0xff]
      %v1848 = vld [vmem:[%s280 + $0x270] sm:$0xff]
      %v1849 = vld [vmem:[%s280 + $0x278] sm:$0xff]
      %v1850 = vld [vmem:[%s280 + $0x280] sm:$0xff]
      %v1851 = vld [vmem:[%s280 + $0x288] sm:$0xff]
      %v1852 = vld [vmem:[%s280 + $0x290] sm:$0xff]
      %v1853 = vld [vmem:[%s280 + $0x298] sm:$0xff]
      %v1854 = vld [vmem:[%s280 + $0x2a0] sm:$0xff]
      %v1855 = vld [vmem:[%s280 + $0x2a8] sm:$0xff]
      %v1856 = vld [vmem:[%s280 + $0x2b0] sm:$0xff]
      %v1857 = vld [vmem:[%s280 + $0x2b8] sm:$0xff]
      %v1858 = vld [vmem:[%s280 + $0x2c0] sm:$0xff]
      %v1859 = vld [vmem:[%s280 + $0x2c8] sm:$0xff]
      %v1860 = vld [vmem:[%s280 + $0x2d0] sm:$0xff]
      %v1861 = vld [vmem:[%s280 + $0x2d8] sm:$0xff]
      %v1862 = vld [vmem:[%s280 + $0x2e0] sm:$0xff]
      %v1863 = vld [vmem:[%s280 + $0x2e8] sm:$0xff]
      %v1864 = vld [vmem:[%s280 + $0x2f0] sm:$0xff]
      %v1865 = vld [vmem:[%s280 + $0x2f8] sm:$0xff]
      %v1866 = vld [vmem:[%s280 + $0x300] sm:$0xff]
      %v1867 = vld [vmem:[%s280 + $0x308] sm:$0xff]
      %v1868 = vld [vmem:[%s280 + $0x310] sm:$0xff]
      %v1869 = vld [vmem:[%s280 + $0x318] sm:$0xff]
      %v1870 = vld [vmem:[%s280 + $0x320] sm:$0xff]
      %v1871 = vld [vmem:[%s280 + $0x328] sm:$0xff]
      %v1872 = vld [vmem:[%s280 + $0x330] sm:$0xff]
      %v1873 = vld [vmem:[%s280 + $0x338] sm:$0xff]
      %v1874 = vld [vmem:[%s280 + $0x340] sm:$0xff]
      %v1875 = vld [vmem:[%s280 + $0x348] sm:$0xff]
      %v1876 = vld [vmem:[%s280 + $0x350] sm:$0xff]
      %v1877 = vld [vmem:[%s280 + $0x358] sm:$0xff]
      %v1878 = vld [vmem:[%s280 + $0x360] sm:$0xff]
      %v1879 = vld [vmem:[%s280 + $0x368] sm:$0xff]
      %v1880 = vld [vmem:[%s280 + $0x370] sm:$0xff]
      %v1881 = vld [vmem:[%s280 + $0x378] sm:$0xff]
      %v1882 = vld [vmem:[%s280 + $0x380] sm:$0xff]
      %v1883 = vld [vmem:[%s280 + $0x388] sm:$0xff]
      %v1884 = vld [vmem:[%s280 + $0x390] sm:$0xff]
      %v1885 = vld [vmem:[%s280 + $0x398] sm:$0xff]
      %v1886 = vld [vmem:[%s280 + $0x3a0] sm:$0xff]
      %v1887 = vld [vmem:[%s280 + $0x3a8] sm:$0xff]
      %v1888 = vld [vmem:[%s280 + $0x3b0] sm:$0xff]
      %v1889 = vld [vmem:[%s280 + $0x3b8] sm:$0xff]
      %v1890 = vld [vmem:[%s280 + $0x3c0] sm:$0xff]
      %v1891 = vld [vmem:[%s280 + $0x3c8] sm:$0xff]
      %v1892 = vld [vmem:[%s280 + $0x3d0] sm:$0xff]
      %v1893 = vld [vmem:[%s280 + $0x3d8] sm:$0xff]
      %v1894 = vld [vmem:[%s280 + $0x3e0] sm:$0xff]
      %v1895 = vld [vmem:[%s280 + $0x3e8] sm:$0xff]
      %v1896 = vld [vmem:[%s280 + $0x3f0] sm:$0xff]
      %v1897 = vld [vmem:[%s280 + $0x3f8] sm:$0xff]
      %v1898 = vld [vmem:[%s280 + $0x400] sm:$0xff]
      %v1899 = vld [vmem:[%s280 + $0x408] sm:$0xff]
      %v1900 = vld [vmem:[%s280 + $0x410] sm:$0xff]
      %v1901 = vld [vmem:[%s280 + $0x418] sm:$0xff]
      %v1902 = vld [vmem:[%s280 + $0x420] sm:$0xff]
      %v1903 = vld [vmem:[%s280 + $0x428] sm:$0xff]
      %v1904 = vld [vmem:[%s280 + $0x430] sm:$0xff]
      %v1905 = vld [vmem:[%s280 + $0x438] sm:$0xff]
      %v1906 = vld [vmem:[%s280 + $0x440] sm:$0xff]
      %v1907 = vld [vmem:[%s280 + $0x448] sm:$0xff]
      %v1908 = vld [vmem:[%s280 + $0x450] sm:$0xff]
      %v1909 = vld [vmem:[%s280 + $0x458] sm:$0xff]
      %v1910 = vld [vmem:[%s280 + $0x460] sm:$0xff]
      %v1911 = vld [vmem:[%s280 + $0x468] sm:$0xff]
      %v1912 = vld [vmem:[%s280 + $0x470] sm:$0xff]
      %v1913 = vld [vmem:[%s280 + $0x478] sm:$0xff]
      %v1914 = vld [vmem:[%s280 + $0x480] sm:$0xff]
      %v1915 = vld [vmem:[%s280 + $0x488] sm:$0xff]
      %v1916 = vld [vmem:[%s280 + $0x490] sm:$0xff]
      %v1917 = vld [vmem:[%s280 + $0x498] sm:$0xff]
      %v1918 = vld [vmem:[%s280 + $0x4a0] sm:$0xff]
      %v1919 = vld [vmem:[%s280 + $0x4a8] sm:$0xff]
      %v1920 = vld [vmem:[%s280 + $0x4b0] sm:$0xff]
      %v1921 = vld [vmem:[%s280 + $0x4b8] sm:$0xff]
      %v1922 = vld [vmem:[%s280 + $0x4c0] sm:$0xff]
      %v1923 = vld [vmem:[%s280 + $0x4c8] sm:$0xff]
      %v1924 = vld [vmem:[%s280 + $0x4d0] sm:$0xff]
      %v1925 = vld [vmem:[%s280 + $0x4d8] sm:$0xff]
      %v1926 = vld [vmem:[%s280 + $0x4e0] sm:$0xff]
      %v1927 = vld [vmem:[%s280 + $0x4e8] sm:$0xff]
      %v1928 = vld [vmem:[%s280 + $0x4f0] sm:$0xff]
      %v1929 = vld [vmem:[%s280 + $0x4f8] sm:$0xff]
      %1930 = vmatpush.msra.mxu0 %v1845
      %1931 = vmatpush.msra.mxu0 %v1840
      %1932 = vmatpush.msra.mxu0 %v1835
      %1933 = vmatpush.msra.mxu0 %v1830
      %1934 = vmatpush.msra.mxu0 %v1825
      %1935 = vmatpush.msra.mxu0 %v1820
      %1936 = vmatpush.msra.mxu0 %v1815
      %1937 = vmatpush.msra.mxu0 %v1810
      %1938 = vmatpush.msra.mxu0 %v1805
      %1939 = vmatpush.msra.mxu0 %v1800
      %1940 = vmatpush.msra.mxu0 %v1795
      %1941 = vmatpush.msra.mxu0 %v1790
      %1942 = vmatpush.msra.mxu0 %v1785
      %1943 = vmatpush.msra.mxu0 %v1780
      %1944 = vmatpush.msra.mxu0 %v1775
      %1945 = vmatpush.msra.mxu0 %v1770
      %1946 = vmatmul.f32.gmra.mxu0 %v1686
      %v1947 = vpop.f32.mrf.mxu0
      %v1948 = vadd.f32 %v301, %v1947
      %1949 = vdwg.mxu0
      %1950 = vmatpush.msra.mxu0 %v1925
      %1951 = vmatpush.msra.mxu0 %v1920
      %1952 = vmatpush.msra.mxu0 %v1915
      %1953 = vmatpush.msra.mxu0 %v1910
      %1954 = vmatpush.msra.mxu0 %v1905
      %1955 = vmatpush.msra.mxu0 %v1900
      %1956 = vmatpush.msra.mxu0 %v1895
      %1957 = vmatpush.msra.mxu0 %v1890
      %1958 = vmatpush.msra.mxu0 %v1885
      %1959 = vmatpush.msra.mxu0 %v1880
      %1960 = vmatpush.msra.mxu0 %v1875
      %1961 = vmatpush.msra.mxu0 %v1870
      %1962 = vmatpush.msra.mxu0 %v1865
      %1963 = vmatpush.msra.mxu0 %v1860
      %1964 = vmatpush.msra.mxu0 %v1855
      %1965 = vmatpush.msra.mxu0 %v1850
      %1966 = vmatmul.f32.gmra.mxu0 %v1690
      %v1967 = vpop.f32.mrf.mxu0
      %v1968 = vadd.f32 %v1948, %v1967
      %1969 = vdwg.mxu0
      %1970 = vmatpush.msra.mxu0 %v1846
      %1971 = vmatpush.msra.mxu0 %v1841
      %1972 = vmatpush.msra.mxu0 %v1836
      %1973 = vmatpush.msra.mxu0 %v1831
      %1974 = vmatpush.msra.mxu0 %v1826
      %1975 = vmatpush.msra.mxu0 %v1821
      %1976 = vmatpush.msra.mxu0 %v1816
      %1977 = vmatpush.msra.mxu0 %v1811
      %1978 = vmatpush.msra.mxu0 %v1806
      %1979 = vmatpush.msra.mxu0 %v1801
      %1980 = vmatpush.msra.mxu0 %v1796
      %1981 = vmatpush.msra.mxu0 %v1791
      %1982 = vmatpush.msra.mxu0 %v1786
      %1983 = vmatpush.msra.mxu0 %v1781
      %1984 = vmatpush.msra.mxu0 %v1776
      %1985 = vmatpush.msra.mxu0 %v1771
      %1986 = vmatmul.f32.gmra.mxu0 %v1686
      %v1987 = vpop.f32.mrf.mxu0
      %v1988 = vadd.f32 %v302, %v1987
      %1989 = vdwg.mxu0
      %1990 = vmatpush.msra.mxu0 %v1926
      %1991 = vmatpush.msra.mxu0 %v1921
      %1992 = vmatpush.msra.mxu0 %v1916
      %1993 = vmatpush.msra.mxu0 %v1911
      %1994 = vmatpush.msra.mxu0 %v1906
      %1995 = vmatpush.msra.mxu0 %v1901
      %1996 = vmatpush.msra.mxu0 %v1896
      %1997 = vmatpush.msra.mxu0 %v1891
      %1998 = vmatpush.msra.mxu0 %v1886
      %1999 = vmatpush.msra.mxu0 %v1881
      %2000 = vmatpush.msra.mxu0 %v1876
      %2001 = vmatpush.msra.mxu0 %v1871
      %2002 = vmatpush.msra.mxu0 %v1866
      %2003 = vmatpush.msra.mxu0 %v1861
      %2004 = vmatpush.msra.mxu0 %v1856
      %2005 = vmatpush.msra.mxu0 %v1851
      %2006 = vmatmul.f32.gmra.mxu0 %v1690
      %v2007 = vpop.f32.mrf.mxu0
      %v2008 = vadd.f32 %v1988, %v2007
      %2009 = vdwg.mxu0
      %2010 = vmatpush.msra.mxu0 %v1847
      %2011 = vmatpush.msra.mxu0 %v1842
      %2012 = vmatpush.msra.mxu0 %v1837
      %2013 = vmatpush.msra.mxu0 %v1832
      %2014 = vmatpush.msra.mxu0 %v1827
      %2015 = vmatpush.msra.mxu0 %v1822
      %2016 = vmatpush.msra.mxu0 %v1817
      %2017 = vmatpush.msra.mxu0 %v1812
      %2018 = vmatpush.msra.mxu0 %v1807
      %2019 = vmatpush.msra.mxu0 %v1802
      %2020 = vmatpush.msra.mxu0 %v1797
      %2021 = vmatpush.msra.mxu0 %v1792
      %2022 = vmatpush.msra.mxu0 %v1787
      %2023 = vmatpush.msra.mxu0 %v1782
      %2024 = vmatpush.msra.mxu0 %v1777
      %2025 = vmatpush.msra.mxu0 %v1772
      %2026 = vmatmul.f32.gmra.mxu0 %v1686
      %v2027 = vpop.f32.mrf.mxu0
      %v2028 = vadd.f32 %v303, %v2027
      %2029 = vdwg.mxu0
      %2030 = vmatpush.msra.mxu0 %v1927
      %2031 = vmatpush.msra.mxu0 %v1922
      %2032 = vmatpush.msra.mxu0 %v1917
      %2033 = vmatpush.msra.mxu0 %v1912
      %2034 = vmatpush.msra.mxu0 %v1907
      %2035 = vmatpush.msra.mxu0 %v1902
      %2036 = vmatpush.msra.mxu0 %v1897
      %2037 = vmatpush.msra.mxu0 %v1892
      %2038 = vmatpush.msra.mxu0 %v1887
      %2039 = vmatpush.msra.mxu0 %v1882
      %2040 = vmatpush.msra.mxu0 %v1877
      %2041 = vmatpush.msra.mxu0 %v1872
      %2042 = vmatpush.msra.mxu0 %v1867
      %2043 = vmatpush.msra.mxu0 %v1862
      %2044 = vmatpush.msra.mxu0 %v1857
      %2045 = vmatpush.msra.mxu0 %v1852
      %2046 = vmatmul.f32.gmra.mxu0 %v1690
      %v2047 = vpop.f32.mrf.mxu0
      %v2048 = vadd.f32 %v2028, %v2047
      %2049 = vdwg.mxu0
      %2050 = vmatpush.msra.mxu0 %v1848
      %2051 = vmatpush.msra.mxu0 %v1843
      %2052 = vmatpush.msra.mxu0 %v1838
      %2053 = vmatpush.msra.mxu0 %v1833
      %2054 = vmatpush.msra.mxu0 %v1828
      %2055 = vmatpush.msra.mxu0 %v1823
      %2056 = vmatpush.msra.mxu0 %v1818
      %2057 = vmatpush.msra.mxu0 %v1813
      %2058 = vmatpush.msra.mxu0 %v1808
      %2059 = vmatpush.msra.mxu0 %v1803
      %2060 = vmatpush.msra.mxu0 %v1798
      %2061 = vmatpush.msra.mxu0 %v1793
      %2062 = vmatpush.msra.mxu0 %v1788
      %2063 = vmatpush.msra.mxu0 %v1783
      %2064 = vmatpush.msra.mxu0 %v1778
      %2065 = vmatpush.msra.mxu0 %v1773
      %2066 = vmatmul.f32.gmra.mxu0 %v1686
      %v2067 = vpop.f32.mrf.mxu0
      %v2068 = vadd.f32 %v304, %v2067
      %2069 = vdwg.mxu0
      %2070 = vmatpush.msra.mxu0 %v1928
      %2071 = vmatpush.msra.mxu0 %v1923
      %2072 = vmatpush.msra.mxu0 %v1918
      %2073 = vmatpush.msra.mxu0 %v1913
      %2074 = vmatpush.msra.mxu0 %v1908
      %2075 = vmatpush.msra.mxu0 %v1903
      %2076 = vmatpush.msra.mxu0 %v1898
      %2077 = vmatpush.msra.mxu0 %v1893
      %2078 = vmatpush.msra.mxu0 %v1888
      %2079 = vmatpush.msra.mxu0 %v1883
      %2080 = vmatpush.msra.mxu0 %v1878
      %2081 = vmatpush.msra.mxu0 %v1873
      %2082 = vmatpush.msra.mxu0 %v1868
      %2083 = vmatpush.msra.mxu0 %v1863
      %2084 = vmatpush.msra.mxu0 %v1858
      %2085 = vmatpush.msra.mxu0 %v1853
      %2086 = vmatmul.f32.gmra.mxu0 %v1690
      %v2087 = vpop.f32.mrf.mxu0
      %v2088 = vadd.f32 %v2068, %v2087
      %2089 = vdwg.mxu0
      %2090 = vmatpush.msra.mxu0 %v1849
      %2091 = vmatpush.msra.mxu0 %v1844
      %2092 = vmatpush.msra.mxu0 %v1839
      %2093 = vmatpush.msra.mxu0 %v1834
      %2094 = vmatpush.msra.mxu0 %v1829
      %2095 = vmatpush.msra.mxu0 %v1824
      %2096 = vmatpush.msra.mxu0 %v1819
      %2097 = vmatpush.msra.mxu0 %v1814
      %2098 = vmatpush.msra.mxu0 %v1809
      %2099 = vmatpush.msra.mxu0 %v1804
      %2100 = vmatpush.msra.mxu0 %v1799
      %2101 = vmatpush.msra.mxu0 %v1794
      %2102 = vmatpush.msra.mxu0 %v1789
      %2103 = vmatpush.msra.mxu0 %v1784
      %2104 = vmatpush.msra.mxu0 %v1779
      %2105 = vmatpush.msra.mxu0 %v1774
      %2106 = vmatmul.f32.gmra.mxu0 %v1686
      %v2107 = vpop.f32.mrf.mxu0
      %v2108 = vadd.f32 %v305, %v2107
      %2109 = vdwg.mxu0
      %2110 = vmatpush.msra.mxu0 %v1929
      %2111 = vmatpush.msra.mxu0 %v1924
      %2112 = vmatpush.msra.mxu0 %v1919
      %2113 = vmatpush.msra.mxu0 %v1914
      %2114 = vmatpush.msra.mxu0 %v1909
      %2115 = vmatpush.msra.mxu0 %v1904
      %2116 = vmatpush.msra.mxu0 %v1899
      %2117 = vmatpush.msra.mxu0 %v1894
      %2118 = vmatpush.msra.mxu0 %v1889
      %2119 = vmatpush.msra.mxu0 %v1884
      %2120 = vmatpush.msra.mxu0 %v1879
      %2121 = vmatpush.msra.mxu0 %v1874
      %2122 = vmatpush.msra.mxu0 %v1869
      %2123 = vmatpush.msra.mxu0 %v1864
      %2124 = vmatpush.msra.mxu0 %v1859
      %2125 = vmatpush.msra.mxu0 %v1854
      %2126 = vmatmul.f32.gmra.mxu0 %v1690
      %v2127 = vpop.f32.mrf.mxu0
      %v2128 = vadd.f32 %v2108, %v2127
      %2129 = vdwg.mxu0
      %s2130 = scalar_lea.vmem %s275, 24
      %v2131 = vld [vmem:[%s2130] sm:$0xff]
      %v2136 = vrot.slane %v2048, 6
      %v2137 = vrot.slane %v2088, 4
      %v2138 = vrot.slane %v2128, 2
      %v2139 = vsel %vm685, %v2008, %v2136
      %v2140 = vsel %vm687, %v2137, %v2138
      %v2141 = vsel %vm689, %v2139, %v2140
      %v2143 = vadd.f32 %v2131, %v2141
      %v2144 = vxor.u32 %v2143, 2147483648
      %v2145 = vmul.f32 %v2144, 1.442695
      %v2146 = vpow.pop %v2145
      %v2147 = vadd.f32 %v2146, 1.0
      %v2148 = vrcp.pop %v2147
      %v2149 = vmul.f32 %v2147, %v2148
      %v2150 = vsub.f32 1.0, %v2149
      %v2151 = vmul.f32 %v2148, %v2150
      %v2152 = vadd.f32 %v2148, %v2151
      %vm2153 = vweird.f32 %v2147
      %vm2154 = vweird.f32 %v2148
      %vm2155 = vmor %vm2153, %vm2154
      %v2156 = vsel %vm2155, %v2148, %v2152
      %v2157 = vand.u32 2147483647, %v2147
      %vm2158 = vcmp.eq.f32.partialorder %v2157, 8.507059e+37
      %v2159 = vand.u32 %v2147, 2147483648
      %v2160 = vor.u32 1.1754944e-38, %v2159
      %v2161 = vsel %vm2158, %v2160, %v2156
      %v2162 = vmul.f32 1.0, %v2161
      %v2164 = vrot.slane %v2162, 4
      %v2166 = vmul.f32 %v2164, %v1968
      %v2167 = vrot.slane %v2162, 2
      %v2169 = vmul.f32 %v2162, %v2167
      %v2170 = vadd.f32 %v2166, %v2169
      %v2171 = vtanh.pop %v2170
      %v2172 = vrot.slane %v2162, 6
      %v2174 = vmul.f32 %v2172, %v2171
      %v2175 = vld [vmem:[%s289] sm:$0xff]
      %v2176 = vld [vmem:[%s289 + $0x8] sm:$0xff]
      %v2177 = vld [vmem:[%s289 + $0x10] sm:$0xff]
      %v2178 = vld [vmem:[%s289 + $0x18] sm:$0xff]
      %v2179 = vld [vmem:[%s289 + $0x20] sm:$0xff]
      %v2180 = vld [vmem:[%s289 + $0x28] sm:$0xff]
      %v2181 = vld [vmem:[%s289 + $0x30] sm:$0xff]
      %v2182 = vld [vmem:[%s289 + $0x38] sm:$0xff]
      %v2183 = vld [vmem:[%s289 + $0x40] sm:$0xff]
      %v2184 = vld [vmem:[%s289 + $0x48] sm:$0xff]
      %v2185 = vld [vmem:[%s289 + $0x50] sm:$0xff]
      %v2186 = vld [vmem:[%s289 + $0x58] sm:$0xff]
      %v2187 = vld [vmem:[%s289 + $0x60] sm:$0xff]
      %v2188 = vld [vmem:[%s289 + $0x68] sm:$0xff]
      %v2189 = vld [vmem:[%s289 + $0x70] sm:$0xff]
      %v2190 = vld [vmem:[%s289 + $0x78] sm:$0xff]
      %v2191 = vld [vmem:[%s289 + $0x80] sm:$0xff]
      %v2192 = vld [vmem:[%s289 + $0x88] sm:$0xff]
      %v2193 = vld [vmem:[%s289 + $0x90] sm:$0xff]
      %v2194 = vld [vmem:[%s289 + $0x98] sm:$0xff]
      %v2195 = vld [vmem:[%s289 + $0xa0] sm:$0xff]
      %v2196 = vld [vmem:[%s289 + $0xa8] sm:$0xff]
      %v2197 = vld [vmem:[%s289 + $0xb0] sm:$0xff]
      %v2198 = vld [vmem:[%s289 + $0xb8] sm:$0xff]
      %v2199 = vld [vmem:[%s289 + $0xc0] sm:$0xff]
      %v2200 = vld [vmem:[%s289 + $0xc8] sm:$0xff]
      %v2201 = vld [vmem:[%s289 + $0xd0] sm:$0xff]
      %v2202 = vld [vmem:[%s289 + $0xd8] sm:$0xff]
      %v2203 = vld [vmem:[%s289 + $0xe0] sm:$0xff]
      %v2204 = vld [vmem:[%s289 + $0xe8] sm:$0xff]
      %v2205 = vld [vmem:[%s289 + $0xf0] sm:$0xff]
      %v2206 = vld [vmem:[%s289 + $0xf8] sm:$0xff]
      %2207 = vmatpush.msra.mxu0 %v2205
      %2208 = vmatpush.msra.mxu0 %v2203
      %2209 = vmatpush.msra.mxu0 %v2201
      %2210 = vmatpush.msra.mxu0 %v2199
      %2211 = vmatpush.msra.mxu0 %v2197
      %2212 = vmatpush.msra.mxu0 %v2195
      %2213 = vmatpush.msra.mxu0 %v2193
      %2214 = vmatpush.msra.mxu0 %v2191
      %2215 = vmatpush.msra.mxu0 %v2189
      %2216 = vmatpush.msra.mxu0 %v2187
      %2217 = vmatpush.msra.mxu0 %v2185
      %2218 = vmatpush.msra.mxu0 %v2183
      %2219 = vmatpush.msra.mxu0 %v2181
      %2220 = vmatpush.msra.mxu0 %v2179
      %2221 = vmatpush.msra.mxu0 %v2177
      %2222 = vmatpush.msra.mxu0 %v2175
      %2223 = vmatmul.f32.gmra.mxu0 %v2174
      %v2224 = vpop.f32.mrf.mxu0
      %v2225 = vadd.f32 %v313, %v2224
      %2226 = vdwg.mxu0
      %2227 = vmatpush.msra.mxu0 %v2206
      %2228 = vmatpush.msra.mxu0 %v2204
      %2229 = vmatpush.msra.mxu0 %v2202
      %2230 = vmatpush.msra.mxu0 %v2200
      %2231 = vmatpush.msra.mxu0 %v2198
      %2232 = vmatpush.msra.mxu0 %v2196
      %2233 = vmatpush.msra.mxu0 %v2194
      %2234 = vmatpush.msra.mxu0 %v2192
      %2235 = vmatpush.msra.mxu0 %v2190
      %2236 = vmatpush.msra.mxu0 %v2188
      %2237 = vmatpush.msra.mxu0 %v2186
      %2238 = vmatpush.msra.mxu0 %v2184
      %2239 = vmatpush.msra.mxu0 %v2182
      %2240 = vmatpush.msra.mxu0 %v2180
      %2241 = vmatpush.msra.mxu0 %v2178
      %2242 = vmatpush.msra.mxu0 %v2176
      %2243 = vmatmul.f32.gmra.mxu0 %v2174
      %v2244 = vpop.f32.mrf.mxu0
      %v2245 = vadd.f32 %v314, %v2244
      %2246 = vdwg.mxu0
      %v2249 = vrot.slane %v2245, 6
      %v2250 = vsel %vm685, %v2225, %v2249
      %s2252 = scalar_lea.vmem %s298, 12
      %2253 = vst [vmem:[%s2252] sm:$0xf] %v2250
      %v2254 = vld [vmem:[%s280] sm:$0xff]
      %v2255 = vld [vmem:[%s280 + $0x8] sm:$0xff]
      %v2256 = vld [vmem:[%s280 + $0x10] sm:$0xff]
      %v2257 = vld [vmem:[%s280 + $0x18] sm:$0xff]
      %v2258 = vld [vmem:[%s280 + $0x20] sm:$0xff]
      %v2259 = vld [vmem:[%s280 + $0x28] sm:$0xff]
      %v2260 = vld [vmem:[%s280 + $0x30] sm:$0xff]
      %v2261 = vld [vmem:[%s280 + $0x38] sm:$0xff]
      %v2262 = vld [vmem:[%s280 + $0x40] sm:$0xff]
      %v2263 = vld [vmem:[%s280 + $0x48] sm:$0xff]
      %v2264 = vld [vmem:[%s280 + $0x50] sm:$0xff]
      %v2265 = vld [vmem:[%s280 + $0x58] sm:$0xff]
      %v2266 = vld [vmem:[%s280 + $0x60] sm:$0xff]
      %v2267 = vld [vmem:[%s280 + $0x68] sm:$0xff]
      %v2268 = vld [vmem:[%s280 + $0x70] sm:$0xff]
      %v2269 = vld [vmem:[%s280 + $0x78] sm:$0xff]
      %v2270 = vld [vmem:[%s280 + $0x80] sm:$0xff]
      %v2271 = vld [vmem:[%s280 + $0x88] sm:$0xff]
      %v2272 = vld [vmem:[%s280 + $0x90] sm:$0xff]
      %v2273 = vld [vmem:[%s280 + $0x98] sm:$0xff]
      %v2274 = vld [vmem:[%s280 + $0xa0] sm:$0xff]
      %v2275 = vld [vmem:[%s280 + $0xa8] sm:$0xff]
      %v2276 = vld [vmem:[%s280 + $0xb0] sm:$0xff]
      %v2277 = vld [vmem:[%s280 + $0xb8] sm:$0xff]
      %v2278 = vld [vmem:[%s280 + $0xc0] sm:$0xff]
      %v2279 = vld [vmem:[%s280 + $0xc8] sm:$0xff]
      %v2280 = vld [vmem:[%s280 + $0xd0] sm:$0xff]
      %v2281 = vld [vmem:[%s280 + $0xd8] sm:$0xff]
      %v2282 = vld [vmem:[%s280 + $0xe0] sm:$0xff]
      %v2283 = vld [vmem:[%s280 + $0xe8] sm:$0xff]
      %v2284 = vld [vmem:[%s280 + $0xf0] sm:$0xff]
      %v2285 = vld [vmem:[%s280 + $0xf8] sm:$0xff]
      %v2286 = vld [vmem:[%s280 + $0x100] sm:$0xff]
      %v2287 = vld [vmem:[%s280 + $0x108] sm:$0xff]
      %v2288 = vld [vmem:[%s280 + $0x110] sm:$0xff]
      %v2289 = vld [vmem:[%s280 + $0x118] sm:$0xff]
      %v2290 = vld [vmem:[%s280 + $0x120] sm:$0xff]
      %v2291 = vld [vmem:[%s280 + $0x128] sm:$0xff]
      %v2292 = vld [vmem:[%s280 + $0x130] sm:$0xff]
      %v2293 = vld [vmem:[%s280 + $0x138] sm:$0xff]
      %v2294 = vld [vmem:[%s280 + $0x140] sm:$0xff]
      %v2295 = vld [vmem:[%s280 + $0x148] sm:$0xff]
      %v2296 = vld [vmem:[%s280 + $0x150] sm:$0xff]
      %v2297 = vld [vmem:[%s280 + $0x158] sm:$0xff]
      %v2298 = vld [vmem:[%s280 + $0x160] sm:$0xff]
      %v2299 = vld [vmem:[%s280 + $0x168] sm:$0xff]
      %v2300 = vld [vmem:[%s280 + $0x170] sm:$0xff]
      %v2301 = vld [vmem:[%s280 + $0x178] sm:$0xff]
      %v2302 = vld [vmem:[%s280 + $0x180] sm:$0xff]
      %v2303 = vld [vmem:[%s280 + $0x188] sm:$0xff]
      %v2304 = vld [vmem:[%s280 + $0x190] sm:$0xff]
      %v2305 = vld [vmem:[%s280 + $0x198] sm:$0xff]
      %v2306 = vld [vmem:[%s280 + $0x1a0] sm:$0xff]
      %v2307 = vld [vmem:[%s280 + $0x1a8] sm:$0xff]
      %v2308 = vld [vmem:[%s280 + $0x1b0] sm:$0xff]
      %v2309 = vld [vmem:[%s280 + $0x1b8] sm:$0xff]
      %v2310 = vld [vmem:[%s280 + $0x1c0] sm:$0xff]
      %v2311 = vld [vmem:[%s280 + $0x1c8] sm:$0xff]
      %v2312 = vld [vmem:[%s280 + $0x1d0] sm:$0xff]
      %v2313 = vld [vmem:[%s280 + $0x1d8] sm:$0xff]
      %v2314 = vld [vmem:[%s280 + $0x1e0] sm:$0xff]
      %v2315 = vld [vmem:[%s280 + $0x1e8] sm:$0xff]
      %v2316 = vld [vmem:[%s280 + $0x1f0] sm:$0xff]
      %v2317 = vld [vmem:[%s280 + $0x1f8] sm:$0xff]
      %v2318 = vld [vmem:[%s280 + $0x200] sm:$0xff]
      %v2319 = vld [vmem:[%s280 + $0x208] sm:$0xff]
      %v2320 = vld [vmem:[%s280 + $0x210] sm:$0xff]
      %v2321 = vld [vmem:[%s280 + $0x218] sm:$0xff]
      %v2322 = vld [vmem:[%s280 + $0x220] sm:$0xff]
      %v2323 = vld [vmem:[%s280 + $0x228] sm:$0xff]
      %v2324 = vld [vmem:[%s280 + $0x230] sm:$0xff]
      %v2325 = vld [vmem:[%s280 + $0x238] sm:$0xff]
      %v2326 = vld [vmem:[%s280 + $0x240] sm:$0xff]
      %v2327 = vld [vmem:[%s280 + $0x248] sm:$0xff]
      %v2328 = vld [vmem:[%s280 + $0x250] sm:$0xff]
      %v2329 = vld [vmem:[%s280 + $0x258] sm:$0xff]
      %v2330 = vld [vmem:[%s280 + $0x260] sm:$0xff]
      %v2331 = vld [vmem:[%s280 + $0x268] sm:$0xff]
      %v2332 = vld [vmem:[%s280 + $0x270] sm:$0xff]
      %v2333 = vld [vmem:[%s280 + $0x278] sm:$0xff]
      %v2334 = vld [vmem:[%s280 + $0x280] sm:$0xff]
      %v2335 = vld [vmem:[%s280 + $0x288] sm:$0xff]
      %v2336 = vld [vmem:[%s280 + $0x290] sm:$0xff]
      %v2337 = vld [vmem:[%s280 + $0x298] sm:$0xff]
      %v2338 = vld [vmem:[%s280 + $0x2a0] sm:$0xff]
      %v2339 = vld [vmem:[%s280 + $0x2a8] sm:$0xff]
      %v2340 = vld [vmem:[%s280 + $0x2b0] sm:$0xff]
      %v2341 = vld [vmem:[%s280 + $0x2b8] sm:$0xff]
      %v2342 = vld [vmem:[%s280 + $0x2c0] sm:$0xff]
      %v2343 = vld [vmem:[%s280 + $0x2c8] sm:$0xff]
      %v2344 = vld [vmem:[%s280 + $0x2d0] sm:$0xff]
      %v2345 = vld [vmem:[%s280 + $0x2d8] sm:$0xff]
      %v2346 = vld [vmem:[%s280 + $0x2e0] sm:$0xff]
      %v2347 = vld [vmem:[%s280 + $0x2e8] sm:$0xff]
      %v2348 = vld [vmem:[%s280 + $0x2f0] sm:$0xff]
      %v2349 = vld [vmem:[%s280 + $0x2f8] sm:$0xff]
      %v2350 = vld [vmem:[%s280 + $0x300] sm:$0xff]
      %v2351 = vld [vmem:[%s280 + $0x308] sm:$0xff]
      %v2352 = vld [vmem:[%s280 + $0x310] sm:$0xff]
      %v2353 = vld [vmem:[%s280 + $0x318] sm:$0xff]
      %v2354 = vld [vmem:[%s280 + $0x320] sm:$0xff]
      %v2355 = vld [vmem:[%s280 + $0x328] sm:$0xff]
      %v2356 = vld [vmem:[%s280 + $0x330] sm:$0xff]
      %v2357 = vld [vmem:[%s280 + $0x338] sm:$0xff]
      %v2358 = vld [vmem:[%s280 + $0x340] sm:$0xff]
      %v2359 = vld [vmem:[%s280 + $0x348] sm:$0xff]
      %v2360 = vld [vmem:[%s280 + $0x350] sm:$0xff]
      %v2361 = vld [vmem:[%s280 + $0x358] sm:$0xff]
      %v2362 = vld [vmem:[%s280 + $0x360] sm:$0xff]
      %v2363 = vld [vmem:[%s280 + $0x368] sm:$0xff]
      %v2364 = vld [vmem:[%s280 + $0x370] sm:$0xff]
      %v2365 = vld [vmem:[%s280 + $0x378] sm:$0xff]
      %v2366 = vld [vmem:[%s280 + $0x380] sm:$0xff]
      %v2367 = vld [vmem:[%s280 + $0x388] sm:$0xff]
      %v2368 = vld [vmem:[%s280 + $0x390] sm:$0xff]
      %v2369 = vld [vmem:[%s280 + $0x398] sm:$0xff]
      %v2370 = vld [vmem:[%s280 + $0x3a0] sm:$0xff]
      %v2371 = vld [vmem:[%s280 + $0x3a8] sm:$0xff]
      %v2372 = vld [vmem:[%s280 + $0x3b0] sm:$0xff]
      %v2373 = vld [vmem:[%s280 + $0x3b8] sm:$0xff]
      %v2374 = vld [vmem:[%s280 + $0x3c0] sm:$0xff]
      %v2375 = vld [vmem:[%s280 + $0x3c8] sm:$0xff]
      %v2376 = vld [vmem:[%s280 + $0x3d0] sm:$0xff]
      %v2377 = vld [vmem:[%s280 + $0x3d8] sm:$0xff]
      %v2378 = vld [vmem:[%s280 + $0x3e0] sm:$0xff]
      %v2379 = vld [vmem:[%s280 + $0x3e8] sm:$0xff]
      %v2380 = vld [vmem:[%s280 + $0x3f0] sm:$0xff]
      %v2381 = vld [vmem:[%s280 + $0x3f8] sm:$0xff]
      %v2382 = vld [vmem:[%s280 + $0x400] sm:$0xff]
      %v2383 = vld [vmem:[%s280 + $0x408] sm:$0xff]
      %v2384 = vld [vmem:[%s280 + $0x410] sm:$0xff]
      %v2385 = vld [vmem:[%s280 + $0x418] sm:$0xff]
      %v2386 = vld [vmem:[%s280 + $0x420] sm:$0xff]
      %v2387 = vld [vmem:[%s280 + $0x428] sm:$0xff]
      %v2388 = vld [vmem:[%s280 + $0x430] sm:$0xff]
      %v2389 = vld [vmem:[%s280 + $0x438] sm:$0xff]
      %v2390 = vld [vmem:[%s280 + $0x440] sm:$0xff]
      %v2391 = vld [vmem:[%s280 + $0x448] sm:$0xff]
      %v2392 = vld [vmem:[%s280 + $0x450] sm:$0xff]
      %v2393 = vld [vmem:[%s280 + $0x458] sm:$0xff]
      %v2394 = vld [vmem:[%s280 + $0x460] sm:$0xff]
      %v2395 = vld [vmem:[%s280 + $0x468] sm:$0xff]
      %v2396 = vld [vmem:[%s280 + $0x470] sm:$0xff]
      %v2397 = vld [vmem:[%s280 + $0x478] sm:$0xff]
      %v2398 = vld [vmem:[%s280 + $0x480] sm:$0xff]
      %v2399 = vld [vmem:[%s280 + $0x488] sm:$0xff]
      %v2400 = vld [vmem:[%s280 + $0x490] sm:$0xff]
      %v2401 = vld [vmem:[%s280 + $0x498] sm:$0xff]
      %v2402 = vld [vmem:[%s280 + $0x4a0] sm:$0xff]
      %v2403 = vld [vmem:[%s280 + $0x4a8] sm:$0xff]
      %v2404 = vld [vmem:[%s280 + $0x4b0] sm:$0xff]
      %v2405 = vld [vmem:[%s280 + $0x4b8] sm:$0xff]
      %v2406 = vld [vmem:[%s280 + $0x4c0] sm:$0xff]
      %v2407 = vld [vmem:[%s280 + $0x4c8] sm:$0xff]
      %v2408 = vld [vmem:[%s280 + $0x4d0] sm:$0xff]
      %v2409 = vld [vmem:[%s280 + $0x4d8] sm:$0xff]
      %v2410 = vld [vmem:[%s280 + $0x4e0] sm:$0xff]
      %v2411 = vld [vmem:[%s280 + $0x4e8] sm:$0xff]
      %v2412 = vld [vmem:[%s280 + $0x4f0] sm:$0xff]
      %v2413 = vld [vmem:[%s280 + $0x4f8] sm:$0xff]
      %2414 = vmatpush.msra.mxu0 %v2329
      %2415 = vmatpush.msra.mxu0 %v2324
      %2416 = vmatpush.msra.mxu0 %v2319
      %2417 = vmatpush.msra.mxu0 %v2314
      %2418 = vmatpush.msra.mxu0 %v2309
      %2419 = vmatpush.msra.mxu0 %v2304
      %2420 = vmatpush.msra.mxu0 %v2299
      %2421 = vmatpush.msra.mxu0 %v2294
      %2422 = vmatpush.msra.mxu0 %v2289
      %2423 = vmatpush.msra.mxu0 %v2284
      %2424 = vmatpush.msra.mxu0 %v2279
      %2425 = vmatpush.msra.mxu0 %v2274
      %2426 = vmatpush.msra.mxu0 %v2269
      %2427 = vmatpush.msra.mxu0 %v2264
      %2428 = vmatpush.msra.mxu0 %v2259
      %2429 = vmatpush.msra.mxu0 %v2254
      %2430 = vmatmul.f32.gmra.mxu0 %v2170
      %v2431 = vpop.f32.mrf.mxu0
      %v2432 = vadd.f32 %v301, %v2431
      %2433 = vdwg.mxu0
      %2434 = vmatpush.msra.mxu0 %v2409
      %2435 = vmatpush.msra.mxu0 %v2404
      %2436 = vmatpush.msra.mxu0 %v2399
      %2437 = vmatpush.msra.mxu0 %v2394
      %2438 = vmatpush.msra.mxu0 %v2389
      %2439 = vmatpush.msra.mxu0 %v2384
      %2440 = vmatpush.msra.mxu0 %v2379
      %2441 = vmatpush.msra.mxu0 %v2374
      %2442 = vmatpush.msra.mxu0 %v2369
      %2443 = vmatpush.msra.mxu0 %v2364
      %2444 = vmatpush.msra.mxu0 %v2359
      %2445 = vmatpush.msra.mxu0 %v2354
      %2446 = vmatpush.msra.mxu0 %v2349
      %2447 = vmatpush.msra.mxu0 %v2344
      %2448 = vmatpush.msra.mxu0 %v2339
      %2449 = vmatpush.msra.mxu0 %v2334
      %2450 = vmatmul.f32.gmra.mxu0 %v2174
      %v2451 = vpop.f32.mrf.mxu0
      %v2452 = vadd.f32 %v2432, %v2451
      %2453 = vdwg.mxu0
      %2454 = vmatpush.msra.mxu0 %v2330
      %2455 = vmatpush.msra.mxu0 %v2325
      %2456 = vmatpush.msra.mxu0 %v2320
      %2457 = vmatpush.msra.mxu0 %v2315
      %2458 = vmatpush.msra.mxu0 %v2310
      %2459 = vmatpush.msra.mxu0 %v2305
      %2460 = vmatpush.msra.mxu0 %v2300
      %2461 = vmatpush.msra.mxu0 %v2295
      %2462 = vmatpush.msra.mxu0 %v2290
      %2463 = vmatpush.msra.mxu0 %v2285
      %2464 = vmatpush.msra.mxu0 %v2280
      %2465 = vmatpush.msra.mxu0 %v2275
      %2466 = vmatpush.msra.mxu0 %v2270
      %2467 = vmatpush.msra.mxu0 %v2265
      %2468 = vmatpush.msra.mxu0 %v2260
      %2469 = vmatpush.msra.mxu0 %v2255
      %2470 = vmatmul.f32.gmra.mxu0 %v2170
      %v2471 = vpop.f32.mrf.mxu0
      %v2472 = vadd.f32 %v302, %v2471
      %2473 = vdwg.mxu0
      %2474 = vmatpush.msra.mxu0 %v2410
      %2475 = vmatpush.msra.mxu0 %v2405
      %2476 = vmatpush.msra.mxu0 %v2400
      %2477 = vmatpush.msra.mxu0 %v2395
      %2478 = vmatpush.msra.mxu0 %v2390
      %2479 = vmatpush.msra.mxu0 %v2385
      %2480 = vmatpush.msra.mxu0 %v2380
      %2481 = vmatpush.msra.mxu0 %v2375
      %2482 = vmatpush.msra.mxu0 %v2370
      %2483 = vmatpush.msra.mxu0 %v2365
      %2484 = vmatpush.msra.mxu0 %v2360
      %2485 = vmatpush.msra.mxu0 %v2355
      %2486 = vmatpush.msra.mxu0 %v2350
      %2487 = vmatpush.msra.mxu0 %v2345
      %2488 = vmatpush.msra.mxu0 %v2340
      %2489 = vmatpush.msra.mxu0 %v2335
      %2490 = vmatmul.f32.gmra.mxu0 %v2174
      %v2491 = vpop.f32.mrf.mxu0
      %v2492 = vadd.f32 %v2472, %v2491
      %2493 = vdwg.mxu0
      %2494 = vmatpush.msra.mxu0 %v2331
      %2495 = vmatpush.msra.mxu0 %v2326
      %2496 = vmatpush.msra.mxu0 %v2321
      %2497 = vmatpush.msra.mxu0 %v2316
      %2498 = vmatpush.msra.mxu0 %v2311
      %2499 = vmatpush.msra.mxu0 %v2306
      %2500 = vmatpush.msra.mxu0 %v2301
      %2501 = vmatpush.msra.mxu0 %v2296
      %2502 = vmatpush.msra.mxu0 %v2291
      %2503 = vmatpush.msra.mxu0 %v2286
      %2504 = vmatpush.msra.mxu0 %v2281
      %2505 = vmatpush.msra.mxu0 %v2276
      %2506 = vmatpush.msra.mxu0 %v2271
      %2507 = vmatpush.msra.mxu0 %v2266
      %2508 = vmatpush.msra.mxu0 %v2261
      %2509 = vmatpush.msra.mxu0 %v2256
      %2510 = vmatmul.f32.gmra.mxu0 %v2170
      %v2511 = vpop.f32.mrf.mxu0
      %v2512 = vadd.f32 %v303, %v2511
      %2513 = vdwg.mxu0
      %2514 = vmatpush.msra.mxu0 %v2411
      %2515 = vmatpush.msra.mxu0 %v2406
      %2516 = vmatpush.msra.mxu0 %v2401
      %2517 = vmatpush.msra.mxu0 %v2396
      %2518 = vmatpush.msra.mxu0 %v2391
      %2519 = vmatpush.msra.mxu0 %v2386
      %2520 = vmatpush.msra.mxu0 %v2381
      %2521 = vmatpush.msra.mxu0 %v2376
      %2522 = vmatpush.msra.mxu0 %v2371
      %2523 = vmatpush.msra.mxu0 %v2366
      %2524 = vmatpush.msra.mxu0 %v2361
      %2525 = vmatpush.msra.mxu0 %v2356
      %2526 = vmatpush.msra.mxu0 %v2351
      %2527 = vmatpush.msra.mxu0 %v2346
      %2528 = vmatpush.msra.mxu0 %v2341
      %2529 = vmatpush.msra.mxu0 %v2336
      %2530 = vmatmul.f32.gmra.mxu0 %v2174
      %v2531 = vpop.f32.mrf.mxu0
      %v2532 = vadd.f32 %v2512, %v2531
      %2533 = vdwg.mxu0
      %2534 = vmatpush.msra.mxu0 %v2332
      %2535 = vmatpush.msra.mxu0 %v2327
      %2536 = vmatpush.msra.mxu0 %v2322
      %2537 = vmatpush.msra.mxu0 %v2317
      %2538 = vmatpush.msra.mxu0 %v2312
      %2539 = vmatpush.msra.mxu0 %v2307
      %2540 = vmatpush.msra.mxu0 %v2302
      %2541 = vmatpush.msra.mxu0 %v2297
      %2542 = vmatpush.msra.mxu0 %v2292
      %2543 = vmatpush.msra.mxu0 %v2287
      %2544 = vmatpush.msra.mxu0 %v2282
      %2545 = vmatpush.msra.mxu0 %v2277
      %2546 = vmatpush.msra.mxu0 %v2272
      %2547 = vmatpush.msra.mxu0 %v2267
      %2548 = vmatpush.msra.mxu0 %v2262
      %2549 = vmatpush.msra.mxu0 %v2257
      %2550 = vmatmul.f32.gmra.mxu0 %v2170
      %v2551 = vpop.f32.mrf.mxu0
      %v2552 = vadd.f32 %v304, %v2551
      %2553 = vdwg.mxu0
      %2554 = vmatpush.msra.mxu0 %v2412
      %2555 = vmatpush.msra.mxu0 %v2407
      %2556 = vmatpush.msra.mxu0 %v2402
      %2557 = vmatpush.msra.mxu0 %v2397
      %2558 = vmatpush.msra.mxu0 %v2392
      %2559 = vmatpush.msra.mxu0 %v2387
      %2560 = vmatpush.msra.mxu0 %v2382
      %2561 = vmatpush.msra.mxu0 %v2377
      %2562 = vmatpush.msra.mxu0 %v2372
      %2563 = vmatpush.msra.mxu0 %v2367
      %2564 = vmatpush.msra.mxu0 %v2362
      %2565 = vmatpush.msra.mxu0 %v2357
      %2566 = vmatpush.msra.mxu0 %v2352
      %2567 = vmatpush.msra.mxu0 %v2347
      %2568 = vmatpush.msra.mxu0 %v2342
      %2569 = vmatpush.msra.mxu0 %v2337
      %2570 = vmatmul.f32.gmra.mxu0 %v2174
      %v2571 = vpop.f32.mrf.mxu0
      %v2572 = vadd.f32 %v2552, %v2571
      %2573 = vdwg.mxu0
      %2574 = vmatpush.msra.mxu0 %v2333
      %2575 = vmatpush.msra.mxu0 %v2328
      %2576 = vmatpush.msra.mxu0 %v2323
      %2577 = vmatpush.msra.mxu0 %v2318
      %2578 = vmatpush.msra.mxu0 %v2313
      %2579 = vmatpush.msra.mxu0 %v2308
      %2580 = vmatpush.msra.mxu0 %v2303
      %2581 = vmatpush.msra.mxu0 %v2298
      %2582 = vmatpush.msra.mxu0 %v2293
      %2583 = vmatpush.msra.mxu0 %v2288
      %2584 = vmatpush.msra.mxu0 %v2283
      %2585 = vmatpush.msra.mxu0 %v2278
      %2586 = vmatpush.msra.mxu0 %v2273
      %2587 = vmatpush.msra.mxu0 %v2268
      %2588 = vmatpush.msra.mxu0 %v2263
      %2589 = vmatpush.msra.mxu0 %v2258
      %2590 = vmatmul.f32.gmra.mxu0 %v2170
      %v2591 = vpop.f32.mrf.mxu0
      %v2592 = vadd.f32 %v305, %v2591
      %2593 = vdwg.mxu0
      %2594 = vmatpush.msra.mxu0 %v2413
      %2595 = vmatpush.msra.mxu0 %v2408
      %2596 = vmatpush.msra.mxu0 %v2403
      %2597 = vmatpush.msra.mxu0 %v2398
      %2598 = vmatpush.msra.mxu0 %v2393
      %2599 = vmatpush.msra.mxu0 %v2388
      %2600 = vmatpush.msra.mxu0 %v2383
      %2601 = vmatpush.msra.mxu0 %v2378
      %2602 = vmatpush.msra.mxu0 %v2373
      %2603 = vmatpush.msra.mxu0 %v2368
      %2604 = vmatpush.msra.mxu0 %v2363
      %2605 = vmatpush.msra.mxu0 %v2358
      %2606 = vmatpush.msra.mxu0 %v2353
      %2607 = vmatpush.msra.mxu0 %v2348
      %2608 = vmatpush.msra.mxu0 %v2343
      %2609 = vmatpush.msra.mxu0 %v2338
      %2610 = vmatmul.f32.gmra.mxu0 %v2174
      %v2611 = vpop.f32.mrf.mxu0
      %v2612 = vadd.f32 %v2592, %v2611
      %2613 = vdwg.mxu0
      %s2614 = scalar_lea.vmem %s275, 32
      %v2615 = vld [vmem:[%s2614] sm:$0xff]
      %v2620 = vrot.slane %v2532, 6
      %v2621 = vrot.slane %v2572, 4
      %v2622 = vrot.slane %v2612, 2
      %v2623 = vsel %vm685, %v2492, %v2620
      %v2624 = vsel %vm687, %v2621, %v2622
      %v2625 = vsel %vm689, %v2623, %v2624
      %v2627 = vadd.f32 %v2615, %v2625
      %v2628 = vxor.u32 %v2627, 2147483648
      %v2629 = vmul.f32 %v2628, 1.442695
      %v2630 = vpow.pop %v2629
      %v2631 = vadd.f32 %v2630, 1.0
      %v2632 = vrcp.pop %v2631
      %v2633 = vmul.f32 %v2631, %v2632
      %v2634 = vsub.f32 1.0, %v2633
      %v2635 = vmul.f32 %v2632, %v2634
      %v2636 = vadd.f32 %v2632, %v2635
      %vm2637 = vweird.f32 %v2631
      %vm2638 = vweird.f32 %v2632
      %vm2639 = vmor %vm2637, %vm2638
      %v2640 = vsel %vm2639, %v2632, %v2636
      %v2641 = vand.u32 2147483647, %v2631
      %vm2642 = vcmp.eq.f32.partialorder %v2641, 8.507059e+37
      %v2643 = vand.u32 %v2631, 2147483648
      %v2644 = vor.u32 1.1754944e-38, %v2643
      %v2645 = vsel %vm2642, %v2644, %v2640
      %v2646 = vmul.f32 1.0, %v2645
      %v2648 = vrot.slane %v2646, 4
      %v2650 = vmul.f32 %v2648, %v2452
      %v2651 = vrot.slane %v2646, 2
      %v2653 = vmul.f32 %v2646, %v2651
      %v2654 = vadd.f32 %v2650, %v2653
      %v2655 = vtanh.pop %v2654
      %v2656 = vrot.slane %v2646, 6
      %v2658 = vmul.f32 %v2656, %v2655
      %v2659 = vld [vmem:[%s289] sm:$0xff]
      %v2660 = vld [vmem:[%s289 + $0x8] sm:$0xff]
      %v2661 = vld [vmem:[%s289 + $0x10] sm:$0xff]
      %v2662 = vld [vmem:[%s289 + $0x18] sm:$0xff]
      %v2663 = vld [vmem:[%s289 + $0x20] sm:$0xff]
      %v2664 = vld [vmem:[%s289 + $0x28] sm:$0xff]
      %v2665 = vld [vmem:[%s289 + $0x30] sm:$0xff]
      %v2666 = vld [vmem:[%s289 + $0x38] sm:$0xff]
      %v2667 = vld [vmem:[%s289 + $0x40] sm:$0xff]
      %v2668 = vld [vmem:[%s289 + $0x48] sm:$0xff]
      %v2669 = vld [vmem:[%s289 + $0x50] sm:$0xff]
      %v2670 = vld [vmem:[%s289 + $0x58] sm:$0xff]
      %v2671 = vld [vmem:[%s289 + $0x60] sm:$0xff]
      %v2672 = vld [vmem:[%s289 + $0x68] sm:$0xff]
      %v2673 = vld [vmem:[%s289 + $0x70] sm:$0xff]
      %v2674 = vld [vmem:[%s289 + $0x78] sm:$0xff]
      %v2675 = vld [vmem:[%s289 + $0x80] sm:$0xff]
      %v2676 = vld [vmem:[%s289 + $0x88] sm:$0xff]
      %v2677 = vld [vmem:[%s289 + $0x90] sm:$0xff]
      %v2678 = vld [vmem:[%s289 + $0x98] sm:$0xff]
      %v2679 = vld [vmem:[%s289 + $0xa0] sm:$0xff]
      %v2680 = vld [vmem:[%s289 + $0xa8] sm:$0xff]
      %v2681 = vld [vmem:[%s289 + $0xb0] sm:$0xff]
      %v2682 = vld [vmem:[%s289 + $0xb8] sm:$0xff]
      %v2683 = vld [vmem:[%s289 + $0xc0] sm:$0xff]
      %v2684 = vld [vmem:[%s289 + $0xc8] sm:$0xff]
      %v2685 = vld [vmem:[%s289 + $0xd0] sm:$0xff]
      %v2686 = vld [vmem:[%s289 + $0xd8] sm:$0xff]
      %v2687 = vld [vmem:[%s289 + $0xe0] sm:$0xff]
      %v2688 = vld [vmem:[%s289 + $0xe8] sm:$0xff]
      %v2689 = vld [vmem:[%s289 + $0xf0] sm:$0xff]
      %v2690 = vld [vmem:[%s289 + $0xf8] sm:$0xff]
      %2691 = vmatpush.msra.mxu0 %v2689
      %2692 = vmatpush.msra.mxu0 %v2687
      %2693 = vmatpush.msra.mxu0 %v2685
      %2694 = vmatpush.msra.mxu0 %v2683
      %2695 = vmatpush.msra.mxu0 %v2681
      %2696 = vmatpush.msra.mxu0 %v2679
      %2697 = vmatpush.msra.mxu0 %v2677
      %2698 = vmatpush.msra.mxu0 %v2675
      %2699 = vmatpush.msra.mxu0 %v2673
      %2700 = vmatpush.msra.mxu0 %v2671
      %2701 = vmatpush.msra.mxu0 %v2669
      %2702 = vmatpush.msra.mxu0 %v2667
      %2703 = vmatpush.msra.mxu0 %v2665
      %2704 = vmatpush.msra.mxu0 %v2663
      %2705 = vmatpush.msra.mxu0 %v2661
      %2706 = vmatpush.msra.mxu0 %v2659
      %2707 = vmatmul.f32.gmra.mxu0 %v2658
      %v2708 = vpop.f32.mrf.mxu0
      %v2709 = vadd.f32 %v313, %v2708
      %2710 = vdwg.mxu0
      %2711 = vmatpush.msra.mxu0 %v2690
      %2712 = vmatpush.msra.mxu0 %v2688
      %2713 = vmatpush.msra.mxu0 %v2686
      %2714 = vmatpush.msra.mxu0 %v2684
      %2715 = vmatpush.msra.mxu0 %v2682
      %2716 = vmatpush.msra.mxu0 %v2680
      %2717 = vmatpush.msra.mxu0 %v2678
      %2718 = vmatpush.msra.mxu0 %v2676
      %2719 = vmatpush.msra.mxu0 %v2674
      %2720 = vmatpush.msra.mxu0 %v2672
      %2721 = vmatpush.msra.mxu0 %v2670
      %2722 = vmatpush.msra.mxu0 %v2668
      %2723 = vmatpush.msra.mxu0 %v2666
      %2724 = vmatpush.msra.mxu0 %v2664
      %2725 = vmatpush.msra.mxu0 %v2662
      %2726 = vmatpush.msra.mxu0 %v2660
      %2727 = vmatmul.f32.gmra.mxu0 %v2658
      %v2728 = vpop.f32.mrf.mxu0
      %v2729 = vadd.f32 %v314, %v2728
      %2730 = vdwg.mxu0
      %v2733 = vrot.slane %v2729, 6
      %v2734 = vsel %vm685, %v2709, %v2733
      %s2736 = scalar_lea.vmem %s298, 16
      %2737 = vst [vmem:[%s2736] sm:$0xf] %v2734
      %v2738 = vld [vmem:[%s280] sm:$0xff]
      %v2739 = vld [vmem:[%s280 + $0x8] sm:$0xff]
      %v2740 = vld [vmem:[%s280 + $0x10] sm:$0xff]
      %v2741 = vld [vmem:[%s280 + $0x18] sm:$0xff]
      %v2742 = vld [vmem:[%s280 + $0x20] sm:$0xff]
      %v2743 = vld [vmem:[%s280 + $0x28] sm:$0xff]
      %v2744 = vld [vmem:[%s280 + $0x30] sm:$0xff]
      %v2745 = vld [vmem:[%s280 + $0x38] sm:$0xff]
      %v2746 = vld [vmem:[%s280 + $0x40] sm:$0xff]
      %v2747 = vld [vmem:[%s280 + $0x48] sm:$0xff]
      %v2748 = vld [vmem:[%s280 + $0x50] sm:$0xff]
      %v2749 = vld [vmem:[%s280 + $0x58] sm:$0xff]
      %v2750 = vld [vmem:[%s280 + $0x60] sm:$0xff]
      %v2751 = vld [vmem:[%s280 + $0x68] sm:$0xff]
      %v2752 = vld [vmem:[%s280 + $0x70] sm:$0xff]
      %v2753 = vld [vmem:[%s280 + $0x78] sm:$0xff]
      %v2754 = vld [vmem:[%s280 + $0x80] sm:$0xff]
      %v2755 = vld [vmem:[%s280 + $0x88] sm:$0xff]
      %v2756 = vld [vmem:[%s280 + $0x90] sm:$0xff]
      %v2757 = vld [vmem:[%s280 + $0x98] sm:$0xff]
      %v2758 = vld [vmem:[%s280 + $0xa0] sm:$0xff]
      %v2759 = vld [vmem:[%s280 + $0xa8] sm:$0xff]
      %v2760 = vld [vmem:[%s280 + $0xb0] sm:$0xff]
      %v2761 = vld [vmem:[%s280 + $0xb8] sm:$0xff]
      %v2762 = vld [vmem:[%s280 + $0xc0] sm:$0xff]
      %v2763 = vld [vmem:[%s280 + $0xc8] sm:$0xff]
      %v2764 = vld [vmem:[%s280 + $0xd0] sm:$0xff]
      %v2765 = vld [vmem:[%s280 + $0xd8] sm:$0xff]
      %v2766 = vld [vmem:[%s280 + $0xe0] sm:$0xff]
      %v2767 = vld [vmem:[%s280 + $0xe8] sm:$0xff]
      %v2768 = vld [vmem:[%s280 + $0xf0] sm:$0xff]
      %v2769 = vld [vmem:[%s280 + $0xf8] sm:$0xff]
      %v2770 = vld [vmem:[%s280 + $0x100] sm:$0xff]
      %v2771 = vld [vmem:[%s280 + $0x108] sm:$0xff]
      %v2772 = vld [vmem:[%s280 + $0x110] sm:$0xff]
      %v2773 = vld [vmem:[%s280 + $0x118] sm:$0xff]
      %v2774 = vld [vmem:[%s280 + $0x120] sm:$0xff]
      %v2775 = vld [vmem:[%s280 + $0x128] sm:$0xff]
      %v2776 = vld [vmem:[%s280 + $0x130] sm:$0xff]
      %v2777 = vld [vmem:[%s280 + $0x138] sm:$0xff]
      %v2778 = vld [vmem:[%s280 + $0x140] sm:$0xff]
      %v2779 = vld [vmem:[%s280 + $0x148] sm:$0xff]
      %v2780 = vld [vmem:[%s280 + $0x150] sm:$0xff]
      %v2781 = vld [vmem:[%s280 + $0x158] sm:$0xff]
      %v2782 = vld [vmem:[%s280 + $0x160] sm:$0xff]
      %v2783 = vld [vmem:[%s280 + $0x168] sm:$0xff]
      %v2784 = vld [vmem:[%s280 + $0x170] sm:$0xff]
      %v2785 = vld [vmem:[%s280 + $0x178] sm:$0xff]
      %v2786 = vld [vmem:[%s280 + $0x180] sm:$0xff]
      %v2787 = vld [vmem:[%s280 + $0x188] sm:$0xff]
      %v2788 = vld [vmem:[%s280 + $0x190] sm:$0xff]
      %v2789 = vld [vmem:[%s280 + $0x198] sm:$0xff]
      %v2790 = vld [vmem:[%s280 + $0x1a0] sm:$0xff]
      %v2791 = vld [vmem:[%s280 + $0x1a8] sm:$0xff]
      %v2792 = vld [vmem:[%s280 + $0x1b0] sm:$0xff]
      %v2793 = vld [vmem:[%s280 + $0x1b8] sm:$0xff]
      %v2794 = vld [vmem:[%s280 + $0x1c0] sm:$0xff]
      %v2795 = vld [vmem:[%s280 + $0x1c8] sm:$0xff]
      %v2796 = vld [vmem:[%s280 + $0x1d0] sm:$0xff]
      %v2797 = vld [vmem:[%s280 + $0x1d8] sm:$0xff]
      %v2798 = vld [vmem:[%s280 + $0x1e0] sm:$0xff]
      %v2799 = vld [vmem:[%s280 + $0x1e8] sm:$0xff]
      %v2800 = vld [vmem:[%s280 + $0x1f0] sm:$0xff]
      %v2801 = vld [vmem:[%s280 + $0x1f8] sm:$0xff]
      %v2802 = vld [vmem:[%s280 + $0x200] sm:$0xff]
      %v2803 = vld [vmem:[%s280 + $0x208] sm:$0xff]
      %v2804 = vld [vmem:[%s280 + $0x210] sm:$0xff]
      %v2805 = vld [vmem:[%s280 + $0x218] sm:$0xff]
      %v2806 = vld [vmem:[%s280 + $0x220] sm:$0xff]
      %v2807 = vld [vmem:[%s280 + $0x228] sm:$0xff]
      %v2808 = vld [vmem:[%s280 + $0x230] sm:$0xff]
      %v2809 = vld [vmem:[%s280 + $0x238] sm:$0xff]
      %v2810 = vld [vmem:[%s280 + $0x240] sm:$0xff]
      %v2811 = vld [vmem:[%s280 + $0x248] sm:$0xff]
      %v2812 = vld [vmem:[%s280 + $0x250] sm:$0xff]
      %v2813 = vld [vmem:[%s280 + $0x258] sm:$0xff]
      %v2814 = vld [vmem:[%s280 + $0x260] sm:$0xff]
      %v2815 = vld [vmem:[%s280 + $0x268] sm:$0xff]
      %v2816 = vld [vmem:[%s280 + $0x270] sm:$0xff]
      %v2817 = vld [vmem:[%s280 + $0x278] sm:$0xff]
      %v2818 = vld [vmem:[%s280 + $0x280] sm:$0xff]
      %v2819 = vld [vmem:[%s280 + $0x288] sm:$0xff]
      %v2820 = vld [vmem:[%s280 + $0x290] sm:$0xff]
      %v2821 = vld [vmem:[%s280 + $0x298] sm:$0xff]
      %v2822 = vld [vmem:[%s280 + $0x2a0] sm:$0xff]
      %v2823 = vld [vmem:[%s280 + $0x2a8] sm:$0xff]
      %v2824 = vld [vmem:[%s280 + $0x2b0] sm:$0xff]
      %v2825 = vld [vmem:[%s280 + $0x2b8] sm:$0xff]
      %v2826 = vld [vmem:[%s280 + $0x2c0] sm:$0xff]
      %v2827 = vld [vmem:[%s280 + $0x2c8] sm:$0xff]
      %v2828 = vld [vmem:[%s280 + $0x2d0] sm:$0xff]
      %v2829 = vld [vmem:[%s280 + $0x2d8] sm:$0xff]
      %v2830 = vld [vmem:[%s280 + $0x2e0] sm:$0xff]
      %v2831 = vld [vmem:[%s280 + $0x2e8] sm:$0xff]
      %v2832 = vld [vmem:[%s280 + $0x2f0] sm:$0xff]
      %v2833 = vld [vmem:[%s280 + $0x2f8] sm:$0xff]
      %v2834 = vld [vmem:[%s280 + $0x300] sm:$0xff]
      %v2835 = vld [vmem:[%s280 + $0x308] sm:$0xff]
      %v2836 = vld [vmem:[%s280 + $0x310] sm:$0xff]
      %v2837 = vld [vmem:[%s280 + $0x318] sm:$0xff]
      %v2838 = vld [vmem:[%s280 + $0x320] sm:$0xff]
      %v2839 = vld [vmem:[%s280 + $0x328] sm:$0xff]
      %v2840 = vld [vmem:[%s280 + $0x330] sm:$0xff]
      %v2841 = vld [vmem:[%s280 + $0x338] sm:$0xff]
      %v2842 = vld [vmem:[%s280 + $0x340] sm:$0xff]
      %v2843 = vld [vmem:[%s280 + $0x348] sm:$0xff]
      %v2844 = vld [vmem:[%s280 + $0x350] sm:$0xff]
      %v2845 = vld [vmem:[%s280 + $0x358] sm:$0xff]
      %v2846 = vld [vmem:[%s280 + $0x360] sm:$0xff]
      %v2847 = vld [vmem:[%s280 + $0x368] sm:$0xff]
      %v2848 = vld [vmem:[%s280 + $0x370] sm:$0xff]
      %v2849 = vld [vmem:[%s280 + $0x378] sm:$0xff]
      %v2850 = vld [vmem:[%s280 + $0x380] sm:$0xff]
      %v2851 = vld [vmem:[%s280 + $0x388] sm:$0xff]
      %v2852 = vld [vmem:[%s280 + $0x390] sm:$0xff]
      %v2853 = vld [vmem:[%s280 + $0x398] sm:$0xff]
      %v2854 = vld [vmem:[%s280 + $0x3a0] sm:$0xff]
      %v2855 = vld [vmem:[%s280 + $0x3a8] sm:$0xff]
      %v2856 = vld [vmem:[%s280 + $0x3b0] sm:$0xff]
      %v2857 = vld [vmem:[%s280 + $0x3b8] sm:$0xff]
      %v2858 = vld [vmem:[%s280 + $0x3c0] sm:$0xff]
      %v2859 = vld [vmem:[%s280 + $0x3c8] sm:$0xff]
      %v2860 = vld [vmem:[%s280 + $0x3d0] sm:$0xff]
      %v2861 = vld [vmem:[%s280 + $0x3d8] sm:$0xff]
      %v2862 = vld [vmem:[%s280 + $0x3e0] sm:$0xff]
      %v2863 = vld [vmem:[%s280 + $0x3e8] sm:$0xff]
      %v2864 = vld [vmem:[%s280 + $0x3f0] sm:$0xff]
      %v2865 = vld [vmem:[%s280 + $0x3f8] sm:$0xff]
      %v2866 = vld [vmem:[%s280 + $0x400] sm:$0xff]
      %v2867 = vld [vmem:[%s280 + $0x408] sm:$0xff]
      %v2868 = vld [vmem:[%s280 + $0x410] sm:$0xff]
      %v2869 = vld [vmem:[%s280 + $0x418] sm:$0xff]
      %v2870 = vld [vmem:[%s280 + $0x420] sm:$0xff]
      %v2871 = vld [vmem:[%s280 + $0x428] sm:$0xff]
      %v2872 = vld [vmem:[%s280 + $0x430] sm:$0xff]
      %v2873 = vld [vmem:[%s280 + $0x438] sm:$0xff]
      %v2874 = vld [vmem:[%s280 + $0x440] sm:$0xff]
      %v2875 = vld [vmem:[%s280 + $0x448] sm:$0xff]
      %v2876 = vld [vmem:[%s280 + $0x450] sm:$0xff]
      %v2877 = vld [vmem:[%s280 + $0x458] sm:$0xff]
      %v2878 = vld [vmem:[%s280 + $0x460] sm:$0xff]
      %v2879 = vld [vmem:[%s280 + $0x468] sm:$0xff]
      %v2880 = vld [vmem:[%s280 + $0x470] sm:$0xff]
      %v2881 = vld [vmem:[%s280 + $0x478] sm:$0xff]
      %v2882 = vld [vmem:[%s280 + $0x480] sm:$0xff]
      %v2883 = vld [vmem:[%s280 + $0x488] sm:$0xff]
      %v2884 = vld [vmem:[%s280 + $0x490] sm:$0xff]
      %v2885 = vld [vmem:[%s280 + $0x498] sm:$0xff]
      %v2886 = vld [vmem:[%s280 + $0x4a0] sm:$0xff]
      %v2887 = vld [vmem:[%s280 + $0x4a8] sm:$0xff]
      %v2888 = vld [vmem:[%s280 + $0x4b0] sm:$0xff]
      %v2889 = vld [vmem:[%s280 + $0x4b8] sm:$0xff]
      %v2890 = vld [vmem:[%s280 + $0x4c0] sm:$0xff]
      %v2891 = vld [vmem:[%s280 + $0x4c8] sm:$0xff]
      %v2892 = vld [vmem:[%s280 + $0x4d0] sm:$0xff]
      %v2893 = vld [vmem:[%s280 + $0x4d8] sm:$0xff]
      %v2894 = vld [vmem:[%s280 + $0x4e0] sm:$0xff]
      %v2895 = vld [vmem:[%s280 + $0x4e8] sm:$0xff]
      %v2896 = vld [vmem:[%s280 + $0x4f0] sm:$0xff]
      %v2897 = vld [vmem:[%s280 + $0x4f8] sm:$0xff]
      %2898 = vmatpush.msra.mxu0 %v2813
      %2899 = vmatpush.msra.mxu0 %v2808
      %2900 = vmatpush.msra.mxu0 %v2803
      %2901 = vmatpush.msra.mxu0 %v2798
      %2902 = vmatpush.msra.mxu0 %v2793
      %2903 = vmatpush.msra.mxu0 %v2788
      %2904 = vmatpush.msra.mxu0 %v2783
      %2905 = vmatpush.msra.mxu0 %v2778
      %2906 = vmatpush.msra.mxu0 %v2773
      %2907 = vmatpush.msra.mxu0 %v2768
      %2908 = vmatpush.msra.mxu0 %v2763
      %2909 = vmatpush.msra.mxu0 %v2758
      %2910 = vmatpush.msra.mxu0 %v2753
      %2911 = vmatpush.msra.mxu0 %v2748
      %2912 = vmatpush.msra.mxu0 %v2743
      %2913 = vmatpush.msra.mxu0 %v2738
      %2914 = vmatmul.f32.gmra.mxu0 %v2654
      %v2915 = vpop.f32.mrf.mxu0
      %v2916 = vadd.f32 %v301, %v2915
      %2917 = vdwg.mxu0
      %2918 = vmatpush.msra.mxu0 %v2893
      %2919 = vmatpush.msra.mxu0 %v2888
      %2920 = vmatpush.msra.mxu0 %v2883
      %2921 = vmatpush.msra.mxu0 %v2878
      %2922 = vmatpush.msra.mxu0 %v2873
      %2923 = vmatpush.msra.mxu0 %v2868
      %2924 = vmatpush.msra.mxu0 %v2863
      %2925 = vmatpush.msra.mxu0 %v2858
      %2926 = vmatpush.msra.mxu0 %v2853
      %2927 = vmatpush.msra.mxu0 %v2848
      %2928 = vmatpush.msra.mxu0 %v2843
      %2929 = vmatpush.msra.mxu0 %v2838
      %2930 = vmatpush.msra.mxu0 %v2833
      %2931 = vmatpush.msra.mxu0 %v2828
      %2932 = vmatpush.msra.mxu0 %v2823
      %2933 = vmatpush.msra.mxu0 %v2818
      %2934 = vmatmul.f32.gmra.mxu0 %v2658
      %v2935 = vpop.f32.mrf.mxu0
      %v2936 = vadd.f32 %v2916, %v2935
      %2937 = vdwg.mxu0
      %2938 = vmatpush.msra.mxu0 %v2814
      %2939 = vmatpush.msra.mxu0 %v2809
      %2940 = vmatpush.msra.mxu0 %v2804
      %2941 = vmatpush.msra.mxu0 %v2799
      %2942 = vmatpush.msra.mxu0 %v2794
      %2943 = vmatpush.msra.mxu0 %v2789
      %2944 = vmatpush.msra.mxu0 %v2784
      %2945 = vmatpush.msra.mxu0 %v2779
      %2946 = vmatpush.msra.mxu0 %v2774
      %2947 = vmatpush.msra.mxu0 %v2769
      %2948 = vmatpush.msra.mxu0 %v2764
      %2949 = vmatpush.msra.mxu0 %v2759
      %2950 = vmatpush.msra.mxu0 %v2754
      %2951 = vmatpush.msra.mxu0 %v2749
      %2952 = vmatpush.msra.mxu0 %v2744
      %2953 = vmatpush.msra.mxu0 %v2739
      %2954 = vmatmul.f32.gmra.mxu0 %v2654
      %v2955 = vpop.f32.mrf.mxu0
      %v2956 = vadd.f32 %v302, %v2955
      %2957 = vdwg.mxu0
      %2958 = vmatpush.msra.mxu0 %v2894
      %2959 = vmatpush.msra.mxu0 %v2889
      %2960 = vmatpush.msra.mxu0 %v2884
      %2961 = vmatpush.msra.mxu0 %v2879
      %2962 = vmatpush.msra.mxu0 %v2874
      %2963 = vmatpush.msra.mxu0 %v2869
      %2964 = vmatpush.msra.mxu0 %v2864
      %2965 = vmatpush.msra.mxu0 %v2859
      %2966 = vmatpush.msra.mxu0 %v2854
      %2967 = vmatpush.msra.mxu0 %v2849
      %2968 = vmatpush.msra.mxu0 %v2844
      %2969 = vmatpush.msra.mxu0 %v2839
      %2970 = vmatpush.msra.mxu0 %v2834
      %2971 = vmatpush.msra.mxu0 %v2829
      %2972 = vmatpush.msra.mxu0 %v2824
      %2973 = vmatpush.msra.mxu0 %v2819
      %2974 = vmatmul.f32.gmra.mxu0 %v2658
      %v2975 = vpop.f32.mrf.mxu0
      %v2976 = vadd.f32 %v2956, %v2975
      %2977 = vdwg.mxu0
      %2978 = vmatpush.msra.mxu0 %v2815
      %2979 = vmatpush.msra.mxu0 %v2810
      %2980 = vmatpush.msra.mxu0 %v2805
      %2981 = vmatpush.msra.mxu0 %v2800
      %2982 = vmatpush.msra.mxu0 %v2795
      %2983 = vmatpush.msra.mxu0 %v2790
      %2984 = vmatpush.msra.mxu0 %v2785
      %2985 = vmatpush.msra.mxu0 %v2780
      %2986 = vmatpush.msra.mxu0 %v2775
      %2987 = vmatpush.msra.mxu0 %v2770
      %2988 = vmatpush.msra.mxu0 %v2765
      %2989 = vmatpush.msra.mxu0 %v2760
      %2990 = vmatpush.msra.mxu0 %v2755
      %2991 = vmatpush.msra.mxu0 %v2750
      %2992 = vmatpush.msra.mxu0 %v2745
      %2993 = vmatpush.msra.mxu0 %v2740
      %2994 = vmatmul.f32.gmra.mxu0 %v2654
      %v2995 = vpop.f32.mrf.mxu0
      %v2996 = vadd.f32 %v303, %v2995
      %2997 = vdwg.mxu0
      %2998 = vmatpush.msra.mxu0 %v2895
      %2999 = vmatpush.msra.mxu0 %v2890
      %3000 = vmatpush.msra.mxu0 %v2885
      %3001 = vmatpush.msra.mxu0 %v2880
      %3002 = vmatpush.msra.mxu0 %v2875
      %3003 = vmatpush.msra.mxu0 %v2870
      %3004 = vmatpush.msra.mxu0 %v2865
      %3005 = vmatpush.msra.mxu0 %v2860
      %3006 = vmatpush.msra.mxu0 %v2855
      %3007 = vmatpush.msra.mxu0 %v2850
      %3008 = vmatpush.msra.mxu0 %v2845
      %3009 = vmatpush.msra.mxu0 %v2840
      %3010 = vmatpush.msra.mxu0 %v2835
      %3011 = vmatpush.msra.mxu0 %v2830
      %3012 = vmatpush.msra.mxu0 %v2825
      %3013 = vmatpush.msra.mxu0 %v2820
      %3014 = vmatmul.f32.gmra.mxu0 %v2658
      %v3015 = vpop.f32.mrf.mxu0
      %v3016 = vadd.f32 %v2996, %v3015
      %3017 = vdwg.mxu0
      %3018 = vmatpush.msra.mxu0 %v2816
      %3019 = vmatpush.msra.mxu0 %v2811
      %3020 = vmatpush.msra.mxu0 %v2806
      %3021 = vmatpush.msra.mxu0 %v2801
      %3022 = vmatpush.msra.mxu0 %v2796
      %3023 = vmatpush.msra.mxu0 %v2791
      %3024 = vmatpush.msra.mxu0 %v2786
      %3025 = vmatpush.msra.mxu0 %v2781
      %3026 = vmatpush.msra.mxu0 %v2776
      %3027 = vmatpush.msra.mxu0 %v2771
      %3028 = vmatpush.msra.mxu0 %v2766
      %3029 = vmatpush.msra.mxu0 %v2761
      %3030 = vmatpush.msra.mxu0 %v2756
      %3031 = vmatpush.msra.mxu0 %v2751
      %3032 = vmatpush.msra.mxu0 %v2746
      %3033 = vmatpush.msra.mxu0 %v2741
      %3034 = vmatmul.f32.gmra.mxu0 %v2654
      %v3035 = vpop.f32.mrf.mxu0
      %v3036 = vadd.f32 %v304, %v3035
      %3037 = vdwg.mxu0
      %3038 = vmatpush.msra.mxu0 %v2896
      %3039 = vmatpush.msra.mxu0 %v2891
      %3040 = vmatpush.msra.mxu0 %v2886
      %3041 = vmatpush.msra.mxu0 %v2881
      %3042 = vmatpush.msra.mxu0 %v2876
      %3043 = vmatpush.msra.mxu0 %v2871
      %3044 = vmatpush.msra.mxu0 %v2866
      %3045 = vmatpush.msra.mxu0 %v2861
      %3046 = vmatpush.msra.mxu0 %v2856
      %3047 = vmatpush.msra.mxu0 %v2851
      %3048 = vmatpush.msra.mxu0 %v2846
      %3049 = vmatpush.msra.mxu0 %v2841
      %3050 = vmatpush.msra.mxu0 %v2836
      %3051 = vmatpush.msra.mxu0 %v2831
      %3052 = vmatpush.msra.mxu0 %v2826
      %3053 = vmatpush.msra.mxu0 %v2821
      %3054 = vmatmul.f32.gmra.mxu0 %v2658
      %v3055 = vpop.f32.mrf.mxu0
      %v3056 = vadd.f32 %v3036, %v3055
      %3057 = vdwg.mxu0
      %3058 = vmatpush.msra.mxu0 %v2817
      %3059 = vmatpush.msra.mxu0 %v2812
      %3060 = vmatpush.msra.mxu0 %v2807
      %3061 = vmatpush.msra.mxu0 %v2802
      %3062 = vmatpush.msra.mxu0 %v2797
      %3063 = vmatpush.msra.mxu0 %v2792
      %3064 = vmatpush.msra.mxu0 %v2787
      %3065 = vmatpush.msra.mxu0 %v2782
      %3066 = vmatpush.msra.mxu0 %v2777
      %3067 = vmatpush.msra.mxu0 %v2772
      %3068 = vmatpush.msra.mxu0 %v2767
      %3069 = vmatpush.msra.mxu0 %v2762
      %3070 = vmatpush.msra.mxu0 %v2757
      %3071 = vmatpush.msra.mxu0 %v2752
      %3072 = vmatpush.msra.mxu0 %v2747
      %3073 = vmatpush.msra.mxu0 %v2742
      %3074 = vmatmul.f32.gmra.mxu0 %v2654
      %v3075 = vpop.f32.mrf.mxu0
      %v3076 = vadd.f32 %v305, %v3075
      %3077 = vdwg.mxu0
      %3078 = vmatpush.msra.mxu0 %v2897
      %3079 = vmatpush.msra.mxu0 %v2892
      %3080 = vmatpush.msra.mxu0 %v2887
      %3081 = vmatpush.msra.mxu0 %v2882
      %3082 = vmatpush.msra.mxu0 %v2877
      %3083 = vmatpush.msra.mxu0 %v2872
      %3084 = vmatpush.msra.mxu0 %v2867
      %3085 = vmatpush.msra.mxu0 %v2862
      %3086 = vmatpush.msra.mxu0 %v2857
      %3087 = vmatpush.msra.mxu0 %v2852
      %3088 = vmatpush.msra.mxu0 %v2847
      %3089 = vmatpush.msra.mxu0 %v2842
      %3090 = vmatpush.msra.mxu0 %v2837
      %3091 = vmatpush.msra.mxu0 %v2832
      %3092 = vmatpush.msra.mxu0 %v2827
      %3093 = vmatpush.msra.mxu0 %v2822
      %3094 = vmatmul.f32.gmra.mxu0 %v2658
      %v3095 = vpop.f32.mrf.mxu0
      %v3096 = vadd.f32 %v3076, %v3095
      %3097 = vdwg.mxu0
      %s3098 = scalar_lea.vmem %s275, 40
      %v3099 = vld [vmem:[%s3098] sm:$0xff]
      %v3104 = vrot.slane %v3016, 6
      %v3105 = vrot.slane %v3056, 4
      %v3106 = vrot.slane %v3096, 2
      %v3107 = vsel %vm685, %v2976, %v3104
      %v3108 = vsel %vm687, %v3105, %v3106
      %v3109 = vsel %vm689, %v3107, %v3108
      %v3111 = vadd.f32 %v3099, %v3109
      %v3112 = vxor.u32 %v3111, 2147483648
      %v3113 = vmul.f32 %v3112, 1.442695
      %v3114 = vpow.pop %v3113
      %v3115 = vadd.f32 %v3114, 1.0
      %v3116 = vrcp.pop %v3115
      %v3117 = vmul.f32 %v3115, %v3116
      %v3118 = vsub.f32 1.0, %v3117
      %v3119 = vmul.f32 %v3116, %v3118
      %v3120 = vadd.f32 %v3116, %v3119
      %vm3121 = vweird.f32 %v3115
      %vm3122 = vweird.f32 %v3116
      %vm3123 = vmor %vm3121, %vm3122
      %v3124 = vsel %vm3123, %v3116, %v3120
      %v3125 = vand.u32 2147483647, %v3115
      %vm3126 = vcmp.eq.f32.partialorder %v3125, 8.507059e+37
      %v3127 = vand.u32 %v3115, 2147483648
      %v3128 = vor.u32 1.1754944e-38, %v3127
      %v3129 = vsel %vm3126, %v3128, %v3124
      %v3130 = vmul.f32 1.0, %v3129
      %v3132 = vrot.slane %v3130, 4
      %v3134 = vmul.f32 %v3132, %v2936
      %v3135 = vrot.slane %v3130, 2
      %v3137 = vmul.f32 %v3130, %v3135
      %v3138 = vadd.f32 %v3134, %v3137
      %v3139 = vtanh.pop %v3138
      %v3140 = vrot.slane %v3130, 6
      %v3142 = vmul.f32 %v3140, %v3139
      %v3143 = vld [vmem:[%s289] sm:$0xff]
      %v3144 = vld [vmem:[%s289 + $0x8] sm:$0xff]
      %v3145 = vld [vmem:[%s289 + $0x10] sm:$0xff]
      %v3146 = vld [vmem:[%s289 + $0x18] sm:$0xff]
      %v3147 = vld [vmem:[%s289 + $0x20] sm:$0xff]
      %v3148 = vld [vmem:[%s289 + $0x28] sm:$0xff]
      %v3149 = vld [vmem:[%s289 + $0x30] sm:$0xff]
      %v3150 = vld [vmem:[%s289 + $0x38] sm:$0xff]
      %v3151 = vld [vmem:[%s289 + $0x40] sm:$0xff]
      %v3152 = vld [vmem:[%s289 + $0x48] sm:$0xff]
      %v3153 = vld [vmem:[%s289 + $0x50] sm:$0xff]
      %v3154 = vld [vmem:[%s289 + $0x58] sm:$0xff]
      %v3155 = vld [vmem:[%s289 + $0x60] sm:$0xff]
      %v3156 = vld [vmem:[%s289 + $0x68] sm:$0xff]
      %v3157 = vld [vmem:[%s289 + $0x70] sm:$0xff]
      %v3158 = vld [vmem:[%s289 + $0x78] sm:$0xff]
      %v3159 = vld [vmem:[%s289 + $0x80] sm:$0xff]
      %v3160 = vld [vmem:[%s289 + $0x88] sm:$0xff]
      %v3161 = vld [vmem:[%s289 + $0x90] sm:$0xff]
      %v3162 = vld [vmem:[%s289 + $0x98] sm:$0xff]
      %v3163 = vld [vmem:[%s289 + $0xa0] sm:$0xff]
      %v3164 = vld [vmem:[%s289 + $0xa8] sm:$0xff]
      %v3165 = vld [vmem:[%s289 + $0xb0] sm:$0xff]
      %v3166 = vld [vmem:[%s289 + $0xb8] sm:$0xff]
      %v3167 = vld [vmem:[%s289 + $0xc0] sm:$0xff]
      %v3168 = vld [vmem:[%s289 + $0xc8] sm:$0xff]
      %v3169 = vld [vmem:[%s289 + $0xd0] sm:$0xff]
      %v3170 = vld [vmem:[%s289 + $0xd8] sm:$0xff]
      %v3171 = vld [vmem:[%s289 + $0xe0] sm:$0xff]
      %v3172 = vld [vmem:[%s289 + $0xe8] sm:$0xff]
      %v3173 = vld [vmem:[%s289 + $0xf0] sm:$0xff]
      %v3174 = vld [vmem:[%s289 + $0xf8] sm:$0xff]
      %3175 = vmatpush.msra.mxu0 %v3173
      %3176 = vmatpush.msra.mxu0 %v3171
      %3177 = vmatpush.msra.mxu0 %v3169
      %3178 = vmatpush.msra.mxu0 %v3167
      %3179 = vmatpush.msra.mxu0 %v3165
      %3180 = vmatpush.msra.mxu0 %v3163
      %3181 = vmatpush.msra.mxu0 %v3161
      %3182 = vmatpush.msra.mxu0 %v3159
      %3183 = vmatpush.msra.mxu0 %v3157
      %3184 = vmatpush.msra.mxu0 %v3155
      %3185 = vmatpush.msra.mxu0 %v3153
      %3186 = vmatpush.msra.mxu0 %v3151
      %3187 = vmatpush.msra.mxu0 %v3149
      %3188 = vmatpush.msra.mxu0 %v3147
      %3189 = vmatpush.msra.mxu0 %v3145
      %3190 = vmatpush.msra.mxu0 %v3143
      %3191 = vmatmul.f32.gmra.mxu0 %v3142
      %v3192 = vpop.f32.mrf.mxu0
      %v3193 = vadd.f32 %v313, %v3192
      %3194 = vdwg.mxu0
      %3195 = vmatpush.msra.mxu0 %v3174
      %3196 = vmatpush.msra.mxu0 %v3172
      %3197 = vmatpush.msra.mxu0 %v3170
      %3198 = vmatpush.msra.mxu0 %v3168
      %3199 = vmatpush.msra.mxu0 %v3166
      %3200 = vmatpush.msra.mxu0 %v3164
      %3201 = vmatpush.msra.mxu0 %v3162
      %3202 = vmatpush.msra.mxu0 %v3160
      %3203 = vmatpush.msra.mxu0 %v3158
      %3204 = vmatpush.msra.mxu0 %v3156
      %3205 = vmatpush.msra.mxu0 %v3154
      %3206 = vmatpush.msra.mxu0 %v3152
      %3207 = vmatpush.msra.mxu0 %v3150
      %3208 = vmatpush.msra.mxu0 %v3148
      %3209 = vmatpush.msra.mxu0 %v3146
      %3210 = vmatpush.msra.mxu0 %v3144
      %3211 = vmatmul.f32.gmra.mxu0 %v3142
      %v3212 = vpop.f32.mrf.mxu0
      %v3213 = vadd.f32 %v314, %v3212
      %3214 = vdwg.mxu0
      %v3217 = vrot.slane %v3213, 6
      %v3218 = vsel %vm685, %v3193, %v3217
      %s3220 = scalar_lea.vmem %s298, 20
      %3221 = vst [vmem:[%s3220] sm:$0xf] %v3218
      %v3222 = vld [vmem:[%s280] sm:$0xff]
      %v3223 = vld [vmem:[%s280 + $0x8] sm:$0xff]
      %v3224 = vld [vmem:[%s280 + $0x10] sm:$0xff]
      %v3225 = vld [vmem:[%s280 + $0x18] sm:$0xff]
      %v3226 = vld [vmem:[%s280 + $0x20] sm:$0xff]
      %v3227 = vld [vmem:[%s280 + $0x28] sm:$0xff]
      %v3228 = vld [vmem:[%s280 + $0x30] sm:$0xff]
      %v3229 = vld [vmem:[%s280 + $0x38] sm:$0xff]
      %v3230 = vld [vmem:[%s280 + $0x40] sm:$0xff]
      %v3231 = vld [vmem:[%s280 + $0x48] sm:$0xff]
      %v3232 = vld [vmem:[%s280 + $0x50] sm:$0xff]
      %v3233 = vld [vmem:[%s280 + $0x58] sm:$0xff]
      %v3234 = vld [vmem:[%s280 + $0x60] sm:$0xff]
      %v3235 = vld [vmem:[%s280 + $0x68] sm:$0xff]
      %v3236 = vld [vmem:[%s280 + $0x70] sm:$0xff]
      %v3237 = vld [vmem:[%s280 + $0x78] sm:$0xff]
      %v3238 = vld [vmem:[%s280 + $0x80] sm:$0xff]
      %v3239 = vld [vmem:[%s280 + $0x88] sm:$0xff]
      %v3240 = vld [vmem:[%s280 + $0x90] sm:$0xff]
      %v3241 = vld [vmem:[%s280 + $0x98] sm:$0xff]
      %v3242 = vld [vmem:[%s280 + $0xa0] sm:$0xff]
      %v3243 = vld [vmem:[%s280 + $0xa8] sm:$0xff]
      %v3244 = vld [vmem:[%s280 + $0xb0] sm:$0xff]
      %v3245 = vld [vmem:[%s280 + $0xb8] sm:$0xff]
      %v3246 = vld [vmem:[%s280 + $0xc0] sm:$0xff]
      %v3247 = vld [vmem:[%s280 + $0xc8] sm:$0xff]
      %v3248 = vld [vmem:[%s280 + $0xd0] sm:$0xff]
      %v3249 = vld [vmem:[%s280 + $0xd8] sm:$0xff]
      %v3250 = vld [vmem:[%s280 + $0xe0] sm:$0xff]
      %v3251 = vld [vmem:[%s280 + $0xe8] sm:$0xff]
      %v3252 = vld [vmem:[%s280 + $0xf0] sm:$0xff]
      %v3253 = vld [vmem:[%s280 + $0xf8] sm:$0xff]
      %v3254 = vld [vmem:[%s280 + $0x100] sm:$0xff]
      %v3255 = vld [vmem:[%s280 + $0x108] sm:$0xff]
      %v3256 = vld [vmem:[%s280 + $0x110] sm:$0xff]
      %v3257 = vld [vmem:[%s280 + $0x118] sm:$0xff]
      %v3258 = vld [vmem:[%s280 + $0x120] sm:$0xff]
      %v3259 = vld [vmem:[%s280 + $0x128] sm:$0xff]
      %v3260 = vld [vmem:[%s280 + $0x130] sm:$0xff]
      %v3261 = vld [vmem:[%s280 + $0x138] sm:$0xff]
      %v3262 = vld [vmem:[%s280 + $0x140] sm:$0xff]
      %v3263 = vld [vmem:[%s280 + $0x148] sm:$0xff]
      %v3264 = vld [vmem:[%s280 + $0x150] sm:$0xff]
      %v3265 = vld [vmem:[%s280 + $0x158] sm:$0xff]
      %v3266 = vld [vmem:[%s280 + $0x160] sm:$0xff]
      %v3267 = vld [vmem:[%s280 + $0x168] sm:$0xff]
      %v3268 = vld [vmem:[%s280 + $0x170] sm:$0xff]
      %v3269 = vld [vmem:[%s280 + $0x178] sm:$0xff]
      %v3270 = vld [vmem:[%s280 + $0x180] sm:$0xff]
      %v3271 = vld [vmem:[%s280 + $0x188] sm:$0xff]
      %v3272 = vld [vmem:[%s280 + $0x190] sm:$0xff]
      %v3273 = vld [vmem:[%s280 + $0x198] sm:$0xff]
      %v3274 = vld [vmem:[%s280 + $0x1a0] sm:$0xff]
      %v3275 = vld [vmem:[%s280 + $0x1a8] sm:$0xff]
      %v3276 = vld [vmem:[%s280 + $0x1b0] sm:$0xff]
      %v3277 = vld [vmem:[%s280 + $0x1b8] sm:$0xff]
      %v3278 = vld [vmem:[%s280 + $0x1c0] sm:$0xff]
      %v3279 = vld [vmem:[%s280 + $0x1c8] sm:$0xff]
      %v3280 = vld [vmem:[%s280 + $0x1d0] sm:$0xff]
      %v3281 = vld [vmem:[%s280 + $0x1d8] sm:$0xff]
      %v3282 = vld [vmem:[%s280 + $0x1e0] sm:$0xff]
      %v3283 = vld [vmem:[%s280 + $0x1e8] sm:$0xff]
      %v3284 = vld [vmem:[%s280 + $0x1f0] sm:$0xff]
      %v3285 = vld [vmem:[%s280 + $0x1f8] sm:$0xff]
      %v3286 = vld [vmem:[%s280 + $0x200] sm:$0xff]
      %v3287 = vld [vmem:[%s280 + $0x208] sm:$0xff]
      %v3288 = vld [vmem:[%s280 + $0x210] sm:$0xff]
      %v3289 = vld [vmem:[%s280 + $0x218] sm:$0xff]
      %v3290 = vld [vmem:[%s280 + $0x220] sm:$0xff]
      %v3291 = vld [vmem:[%s280 + $0x228] sm:$0xff]
      %v3292 = vld [vmem:[%s280 + $0x230] sm:$0xff]
      %v3293 = vld [vmem:[%s280 + $0x238] sm:$0xff]
      %v3294 = vld [vmem:[%s280 + $0x240] sm:$0xff]
      %v3295 = vld [vmem:[%s280 + $0x248] sm:$0xff]
      %v3296 = vld [vmem:[%s280 + $0x250] sm:$0xff]
      %v3297 = vld [vmem:[%s280 + $0x258] sm:$0xff]
      %v3298 = vld [vmem:[%s280 + $0x260] sm:$0xff]
      %v3299 = vld [vmem:[%s280 + $0x268] sm:$0xff]
      %v3300 = vld [vmem:[%s280 + $0x270] sm:$0xff]
      %v3301 = vld [vmem:[%s280 + $0x278] sm:$0xff]
      %v3302 = vld [vmem:[%s280 + $0x280] sm:$0xff]
      %v3303 = vld [vmem:[%s280 + $0x288] sm:$0xff]
      %v3304 = vld [vmem:[%s280 + $0x290] sm:$0xff]
      %v3305 = vld [vmem:[%s280 + $0x298] sm:$0xff]
      %v3306 = vld [vmem:[%s280 + $0x2a0] sm:$0xff]
      %v3307 = vld [vmem:[%s280 + $0x2a8] sm:$0xff]
      %v3308 = vld [vmem:[%s280 + $0x2b0] sm:$0xff]
      %v3309 = vld [vmem:[%s280 + $0x2b8] sm:$0xff]
      %v3310 = vld [vmem:[%s280 + $0x2c0] sm:$0xff]
      %v3311 = vld [vmem:[%s280 + $0x2c8] sm:$0xff]
      %v3312 = vld [vmem:[%s280 + $0x2d0] sm:$0xff]
      %v3313 = vld [vmem:[%s280 + $0x2d8] sm:$0xff]
      %v3314 = vld [vmem:[%s280 + $0x2e0] sm:$0xff]
      %v3315 = vld [vmem:[%s280 + $0x2e8] sm:$0xff]
      %v3316 = vld [vmem:[%s280 + $0x2f0] sm:$0xff]
      %v3317 = vld [vmem:[%s280 + $0x2f8] sm:$0xff]
      %v3318 = vld [vmem:[%s280 + $0x300] sm:$0xff]
      %v3319 = vld [vmem:[%s280 + $0x308] sm:$0xff]
      %v3320 = vld [vmem:[%s280 + $0x310] sm:$0xff]
      %v3321 = vld [vmem:[%s280 + $0x318] sm:$0xff]
      %v3322 = vld [vmem:[%s280 + $0x320] sm:$0xff]
      %v3323 = vld [vmem:[%s280 + $0x328] sm:$0xff]
      %v3324 = vld [vmem:[%s280 + $0x330] sm:$0xff]
      %v3325 = vld [vmem:[%s280 + $0x338] sm:$0xff]
      %v3326 = vld [vmem:[%s280 + $0x340] sm:$0xff]
      %v3327 = vld [vmem:[%s280 + $0x348] sm:$0xff]
      %v3328 = vld [vmem:[%s280 + $0x350] sm:$0xff]
      %v3329 = vld [vmem:[%s280 + $0x358] sm:$0xff]
      %v3330 = vld [vmem:[%s280 + $0x360] sm:$0xff]
      %v3331 = vld [vmem:[%s280 + $0x368] sm:$0xff]
      %v3332 = vld [vmem:[%s280 + $0x370] sm:$0xff]
      %v3333 = vld [vmem:[%s280 + $0x378] sm:$0xff]
      %v3334 = vld [vmem:[%s280 + $0x380] sm:$0xff]
      %v3335 = vld [vmem:[%s280 + $0x388] sm:$0xff]
      %v3336 = vld [vmem:[%s280 + $0x390] sm:$0xff]
      %v3337 = vld [vmem:[%s280 + $0x398] sm:$0xff]
      %v3338 = vld [vmem:[%s280 + $0x3a0] sm:$0xff]
      %v3339 = vld [vmem:[%s280 + $0x3a8] sm:$0xff]
      %v3340 = vld [vmem:[%s280 + $0x3b0] sm:$0xff]
      %v3341 = vld [vmem:[%s280 + $0x3b8] sm:$0xff]
      %v3342 = vld [vmem:[%s280 + $0x3c0] sm:$0xff]
      %v3343 = vld [vmem:[%s280 + $0x3c8] sm:$0xff]
      %v3344 = vld [vmem:[%s280 + $0x3d0] sm:$0xff]
      %v3345 = vld [vmem:[%s280 + $0x3d8] sm:$0xff]
      %v3346 = vld [vmem:[%s280 + $0x3e0] sm:$0xff]
      %v3347 = vld [vmem:[%s280 + $0x3e8] sm:$0xff]
      %v3348 = vld [vmem:[%s280 + $0x3f0] sm:$0xff]
      %v3349 = vld [vmem:[%s280 + $0x3f8] sm:$0xff]
      %v3350 = vld [vmem:[%s280 + $0x400] sm:$0xff]
      %v3351 = vld [vmem:[%s280 + $0x408] sm:$0xff]
      %v3352 = vld [vmem:[%s280 + $0x410] sm:$0xff]
      %v3353 = vld [vmem:[%s280 + $0x418] sm:$0xff]
      %v3354 = vld [vmem:[%s280 + $0x420] sm:$0xff]
      %v3355 = vld [vmem:[%s280 + $0x428] sm:$0xff]
      %v3356 = vld [vmem:[%s280 + $0x430] sm:$0xff]
      %v3357 = vld [vmem:[%s280 + $0x438] sm:$0xff]
      %v3358 = vld [vmem:[%s280 + $0x440] sm:$0xff]
      %v3359 = vld [vmem:[%s280 + $0x448] sm:$0xff]
      %v3360 = vld [vmem:[%s280 + $0x450] sm:$0xff]
      %v3361 = vld [vmem:[%s280 + $0x458] sm:$0xff]
      %v3362 = vld [vmem:[%s280 + $0x460] sm:$0xff]
      %v3363 = vld [vmem:[%s280 + $0x468] sm:$0xff]
      %v3364 = vld [vmem:[%s280 + $0x470] sm:$0xff]
      %v3365 = vld [vmem:[%s280 + $0x478] sm:$0xff]
      %v3366 = vld [vmem:[%s280 + $0x480] sm:$0xff]
      %v3367 = vld [vmem:[%s280 + $0x488] sm:$0xff]
      %v3368 = vld [vmem:[%s280 + $0x490] sm:$0xff]
      %v3369 = vld [vmem:[%s280 + $0x498] sm:$0xff]
      %v3370 = vld [vmem:[%s280 + $0x4a0] sm:$0xff]
      %v3371 = vld [vmem:[%s280 + $0x4a8] sm:$0xff]
      %v3372 = vld [vmem:[%s280 + $0x4b0] sm:$0xff]
      %v3373 = vld [vmem:[%s280 + $0x4b8] sm:$0xff]
      %v3374 = vld [vmem:[%s280 + $0x4c0] sm:$0xff]
      %v3375 = vld [vmem:[%s280 + $0x4c8] sm:$0xff]
      %v3376 = vld [vmem:[%s280 + $0x4d0] sm:$0xff]
      %v3377 = vld [vmem:[%s280 + $0x4d8] sm:$0xff]
      %v3378 = vld [vmem:[%s280 + $0x4e0] sm:$0xff]
      %v3379 = vld [vmem:[%s280 + $0x4e8] sm:$0xff]
      %v3380 = vld [vmem:[%s280 + $0x4f0] sm:$0xff]
      %v3381 = vld [vmem:[%s280 + $0x4f8] sm:$0xff]
      %3382 = vmatpush.msra.mxu0 %v3297
      %3383 = vmatpush.msra.mxu0 %v3292
      %3384 = vmatpush.msra.mxu0 %v3287
      %3385 = vmatpush.msra.mxu0 %v3282
      %3386 = vmatpush.msra.mxu0 %v3277
      %3387 = vmatpush.msra.mxu0 %v3272
      %3388 = vmatpush.msra.mxu0 %v3267
      %3389 = vmatpush.msra.mxu0 %v3262
      %3390 = vmatpush.msra.mxu0 %v3257
      %3391 = vmatpush.msra.mxu0 %v3252
      %3392 = vmatpush.msra.mxu0 %v3247
      %3393 = vmatpush.msra.mxu0 %v3242
      %3394 = vmatpush.msra.mxu0 %v3237
      %3395 = vmatpush.msra.mxu0 %v3232
      %3396 = vmatpush.msra.mxu0 %v3227
      %3397 = vmatpush.msra.mxu0 %v3222
      %3398 = vmatmul.f32.gmra.mxu0 %v3138
      %v3399 = vpop.f32.mrf.mxu0
      %v3400 = vadd.f32 %v301, %v3399
      %3401 = vdwg.mxu0
      %3402 = vmatpush.msra.mxu0 %v3377
      %3403 = vmatpush.msra.mxu0 %v3372
      %3404 = vmatpush.msra.mxu0 %v3367
      %3405 = vmatpush.msra.mxu0 %v3362
      %3406 = vmatpush.msra.mxu0 %v3357
      %3407 = vmatpush.msra.mxu0 %v3352
      %3408 = vmatpush.msra.mxu0 %v3347
      %3409 = vmatpush.msra.mxu0 %v3342
      %3410 = vmatpush.msra.mxu0 %v3337
      %3411 = vmatpush.msra.mxu0 %v3332
      %3412 = vmatpush.msra.mxu0 %v3327
      %3413 = vmatpush.msra.mxu0 %v3322
      %3414 = vmatpush.msra.mxu0 %v3317
      %3415 = vmatpush.msra.mxu0 %v3312
      %3416 = vmatpush.msra.mxu0 %v3307
      %3417 = vmatpush.msra.mxu0 %v3302
      %3418 = vmatmul.f32.gmra.mxu0 %v3142
      %v3419 = vpop.f32.mrf.mxu0
      %v3420 = vadd.f32 %v3400, %v3419
      %3421 = vdwg.mxu0
      %3422 = vmatpush.msra.mxu0 %v3298
      %3423 = vmatpush.msra.mxu0 %v3293
      %3424 = vmatpush.msra.mxu0 %v3288
      %3425 = vmatpush.msra.mxu0 %v3283
      %3426 = vmatpush.msra.mxu0 %v3278
      %3427 = vmatpush.msra.mxu0 %v3273
      %3428 = vmatpush.msra.mxu0 %v3268
      %3429 = vmatpush.msra.mxu0 %v3263
      %3430 = vmatpush.msra.mxu0 %v3258
      %3431 = vmatpush.msra.mxu0 %v3253
      %3432 = vmatpush.msra.mxu0 %v3248
      %3433 = vmatpush.msra.mxu0 %v3243
      %3434 = vmatpush.msra.mxu0 %v3238
      %3435 = vmatpush.msra.mxu0 %v3233
      %3436 = vmatpush.msra.mxu0 %v3228
      %3437 = vmatpush.msra.mxu0 %v3223
      %3438 = vmatmul.f32.gmra.mxu0 %v3138
      %v3439 = vpop.f32.mrf.mxu0
      %v3440 = vadd.f32 %v302, %v3439
      %3441 = vdwg.mxu0
      %3442 = vmatpush.msra.mxu0 %v3378
      %3443 = vmatpush.msra.mxu0 %v3373
      %3444 = vmatpush.msra.mxu0 %v3368
      %3445 = vmatpush.msra.mxu0 %v3363
      %3446 = vmatpush.msra.mxu0 %v3358
      %3447 = vmatpush.msra.mxu0 %v3353
      %3448 = vmatpush.msra.mxu0 %v3348
      %3449 = vmatpush.msra.mxu0 %v3343
      %3450 = vmatpush.msra.mxu0 %v3338
      %3451 = vmatpush.msra.mxu0 %v3333
      %3452 = vmatpush.msra.mxu0 %v3328
      %3453 = vmatpush.msra.mxu0 %v3323
      %3454 = vmatpush.msra.mxu0 %v3318
      %3455 = vmatpush.msra.mxu0 %v3313
      %3456 = vmatpush.msra.mxu0 %v3308
      %3457 = vmatpush.msra.mxu0 %v3303
      %3458 = vmatmul.f32.gmra.mxu0 %v3142
      %v3459 = vpop.f32.mrf.mxu0
      %v3460 = vadd.f32 %v3440, %v3459
      %3461 = vdwg.mxu0
      %3462 = vmatpush.msra.mxu0 %v3299
      %3463 = vmatpush.msra.mxu0 %v3294
      %3464 = vmatpush.msra.mxu0 %v3289
      %3465 = vmatpush.msra.mxu0 %v3284
      %3466 = vmatpush.msra.mxu0 %v3279
      %3467 = vmatpush.msra.mxu0 %v3274
      %3468 = vmatpush.msra.mxu0 %v3269
      %3469 = vmatpush.msra.mxu0 %v3264
      %3470 = vmatpush.msra.mxu0 %v3259
      %3471 = vmatpush.msra.mxu0 %v3254
      %3472 = vmatpush.msra.mxu0 %v3249
      %3473 = vmatpush.msra.mxu0 %v3244
      %3474 = vmatpush.msra.mxu0 %v3239
      %3475 = vmatpush.msra.mxu0 %v3234
      %3476 = vmatpush.msra.mxu0 %v3229
      %3477 = vmatpush.msra.mxu0 %v3224
      %3478 = vmatmul.f32.gmra.mxu0 %v3138
      %v3479 = vpop.f32.mrf.mxu0
      %v3480 = vadd.f32 %v303, %v3479
      %3481 = vdwg.mxu0
      %3482 = vmatpush.msra.mxu0 %v3379
      %3483 = vmatpush.msra.mxu0 %v3374
      %3484 = vmatpush.msra.mxu0 %v3369
      %3485 = vmatpush.msra.mxu0 %v3364
      %3486 = vmatpush.msra.mxu0 %v3359
      %3487 = vmatpush.msra.mxu0 %v3354
      %3488 = vmatpush.msra.mxu0 %v3349
      %3489 = vmatpush.msra.mxu0 %v3344
      %3490 = vmatpush.msra.mxu0 %v3339
      %3491 = vmatpush.msra.mxu0 %v3334
      %3492 = vmatpush.msra.mxu0 %v3329
      %3493 = vmatpush.msra.mxu0 %v3324
      %3494 = vmatpush.msra.mxu0 %v3319
      %3495 = vmatpush.msra.mxu0 %v3314
      %3496 = vmatpush.msra.mxu0 %v3309
      %3497 = vmatpush.msra.mxu0 %v3304
      %3498 = vmatmul.f32.gmra.mxu0 %v3142
      %v3499 = vpop.f32.mrf.mxu0
      %v3500 = vadd.f32 %v3480, %v3499
      %3501 = vdwg.mxu0
      %3502 = vmatpush.msra.mxu0 %v3300
      %3503 = vmatpush.msra.mxu0 %v3295
      %3504 = vmatpush.msra.mxu0 %v3290
      %3505 = vmatpush.msra.mxu0 %v3285
      %3506 = vmatpush.msra.mxu0 %v3280
      %3507 = vmatpush.msra.mxu0 %v3275
      %3508 = vmatpush.msra.mxu0 %v3270
      %3509 = vmatpush.msra.mxu0 %v3265
      %3510 = vmatpush.msra.mxu0 %v3260
      %3511 = vmatpush.msra.mxu0 %v3255
      %3512 = vmatpush.msra.mxu0 %v3250
      %3513 = vmatpush.msra.mxu0 %v3245
      %3514 = vmatpush.msra.mxu0 %v3240
      %3515 = vmatpush.msra.mxu0 %v3235
      %3516 = vmatpush.msra.mxu0 %v3230
      %3517 = vmatpush.msra.mxu0 %v3225
      %3518 = vmatmul.f32.gmra.mxu0 %v3138
      %v3519 = vpop.f32.mrf.mxu0
      %v3520 = vadd.f32 %v304, %v3519
      %3521 = vdwg.mxu0
      %3522 = vmatpush.msra.mxu0 %v3380
      %3523 = vmatpush.msra.mxu0 %v3375
      %3524 = vmatpush.msra.mxu0 %v3370
      %3525 = vmatpush.msra.mxu0 %v3365
      %3526 = vmatpush.msra.mxu0 %v3360
      %3527 = vmatpush.msra.mxu0 %v3355
      %3528 = vmatpush.msra.mxu0 %v3350
      %3529 = vmatpush.msra.mxu0 %v3345
      %3530 = vmatpush.msra.mxu0 %v3340
      %3531 = vmatpush.msra.mxu0 %v3335
      %3532 = vmatpush.msra.mxu0 %v3330
      %3533 = vmatpush.msra.mxu0 %v3325
      %3534 = vmatpush.msra.mxu0 %v3320
      %3535 = vmatpush.msra.mxu0 %v3315
      %3536 = vmatpush.msra.mxu0 %v3310
      %3537 = vmatpush.msra.mxu0 %v3305
      %3538 = vmatmul.f32.gmra.mxu0 %v3142
      %v3539 = vpop.f32.mrf.mxu0
      %v3540 = vadd.f32 %v3520, %v3539
      %3541 = vdwg.mxu0
      %3542 = vmatpush.msra.mxu0 %v3301
      %3543 = vmatpush.msra.mxu0 %v3296
      %3544 = vmatpush.msra.mxu0 %v3291
      %3545 = vmatpush.msra.mxu0 %v3286
      %3546 = vmatpush.msra.mxu0 %v3281
      %3547 = vmatpush.msra.mxu0 %v3276
      %3548 = vmatpush.msra.mxu0 %v3271
      %3549 = vmatpush.msra.mxu0 %v3266
      %3550 = vmatpush.msra.mxu0 %v3261
      %3551 = vmatpush.msra.mxu0 %v3256
      %3552 = vmatpush.msra.mxu0 %v3251
      %3553 = vmatpush.msra.mxu0 %v3246
      %3554 = vmatpush.msra.mxu0 %v3241
      %3555 = vmatpush.msra.mxu0 %v3236
      %3556 = vmatpush.msra.mxu0 %v3231
      %3557 = vmatpush.msra.mxu0 %v3226
      %3558 = vmatmul.f32.gmra.mxu0 %v3138
      %v3559 = vpop.f32.mrf.mxu0
      %v3560 = vadd.f32 %v305, %v3559
      %3561 = vdwg.mxu0
      %3562 = vmatpush.msra.mxu0 %v3381
      %3563 = vmatpush.msra.mxu0 %v3376
      %3564 = vmatpush.msra.mxu0 %v3371
      %3565 = vmatpush.msra.mxu0 %v3366
      %3566 = vmatpush.msra.mxu0 %v3361
      %3567 = vmatpush.msra.mxu0 %v3356
      %3568 = vmatpush.msra.mxu0 %v3351
      %3569 = vmatpush.msra.mxu0 %v3346
      %3570 = vmatpush.msra.mxu0 %v3341
      %3571 = vmatpush.msra.mxu0 %v3336
      %3572 = vmatpush.msra.mxu0 %v3331
      %3573 = vmatpush.msra.mxu0 %v3326
      %3574 = vmatpush.msra.mxu0 %v3321
      %3575 = vmatpush.msra.mxu0 %v3316
      %3576 = vmatpush.msra.mxu0 %v3311
      %3577 = vmatpush.msra.mxu0 %v3306
      %3578 = vmatmul.f32.gmra.mxu0 %v3142
      %v3579 = vpop.f32.mrf.mxu0
      %v3580 = vadd.f32 %v3560, %v3579
      %3581 = vdwg.mxu0
      %s3582 = scalar_lea.vmem %s275, 48
      %v3583 = vld [vmem:[%s3582] sm:$0xff]
      %v3588 = vrot.slane %v3500, 6
      %v3589 = vrot.slane %v3540, 4
      %v3590 = vrot.slane %v3580, 2
      %v3591 = vsel %vm685, %v3460, %v3588
      %v3592 = vsel %vm687, %v3589, %v3590
      %v3593 = vsel %vm689, %v3591, %v3592
      %v3595 = vadd.f32 %v3583, %v3593
      %v3596 = vxor.u32 %v3595, 2147483648
      %v3597 = vmul.f32 %v3596, 1.442695
      %v3598 = vpow.pop %v3597
      %v3599 = vadd.f32 %v3598, 1.0
      %v3600 = vrcp.pop %v3599
      %v3601 = vmul.f32 %v3599, %v3600
      %v3602 = vsub.f32 1.0, %v3601
      %v3603 = vmul.f32 %v3600, %v3602
      %v3604 = vadd.f32 %v3600, %v3603
      %vm3605 = vweird.f32 %v3599
      %vm3606 = vweird.f32 %v3600
      %vm3607 = vmor %vm3605, %vm3606
      %v3608 = vsel %vm3607, %v3600, %v3604
      %v3609 = vand.u32 2147483647, %v3599
      %vm3610 = vcmp.eq.f32.partialorder %v3609, 8.507059e+37
      %v3611 = vand.u32 %v3599, 2147483648
      %v3612 = vor.u32 1.1754944e-38, %v3611
      %v3613 = vsel %vm3610, %v3612, %v3608
      %v3614 = vmul.f32 1.0, %v3613
      %v3616 = vrot.slane %v3614, 4
      %v3618 = vmul.f32 %v3616, %v3420
      %v3619 = vrot.slane %v3614, 2
      %v3621 = vmul.f32 %v3614, %v3619
      %v3622 = vadd.f32 %v3618, %v3621
      %v3623 = vtanh.pop %v3622
      %v3624 = vrot.slane %v3614, 6
      %v3626 = vmul.f32 %v3624, %v3623
      %v3627 = vld [vmem:[%s289] sm:$0xff]
      %v3628 = vld [vmem:[%s289 + $0x8] sm:$0xff]
      %v3629 = vld [vmem:[%s289 + $0x10] sm:$0xff]
      %v3630 = vld [vmem:[%s289 + $0x18] sm:$0xff]
      %v3631 = vld [vmem:[%s289 + $0x20] sm:$0xff]
      %v3632 = vld [vmem:[%s289 + $0x28] sm:$0xff]
      %v3633 = vld [vmem:[%s289 + $0x30] sm:$0xff]
      %v3634 = vld [vmem:[%s289 + $0x38] sm:$0xff]
      %v3635 = vld [vmem:[%s289 + $0x40] sm:$0xff]
      %v3636 = vld [vmem:[%s289 + $0x48] sm:$0xff]
      %v3637 = vld [vmem:[%s289 + $0x50] sm:$0xff]
      %v3638 = vld [vmem:[%s289 + $0x58] sm:$0xff]
      %v3639 = vld [vmem:[%s289 + $0x60] sm:$0xff]
      %v3640 = vld [vmem:[%s289 + $0x68] sm:$0xff]
      %v3641 = vld [vmem:[%s289 + $0x70] sm:$0xff]
      %v3642 = vld [vmem:[%s289 + $0x78] sm:$0xff]
      %v3643 = vld [vmem:[%s289 + $0x80] sm:$0xff]
      %v3644 = vld [vmem:[%s289 + $0x88] sm:$0xff]
      %v3645 = vld [vmem:[%s289 + $0x90] sm:$0xff]
      %v3646 = vld [vmem:[%s289 + $0x98] sm:$0xff]
      %v3647 = vld [vmem:[%s289 + $0xa0] sm:$0xff]
      %v3648 = vld [vmem:[%s289 + $0xa8] sm:$0xff]
      %v3649 = vld [vmem:[%s289 + $0xb0] sm:$0xff]
      %v3650 = vld [vmem:[%s289 + $0xb8] sm:$0xff]
      %v3651 = vld [vmem:[%s289 + $0xc0] sm:$0xff]
      %v3652 = vld [vmem:[%s289 + $0xc8] sm:$0xff]
      %v3653 = vld [vmem:[%s289 + $0xd0] sm:$0xff]
      %v3654 = vld [vmem:[%s289 + $0xd8] sm:$0xff]
      %v3655 = vld [vmem:[%s289 + $0xe0] sm:$0xff]
      %v3656 = vld [vmem:[%s289 + $0xe8] sm:$0xff]
      %v3657 = vld [vmem:[%s289 + $0xf0] sm:$0xff]
      %v3658 = vld [vmem:[%s289 + $0xf8] sm:$0xff]
      %3659 = vmatpush.msra.mxu0 %v3657
      %3660 = vmatpush.msra.mxu0 %v3655
      %3661 = vmatpush.msra.mxu0 %v3653
      %3662 = vmatpush.msra.mxu0 %v3651
      %3663 = vmatpush.msra.mxu0 %v3649
      %3664 = vmatpush.msra.mxu0 %v3647
      %3665 = vmatpush.msra.mxu0 %v3645
      %3666 = vmatpush.msra.mxu0 %v3643
      %3667 = vmatpush.msra.mxu0 %v3641
      %3668 = vmatpush.msra.mxu0 %v3639
      %3669 = vmatpush.msra.mxu0 %v3637
      %3670 = vmatpush.msra.mxu0 %v3635
      %3671 = vmatpush.msra.mxu0 %v3633
      %3672 = vmatpush.msra.mxu0 %v3631
      %3673 = vmatpush.msra.mxu0 %v3629
      %3674 = vmatpush.msra.mxu0 %v3627
      %3675 = vmatmul.f32.gmra.mxu0 %v3626
      %v3676 = vpop.f32.mrf.mxu0
      %v3677 = vadd.f32 %v313, %v3676
      %3678 = vdwg.mxu0
      %3679 = vmatpush.msra.mxu0 %v3658
      %3680 = vmatpush.msra.mxu0 %v3656
      %3681 = vmatpush.msra.mxu0 %v3654
      %3682 = vmatpush.msra.mxu0 %v3652
      %3683 = vmatpush.msra.mxu0 %v3650
      %3684 = vmatpush.msra.mxu0 %v3648
      %3685 = vmatpush.msra.mxu0 %v3646
      %3686 = vmatpush.msra.mxu0 %v3644
      %3687 = vmatpush.msra.mxu0 %v3642
      %3688 = vmatpush.msra.mxu0 %v3640
      %3689 = vmatpush.msra.mxu0 %v3638
      %3690 = vmatpush.msra.mxu0 %v3636
      %3691 = vmatpush.msra.mxu0 %v3634
      %3692 = vmatpush.msra.mxu0 %v3632
      %3693 = vmatpush.msra.mxu0 %v3630
      %3694 = vmatpush.msra.mxu0 %v3628
      %3695 = vmatmul.f32.gmra.mxu0 %v3626
      %v3696 = vpop.f32.mrf.mxu0
      %v3697 = vadd.f32 %v314, %v3696
      %3698 = vdwg.mxu0
      %v3701 = vrot.slane %v3697, 6
      %v3702 = vsel %vm685, %v3677, %v3701
      %s3704 = scalar_lea.vmem %s298, 24
      %3705 = vst [vmem:[%s3704] sm:$0xf] %v3702
      %v3706 = vld [vmem:[%s280] sm:$0xff]
      %v3707 = vld [vmem:[%s280 + $0x8] sm:$0xff]
      %v3708 = vld [vmem:[%s280 + $0x10] sm:$0xff]
      %v3709 = vld [vmem:[%s280 + $0x18] sm:$0xff]
      %v3710 = vld [vmem:[%s280 + $0x20] sm:$0xff]
      %v3711 = vld [vmem:[%s280 + $0x28] sm:$0xff]
      %v3712 = vld [vmem:[%s280 + $0x30] sm:$0xff]
      %v3713 = vld [vmem:[%s280 + $0x38] sm:$0xff]
      %v3714 = vld [vmem:[%s280 + $0x40] sm:$0xff]
      %v3715 = vld [vmem:[%s280 + $0x48] sm:$0xff]
      %v3716 = vld [vmem:[%s280 + $0x50] sm:$0xff]
      %v3717 = vld [vmem:[%s280 + $0x58] sm:$0xff]
      %v3718 = vld [vmem:[%s280 + $0x60] sm:$0xff]
      %v3719 = vld [vmem:[%s280 + $0x68] sm:$0xff]
      %v3720 = vld [vmem:[%s280 + $0x70] sm:$0xff]
      %v3721 = vld [vmem:[%s280 + $0x78] sm:$0xff]
      %v3722 = vld [vmem:[%s280 + $0x80] sm:$0xff]
      %v3723 = vld [vmem:[%s280 + $0x88] sm:$0xff]
      %v3724 = vld [vmem:[%s280 + $0x90] sm:$0xff]
      %v3725 = vld [vmem:[%s280 + $0x98] sm:$0xff]
      %v3726 = vld [vmem:[%s280 + $0xa0] sm:$0xff]
      %v3727 = vld [vmem:[%s280 + $0xa8] sm:$0xff]
      %v3728 = vld [vmem:[%s280 + $0xb0] sm:$0xff]
      %v3729 = vld [vmem:[%s280 + $0xb8] sm:$0xff]
      %v3730 = vld [vmem:[%s280 + $0xc0] sm:$0xff]
      %v3731 = vld [vmem:[%s280 + $0xc8] sm:$0xff]
      %v3732 = vld [vmem:[%s280 + $0xd0] sm:$0xff]
      %v3733 = vld [vmem:[%s280 + $0xd8] sm:$0xff]
      %v3734 = vld [vmem:[%s280 + $0xe0] sm:$0xff]
      %v3735 = vld [vmem:[%s280 + $0xe8] sm:$0xff]
      %v3736 = vld [vmem:[%s280 + $0xf0] sm:$0xff]
      %v3737 = vld [vmem:[%s280 + $0xf8] sm:$0xff]
      %v3738 = vld [vmem:[%s280 + $0x100] sm:$0xff]
      %v3739 = vld [vmem:[%s280 + $0x108] sm:$0xff]
      %v3740 = vld [vmem:[%s280 + $0x110] sm:$0xff]
      %v3741 = vld [vmem:[%s280 + $0x118] sm:$0xff]
      %v3742 = vld [vmem:[%s280 + $0x120] sm:$0xff]
      %v3743 = vld [vmem:[%s280 + $0x128] sm:$0xff]
      %v3744 = vld [vmem:[%s280 + $0x130] sm:$0xff]
      %v3745 = vld [vmem:[%s280 + $0x138] sm:$0xff]
      %v3746 = vld [vmem:[%s280 + $0x140] sm:$0xff]
      %v3747 = vld [vmem:[%s280 + $0x148] sm:$0xff]
      %v3748 = vld [vmem:[%s280 + $0x150] sm:$0xff]
      %v3749 = vld [vmem:[%s280 + $0x158] sm:$0xff]
      %v3750 = vld [vmem:[%s280 + $0x160] sm:$0xff]
      %v3751 = vld [vmem:[%s280 + $0x168] sm:$0xff]
      %v3752 = vld [vmem:[%s280 + $0x170] sm:$0xff]
      %v3753 = vld [vmem:[%s280 + $0x178] sm:$0xff]
      %v3754 = vld [vmem:[%s280 + $0x180] sm:$0xff]
      %v3755 = vld [vmem:[%s280 + $0x188] sm:$0xff]
      %v3756 = vld [vmem:[%s280 + $0x190] sm:$0xff]
      %v3757 = vld [vmem:[%s280 + $0x198] sm:$0xff]
      %v3758 = vld [vmem:[%s280 + $0x1a0] sm:$0xff]
      %v3759 = vld [vmem:[%s280 + $0x1a8] sm:$0xff]
      %v3760 = vld [vmem:[%s280 + $0x1b0] sm:$0xff]
      %v3761 = vld [vmem:[%s280 + $0x1b8] sm:$0xff]
      %v3762 = vld [vmem:[%s280 + $0x1c0] sm:$0xff]
      %v3763 = vld [vmem:[%s280 + $0x1c8] sm:$0xff]
      %v3764 = vld [vmem:[%s280 + $0x1d0] sm:$0xff]
      %v3765 = vld [vmem:[%s280 + $0x1d8] sm:$0xff]
      %v3766 = vld [vmem:[%s280 + $0x1e0] sm:$0xff]
      %v3767 = vld [vmem:[%s280 + $0x1e8] sm:$0xff]
      %v3768 = vld [vmem:[%s280 + $0x1f0] sm:$0xff]
      %v3769 = vld [vmem:[%s280 + $0x1f8] sm:$0xff]
      %v3770 = vld [vmem:[%s280 + $0x200] sm:$0xff]
      %v3771 = vld [vmem:[%s280 + $0x208] sm:$0xff]
      %v3772 = vld [vmem:[%s280 + $0x210] sm:$0xff]
      %v3773 = vld [vmem:[%s280 + $0x218] sm:$0xff]
      %v3774 = vld [vmem:[%s280 + $0x220] sm:$0xff]
      %v3775 = vld [vmem:[%s280 + $0x228] sm:$0xff]
      %v3776 = vld [vmem:[%s280 + $0x230] sm:$0xff]
      %v3777 = vld [vmem:[%s280 + $0x238] sm:$0xff]
      %v3778 = vld [vmem:[%s280 + $0x240] sm:$0xff]
      %v3779 = vld [vmem:[%s280 + $0x248] sm:$0xff]
      %v3780 = vld [vmem:[%s280 + $0x250] sm:$0xff]
      %v3781 = vld [vmem:[%s280 + $0x258] sm:$0xff]
      %v3782 = vld [vmem:[%s280 + $0x260] sm:$0xff]
      %v3783 = vld [vmem:[%s280 + $0x268] sm:$0xff]
      %v3784 = vld [vmem:[%s280 + $0x270] sm:$0xff]
      %v3785 = vld [vmem:[%s280 + $0x278] sm:$0xff]
      %v3786 = vld [vmem:[%s280 + $0x280] sm:$0xff]
      %v3787 = vld [vmem:[%s280 + $0x288] sm:$0xff]
      %v3788 = vld [vmem:[%s280 + $0x290] sm:$0xff]
      %v3789 = vld [vmem:[%s280 + $0x298] sm:$0xff]
      %v3790 = vld [vmem:[%s280 + $0x2a0] sm:$0xff]
      %v3791 = vld [vmem:[%s280 + $0x2a8] sm:$0xff]
      %v3792 = vld [vmem:[%s280 + $0x2b0] sm:$0xff]
      %v3793 = vld [vmem:[%s280 + $0x2b8] sm:$0xff]
      %v3794 = vld [vmem:[%s280 + $0x2c0] sm:$0xff]
      %v3795 = vld [vmem:[%s280 + $0x2c8] sm:$0xff]
      %v3796 = vld [vmem:[%s280 + $0x2d0] sm:$0xff]
      %v3797 = vld [vmem:[%s280 + $0x2d8] sm:$0xff]
      %v3798 = vld [vmem:[%s280 + $0x2e0] sm:$0xff]
      %v3799 = vld [vmem:[%s280 + $0x2e8] sm:$0xff]
      %v3800 = vld [vmem:[%s280 + $0x2f0] sm:$0xff]
      %v3801 = vld [vmem:[%s280 + $0x2f8] sm:$0xff]
      %v3802 = vld [vmem:[%s280 + $0x300] sm:$0xff]
      %v3803 = vld [vmem:[%s280 + $0x308] sm:$0xff]
      %v3804 = vld [vmem:[%s280 + $0x310] sm:$0xff]
      %v3805 = vld [vmem:[%s280 + $0x318] sm:$0xff]
      %v3806 = vld [vmem:[%s280 + $0x320] sm:$0xff]
      %v3807 = vld [vmem:[%s280 + $0x328] sm:$0xff]
      %v3808 = vld [vmem:[%s280 + $0x330] sm:$0xff]
      %v3809 = vld [vmem:[%s280 + $0x338] sm:$0xff]
      %v3810 = vld [vmem:[%s280 + $0x340] sm:$0xff]
      %v3811 = vld [vmem:[%s280 + $0x348] sm:$0xff]
      %v3812 = vld [vmem:[%s280 + $0x350] sm:$0xff]
      %v3813 = vld [vmem:[%s280 + $0x358] sm:$0xff]
      %v3814 = vld [vmem:[%s280 + $0x360] sm:$0xff]
      %v3815 = vld [vmem:[%s280 + $0x368] sm:$0xff]
      %v3816 = vld [vmem:[%s280 + $0x370] sm:$0xff]
      %v3817 = vld [vmem:[%s280 + $0x378] sm:$0xff]
      %v3818 = vld [vmem:[%s280 + $0x380] sm:$0xff]
      %v3819 = vld [vmem:[%s280 + $0x388] sm:$0xff]
      %v3820 = vld [vmem:[%s280 + $0x390] sm:$0xff]
      %v3821 = vld [vmem:[%s280 + $0x398] sm:$0xff]
      %v3822 = vld [vmem:[%s280 + $0x3a0] sm:$0xff]
      %v3823 = vld [vmem:[%s280 + $0x3a8] sm:$0xff]
      %v3824 = vld [vmem:[%s280 + $0x3b0] sm:$0xff]
      %v3825 = vld [vmem:[%s280 + $0x3b8] sm:$0xff]
      %v3826 = vld [vmem:[%s280 + $0x3c0] sm:$0xff]
      %v3827 = vld [vmem:[%s280 + $0x3c8] sm:$0xff]
      %v3828 = vld [vmem:[%s280 + $0x3d0] sm:$0xff]
      %v3829 = vld [vmem:[%s280 + $0x3d8] sm:$0xff]
      %v3830 = vld [vmem:[%s280 + $0x3e0] sm:$0xff]
      %v3831 = vld [vmem:[%s280 + $0x3e8] sm:$0xff]
      %v3832 = vld [vmem:[%s280 + $0x3f0] sm:$0xff]
      %v3833 = vld [vmem:[%s280 + $0x3f8] sm:$0xff]
      %v3834 = vld [vmem:[%s280 + $0x400] sm:$0xff]
      %v3835 = vld [vmem:[%s280 + $0x408] sm:$0xff]
      %v3836 = vld [vmem:[%s280 + $0x410] sm:$0xff]
      %v3837 = vld [vmem:[%s280 + $0x418] sm:$0xff]
      %v3838 = vld [vmem:[%s280 + $0x420] sm:$0xff]
      %v3839 = vld [vmem:[%s280 + $0x428] sm:$0xff]
      %v3840 = vld [vmem:[%s280 + $0x430] sm:$0xff]
      %v3841 = vld [vmem:[%s280 + $0x438] sm:$0xff]
      %v3842 = vld [vmem:[%s280 + $0x440] sm:$0xff]
      %v3843 = vld [vmem:[%s280 + $0x448] sm:$0xff]
      %v3844 = vld [vmem:[%s280 + $0x450] sm:$0xff]
      %v3845 = vld [vmem:[%s280 + $0x458] sm:$0xff]
      %v3846 = vld [vmem:[%s280 + $0x460] sm:$0xff]
      %v3847 = vld [vmem:[%s280 + $0x468] sm:$0xff]
      %v3848 = vld [vmem:[%s280 + $0x470] sm:$0xff]
      %v3849 = vld [vmem:[%s280 + $0x478] sm:$0xff]
      %v3850 = vld [vmem:[%s280 + $0x480] sm:$0xff]
      %v3851 = vld [vmem:[%s280 + $0x488] sm:$0xff]
      %v3852 = vld [vmem:[%s280 + $0x490] sm:$0xff]
      %v3853 = vld [vmem:[%s280 + $0x498] sm:$0xff]
      %v3854 = vld [vmem:[%s280 + $0x4a0] sm:$0xff]
      %v3855 = vld [vmem:[%s280 + $0x4a8] sm:$0xff]
      %v3856 = vld [vmem:[%s280 + $0x4b0] sm:$0xff]
      %v3857 = vld [vmem:[%s280 + $0x4b8] sm:$0xff]
      %v3858 = vld [vmem:[%s280 + $0x4c0] sm:$0xff]
      %v3859 = vld [vmem:[%s280 + $0x4c8] sm:$0xff]
      %v3860 = vld [vmem:[%s280 + $0x4d0] sm:$0xff]
      %v3861 = vld [vmem:[%s280 + $0x4d8] sm:$0xff]
      %v3862 = vld [vmem:[%s280 + $0x4e0] sm:$0xff]
      %v3863 = vld [vmem:[%s280 + $0x4e8] sm:$0xff]
      %v3864 = vld [vmem:[%s280 + $0x4f0] sm:$0xff]
      %v3865 = vld [vmem:[%s280 + $0x4f8] sm:$0xff]
      %3866 = vmatpush.msra.mxu0 %v3781
      %3867 = vmatpush.msra.mxu0 %v3776
      %3868 = vmatpush.msra.mxu0 %v3771
      %3869 = vmatpush.msra.mxu0 %v3766
      %3870 = vmatpush.msra.mxu0 %v3761
      %3871 = vmatpush.msra.mxu0 %v3756
      %3872 = vmatpush.msra.mxu0 %v3751
      %3873 = vmatpush.msra.mxu0 %v3746
      %3874 = vmatpush.msra.mxu0 %v3741
      %3875 = vmatpush.msra.mxu0 %v3736
      %3876 = vmatpush.msra.mxu0 %v3731
      %3877 = vmatpush.msra.mxu0 %v3726
      %3878 = vmatpush.msra.mxu0 %v3721
      %3879 = vmatpush.msra.mxu0 %v3716
      %3880 = vmatpush.msra.mxu0 %v3711
      %3881 = vmatpush.msra.mxu0 %v3706
      %3882 = vmatmul.f32.gmra.mxu0 %v3622
      %v3883 = vpop.f32.mrf.mxu0
      %v3884 = vadd.f32 %v301, %v3883
      %3885 = vdwg.mxu0
      %3886 = vmatpush.msra.mxu0 %v3861
      %3887 = vmatpush.msra.mxu0 %v3856
      %3888 = vmatpush.msra.mxu0 %v3851
      %3889 = vmatpush.msra.mxu0 %v3846
      %3890 = vmatpush.msra.mxu0 %v3841
      %3891 = vmatpush.msra.mxu0 %v3836
      %3892 = vmatpush.msra.mxu0 %v3831
      %3893 = vmatpush.msra.mxu0 %v3826
      %3894 = vmatpush.msra.mxu0 %v3821
      %3895 = vmatpush.msra.mxu0 %v3816
      %3896 = vmatpush.msra.mxu0 %v3811
      %3897 = vmatpush.msra.mxu0 %v3806
      %3898 = vmatpush.msra.mxu0 %v3801
      %3899 = vmatpush.msra.mxu0 %v3796
      %3900 = vmatpush.msra.mxu0 %v3791
      %3901 = vmatpush.msra.mxu0 %v3786
      %3902 = vmatmul.f32.gmra.mxu0 %v3626
      %v3903 = vpop.f32.mrf.mxu0
      %v3904 = vadd.f32 %v3884, %v3903
      %3905 = vdwg.mxu0
      %3906 = vmatpush.msra.mxu0 %v3782
      %3907 = vmatpush.msra.mxu0 %v3777
      %3908 = vmatpush.msra.mxu0 %v3772
      %3909 = vmatpush.msra.mxu0 %v3767
      %3910 = vmatpush.msra.mxu0 %v3762
      %3911 = vmatpush.msra.mxu0 %v3757
      %3912 = vmatpush.msra.mxu0 %v3752
      %3913 = vmatpush.msra.mxu0 %v3747
      %3914 = vmatpush.msra.mxu0 %v3742
      %3915 = vmatpush.msra.mxu0 %v3737
      %3916 = vmatpush.msra.mxu0 %v3732
      %3917 = vmatpush.msra.mxu0 %v3727
      %3918 = vmatpush.msra.mxu0 %v3722
      %3919 = vmatpush.msra.mxu0 %v3717
      %3920 = vmatpush.msra.mxu0 %v3712
      %3921 = vmatpush.msra.mxu0 %v3707
      %3922 = vmatmul.f32.gmra.mxu0 %v3622
      %v3923 = vpop.f32.mrf.mxu0
      %v3924 = vadd.f32 %v302, %v3923
      %3925 = vdwg.mxu0
      %3926 = vmatpush.msra.mxu0 %v3862
      %3927 = vmatpush.msra.mxu0 %v3857
      %3928 = vmatpush.msra.mxu0 %v3852
      %3929 = vmatpush.msra.mxu0 %v3847
      %3930 = vmatpush.msra.mxu0 %v3842
      %3931 = vmatpush.msra.mxu0 %v3837
      %3932 = vmatpush.msra.mxu0 %v3832
      %3933 = vmatpush.msra.mxu0 %v3827
      %3934 = vmatpush.msra.mxu0 %v3822
      %3935 = vmatpush.msra.mxu0 %v3817
      %3936 = vmatpush.msra.mxu0 %v3812
      %3937 = vmatpush.msra.mxu0 %v3807
      %3938 = vmatpush.msra.mxu0 %v3802
      %3939 = vmatpush.msra.mxu0 %v3797
      %3940 = vmatpush.msra.mxu0 %v3792
      %3941 = vmatpush.msra.mxu0 %v3787
      %3942 = vmatmul.f32.gmra.mxu0 %v3626
      %v3943 = vpop.f32.mrf.mxu0
      %v3944 = vadd.f32 %v3924, %v3943
      %3945 = vdwg.mxu0
      %3946 = vmatpush.msra.mxu0 %v3783
      %3947 = vmatpush.msra.mxu0 %v3778
      %3948 = vmatpush.msra.mxu0 %v3773
      %3949 = vmatpush.msra.mxu0 %v3768
      %3950 = vmatpush.msra.mxu0 %v3763
      %3951 = vmatpush.msra.mxu0 %v3758
      %3952 = vmatpush.msra.mxu0 %v3753
      %3953 = vmatpush.msra.mxu0 %v3748
      %3954 = vmatpush.msra.mxu0 %v3743
      %3955 = vmatpush.msra.mxu0 %v3738
      %3956 = vmatpush.msra.mxu0 %v3733
      %3957 = vmatpush.msra.mxu0 %v3728
      %3958 = vmatpush.msra.mxu0 %v3723
      %3959 = vmatpush.msra.mxu0 %v3718
      %3960 = vmatpush.msra.mxu0 %v3713
      %3961 = vmatpush.msra.mxu0 %v3708
      %3962 = vmatmul.f32.gmra.mxu0 %v3622
      %v3963 = vpop.f32.mrf.mxu0
      %v3964 = vadd.f32 %v303, %v3963
      %3965 = vdwg.mxu0
      %3966 = vmatpush.msra.mxu0 %v3863
      %3967 = vmatpush.msra.mxu0 %v3858
      %3968 = vmatpush.msra.mxu0 %v3853
      %3969 = vmatpush.msra.mxu0 %v3848
      %3970 = vmatpush.msra.mxu0 %v3843
      %3971 = vmatpush.msra.mxu0 %v3838
      %3972 = vmatpush.msra.mxu0 %v3833
      %3973 = vmatpush.msra.mxu0 %v3828
      %3974 = vmatpush.msra.mxu0 %v3823
      %3975 = vmatpush.msra.mxu0 %v3818
      %3976 = vmatpush.msra.mxu0 %v3813
      %3977 = vmatpush.msra.mxu0 %v3808
      %3978 = vmatpush.msra.mxu0 %v3803
      %3979 = vmatpush.msra.mxu0 %v3798
      %3980 = vmatpush.msra.mxu0 %v3793
      %3981 = vmatpush.msra.mxu0 %v3788
      %3982 = vmatmul.f32.gmra.mxu0 %v3626
      %v3983 = vpop.f32.mrf.mxu0
      %v3984 = vadd.f32 %v3964, %v3983
      %3985 = vdwg.mxu0
      %3986 = vmatpush.msra.mxu0 %v3784
      %3987 = vmatpush.msra.mxu0 %v3779
      %3988 = vmatpush.msra.mxu0 %v3774
      %3989 = vmatpush.msra.mxu0 %v3769
      %3990 = vmatpush.msra.mxu0 %v3764
      %3991 = vmatpush.msra.mxu0 %v3759
      %3992 = vmatpush.msra.mxu0 %v3754
      %3993 = vmatpush.msra.mxu0 %v3749
      %3994 = vmatpush.msra.mxu0 %v3744
      %3995 = vmatpush.msra.mxu0 %v3739
      %3996 = vmatpush.msra.mxu0 %v3734
      %3997 = vmatpush.msra.mxu0 %v3729
      %3998 = vmatpush.msra.mxu0 %v3724
      %3999 = vmatpush.msra.mxu0 %v3719
      %4000 = vmatpush.msra.mxu0 %v3714
      %4001 = vmatpush.msra.mxu0 %v3709
      %4002 = vmatmul.f32.gmra.mxu0 %v3622
      %v4003 = vpop.f32.mrf.mxu0
      %v4004 = vadd.f32 %v304, %v4003
      %4005 = vdwg.mxu0
      %4006 = vmatpush.msra.mxu0 %v3864
      %4007 = vmatpush.msra.mxu0 %v3859
      %4008 = vmatpush.msra.mxu0 %v3854
      %4009 = vmatpush.msra.mxu0 %v3849
      %4010 = vmatpush.msra.mxu0 %v3844
      %4011 = vmatpush.msra.mxu0 %v3839
      %4012 = vmatpush.msra.mxu0 %v3834
      %4013 = vmatpush.msra.mxu0 %v3829
      %4014 = vmatpush.msra.mxu0 %v3824
      %4015 = vmatpush.msra.mxu0 %v3819
      %4016 = vmatpush.msra.mxu0 %v3814
      %4017 = vmatpush.msra.mxu0 %v3809
      %4018 = vmatpush.msra.mxu0 %v3804
      %4019 = vmatpush.msra.mxu0 %v3799
      %4020 = vmatpush.msra.mxu0 %v3794
      %4021 = vmatpush.msra.mxu0 %v3789
      %4022 = vmatmul.f32.gmra.mxu0 %v3626
      %v4023 = vpop.f32.mrf.mxu0
      %v4024 = vadd.f32 %v4004, %v4023
      %4025 = vdwg.mxu0
      %4026 = vmatpush.msra.mxu0 %v3785
      %4027 = vmatpush.msra.mxu0 %v3780
      %4028 = vmatpush.msra.mxu0 %v3775
      %4029 = vmatpush.msra.mxu0 %v3770
      %4030 = vmatpush.msra.mxu0 %v3765
      %4031 = vmatpush.msra.mxu0 %v3760
      %4032 = vmatpush.msra.mxu0 %v3755
      %4033 = vmatpush.msra.mxu0 %v3750
      %4034 = vmatpush.msra.mxu0 %v3745
      %4035 = vmatpush.msra.mxu0 %v3740
      %4036 = vmatpush.msra.mxu0 %v3735
      %4037 = vmatpush.msra.mxu0 %v3730
      %4038 = vmatpush.msra.mxu0 %v3725
      %4039 = vmatpush.msra.mxu0 %v3720
      %4040 = vmatpush.msra.mxu0 %v3715
      %4041 = vmatpush.msra.mxu0 %v3710
      %4042 = vmatmul.f32.gmra.mxu0 %v3622
      %v4043 = vpop.f32.mrf.mxu0
      %v4044 = vadd.f32 %v305, %v4043
      %4045 = vdwg.mxu0
      %4046 = vmatpush.msra.mxu0 %v3865
      %4047 = vmatpush.msra.mxu0 %v3860
      %4048 = vmatpush.msra.mxu0 %v3855
      %4049 = vmatpush.msra.mxu0 %v3850
      %4050 = vmatpush.msra.mxu0 %v3845
      %4051 = vmatpush.msra.mxu0 %v3840
      %4052 = vmatpush.msra.mxu0 %v3835
      %4053 = vmatpush.msra.mxu0 %v3830
      %4054 = vmatpush.msra.mxu0 %v3825
      %4055 = vmatpush.msra.mxu0 %v3820
      %4056 = vmatpush.msra.mxu0 %v3815
      %4057 = vmatpush.msra.mxu0 %v3810
      %4058 = vmatpush.msra.mxu0 %v3805
      %4059 = vmatpush.msra.mxu0 %v3800
      %4060 = vmatpush.msra.mxu0 %v3795
      %4061 = vmatpush.msra.mxu0 %v3790
      %4062 = vmatmul.f32.gmra.mxu0 %v3626
      %v4063 = vpop.f32.mrf.mxu0
      %v4064 = vadd.f32 %v4044, %v4063
      %4065 = vdwg.mxu0
      %s4066 = scalar_lea.vmem %s275, 56
      %v4067 = vld [vmem:[%s4066] sm:$0xff]
      %v4072 = vrot.slane %v3984, 6
      %v4073 = vrot.slane %v4024, 4
      %v4074 = vrot.slane %v4064, 2
      %v4075 = vsel %vm685, %v3944, %v4072
      %v4076 = vsel %vm687, %v4073, %v4074
      %v4077 = vsel %vm689, %v4075, %v4076
      %v4079 = vadd.f32 %v4067, %v4077
      %v4080 = vxor.u32 %v4079, 2147483648
      %v4081 = vmul.f32 %v4080, 1.442695
      %v4082 = vpow.pop %v4081
      %v4083 = vadd.f32 %v4082, 1.0
      %v4084 = vrcp.pop %v4083
      %v4085 = vmul.f32 %v4083, %v4084
      %v4086 = vsub.f32 1.0, %v4085
      %v4087 = vmul.f32 %v4084, %v4086
      %v4088 = vadd.f32 %v4084, %v4087
      %vm4089 = vweird.f32 %v4083
      %vm4090 = vweird.f32 %v4084
      %vm4091 = vmor %vm4089, %vm4090
      %v4092 = vsel %vm4091, %v4084, %v4088
      %v4093 = vand.u32 2147483647, %v4083
      %vm4094 = vcmp.eq.f32.partialorder %v4093, 8.507059e+37
      %v4095 = vand.u32 %v4083, 2147483648
      %v4096 = vor.u32 1.1754944e-38, %v4095
      %v4097 = vsel %vm4094, %v4096, %v4092
      %v4098 = vmul.f32 1.0, %v4097
      %v4100 = vrot.slane %v4098, 4
      %v4102 = vmul.f32 %v4100, %v3904
      %v4103 = vrot.slane %v4098, 2
      %v4105 = vmul.f32 %v4098, %v4103
      %v4106 = vadd.f32 %v4102, %v4105
      %v4107 = vtanh.pop %v4106
      %v4108 = vrot.slane %v4098, 6
      %v4110 = vmul.f32 %v4108, %v4107
      %v4111 = vld [vmem:[%s289] sm:$0xff]
      %v4112 = vld [vmem:[%s289 + $0x8] sm:$0xff]
      %v4113 = vld [vmem:[%s289 + $0x10] sm:$0xff]
      %v4114 = vld [vmem:[%s289 + $0x18] sm:$0xff]
      %v4115 = vld [vmem:[%s289 + $0x20] sm:$0xff]
      %v4116 = vld [vmem:[%s289 + $0x28] sm:$0xff]
      %v4117 = vld [vmem:[%s289 + $0x30] sm:$0xff]
      %v4118 = vld [vmem:[%s289 + $0x38] sm:$0xff]
      %v4119 = vld [vmem:[%s289 + $0x40] sm:$0xff]
      %v4120 = vld [vmem:[%s289 + $0x48] sm:$0xff]
      %v4121 = vld [vmem:[%s289 + $0x50] sm:$0xff]
      %v4122 = vld [vmem:[%s289 + $0x58] sm:$0xff]
      %v4123 = vld [vmem:[%s289 + $0x60] sm:$0xff]
      %v4124 = vld [vmem:[%s289 + $0x68] sm:$0xff]
      %v4125 = vld [vmem:[%s289 + $0x70] sm:$0xff]
      %v4126 = vld [vmem:[%s289 + $0x78] sm:$0xff]
      %v4127 = vld [vmem:[%s289 + $0x80] sm:$0xff]
      %v4128 = vld [vmem:[%s289 + $0x88] sm:$0xff]
      %v4129 = vld [vmem:[%s289 + $0x90] sm:$0xff]
      %v4130 = vld [vmem:[%s289 + $0x98] sm:$0xff]
      %v4131 = vld [vmem:[%s289 + $0xa0] sm:$0xff]
      %v4132 = vld [vmem:[%s289 + $0xa8] sm:$0xff]
      %v4133 = vld [vmem:[%s289 + $0xb0] sm:$0xff]
      %v4134 = vld [vmem:[%s289 + $0xb8] sm:$0xff]
      %v4135 = vld [vmem:[%s289 + $0xc0] sm:$0xff]
      %v4136 = vld [vmem:[%s289 + $0xc8] sm:$0xff]
      %v4137 = vld [vmem:[%s289 + $0xd0] sm:$0xff]
      %v4138 = vld [vmem:[%s289 + $0xd8] sm:$0xff]
      %v4139 = vld [vmem:[%s289 + $0xe0] sm:$0xff]
      %v4140 = vld [vmem:[%s289 + $0xe8] sm:$0xff]
      %v4141 = vld [vmem:[%s289 + $0xf0] sm:$0xff]
      %v4142 = vld [vmem:[%s289 + $0xf8] sm:$0xff]
      %4143 = vmatpush.msra.mxu0 %v4141
      %4144 = vmatpush.msra.mxu0 %v4139
      %4145 = vmatpush.msra.mxu0 %v4137
      %4146 = vmatpush.msra.mxu0 %v4135
      %4147 = vmatpush.msra.mxu0 %v4133
      %4148 = vmatpush.msra.mxu0 %v4131
      %4149 = vmatpush.msra.mxu0 %v4129
      %4150 = vmatpush.msra.mxu0 %v4127
      %4151 = vmatpush.msra.mxu0 %v4125
      %4152 = vmatpush.msra.mxu0 %v4123
      %4153 = vmatpush.msra.mxu0 %v4121
      %4154 = vmatpush.msra.mxu0 %v4119
      %4155 = vmatpush.msra.mxu0 %v4117
      %4156 = vmatpush.msra.mxu0 %v4115
      %4157 = vmatpush.msra.mxu0 %v4113
      %4158 = vmatpush.msra.mxu0 %v4111
      %4159 = vmatmul.f32.gmra.mxu0 %v4110
      %v4160 = vpop.f32.mrf.mxu0
      %v4161 = vadd.f32 %v313, %v4160
      %4162 = vdwg.mxu0
      %4163 = vmatpush.msra.mxu0 %v4142
      %4164 = vmatpush.msra.mxu0 %v4140
      %4165 = vmatpush.msra.mxu0 %v4138
      %4166 = vmatpush.msra.mxu0 %v4136
      %4167 = vmatpush.msra.mxu0 %v4134
      %4168 = vmatpush.msra.mxu0 %v4132
      %4169 = vmatpush.msra.mxu0 %v4130
      %4170 = vmatpush.msra.mxu0 %v4128
      %4171 = vmatpush.msra.mxu0 %v4126
      %4172 = vmatpush.msra.mxu0 %v4124
      %4173 = vmatpush.msra.mxu0 %v4122
      %4174 = vmatpush.msra.mxu0 %v4120
      %4175 = vmatpush.msra.mxu0 %v4118
      %4176 = vmatpush.msra.mxu0 %v4116
      %4177 = vmatpush.msra.mxu0 %v4114
      %4178 = vmatpush.msra.mxu0 %v4112
      %4179 = vmatmul.f32.gmra.mxu0 %v4110
      %v4180 = vpop.f32.mrf.mxu0
      %v4181 = vadd.f32 %v314, %v4180
      %4182 = vdwg.mxu0
      %v4185 = vrot.slane %v4181, 6
      %v4186 = vsel %vm685, %v4161, %v4185
      %s4188 = scalar_lea.vmem %s298, 28
      %4189 = vst [vmem:[%s4188] sm:$0xf] %v4186
      %v4190 = vld [vmem:[%s280] sm:$0xff]
      %v4191 = vld [vmem:[%s280 + $0x8] sm:$0xff]
      %v4192 = vld [vmem:[%s280 + $0x10] sm:$0xff]
      %v4193 = vld [vmem:[%s280 + $0x18] sm:$0xff]
      %v4194 = vld [vmem:[%s280 + $0x20] sm:$0xff]
      %v4195 = vld [vmem:[%s280 + $0x28] sm:$0xff]
      %v4196 = vld [vmem:[%s280 + $0x30] sm:$0xff]
      %v4197 = vld [vmem:[%s280 + $0x38] sm:$0xff]
      %v4198 = vld [vmem:[%s280 + $0x40] sm:$0xff]
      %v4199 = vld [vmem:[%s280 + $0x48] sm:$0xff]
      %v4200 = vld [vmem:[%s280 + $0x50] sm:$0xff]
      %v4201 = vld [vmem:[%s280 + $0x58] sm:$0xff]
      %v4202 = vld [vmem:[%s280 + $0x60] sm:$0xff]
      %v4203 = vld [vmem:[%s280 + $0x68] sm:$0xff]
      %v4204 = vld [vmem:[%s280 + $0x70] sm:$0xff]
      %v4205 = vld [vmem:[%s280 + $0x78] sm:$0xff]
      %v4206 = vld [vmem:[%s280 + $0x80] sm:$0xff]
      %v4207 = vld [vmem:[%s280 + $0x88] sm:$0xff]
      %v4208 = vld [vmem:[%s280 + $0x90] sm:$0xff]
      %v4209 = vld [vmem:[%s280 + $0x98] sm:$0xff]
      %v4210 = vld [vmem:[%s280 + $0xa0] sm:$0xff]
      %v4211 = vld [vmem:[%s280 + $0xa8] sm:$0xff]
      %v4212 = vld [vmem:[%s280 + $0xb0] sm:$0xff]
      %v4213 = vld [vmem:[%s280 + $0xb8] sm:$0xff]
      %v4214 = vld [vmem:[%s280 + $0xc0] sm:$0xff]
      %v4215 = vld [vmem:[%s280 + $0xc8] sm:$0xff]
      %v4216 = vld [vmem:[%s280 + $0xd0] sm:$0xff]
      %v4217 = vld [vmem:[%s280 + $0xd8] sm:$0xff]
      %v4218 = vld [vmem:[%s280 + $0xe0] sm:$0xff]
      %v4219 = vld [vmem:[%s280 + $0xe8] sm:$0xff]
      %v4220 = vld [vmem:[%s280 + $0xf0] sm:$0xff]
      %v4221 = vld [vmem:[%s280 + $0xf8] sm:$0xff]
      %v4222 = vld [vmem:[%s280 + $0x100] sm:$0xff]
      %v4223 = vld [vmem:[%s280 + $0x108] sm:$0xff]
      %v4224 = vld [vmem:[%s280 + $0x110] sm:$0xff]
      %v4225 = vld [vmem:[%s280 + $0x118] sm:$0xff]
      %v4226 = vld [vmem:[%s280 + $0x120] sm:$0xff]
      %v4227 = vld [vmem:[%s280 + $0x128] sm:$0xff]
      %v4228 = vld [vmem:[%s280 + $0x130] sm:$0xff]
      %v4229 = vld [vmem:[%s280 + $0x138] sm:$0xff]
      %v4230 = vld [vmem:[%s280 + $0x140] sm:$0xff]
      %v4231 = vld [vmem:[%s280 + $0x148] sm:$0xff]
      %v4232 = vld [vmem:[%s280 + $0x150] sm:$0xff]
      %v4233 = vld [vmem:[%s280 + $0x158] sm:$0xff]
      %v4234 = vld [vmem:[%s280 + $0x160] sm:$0xff]
      %v4235 = vld [vmem:[%s280 + $0x168] sm:$0xff]
      %v4236 = vld [vmem:[%s280 + $0x170] sm:$0xff]
      %v4237 = vld [vmem:[%s280 + $0x178] sm:$0xff]
      %v4238 = vld [vmem:[%s280 + $0x180] sm:$0xff]
      %v4239 = vld [vmem:[%s280 + $0x188] sm:$0xff]
      %v4240 = vld [vmem:[%s280 + $0x190] sm:$0xff]
      %v4241 = vld [vmem:[%s280 + $0x198] sm:$0xff]
      %v4242 = vld [vmem:[%s280 + $0x1a0] sm:$0xff]
      %v4243 = vld [vmem:[%s280 + $0x1a8] sm:$0xff]
      %v4244 = vld [vmem:[%s280 + $0x1b0] sm:$0xff]
      %v4245 = vld [vmem:[%s280 + $0x1b8] sm:$0xff]
      %v4246 = vld [vmem:[%s280 + $0x1c0] sm:$0xff]
      %v4247 = vld [vmem:[%s280 + $0x1c8] sm:$0xff]
      %v4248 = vld [vmem:[%s280 + $0x1d0] sm:$0xff]
      %v4249 = vld [vmem:[%s280 + $0x1d8] sm:$0xff]
      %v4250 = vld [vmem:[%s280 + $0x1e0] sm:$0xff]
      %v4251 = vld [vmem:[%s280 + $0x1e8] sm:$0xff]
      %v4252 = vld [vmem:[%s280 + $0x1f0] sm:$0xff]
      %v4253 = vld [vmem:[%s280 + $0x1f8] sm:$0xff]
      %v4254 = vld [vmem:[%s280 + $0x200] sm:$0xff]
      %v4255 = vld [vmem:[%s280 + $0x208] sm:$0xff]
      %v4256 = vld [vmem:[%s280 + $0x210] sm:$0xff]
      %v4257 = vld [vmem:[%s280 + $0x218] sm:$0xff]
      %v4258 = vld [vmem:[%s280 + $0x220] sm:$0xff]
      %v4259 = vld [vmem:[%s280 + $0x228] sm:$0xff]
      %v4260 = vld [vmem:[%s280 + $0x230] sm:$0xff]
      %v4261 = vld [vmem:[%s280 + $0x238] sm:$0xff]
      %v4262 = vld [vmem:[%s280 + $0x240] sm:$0xff]
      %v4263 = vld [vmem:[%s280 + $0x248] sm:$0xff]
      %v4264 = vld [vmem:[%s280 + $0x250] sm:$0xff]
      %v4265 = vld [vmem:[%s280 + $0x258] sm:$0xff]
      %v4266 = vld [vmem:[%s280 + $0x260] sm:$0xff]
      %v4267 = vld [vmem:[%s280 + $0x268] sm:$0xff]
      %v4268 = vld [vmem:[%s280 + $0x270] sm:$0xff]
      %v4269 = vld [vmem:[%s280 + $0x278] sm:$0xff]
      %v4270 = vld [vmem:[%s280 + $0x280] sm:$0xff]
      %v4271 = vld [vmem:[%s280 + $0x288] sm:$0xff]
      %v4272 = vld [vmem:[%s280 + $0x290] sm:$0xff]
      %v4273 = vld [vmem:[%s280 + $0x298] sm:$0xff]
      %v4274 = vld [vmem:[%s280 + $0x2a0] sm:$0xff]
      %v4275 = vld [vmem:[%s280 + $0x2a8] sm:$0xff]
      %v4276 = vld [vmem:[%s280 + $0x2b0] sm:$0xff]
      %v4277 = vld [vmem:[%s280 + $0x2b8] sm:$0xff]
      %v4278 = vld [vmem:[%s280 + $0x2c0] sm:$0xff]
      %v4279 = vld [vmem:[%s280 + $0x2c8] sm:$0xff]
      %v4280 = vld [vmem:[%s280 + $0x2d0] sm:$0xff]
      %v4281 = vld [vmem:[%s280 + $0x2d8] sm:$0xff]
      %v4282 = vld [vmem:[%s280 + $0x2e0] sm:$0xff]
      %v4283 = vld [vmem:[%s280 + $0x2e8] sm:$0xff]
      %v4284 = vld [vmem:[%s280 + $0x2f0] sm:$0xff]
      %v4285 = vld [vmem:[%s280 + $0x2f8] sm:$0xff]
      %v4286 = vld [vmem:[%s280 + $0x300] sm:$0xff]
      %v4287 = vld [vmem:[%s280 + $0x308] sm:$0xff]
      %v4288 = vld [vmem:[%s280 + $0x310] sm:$0xff]
      %v4289 = vld [vmem:[%s280 + $0x318] sm:$0xff]
      %v4290 = vld [vmem:[%s280 + $0x320] sm:$0xff]
      %v4291 = vld [vmem:[%s280 + $0x328] sm:$0xff]
      %v4292 = vld [vmem:[%s280 + $0x330] sm:$0xff]
      %v4293 = vld [vmem:[%s280 + $0x338] sm:$0xff]
      %v4294 = vld [vmem:[%s280 + $0x340] sm:$0xff]
      %v4295 = vld [vmem:[%s280 + $0x348] sm:$0xff]
      %v4296 = vld [vmem:[%s280 + $0x350] sm:$0xff]
      %v4297 = vld [vmem:[%s280 + $0x358] sm:$0xff]
      %v4298 = vld [vmem:[%s280 + $0x360] sm:$0xff]
      %v4299 = vld [vmem:[%s280 + $0x368] sm:$0xff]
      %v4300 = vld [vmem:[%s280 + $0x370] sm:$0xff]
      %v4301 = vld [vmem:[%s280 + $0x378] sm:$0xff]
      %v4302 = vld [vmem:[%s280 + $0x380] sm:$0xff]
      %v4303 = vld [vmem:[%s280 + $0x388] sm:$0xff]
      %v4304 = vld [vmem:[%s280 + $0x390] sm:$0xff]
      %v4305 = vld [vmem:[%s280 + $0x398] sm:$0xff]
      %v4306 = vld [vmem:[%s280 + $0x3a0] sm:$0xff]
      %v4307 = vld [vmem:[%s280 + $0x3a8] sm:$0xff]
      %v4308 = vld [vmem:[%s280 + $0x3b0] sm:$0xff]
      %v4309 = vld [vmem:[%s280 + $0x3b8] sm:$0xff]
      %v4310 = vld [vmem:[%s280 + $0x3c0] sm:$0xff]
      %v4311 = vld [vmem:[%s280 + $0x3c8] sm:$0xff]
      %v4312 = vld [vmem:[%s280 + $0x3d0] sm:$0xff]
      %v4313 = vld [vmem:[%s280 + $0x3d8] sm:$0xff]
      %v4314 = vld [vmem:[%s280 + $0x3e0] sm:$0xff]
      %v4315 = vld [vmem:[%s280 + $0x3e8] sm:$0xff]
      %v4316 = vld [vmem:[%s280 + $0x3f0] sm:$0xff]
      %v4317 = vld [vmem:[%s280 + $0x3f8] sm:$0xff]
      %v4318 = vld [vmem:[%s280 + $0x400] sm:$0xff]
      %v4319 = vld [vmem:[%s280 + $0x408] sm:$0xff]
      %v4320 = vld [vmem:[%s280 + $0x410] sm:$0xff]
      %v4321 = vld [vmem:[%s280 + $0x418] sm:$0xff]
      %v4322 = vld [vmem:[%s280 + $0x420] sm:$0xff]
      %v4323 = vld [vmem:[%s280 + $0x428] sm:$0xff]
      %v4324 = vld [vmem:[%s280 + $0x430] sm:$0xff]
      %v4325 = vld [vmem:[%s280 + $0x438] sm:$0xff]
      %v4326 = vld [vmem:[%s280 + $0x440] sm:$0xff]
      %v4327 = vld [vmem:[%s280 + $0x448] sm:$0xff]
      %v4328 = vld [vmem:[%s280 + $0x450] sm:$0xff]
      %v4329 = vld [vmem:[%s280 + $0x458] sm:$0xff]
      %v4330 = vld [vmem:[%s280 + $0x460] sm:$0xff]
      %v4331 = vld [vmem:[%s280 + $0x468] sm:$0xff]
      %v4332 = vld [vmem:[%s280 + $0x470] sm:$0xff]
      %v4333 = vld [vmem:[%s280 + $0x478] sm:$0xff]
      %v4334 = vld [vmem:[%s280 + $0x480] sm:$0xff]
      %v4335 = vld [vmem:[%s280 + $0x488] sm:$0xff]
      %v4336 = vld [vmem:[%s280 + $0x490] sm:$0xff]
      %v4337 = vld [vmem:[%s280 + $0x498] sm:$0xff]
      %v4338 = vld [vmem:[%s280 + $0x4a0] sm:$0xff]
      %v4339 = vld [vmem:[%s280 + $0x4a8] sm:$0xff]
      %v4340 = vld [vmem:[%s280 + $0x4b0] sm:$0xff]
      %v4341 = vld [vmem:[%s280 + $0x4b8] sm:$0xff]
      %v4342 = vld [vmem:[%s280 + $0x4c0] sm:$0xff]
      %v4343 = vld [vmem:[%s280 + $0x4c8] sm:$0xff]
      %v4344 = vld [vmem:[%s280 + $0x4d0] sm:$0xff]
      %v4345 = vld [vmem:[%s280 + $0x4d8] sm:$0xff]
      %v4346 = vld [vmem:[%s280 + $0x4e0] sm:$0xff]
      %v4347 = vld [vmem:[%s280 + $0x4e8] sm:$0xff]
      %v4348 = vld [vmem:[%s280 + $0x4f0] sm:$0xff]
      %v4349 = vld [vmem:[%s280 + $0x4f8] sm:$0xff]
      %4350 = vmatpush.msra.mxu0 %v4265
      %4351 = vmatpush.msra.mxu0 %v4260
      %4352 = vmatpush.msra.mxu0 %v4255
      %4353 = vmatpush.msra.mxu0 %v4250
      %4354 = vmatpush.msra.mxu0 %v4245
      %4355 = vmatpush.msra.mxu0 %v4240
      %4356 = vmatpush.msra.mxu0 %v4235
      %4357 = vmatpush.msra.mxu0 %v4230
      %4358 = vmatpush.msra.mxu0 %v4225
      %4359 = vmatpush.msra.mxu0 %v4220
      %4360 = vmatpush.msra.mxu0 %v4215
      %4361 = vmatpush.msra.mxu0 %v4210
      %4362 = vmatpush.msra.mxu0 %v4205
      %4363 = vmatpush.msra.mxu0 %v4200
      %4364 = vmatpush.msra.mxu0 %v4195
      %4365 = vmatpush.msra.mxu0 %v4190
      %4366 = vmatmul.f32.gmra.mxu0 %v4106
      %v4367 = vpop.f32.mrf.mxu0
      %v4368 = vadd.f32 %v301, %v4367
      %4369 = vdwg.mxu0
      %4370 = vmatpush.msra.mxu0 %v4345
      %4371 = vmatpush.msra.mxu0 %v4340
      %4372 = vmatpush.msra.mxu0 %v4335
      %4373 = vmatpush.msra.mxu0 %v4330
      %4374 = vmatpush.msra.mxu0 %v4325
      %4375 = vmatpush.msra.mxu0 %v4320
      %4376 = vmatpush.msra.mxu0 %v4315
      %4377 = vmatpush.msra.mxu0 %v4310
      %4378 = vmatpush.msra.mxu0 %v4305
      %4379 = vmatpush.msra.mxu0 %v4300
      %4380 = vmatpush.msra.mxu0 %v4295
      %4381 = vmatpush.msra.mxu0 %v4290
      %4382 = vmatpush.msra.mxu0 %v4285
      %4383 = vmatpush.msra.mxu0 %v4280
      %4384 = vmatpush.msra.mxu0 %v4275
      %4385 = vmatpush.msra.mxu0 %v4270
      %4386 = vmatmul.f32.gmra.mxu0 %v4110
      %v4387 = vpop.f32.mrf.mxu0
      %v4388 = vadd.f32 %v4368, %v4387
      %4389 = vdwg.mxu0
      %4390 = vmatpush.msra.mxu0 %v4266
      %4391 = vmatpush.msra.mxu0 %v4261
      %4392 = vmatpush.msra.mxu0 %v4256
      %4393 = vmatpush.msra.mxu0 %v4251
      %4394 = vmatpush.msra.mxu0 %v4246
      %4395 = vmatpush.msra.mxu0 %v4241
      %4396 = vmatpush.msra.mxu0 %v4236
      %4397 = vmatpush.msra.mxu0 %v4231
      %4398 = vmatpush.msra.mxu0 %v4226
      %4399 = vmatpush.msra.mxu0 %v4221
      %4400 = vmatpush.msra.mxu0 %v4216
      %4401 = vmatpush.msra.mxu0 %v4211
      %4402 = vmatpush.msra.mxu0 %v4206
      %4403 = vmatpush.msra.mxu0 %v4201
      %4404 = vmatpush.msra.mxu0 %v4196
      %4405 = vmatpush.msra.mxu0 %v4191
      %4406 = vmatmul.f32.gmra.mxu0 %v4106
      %v4407 = vpop.f32.mrf.mxu0
      %v4408 = vadd.f32 %v302, %v4407
      %4409 = vdwg.mxu0
      %4410 = vmatpush.msra.mxu0 %v4346
      %4411 = vmatpush.msra.mxu0 %v4341
      %4412 = vmatpush.msra.mxu0 %v4336
      %4413 = vmatpush.msra.mxu0 %v4331
      %4414 = vmatpush.msra.mxu0 %v4326
      %4415 = vmatpush.msra.mxu0 %v4321
      %4416 = vmatpush.msra.mxu0 %v4316
      %4417 = vmatpush.msra.mxu0 %v4311
      %4418 = vmatpush.msra.mxu0 %v4306
      %4419 = vmatpush.msra.mxu0 %v4301
      %4420 = vmatpush.msra.mxu0 %v4296
      %4421 = vmatpush.msra.mxu0 %v4291
      %4422 = vmatpush.msra.mxu0 %v4286
      %4423 = vmatpush.msra.mxu0 %v4281
      %4424 = vmatpush.msra.mxu0 %v4276
      %4425 = vmatpush.msra.mxu0 %v4271
      %4426 = vmatmul.f32.gmra.mxu0 %v4110
      %v4427 = vpop.f32.mrf.mxu0
      %v4428 = vadd.f32 %v4408, %v4427
      %4429 = vdwg.mxu0
      %4430 = vmatpush.msra.mxu0 %v4267
      %4431 = vmatpush.msra.mxu0 %v4262
      %4432 = vmatpush.msra.mxu0 %v4257
      %4433 = vmatpush.msra.mxu0 %v4252
      %4434 = vmatpush.msra.mxu0 %v4247
      %4435 = vmatpush.msra.mxu0 %v4242
      %4436 = vmatpush.msra.mxu0 %v4237
      %4437 = vmatpush.msra.mxu0 %v4232
      %4438 = vmatpush.msra.mxu0 %v4227
      %4439 = vmatpush.msra.mxu0 %v4222
      %4440 = vmatpush.msra.mxu0 %v4217
      %4441 = vmatpush.msra.mxu0 %v4212
      %4442 = vmatpush.msra.mxu0 %v4207
      %4443 = vmatpush.msra.mxu0 %v4202
      %4444 = vmatpush.msra.mxu0 %v4197
      %4445 = vmatpush.msra.mxu0 %v4192
      %4446 = vmatmul.f32.gmra.mxu0 %v4106
      %v4447 = vpop.f32.mrf.mxu0
      %v4448 = vadd.f32 %v303, %v4447
      %4449 = vdwg.mxu0
      %4450 = vmatpush.msra.mxu0 %v4347
      %4451 = vmatpush.msra.mxu0 %v4342
      %4452 = vmatpush.msra.mxu0 %v4337
      %4453 = vmatpush.msra.mxu0 %v4332
      %4454 = vmatpush.msra.mxu0 %v4327
      %4455 = vmatpush.msra.mxu0 %v4322
      %4456 = vmatpush.msra.mxu0 %v4317
      %4457 = vmatpush.msra.mxu0 %v4312
      %4458 = vmatpush.msra.mxu0 %v4307
      %4459 = vmatpush.msra.mxu0 %v4302
      %4460 = vmatpush.msra.mxu0 %v4297
      %4461 = vmatpush.msra.mxu0 %v4292
      %4462 = vmatpush.msra.mxu0 %v4287
      %4463 = vmatpush.msra.mxu0 %v4282
      %4464 = vmatpush.msra.mxu0 %v4277
      %4465 = vmatpush.msra.mxu0 %v4272
      %4466 = vmatmul.f32.gmra.mxu0 %v4110
      %v4467 = vpop.f32.mrf.mxu0
      %v4468 = vadd.f32 %v4448, %v4467
      %4469 = vdwg.mxu0
      %4470 = vmatpush.msra.mxu0 %v4268
      %4471 = vmatpush.msra.mxu0 %v4263
      %4472 = vmatpush.msra.mxu0 %v4258
      %4473 = vmatpush.msra.mxu0 %v4253
      %4474 = vmatpush.msra.mxu0 %v4248
      %4475 = vmatpush.msra.mxu0 %v4243
      %4476 = vmatpush.msra.mxu0 %v4238
      %4477 = vmatpush.msra.mxu0 %v4233
      %4478 = vmatpush.msra.mxu0 %v4228
      %4479 = vmatpush.msra.mxu0 %v4223
      %4480 = vmatpush.msra.mxu0 %v4218
      %4481 = vmatpush.msra.mxu0 %v4213
      %4482 = vmatpush.msra.mxu0 %v4208
      %4483 = vmatpush.msra.mxu0 %v4203
      %4484 = vmatpush.msra.mxu0 %v4198
      %4485 = vmatpush.msra.mxu0 %v4193
      %4486 = vmatmul.f32.gmra.mxu0 %v4106
      %v4487 = vpop.f32.mrf.mxu0
      %v4488 = vadd.f32 %v304, %v4487
      %4489 = vdwg.mxu0
      %4490 = vmatpush.msra.mxu0 %v4348
      %4491 = vmatpush.msra.mxu0 %v4343
      %4492 = vmatpush.msra.mxu0 %v4338
      %4493 = vmatpush.msra.mxu0 %v4333
      %4494 = vmatpush.msra.mxu0 %v4328
      %4495 = vmatpush.msra.mxu0 %v4323
      %4496 = vmatpush.msra.mxu0 %v4318
      %4497 = vmatpush.msra.mxu0 %v4313
      %4498 = vmatpush.msra.mxu0 %v4308
      %4499 = vmatpush.msra.mxu0 %v4303
      %4500 = vmatpush.msra.mxu0 %v4298
      %4501 = vmatpush.msra.mxu0 %v4293
      %4502 = vmatpush.msra.mxu0 %v4288
      %4503 = vmatpush.msra.mxu0 %v4283
      %4504 = vmatpush.msra.mxu0 %v4278
      %4505 = vmatpush.msra.mxu0 %v4273
      %4506 = vmatmul.f32.gmra.mxu0 %v4110
      %v4507 = vpop.f32.mrf.mxu0
      %v4508 = vadd.f32 %v4488, %v4507
      %4509 = vdwg.mxu0
      %4510 = vmatpush.msra.mxu0 %v4269
      %4511 = vmatpush.msra.mxu0 %v4264
      %4512 = vmatpush.msra.mxu0 %v4259
      %4513 = vmatpush.msra.mxu0 %v4254
      %4514 = vmatpush.msra.mxu0 %v4249
      %4515 = vmatpush.msra.mxu0 %v4244
      %4516 = vmatpush.msra.mxu0 %v4239
      %4517 = vmatpush.msra.mxu0 %v4234
      %4518 = vmatpush.msra.mxu0 %v4229
      %4519 = vmatpush.msra.mxu0 %v4224
      %4520 = vmatpush.msra.mxu0 %v4219
      %4521 = vmatpush.msra.mxu0 %v4214
      %4522 = vmatpush.msra.mxu0 %v4209
      %4523 = vmatpush.msra.mxu0 %v4204
      %4524 = vmatpush.msra.mxu0 %v4199
      %4525 = vmatpush.msra.mxu0 %v4194
      %4526 = vmatmul.f32.gmra.mxu0 %v4106
      %v4527 = vpop.f32.mrf.mxu0
      %v4528 = vadd.f32 %v305, %v4527
      %4529 = vdwg.mxu0
      %4530 = vmatpush.msra.mxu0 %v4349
      %4531 = vmatpush.msra.mxu0 %v4344
      %4532 = vmatpush.msra.mxu0 %v4339
      %4533 = vmatpush.msra.mxu0 %v4334
      %4534 = vmatpush.msra.mxu0 %v4329
      %4535 = vmatpush.msra.mxu0 %v4324
      %4536 = vmatpush.msra.mxu0 %v4319
      %4537 = vmatpush.msra.mxu0 %v4314
      %4538 = vmatpush.msra.mxu0 %v4309
      %4539 = vmatpush.msra.mxu0 %v4304
      %4540 = vmatpush.msra.mxu0 %v4299
      %4541 = vmatpush.msra.mxu0 %v4294
      %4542 = vmatpush.msra.mxu0 %v4289
      %4543 = vmatpush.msra.mxu0 %v4284
      %4544 = vmatpush.msra.mxu0 %v4279
      %4545 = vmatpush.msra.mxu0 %v4274
      %4546 = vmatmul.f32.gmra.mxu0 %v4110
      %v4547 = vpop.f32.mrf.mxu0
      %v4548 = vadd.f32 %v4528, %v4547
      %4549 = vdwg.mxu0
      %s4550 = scalar_lea.vmem %s275, 64
      %v4551 = vld [vmem:[%s4550] sm:$0xff]
      %v4556 = vrot.slane %v4468, 6
      %v4557 = vrot.slane %v4508, 4
      %v4558 = vrot.slane %v4548, 2
      %v4559 = vsel %vm685, %v4428, %v4556
      %v4560 = vsel %vm687, %v4557, %v4558
      %v4561 = vsel %vm689, %v4559, %v4560
      %v4563 = vadd.f32 %v4551, %v4561
      %v4564 = vxor.u32 %v4563, 2147483648
      %v4565 = vmul.f32 %v4564, 1.442695
      %v4566 = vpow.pop %v4565
      %v4567 = vadd.f32 %v4566, 1.0
      %v4568 = vrcp.pop %v4567
      %v4569 = vmul.f32 %v4567, %v4568
      %v4570 = vsub.f32 1.0, %v4569
      %v4571 = vmul.f32 %v4568, %v4570
      %v4572 = vadd.f32 %v4568, %v4571
      %vm4573 = vweird.f32 %v4567
      %vm4574 = vweird.f32 %v4568
      %vm4575 = vmor %vm4573, %vm4574
      %v4576 = vsel %vm4575, %v4568, %v4572
      %v4577 = vand.u32 2147483647, %v4567
      %vm4578 = vcmp.eq.f32.partialorder %v4577, 8.507059e+37
      %v4579 = vand.u32 %v4567, 2147483648
      %v4580 = vor.u32 1.1754944e-38, %v4579
      %v4581 = vsel %vm4578, %v4580, %v4576
      %v4582 = vmul.f32 1.0, %v4581
      %v4584 = vrot.slane %v4582, 4
      %v4586 = vmul.f32 %v4584, %v4388
      %v4587 = vrot.slane %v4582, 2
      %v4589 = vmul.f32 %v4582, %v4587
      %v4590 = vadd.f32 %v4586, %v4589
      %v4591 = vtanh.pop %v4590
      %v4592 = vrot.slane %v4582, 6
      %v4594 = vmul.f32 %v4592, %v4591
      %v4595 = vld [vmem:[%s289] sm:$0xff]
      %v4596 = vld [vmem:[%s289 + $0x8] sm:$0xff]
      %v4597 = vld [vmem:[%s289 + $0x10] sm:$0xff]
      %v4598 = vld [vmem:[%s289 + $0x18] sm:$0xff]
      %v4599 = vld [vmem:[%s289 + $0x20] sm:$0xff]
      %v4600 = vld [vmem:[%s289 + $0x28] sm:$0xff]
      %v4601 = vld [vmem:[%s289 + $0x30] sm:$0xff]
      %v4602 = vld [vmem:[%s289 + $0x38] sm:$0xff]
      %v4603 = vld [vmem:[%s289 + $0x40] sm:$0xff]
      %v4604 = vld [vmem:[%s289 + $0x48] sm:$0xff]
      %v4605 = vld [vmem:[%s289 + $0x50] sm:$0xff]
      %v4606 = vld [vmem:[%s289 + $0x58] sm:$0xff]
      %v4607 = vld [vmem:[%s289 + $0x60] sm:$0xff]
      %v4608 = vld [vmem:[%s289 + $0x68] sm:$0xff]
      %v4609 = vld [vmem:[%s289 + $0x70] sm:$0xff]
      %v4610 = vld [vmem:[%s289 + $0x78] sm:$0xff]
      %v4611 = vld [vmem:[%s289 + $0x80] sm:$0xff]
      %v4612 = vld [vmem:[%s289 + $0x88] sm:$0xff]
      %v4613 = vld [vmem:[%s289 + $0x90] sm:$0xff]
      %v4614 = vld [vmem:[%s289 + $0x98] sm:$0xff]
      %v4615 = vld [vmem:[%s289 + $0xa0] sm:$0xff]
      %v4616 = vld [vmem:[%s289 + $0xa8] sm:$0xff]
      %v4617 = vld [vmem:[%s289 + $0xb0] sm:$0xff]
      %v4618 = vld [vmem:[%s289 + $0xb8] sm:$0xff]
      %v4619 = vld [vmem:[%s289 + $0xc0] sm:$0xff]
      %v4620 = vld [vmem:[%s289 + $0xc8] sm:$0xff]
      %v4621 = vld [vmem:[%s289 + $0xd0] sm:$0xff]
      %v4622 = vld [vmem:[%s289 + $0xd8] sm:$0xff]
      %v4623 = vld [vmem:[%s289 + $0xe0] sm:$0xff]
      %v4624 = vld [vmem:[%s289 + $0xe8] sm:$0xff]
      %v4625 = vld [vmem:[%s289 + $0xf0] sm:$0xff]
      %v4626 = vld [vmem:[%s289 + $0xf8] sm:$0xff]
      %4627 = vmatpush.msra.mxu0 %v4625
      %4628 = vmatpush.msra.mxu0 %v4623
      %4629 = vmatpush.msra.mxu0 %v4621
      %4630 = vmatpush.msra.mxu0 %v4619
      %4631 = vmatpush.msra.mxu0 %v4617
      %4632 = vmatpush.msra.mxu0 %v4615
      %4633 = vmatpush.msra.mxu0 %v4613
      %4634 = vmatpush.msra.mxu0 %v4611
      %4635 = vmatpush.msra.mxu0 %v4609
      %4636 = vmatpush.msra.mxu0 %v4607
      %4637 = vmatpush.msra.mxu0 %v4605
      %4638 = vmatpush.msra.mxu0 %v4603
      %4639 = vmatpush.msra.mxu0 %v4601
      %4640 = vmatpush.msra.mxu0 %v4599
      %4641 = vmatpush.msra.mxu0 %v4597
      %4642 = vmatpush.msra.mxu0 %v4595
      %4643 = vmatmul.f32.gmra.mxu0 %v4594
      %v4644 = vpop.f32.mrf.mxu0
      %v4645 = vadd.f32 %v313, %v4644
      %4646 = vdwg.mxu0
      %4647 = vmatpush.msra.mxu0 %v4626
      %4648 = vmatpush.msra.mxu0 %v4624
      %4649 = vmatpush.msra.mxu0 %v4622
      %4650 = vmatpush.msra.mxu0 %v4620
      %4651 = vmatpush.msra.mxu0 %v4618
      %4652 = vmatpush.msra.mxu0 %v4616
      %4653 = vmatpush.msra.mxu0 %v4614
      %4654 = vmatpush.msra.mxu0 %v4612
      %4655 = vmatpush.msra.mxu0 %v4610
      %4656 = vmatpush.msra.mxu0 %v4608
      %4657 = vmatpush.msra.mxu0 %v4606
      %4658 = vmatpush.msra.mxu0 %v4604
      %4659 = vmatpush.msra.mxu0 %v4602
      %4660 = vmatpush.msra.mxu0 %v4600
      %4661 = vmatpush.msra.mxu0 %v4598
      %4662 = vmatpush.msra.mxu0 %v4596
      %4663 = vmatmul.f32.gmra.mxu0 %v4594
      %v4664 = vpop.f32.mrf.mxu0
      %v4665 = vadd.f32 %v314, %v4664
      %4666 = vdwg.mxu0
      %v4669 = vrot.slane %v4665, 6
      %v4670 = vsel %vm685, %v4645, %v4669
      %s4672 = scalar_lea.vmem %s298, 32
      %4673 = vst [vmem:[%s4672] sm:$0xf] %v4670
      %v4674 = vld [vmem:[%s280] sm:$0xff]
      %v4675 = vld [vmem:[%s280 + $0x8] sm:$0xff]
      %v4676 = vld [vmem:[%s280 + $0x10] sm:$0xff]
      %v4677 = vld [vmem:[%s280 + $0x18] sm:$0xff]
      %v4678 = vld [vmem:[%s280 + $0x20] sm:$0xff]
      %v4679 = vld [vmem:[%s280 + $0x28] sm:$0xff]
      %v4680 = vld [vmem:[%s280 + $0x30] sm:$0xff]
      %v4681 = vld [vmem:[%s280 + $0x38] sm:$0xff]
      %v4682 = vld [vmem:[%s280 + $0x40] sm:$0xff]
      %v4683 = vld [vmem:[%s280 + $0x48] sm:$0xff]
      %v4684 = vld [vmem:[%s280 + $0x50] sm:$0xff]
      %v4685 = vld [vmem:[%s280 + $0x58] sm:$0xff]
      %v4686 = vld [vmem:[%s280 + $0x60] sm:$0xff]
      %v4687 = vld [vmem:[%s280 + $0x68] sm:$0xff]
      %v4688 = vld [vmem:[%s280 + $0x70] sm:$0xff]
      %v4689 = vld [vmem:[%s280 + $0x78] sm:$0xff]
      %v4690 = vld [vmem:[%s280 + $0x80] sm:$0xff]
      %v4691 = vld [vmem:[%s280 + $0x88] sm:$0xff]
      %v4692 = vld [vmem:[%s280 + $0x90] sm:$0xff]
      %v4693 = vld [vmem:[%s280 + $0x98] sm:$0xff]
      %v4694 = vld [vmem:[%s280 + $0xa0] sm:$0xff]
      %v4695 = vld [vmem:[%s280 + $0xa8] sm:$0xff]
      %v4696 = vld [vmem:[%s280 + $0xb0] sm:$0xff]
      %v4697 = vld [vmem:[%s280 + $0xb8] sm:$0xff]
      %v4698 = vld [vmem:[%s280 + $0xc0] sm:$0xff]
      %v4699 = vld [vmem:[%s280 + $0xc8] sm:$0xff]
      %v4700 = vld [vmem:[%s280 + $0xd0] sm:$0xff]
      %v4701 = vld [vmem:[%s280 + $0xd8] sm:$0xff]
      %v4702 = vld [vmem:[%s280 + $0xe0] sm:$0xff]
      %v4703 = vld [vmem:[%s280 + $0xe8] sm:$0xff]
      %v4704 = vld [vmem:[%s280 + $0xf0] sm:$0xff]
      %v4705 = vld [vmem:[%s280 + $0xf8] sm:$0xff]
      %v4706 = vld [vmem:[%s280 + $0x100] sm:$0xff]
      %v4707 = vld [vmem:[%s280 + $0x108] sm:$0xff]
      %v4708 = vld [vmem:[%s280 + $0x110] sm:$0xff]
      %v4709 = vld [vmem:[%s280 + $0x118] sm:$0xff]
      %v4710 = vld [vmem:[%s280 + $0x120] sm:$0xff]
      %v4711 = vld [vmem:[%s280 + $0x128] sm:$0xff]
      %v4712 = vld [vmem:[%s280 + $0x130] sm:$0xff]
      %v4713 = vld [vmem:[%s280 + $0x138] sm:$0xff]
      %v4714 = vld [vmem:[%s280 + $0x140] sm:$0xff]
      %v4715 = vld [vmem:[%s280 + $0x148] sm:$0xff]
      %v4716 = vld [vmem:[%s280 + $0x150] sm:$0xff]
      %v4717 = vld [vmem:[%s280 + $0x158] sm:$0xff]
      %v4718 = vld [vmem:[%s280 + $0x160] sm:$0xff]
      %v4719 = vld [vmem:[%s280 + $0x168] sm:$0xff]
      %v4720 = vld [vmem:[%s280 + $0x170] sm:$0xff]
      %v4721 = vld [vmem:[%s280 + $0x178] sm:$0xff]
      %v4722 = vld [vmem:[%s280 + $0x180] sm:$0xff]
      %v4723 = vld [vmem:[%s280 + $0x188] sm:$0xff]
      %v4724 = vld [vmem:[%s280 + $0x190] sm:$0xff]
      %v4725 = vld [vmem:[%s280 + $0x198] sm:$0xff]
      %v4726 = vld [vmem:[%s280 + $0x1a0] sm:$0xff]
      %v4727 = vld [vmem:[%s280 + $0x1a8] sm:$0xff]
      %v4728 = vld [vmem:[%s280 + $0x1b0] sm:$0xff]
      %v4729 = vld [vmem:[%s280 + $0x1b8] sm:$0xff]
      %v4730 = vld [vmem:[%s280 + $0x1c0] sm:$0xff]
      %v4731 = vld [vmem:[%s280 + $0x1c8] sm:$0xff]
      %v4732 = vld [vmem:[%s280 + $0x1d0] sm:$0xff]
      %v4733 = vld [vmem:[%s280 + $0x1d8] sm:$0xff]
      %v4734 = vld [vmem:[%s280 + $0x1e0] sm:$0xff]
      %v4735 = vld [vmem:[%s280 + $0x1e8] sm:$0xff]
      %v4736 = vld [vmem:[%s280 + $0x1f0] sm:$0xff]
      %v4737 = vld [vmem:[%s280 + $0x1f8] sm:$0xff]
      %v4738 = vld [vmem:[%s280 + $0x200] sm:$0xff]
      %v4739 = vld [vmem:[%s280 + $0x208] sm:$0xff]
      %v4740 = vld [vmem:[%s280 + $0x210] sm:$0xff]
      %v4741 = vld [vmem:[%s280 + $0x218] sm:$0xff]
      %v4742 = vld [vmem:[%s280 + $0x220] sm:$0xff]
      %v4743 = vld [vmem:[%s280 + $0x228] sm:$0xff]
      %v4744 = vld [vmem:[%s280 + $0x230] sm:$0xff]
      %v4745 = vld [vmem:[%s280 + $0x238] sm:$0xff]
      %v4746 = vld [vmem:[%s280 + $0x240] sm:$0xff]
      %v4747 = vld [vmem:[%s280 + $0x248] sm:$0xff]
      %v4748 = vld [vmem:[%s280 + $0x250] sm:$0xff]
      %v4749 = vld [vmem:[%s280 + $0x258] sm:$0xff]
      %v4750 = vld [vmem:[%s280 + $0x260] sm:$0xff]
      %v4751 = vld [vmem:[%s280 + $0x268] sm:$0xff]
      %v4752 = vld [vmem:[%s280 + $0x270] sm:$0xff]
      %v4753 = vld [vmem:[%s280 + $0x278] sm:$0xff]
      %v4754 = vld [vmem:[%s280 + $0x280] sm:$0xff]
      %v4755 = vld [vmem:[%s280 + $0x288] sm:$0xff]
      %v4756 = vld [vmem:[%s280 + $0x290] sm:$0xff]
      %v4757 = vld [vmem:[%s280 + $0x298] sm:$0xff]
      %v4758 = vld [vmem:[%s280 + $0x2a0] sm:$0xff]
      %v4759 = vld [vmem:[%s280 + $0x2a8] sm:$0xff]
      %v4760 = vld [vmem:[%s280 + $0x2b0] sm:$0xff]
      %v4761 = vld [vmem:[%s280 + $0x2b8] sm:$0xff]
      %v4762 = vld [vmem:[%s280 + $0x2c0] sm:$0xff]
      %v4763 = vld [vmem:[%s280 + $0x2c8] sm:$0xff]
      %v4764 = vld [vmem:[%s280 + $0x2d0] sm:$0xff]
      %v4765 = vld [vmem:[%s280 + $0x2d8] sm:$0xff]
      %v4766 = vld [vmem:[%s280 + $0x2e0] sm:$0xff]
      %v4767 = vld [vmem:[%s280 + $0x2e8] sm:$0xff]
      %v4768 = vld [vmem:[%s280 + $0x2f0] sm:$0xff]
      %v4769 = vld [vmem:[%s280 + $0x2f8] sm:$0xff]
      %v4770 = vld [vmem:[%s280 + $0x300] sm:$0xff]
      %v4771 = vld [vmem:[%s280 + $0x308] sm:$0xff]
      %v4772 = vld [vmem:[%s280 + $0x310] sm:$0xff]
      %v4773 = vld [vmem:[%s280 + $0x318] sm:$0xff]
      %v4774 = vld [vmem:[%s280 + $0x320] sm:$0xff]
      %v4775 = vld [vmem:[%s280 + $0x328] sm:$0xff]
      %v4776 = vld [vmem:[%s280 + $0x330] sm:$0xff]
      %v4777 = vld [vmem:[%s280 + $0x338] sm:$0xff]
      %v4778 = vld [vmem:[%s280 + $0x340] sm:$0xff]
      %v4779 = vld [vmem:[%s280 + $0x348] sm:$0xff]
      %v4780 = vld [vmem:[%s280 + $0x350] sm:$0xff]
      %v4781 = vld [vmem:[%s280 + $0x358] sm:$0xff]
      %v4782 = vld [vmem:[%s280 + $0x360] sm:$0xff]
      %v4783 = vld [vmem:[%s280 + $0x368] sm:$0xff]
      %v4784 = vld [vmem:[%s280 + $0x370] sm:$0xff]
      %v4785 = vld [vmem:[%s280 + $0x378] sm:$0xff]
      %v4786 = vld [vmem:[%s280 + $0x380] sm:$0xff]
      %v4787 = vld [vmem:[%s280 + $0x388] sm:$0xff]
      %v4788 = vld [vmem:[%s280 + $0x390] sm:$0xff]
      %v4789 = vld [vmem:[%s280 + $0x398] sm:$0xff]
      %v4790 = vld [vmem:[%s280 + $0x3a0] sm:$0xff]
      %v4791 = vld [vmem:[%s280 + $0x3a8] sm:$0xff]
      %v4792 = vld [vmem:[%s280 + $0x3b0] sm:$0xff]
      %v4793 = vld [vmem:[%s280 + $0x3b8] sm:$0xff]
      %v4794 = vld [vmem:[%s280 + $0x3c0] sm:$0xff]
      %v4795 = vld [vmem:[%s280 + $0x3c8] sm:$0xff]
      %v4796 = vld [vmem:[%s280 + $0x3d0] sm:$0xff]
      %v4797 = vld [vmem:[%s280 + $0x3d8] sm:$0xff]
      %v4798 = vld [vmem:[%s280 + $0x3e0] sm:$0xff]
      %v4799 = vld [vmem:[%s280 + $0x3e8] sm:$0xff]
      %v4800 = vld [vmem:[%s280 + $0x3f0] sm:$0xff]
      %v4801 = vld [vmem:[%s280 + $0x3f8] sm:$0xff]
      %v4802 = vld [vmem:[%s280 + $0x400] sm:$0xff]
      %v4803 = vld [vmem:[%s280 + $0x408] sm:$0xff]
      %v4804 = vld [vmem:[%s280 + $0x410] sm:$0xff]
      %v4805 = vld [vmem:[%s280 + $0x418] sm:$0xff]
      %v4806 = vld [vmem:[%s280 + $0x420] sm:$0xff]
      %v4807 = vld [vmem:[%s280 + $0x428] sm:$0xff]
      %v4808 = vld [vmem:[%s280 + $0x430] sm:$0xff]
      %v4809 = vld [vmem:[%s280 + $0x438] sm:$0xff]
      %v4810 = vld [vmem:[%s280 + $0x440] sm:$0xff]
      %v4811 = vld [vmem:[%s280 + $0x448] sm:$0xff]
      %v4812 = vld [vmem:[%s280 + $0x450] sm:$0xff]
      %v4813 = vld [vmem:[%s280 + $0x458] sm:$0xff]
      %v4814 = vld [vmem:[%s280 + $0x460] sm:$0xff]
      %v4815 = vld [vmem:[%s280 + $0x468] sm:$0xff]
      %v4816 = vld [vmem:[%s280 + $0x470] sm:$0xff]
      %v4817 = vld [vmem:[%s280 + $0x478] sm:$0xff]
      %v4818 = vld [vmem:[%s280 + $0x480] sm:$0xff]
      %v4819 = vld [vmem:[%s280 + $0x488] sm:$0xff]
      %v4820 = vld [vmem:[%s280 + $0x490] sm:$0xff]
      %v4821 = vld [vmem:[%s280 + $0x498] sm:$0xff]
      %v4822 = vld [vmem:[%s280 + $0x4a0] sm:$0xff]
      %v4823 = vld [vmem:[%s280 + $0x4a8] sm:$0xff]
      %v4824 = vld [vmem:[%s280 + $0x4b0] sm:$0xff]
      %v4825 = vld [vmem:[%s280 + $0x4b8] sm:$0xff]
      %v4826 = vld [vmem:[%s280 + $0x4c0] sm:$0xff]
      %v4827 = vld [vmem:[%s280 + $0x4c8] sm:$0xff]
      %v4828 = vld [vmem:[%s280 + $0x4d0] sm:$0xff]
      %v4829 = vld [vmem:[%s280 + $0x4d8] sm:$0xff]
      %v4830 = vld [vmem:[%s280 + $0x4e0] sm:$0xff]
      %v4831 = vld [vmem:[%s280 + $0x4e8] sm:$0xff]
      %v4832 = vld [vmem:[%s280 + $0x4f0] sm:$0xff]
      %v4833 = vld [vmem:[%s280 + $0x4f8] sm:$0xff]
      %4834 = vmatpush.msra.mxu0 %v4749
      %4835 = vmatpush.msra.mxu0 %v4744
      %4836 = vmatpush.msra.mxu0 %v4739
      %4837 = vmatpush.msra.mxu0 %v4734
      %4838 = vmatpush.msra.mxu0 %v4729
      %4839 = vmatpush.msra.mxu0 %v4724
      %4840 = vmatpush.msra.mxu0 %v4719
      %4841 = vmatpush.msra.mxu0 %v4714
      %4842 = vmatpush.msra.mxu0 %v4709
      %4843 = vmatpush.msra.mxu0 %v4704
      %4844 = vmatpush.msra.mxu0 %v4699
      %4845 = vmatpush.msra.mxu0 %v4694
      %4846 = vmatpush.msra.mxu0 %v4689
      %4847 = vmatpush.msra.mxu0 %v4684
      %4848 = vmatpush.msra.mxu0 %v4679
      %4849 = vmatpush.msra.mxu0 %v4674
      %4850 = vmatmul.f32.gmra.mxu0 %v4590
      %v4851 = vpop.f32.mrf.mxu0
      %v4852 = vadd.f32 %v301, %v4851
      %4853 = vdwg.mxu0
      %4854 = vmatpush.msra.mxu0 %v4829
      %4855 = vmatpush.msra.mxu0 %v4824
      %4856 = vmatpush.msra.mxu0 %v4819
      %4857 = vmatpush.msra.mxu0 %v4814
      %4858 = vmatpush.msra.mxu0 %v4809
      %4859 = vmatpush.msra.mxu0 %v4804
      %4860 = vmatpush.msra.mxu0 %v4799
      %4861 = vmatpush.msra.mxu0 %v4794
      %4862 = vmatpush.msra.mxu0 %v4789
      %4863 = vmatpush.msra.mxu0 %v4784
      %4864 = vmatpush.msra.mxu0 %v4779
      %4865 = vmatpush.msra.mxu0 %v4774
      %4866 = vmatpush.msra.mxu0 %v4769
      %4867 = vmatpush.msra.mxu0 %v4764
      %4868 = vmatpush.msra.mxu0 %v4759
      %4869 = vmatpush.msra.mxu0 %v4754
      %4870 = vmatmul.f32.gmra.mxu0 %v4594
      %v4871 = vpop.f32.mrf.mxu0
      %v4872 = vadd.f32 %v4852, %v4871
      %4873 = vdwg.mxu0
      %4874 = vmatpush.msra.mxu0 %v4750
      %4875 = vmatpush.msra.mxu0 %v4745
      %4876 = vmatpush.msra.mxu0 %v4740
      %4877 = vmatpush.msra.mxu0 %v4735
      %4878 = vmatpush.msra.mxu0 %v4730
      %4879 = vmatpush.msra.mxu0 %v4725
      %4880 = vmatpush.msra.mxu0 %v4720
      %4881 = vmatpush.msra.mxu0 %v4715
      %4882 = vmatpush.msra.mxu0 %v4710
      %4883 = vmatpush.msra.mxu0 %v4705
      %4884 = vmatpush.msra.mxu0 %v4700
      %4885 = vmatpush.msra.mxu0 %v4695
      %4886 = vmatpush.msra.mxu0 %v4690
      %4887 = vmatpush.msra.mxu0 %v4685
      %4888 = vmatpush.msra.mxu0 %v4680
      %4889 = vmatpush.msra.mxu0 %v4675
      %4890 = vmatmul.f32.gmra.mxu0 %v4590
      %v4891 = vpop.f32.mrf.mxu0
      %v4892 = vadd.f32 %v302, %v4891
      %4893 = vdwg.mxu0
      %4894 = vmatpush.msra.mxu0 %v4830
      %4895 = vmatpush.msra.mxu0 %v4825
      %4896 = vmatpush.msra.mxu0 %v4820
      %4897 = vmatpush.msra.mxu0 %v4815
      %4898 = vmatpush.msra.mxu0 %v4810
      %4899 = vmatpush.msra.mxu0 %v4805
      %4900 = vmatpush.msra.mxu0 %v4800
      %4901 = vmatpush.msra.mxu0 %v4795
      %4902 = vmatpush.msra.mxu0 %v4790
      %4903 = vmatpush.msra.mxu0 %v4785
      %4904 = vmatpush.msra.mxu0 %v4780
      %4905 = vmatpush.msra.mxu0 %v4775
      %4906 = vmatpush.msra.mxu0 %v4770
      %4907 = vmatpush.msra.mxu0 %v4765
      %4908 = vmatpush.msra.mxu0 %v4760
      %4909 = vmatpush.msra.mxu0 %v4755
      %4910 = vmatmul.f32.gmra.mxu0 %v4594
      %v4911 = vpop.f32.mrf.mxu0
      %v4912 = vadd.f32 %v4892, %v4911
      %4913 = vdwg.mxu0
      %4914 = vmatpush.msra.mxu0 %v4751
      %4915 = vmatpush.msra.mxu0 %v4746
      %4916 = vmatpush.msra.mxu0 %v4741
      %4917 = vmatpush.msra.mxu0 %v4736
      %4918 = vmatpush.msra.mxu0 %v4731
      %4919 = vmatpush.msra.mxu0 %v4726
      %4920 = vmatpush.msra.mxu0 %v4721
      %4921 = vmatpush.msra.mxu0 %v4716
      %4922 = vmatpush.msra.mxu0 %v4711
      %4923 = vmatpush.msra.mxu0 %v4706
      %4924 = vmatpush.msra.mxu0 %v4701
      %4925 = vmatpush.msra.mxu0 %v4696
      %4926 = vmatpush.msra.mxu0 %v4691
      %4927 = vmatpush.msra.mxu0 %v4686
      %4928 = vmatpush.msra.mxu0 %v4681
      %4929 = vmatpush.msra.mxu0 %v4676
      %4930 = vmatmul.f32.gmra.mxu0 %v4590
      %v4931 = vpop.f32.mrf.mxu0
      %v4932 = vadd.f32 %v303, %v4931
      %4933 = vdwg.mxu0
      %4934 = vmatpush.msra.mxu0 %v4831
      %4935 = vmatpush.msra.mxu0 %v4826
      %4936 = vmatpush.msra.mxu0 %v4821
      %4937 = vmatpush.msra.mxu0 %v4816
      %4938 = vmatpush.msra.mxu0 %v4811
      %4939 = vmatpush.msra.mxu0 %v4806
      %4940 = vmatpush.msra.mxu0 %v4801
      %4941 = vmatpush.msra.mxu0 %v4796
      %4942 = vmatpush.msra.mxu0 %v4791
      %4943 = vmatpush.msra.mxu0 %v4786
      %4944 = vmatpush.msra.mxu0 %v4781
      %4945 = vmatpush.msra.mxu0 %v4776
      %4946 = vmatpush.msra.mxu0 %v4771
      %4947 = vmatpush.msra.mxu0 %v4766
      %4948 = vmatpush.msra.mxu0 %v4761
      %4949 = vmatpush.msra.mxu0 %v4756
      %4950 = vmatmul.f32.gmra.mxu0 %v4594
      %v4951 = vpop.f32.mrf.mxu0
      %v4952 = vadd.f32 %v4932, %v4951
      %4953 = vdwg.mxu0
      %4954 = vmatpush.msra.mxu0 %v4752
      %4955 = vmatpush.msra.mxu0 %v4747
      %4956 = vmatpush.msra.mxu0 %v4742
      %4957 = vmatpush.msra.mxu0 %v4737
      %4958 = vmatpush.msra.mxu0 %v4732
      %4959 = vmatpush.msra.mxu0 %v4727
      %4960 = vmatpush.msra.mxu0 %v4722
      %4961 = vmatpush.msra.mxu0 %v4717
      %4962 = vmatpush.msra.mxu0 %v4712
      %4963 = vmatpush.msra.mxu0 %v4707
      %4964 = vmatpush.msra.mxu0 %v4702
      %4965 = vmatpush.msra.mxu0 %v4697
      %4966 = vmatpush.msra.mxu0 %v4692
      %4967 = vmatpush.msra.mxu0 %v4687
      %4968 = vmatpush.msra.mxu0 %v4682
      %4969 = vmatpush.msra.mxu0 %v4677
      %4970 = vmatmul.f32.gmra.mxu0 %v4590
      %v4971 = vpop.f32.mrf.mxu0
      %v4972 = vadd.f32 %v304, %v4971
      %4973 = vdwg.mxu0
      %4974 = vmatpush.msra.mxu0 %v4832
      %4975 = vmatpush.msra.mxu0 %v4827
      %4976 = vmatpush.msra.mxu0 %v4822
      %4977 = vmatpush.msra.mxu0 %v4817
      %4978 = vmatpush.msra.mxu0 %v4812
      %4979 = vmatpush.msra.mxu0 %v4807
      %4980 = vmatpush.msra.mxu0 %v4802
      %4981 = vmatpush.msra.mxu0 %v4797
      %4982 = vmatpush.msra.mxu0 %v4792
      %4983 = vmatpush.msra.mxu0 %v4787
      %4984 = vmatpush.msra.mxu0 %v4782
      %4985 = vmatpush.msra.mxu0 %v4777
      %4986 = vmatpush.msra.mxu0 %v4772
      %4987 = vmatpush.msra.mxu0 %v4767
      %4988 = vmatpush.msra.mxu0 %v4762
      %4989 = vmatpush.msra.mxu0 %v4757
      %4990 = vmatmul.f32.gmra.mxu0 %v4594
      %v4991 = vpop.f32.mrf.mxu0
      %v4992 = vadd.f32 %v4972, %v4991
      %4993 = vdwg.mxu0
      %4994 = vmatpush.msra.mxu0 %v4753
      %4995 = vmatpush.msra.mxu0 %v4748
      %4996 = vmatpush.msra.mxu0 %v4743
      %4997 = vmatpush.msra.mxu0 %v4738
      %4998 = vmatpush.msra.mxu0 %v4733
      %4999 = vmatpush.msra.mxu0 %v4728
      %5000 = vmatpush.msra.mxu0 %v4723
      %5001 = vmatpush.msra.mxu0 %v4718
      %5002 = vmatpush.msra.mxu0 %v4713
      %5003 = vmatpush.msra.mxu0 %v4708
      %5004 = vmatpush.msra.mxu0 %v4703
      %5005 = vmatpush.msra.mxu0 %v4698
      %5006 = vmatpush.msra.mxu0 %v4693
      %5007 = vmatpush.msra.mxu0 %v4688
      %5008 = vmatpush.msra.mxu0 %v4683
      %5009 = vmatpush.msra.mxu0 %v4678
      %5010 = vmatmul.f32.gmra.mxu0 %v4590
      %v5011 = vpop.f32.mrf.mxu0
      %v5012 = vadd.f32 %v305, %v5011
      %5013 = vdwg.mxu0
      %5014 = vmatpush.msra.mxu0 %v4833
      %5015 = vmatpush.msra.mxu0 %v4828
      %5016 = vmatpush.msra.mxu0 %v4823
      %5017 = vmatpush.msra.mxu0 %v4818
      %5018 = vmatpush.msra.mxu0 %v4813
      %5019 = vmatpush.msra.mxu0 %v4808
      %5020 = vmatpush.msra.mxu0 %v4803
      %5021 = vmatpush.msra.mxu0 %v4798
      %5022 = vmatpush.msra.mxu0 %v4793
      %5023 = vmatpush.msra.mxu0 %v4788
      %5024 = vmatpush.msra.mxu0 %v4783
      %5025 = vmatpush.msra.mxu0 %v4778
      %5026 = vmatpush.msra.mxu0 %v4773
      %5027 = vmatpush.msra.mxu0 %v4768
      %5028 = vmatpush.msra.mxu0 %v4763
      %5029 = vmatpush.msra.mxu0 %v4758
      %5030 = vmatmul.f32.gmra.mxu0 %v4594
      %v5031 = vpop.f32.mrf.mxu0
      %v5032 = vadd.f32 %v5012, %v5031
      %5033 = vdwg.mxu0
      %s5034 = scalar_lea.vmem %s275, 72
      %v5035 = vld [vmem:[%s5034] sm:$0xff]
      %v5040 = vrot.slane %v4952, 6
      %v5041 = vrot.slane %v4992, 4
      %v5042 = vrot.slane %v5032, 2
      %v5043 = vsel %vm685, %v4912, %v5040
      %v5044 = vsel %vm687, %v5041, %v5042
      %v5045 = vsel %vm689, %v5043, %v5044
      %v5047 = vadd.f32 %v5035, %v5045
      %v5048 = vxor.u32 %v5047, 2147483648
      %v5049 = vmul.f32 %v5048, 1.442695
      %v5050 = vpow.pop %v5049
      %v5051 = vadd.f32 %v5050, 1.0
      %v5052 = vrcp.pop %v5051
      %v5053 = vmul.f32 %v5051, %v5052
      %v5054 = vsub.f32 1.0, %v5053
      %v5055 = vmul.f32 %v5052, %v5054
      %v5056 = vadd.f32 %v5052, %v5055
      %vm5057 = vweird.f32 %v5051
      %vm5058 = vweird.f32 %v5052
      %vm5059 = vmor %vm5057, %vm5058
      %v5060 = vsel %vm5059, %v5052, %v5056
      %v5061 = vand.u32 2147483647, %v5051
      %vm5062 = vcmp.eq.f32.partialorder %v5061, 8.507059e+37
      %v5063 = vand.u32 %v5051, 2147483648
      %v5064 = vor.u32 1.1754944e-38, %v5063
      %v5065 = vsel %vm5062, %v5064, %v5060
      %v5066 = vmul.f32 1.0, %v5065
      %v5068 = vrot.slane %v5066, 4
      %v5070 = vmul.f32 %v5068, %v4872
      %v5071 = vrot.slane %v5066, 2
      %v5073 = vmul.f32 %v5066, %v5071
      %v5074 = vadd.f32 %v5070, %v5073
      %v5075 = vtanh.pop %v5074
      %v5076 = vrot.slane %v5066, 6
      %v5078 = vmul.f32 %v5076, %v5075
      %v5079 = vld [vmem:[%s289] sm:$0xff]
      %v5080 = vld [vmem:[%s289 + $0x8] sm:$0xff]
      %v5081 = vld [vmem:[%s289 + $0x10] sm:$0xff]
      %v5082 = vld [vmem:[%s289 + $0x18] sm:$0xff]
      %v5083 = vld [vmem:[%s289 + $0x20] sm:$0xff]
      %v5084 = vld [vmem:[%s289 + $0x28] sm:$0xff]
      %v5085 = vld [vmem:[%s289 + $0x30] sm:$0xff]
      %v5086 = vld [vmem:[%s289 + $0x38] sm:$0xff]
      %v5087 = vld [vmem:[%s289 + $0x40] sm:$0xff]
      %v5088 = vld [vmem:[%s289 + $0x48] sm:$0xff]
      %v5089 = vld [vmem:[%s289 + $0x50] sm:$0xff]
      %v5090 = vld [vmem:[%s289 + $0x58] sm:$0xff]
      %v5091 = vld [vmem:[%s289 + $0x60] sm:$0xff]
      %v5092 = vld [vmem:[%s289 + $0x68] sm:$0xff]
      %v5093 = vld [vmem:[%s289 + $0x70] sm:$0xff]
      %v5094 = vld [vmem:[%s289 + $0x78] sm:$0xff]
      %v5095 = vld [vmem:[%s289 + $0x80] sm:$0xff]
      %v5096 = vld [vmem:[%s289 + $0x88] sm:$0xff]
      %v5097 = vld [vmem:[%s289 + $0x90] sm:$0xff]
      %v5098 = vld [vmem:[%s289 + $0x98] sm:$0xff]
      %v5099 = vld [vmem:[%s289 + $0xa0] sm:$0xff]
      %v5100 = vld [vmem:[%s289 + $0xa8] sm:$0xff]
      %v5101 = vld [vmem:[%s289 + $0xb0] sm:$0xff]
      %v5102 = vld [vmem:[%s289 + $0xb8] sm:$0xff]
      %v5103 = vld [vmem:[%s289 + $0xc0] sm:$0xff]
      %v5104 = vld [vmem:[%s289 + $0xc8] sm:$0xff]
      %v5105 = vld [vmem:[%s289 + $0xd0] sm:$0xff]
      %v5106 = vld [vmem:[%s289 + $0xd8] sm:$0xff]
      %v5107 = vld [vmem:[%s289 + $0xe0] sm:$0xff]
      %v5108 = vld [vmem:[%s289 + $0xe8] sm:$0xff]
      %v5109 = vld [vmem:[%s289 + $0xf0] sm:$0xff]
      %v5110 = vld [vmem:[%s289 + $0xf8] sm:$0xff]
      %5111 = vmatpush.msra.mxu0 %v5109
      %5112 = vmatpush.msra.mxu0 %v5107
      %5113 = vmatpush.msra.mxu0 %v5105
      %5114 = vmatpush.msra.mxu0 %v5103
      %5115 = vmatpush.msra.mxu0 %v5101
      %5116 = vmatpush.msra.mxu0 %v5099
      %5117 = vmatpush.msra.mxu0 %v5097
      %5118 = vmatpush.msra.mxu0 %v5095
      %5119 = vmatpush.msra.mxu0 %v5093
      %5120 = vmatpush.msra.mxu0 %v5091
      %5121 = vmatpush.msra.mxu0 %v5089
      %5122 = vmatpush.msra.mxu0 %v5087
      %5123 = vmatpush.msra.mxu0 %v5085
      %5124 = vmatpush.msra.mxu0 %v5083
      %5125 = vmatpush.msra.mxu0 %v5081
      %5126 = vmatpush.msra.mxu0 %v5079
      %5127 = vmatmul.f32.gmra.mxu0 %v5078
      %v5128 = vpop.f32.mrf.mxu0
      %v5129 = vadd.f32 %v313, %v5128
      %5130 = vdwg.mxu0
      %5131 = vmatpush.msra.mxu0 %v5110
      %5132 = vmatpush.msra.mxu0 %v5108
      %5133 = vmatpush.msra.mxu0 %v5106
      %5134 = vmatpush.msra.mxu0 %v5104
      %5135 = vmatpush.msra.mxu0 %v5102
      %5136 = vmatpush.msra.mxu0 %v5100
      %5137 = vmatpush.msra.mxu0 %v5098
      %5138 = vmatpush.msra.mxu0 %v5096
      %5139 = vmatpush.msra.mxu0 %v5094
      %5140 = vmatpush.msra.mxu0 %v5092
      %5141 = vmatpush.msra.mxu0 %v5090
      %5142 = vmatpush.msra.mxu0 %v5088
      %5143 = vmatpush.msra.mxu0 %v5086
      %5144 = vmatpush.msra.mxu0 %v5084
      %5145 = vmatpush.msra.mxu0 %v5082
      %5146 = vmatpush.msra.mxu0 %v5080
      %5147 = vmatmul.f32.gmra.mxu0 %v5078
      %v5148 = vpop.f32.mrf.mxu0
      %v5149 = vadd.f32 %v314, %v5148
      %5150 = vdwg.mxu0
      %v5153 = vrot.slane %v5149, 6
      %v5154 = vsel %vm685, %v5129, %v5153
      %s5156 = scalar_lea.vmem %s298, 36
      %5157 = vst [vmem:[%s5156] sm:$0xf] %v5154
      %v5158 = vld [vmem:[%s280] sm:$0xff]
      %v5159 = vld [vmem:[%s280 + $0x8] sm:$0xff]
      %v5160 = vld [vmem:[%s280 + $0x10] sm:$0xff]
      %v5161 = vld [vmem:[%s280 + $0x18] sm:$0xff]
      %v5162 = vld [vmem:[%s280 + $0x20] sm:$0xff]
      %v5163 = vld [vmem:[%s280 + $0x28] sm:$0xff]
      %v5164 = vld [vmem:[%s280 + $0x30] sm:$0xff]
      %v5165 = vld [vmem:[%s280 + $0x38] sm:$0xff]
      %v5166 = vld [vmem:[%s280 + $0x40] sm:$0xff]
      %v5167 = vld [vmem:[%s280 + $0x48] sm:$0xff]
      %v5168 = vld [vmem:[%s280 + $0x50] sm:$0xff]
      %v5169 = vld [vmem:[%s280 + $0x58] sm:$0xff]
      %v5170 = vld [vmem:[%s280 + $0x60] sm:$0xff]
      %v5171 = vld [vmem:[%s280 + $0x68] sm:$0xff]
      %v5172 = vld [vmem:[%s280 + $0x70] sm:$0xff]
      %v5173 = vld [vmem:[%s280 + $0x78] sm:$0xff]
      %v5174 = vld [vmem:[%s280 + $0x80] sm:$0xff]
      %v5175 = vld [vmem:[%s280 + $0x88] sm:$0xff]
      %v5176 = vld [vmem:[%s280 + $0x90] sm:$0xff]
      %v5177 = vld [vmem:[%s280 + $0x98] sm:$0xff]
      %v5178 = vld [vmem:[%s280 + $0xa0] sm:$0xff]
      %v5179 = vld [vmem:[%s280 + $0xa8] sm:$0xff]
      %v5180 = vld [vmem:[%s280 + $0xb0] sm:$0xff]
      %v5181 = vld [vmem:[%s280 + $0xb8] sm:$0xff]
      %v5182 = vld [vmem:[%s280 + $0xc0] sm:$0xff]
      %v5183 = vld [vmem:[%s280 + $0xc8] sm:$0xff]
      %v5184 = vld [vmem:[%s280 + $0xd0] sm:$0xff]
      %v5185 = vld [vmem:[%s280 + $0xd8] sm:$0xff]
      %v5186 = vld [vmem:[%s280 + $0xe0] sm:$0xff]
      %v5187 = vld [vmem:[%s280 + $0xe8] sm:$0xff]
      %v5188 = vld [vmem:[%s280 + $0xf0] sm:$0xff]
      %v5189 = vld [vmem:[%s280 + $0xf8] sm:$0xff]
      %v5190 = vld [vmem:[%s280 + $0x100] sm:$0xff]
      %v5191 = vld [vmem:[%s280 + $0x108] sm:$0xff]
      %v5192 = vld [vmem:[%s280 + $0x110] sm:$0xff]
      %v5193 = vld [vmem:[%s280 + $0x118] sm:$0xff]
      %v5194 = vld [vmem:[%s280 + $0x120] sm:$0xff]
      %v5195 = vld [vmem:[%s280 + $0x128] sm:$0xff]
      %v5196 = vld [vmem:[%s280 + $0x130] sm:$0xff]
      %v5197 = vld [vmem:[%s280 + $0x138] sm:$0xff]
      %v5198 = vld [vmem:[%s280 + $0x140] sm:$0xff]
      %v5199 = vld [vmem:[%s280 + $0x148] sm:$0xff]
      %v5200 = vld [vmem:[%s280 + $0x150] sm:$0xff]
      %v5201 = vld [vmem:[%s280 + $0x158] sm:$0xff]
      %v5202 = vld [vmem:[%s280 + $0x160] sm:$0xff]
      %v5203 = vld [vmem:[%s280 + $0x168] sm:$0xff]
      %v5204 = vld [vmem:[%s280 + $0x170] sm:$0xff]
      %v5205 = vld [vmem:[%s280 + $0x178] sm:$0xff]
      %v5206 = vld [vmem:[%s280 + $0x180] sm:$0xff]
      %v5207 = vld [vmem:[%s280 + $0x188] sm:$0xff]
      %v5208 = vld [vmem:[%s280 + $0x190] sm:$0xff]
      %v5209 = vld [vmem:[%s280 + $0x198] sm:$0xff]
      %v5210 = vld [vmem:[%s280 + $0x1a0] sm:$0xff]
      %v5211 = vld [vmem:[%s280 + $0x1a8] sm:$0xff]
      %v5212 = vld [vmem:[%s280 + $0x1b0] sm:$0xff]
      %v5213 = vld [vmem:[%s280 + $0x1b8] sm:$0xff]
      %v5214 = vld [vmem:[%s280 + $0x1c0] sm:$0xff]
      %v5215 = vld [vmem:[%s280 + $0x1c8] sm:$0xff]
      %v5216 = vld [vmem:[%s280 + $0x1d0] sm:$0xff]
      %v5217 = vld [vmem:[%s280 + $0x1d8] sm:$0xff]
      %v5218 = vld [vmem:[%s280 + $0x1e0] sm:$0xff]
      %v5219 = vld [vmem:[%s280 + $0x1e8] sm:$0xff]
      %v5220 = vld [vmem:[%s280 + $0x1f0] sm:$0xff]
      %v5221 = vld [vmem:[%s280 + $0x1f8] sm:$0xff]
      %v5222 = vld [vmem:[%s280 + $0x200] sm:$0xff]
      %v5223 = vld [vmem:[%s280 + $0x208] sm:$0xff]
      %v5224 = vld [vmem:[%s280 + $0x210] sm:$0xff]
      %v5225 = vld [vmem:[%s280 + $0x218] sm:$0xff]
      %v5226 = vld [vmem:[%s280 + $0x220] sm:$0xff]
      %v5227 = vld [vmem:[%s280 + $0x228] sm:$0xff]
      %v5228 = vld [vmem:[%s280 + $0x230] sm:$0xff]
      %v5229 = vld [vmem:[%s280 + $0x238] sm:$0xff]
      %v5230 = vld [vmem:[%s280 + $0x240] sm:$0xff]
      %v5231 = vld [vmem:[%s280 + $0x248] sm:$0xff]
      %v5232 = vld [vmem:[%s280 + $0x250] sm:$0xff]
      %v5233 = vld [vmem:[%s280 + $0x258] sm:$0xff]
      %v5234 = vld [vmem:[%s280 + $0x260] sm:$0xff]
      %v5235 = vld [vmem:[%s280 + $0x268] sm:$0xff]
      %v5236 = vld [vmem:[%s280 + $0x270] sm:$0xff]
      %v5237 = vld [vmem:[%s280 + $0x278] sm:$0xff]
      %v5238 = vld [vmem:[%s280 + $0x280] sm:$0xff]
      %v5239 = vld [vmem:[%s280 + $0x288] sm:$0xff]
      %v5240 = vld [vmem:[%s280 + $0x290] sm:$0xff]
      %v5241 = vld [vmem:[%s280 + $0x298] sm:$0xff]
      %v5242 = vld [vmem:[%s280 + $0x2a0] sm:$0xff]
      %v5243 = vld [vmem:[%s280 + $0x2a8] sm:$0xff]
      %v5244 = vld [vmem:[%s280 + $0x2b0] sm:$0xff]
      %v5245 = vld [vmem:[%s280 + $0x2b8] sm:$0xff]
      %v5246 = vld [vmem:[%s280 + $0x2c0] sm:$0xff]
      %v5247 = vld [vmem:[%s280 + $0x2c8] sm:$0xff]
      %v5248 = vld [vmem:[%s280 + $0x2d0] sm:$0xff]
      %v5249 = vld [vmem:[%s280 + $0x2d8] sm:$0xff]
      %v5250 = vld [vmem:[%s280 + $0x2e0] sm:$0xff]
      %v5251 = vld [vmem:[%s280 + $0x2e8] sm:$0xff]
      %v5252 = vld [vmem:[%s280 + $0x2f0] sm:$0xff]
      %v5253 = vld [vmem:[%s280 + $0x2f8] sm:$0xff]
      %v5254 = vld [vmem:[%s280 + $0x300] sm:$0xff]
      %v5255 = vld [vmem:[%s280 + $0x308] sm:$0xff]
      %v5256 = vld [vmem:[%s280 + $0x310] sm:$0xff]
      %v5257 = vld [vmem:[%s280 + $0x318] sm:$0xff]
      %v5258 = vld [vmem:[%s280 + $0x320] sm:$0xff]
      %v5259 = vld [vmem:[%s280 + $0x328] sm:$0xff]
      %v5260 = vld [vmem:[%s280 + $0x330] sm:$0xff]
      %v5261 = vld [vmem:[%s280 + $0x338] sm:$0xff]
      %v5262 = vld [vmem:[%s280 + $0x340] sm:$0xff]
      %v5263 = vld [vmem:[%s280 + $0x348] sm:$0xff]
      %v5264 = vld [vmem:[%s280 + $0x350] sm:$0xff]
      %v5265 = vld [vmem:[%s280 + $0x358] sm:$0xff]
      %v5266 = vld [vmem:[%s280 + $0x360] sm:$0xff]
      %v5267 = vld [vmem:[%s280 + $0x368] sm:$0xff]
      %v5268 = vld [vmem:[%s280 + $0x370] sm:$0xff]
      %v5269 = vld [vmem:[%s280 + $0x378] sm:$0xff]
      %v5270 = vld [vmem:[%s280 + $0x380] sm:$0xff]
      %v5271 = vld [vmem:[%s280 + $0x388] sm:$0xff]
      %v5272 = vld [vmem:[%s280 + $0x390] sm:$0xff]
      %v5273 = vld [vmem:[%s280 + $0x398] sm:$0xff]
      %v5274 = vld [vmem:[%s280 + $0x3a0] sm:$0xff]
      %v5275 = vld [vmem:[%s280 + $0x3a8] sm:$0xff]
      %v5276 = vld [vmem:[%s280 + $0x3b0] sm:$0xff]
      %v5277 = vld [vmem:[%s280 + $0x3b8] sm:$0xff]
      %v5278 = vld [vmem:[%s280 + $0x3c0] sm:$0xff]
      %v5279 = vld [vmem:[%s280 + $0x3c8] sm:$0xff]
      %v5280 = vld [vmem:[%s280 + $0x3d0] sm:$0xff]
      %v5281 = vld [vmem:[%s280 + $0x3d8] sm:$0xff]
      %v5282 = vld [vmem:[%s280 + $0x3e0] sm:$0xff]
      %v5283 = vld [vmem:[%s280 + $0x3e8] sm:$0xff]
      %v5284 = vld [vmem:[%s280 + $0x3f0] sm:$0xff]
      %v5285 = vld [vmem:[%s280 + $0x3f8] sm:$0xff]
      %v5286 = vld [vmem:[%s280 + $0x400] sm:$0xff]
      %v5287 = vld [vmem:[%s280 + $0x408] sm:$0xff]
      %v5288 = vld [vmem:[%s280 + $0x410] sm:$0xff]
      %v5289 = vld [vmem:[%s280 + $0x418] sm:$0xff]
      %v5290 = vld [vmem:[%s280 + $0x420] sm:$0xff]
      %v5291 = vld [vmem:[%s280 + $0x428] sm:$0xff]
      %v5292 = vld [vmem:[%s280 + $0x430] sm:$0xff]
      %v5293 = vld [vmem:[%s280 + $0x438] sm:$0xff]
      %v5294 = vld [vmem:[%s280 + $0x440] sm:$0xff]
      %v5295 = vld [vmem:[%s280 + $0x448] sm:$0xff]
      %v5296 = vld [vmem:[%s280 + $0x450] sm:$0xff]
      %v5297 = vld [vmem:[%s280 + $0x458] sm:$0xff]
      %v5298 = vld [vmem:[%s280 + $0x460] sm:$0xff]
      %v5299 = vld [vmem:[%s280 + $0x468] sm:$0xff]
      %v5300 = vld [vmem:[%s280 + $0x470] sm:$0xff]
      %v5301 = vld [vmem:[%s280 + $0x478] sm:$0xff]
      %v5302 = vld [vmem:[%s280 + $0x480] sm:$0xff]
      %v5303 = vld [vmem:[%s280 + $0x488] sm:$0xff]
      %v5304 = vld [vmem:[%s280 + $0x490] sm:$0xff]
      %v5305 = vld [vmem:[%s280 + $0x498] sm:$0xff]
      %v5306 = vld [vmem:[%s280 + $0x4a0] sm:$0xff]
      %v5307 = vld [vmem:[%s280 + $0x4a8] sm:$0xff]
      %v5308 = vld [vmem:[%s280 + $0x4b0] sm:$0xff]
      %v5309 = vld [vmem:[%s280 + $0x4b8] sm:$0xff]
      %v5310 = vld [vmem:[%s280 + $0x4c0] sm:$0xff]
      %v5311 = vld [vmem:[%s280 + $0x4c8] sm:$0xff]
      %v5312 = vld [vmem:[%s280 + $0x4d0] sm:$0xff]
      %v5313 = vld [vmem:[%s280 + $0x4d8] sm:$0xff]
      %v5314 = vld [vmem:[%s280 + $0x4e0] sm:$0xff]
      %v5315 = vld [vmem:[%s280 + $0x4e8] sm:$0xff]
      %v5316 = vld [vmem:[%s280 + $0x4f0] sm:$0xff]
      %v5317 = vld [vmem:[%s280 + $0x4f8] sm:$0xff]
      %5318 = vmatpush.msra.mxu0 %v5233
      %5319 = vmatpush.msra.mxu0 %v5228
      %5320 = vmatpush.msra.mxu0 %v5223
      %5321 = vmatpush.msra.mxu0 %v5218
      %5322 = vmatpush.msra.mxu0 %v5213
      %5323 = vmatpush.msra.mxu0 %v5208
      %5324 = vmatpush.msra.mxu0 %v5203
      %5325 = vmatpush.msra.mxu0 %v5198
      %5326 = vmatpush.msra.mxu0 %v5193
      %5327 = vmatpush.msra.mxu0 %v5188
      %5328 = vmatpush.msra.mxu0 %v5183
      %5329 = vmatpush.msra.mxu0 %v5178
      %5330 = vmatpush.msra.mxu0 %v5173
      %5331 = vmatpush.msra.mxu0 %v5168
      %5332 = vmatpush.msra.mxu0 %v5163
      %5333 = vmatpush.msra.mxu0 %v5158
      %5334 = vmatmul.f32.gmra.mxu0 %v5074
      %v5335 = vpop.f32.mrf.mxu0
      %v5336 = vadd.f32 %v301, %v5335
      %5337 = vdwg.mxu0
      %5338 = vmatpush.msra.mxu0 %v5313
      %5339 = vmatpush.msra.mxu0 %v5308
      %5340 = vmatpush.msra.mxu0 %v5303
      %5341 = vmatpush.msra.mxu0 %v5298
      %5342 = vmatpush.msra.mxu0 %v5293
      %5343 = vmatpush.msra.mxu0 %v5288
      %5344 = vmatpush.msra.mxu0 %v5283
      %5345 = vmatpush.msra.mxu0 %v5278
      %5346 = vmatpush.msra.mxu0 %v5273
      %5347 = vmatpush.msra.mxu0 %v5268
      %5348 = vmatpush.msra.mxu0 %v5263
      %5349 = vmatpush.msra.mxu0 %v5258
      %5350 = vmatpush.msra.mxu0 %v5253
      %5351 = vmatpush.msra.mxu0 %v5248
      %5352 = vmatpush.msra.mxu0 %v5243
      %5353 = vmatpush.msra.mxu0 %v5238
      %5354 = vmatmul.f32.gmra.mxu0 %v5078
      %v5355 = vpop.f32.mrf.mxu0
      %v5356 = vadd.f32 %v5336, %v5355
      %5357 = vdwg.mxu0
      %5358 = vmatpush.msra.mxu0 %v5234
      %5359 = vmatpush.msra.mxu0 %v5229
      %5360 = vmatpush.msra.mxu0 %v5224
      %5361 = vmatpush.msra.mxu0 %v5219
      %5362 = vmatpush.msra.mxu0 %v5214
      %5363 = vmatpush.msra.mxu0 %v5209
      %5364 = vmatpush.msra.mxu0 %v5204
      %5365 = vmatpush.msra.mxu0 %v5199
      %5366 = vmatpush.msra.mxu0 %v5194
      %5367 = vmatpush.msra.mxu0 %v5189
      %5368 = vmatpush.msra.mxu0 %v5184
      %5369 = vmatpush.msra.mxu0 %v5179
      %5370 = vmatpush.msra.mxu0 %v5174
      %5371 = vmatpush.msra.mxu0 %v5169
      %5372 = vmatpush.msra.mxu0 %v5164
      %5373 = vmatpush.msra.mxu0 %v5159
      %5374 = vmatmul.f32.gmra.mxu0 %v5074
      %v5375 = vpop.f32.mrf.mxu0
      %v5376 = vadd.f32 %v302, %v5375
      %5377 = vdwg.mxu0
      %5378 = vmatpush.msra.mxu0 %v5314
      %5379 = vmatpush.msra.mxu0 %v5309
      %5380 = vmatpush.msra.mxu0 %v5304
      %5381 = vmatpush.msra.mxu0 %v5299
      %5382 = vmatpush.msra.mxu0 %v5294
      %5383 = vmatpush.msra.mxu0 %v5289
      %5384 = vmatpush.msra.mxu0 %v5284
      %5385 = vmatpush.msra.mxu0 %v5279
      %5386 = vmatpush.msra.mxu0 %v5274
      %5387 = vmatpush.msra.mxu0 %v5269
      %5388 = vmatpush.msra.mxu0 %v5264
      %5389 = vmatpush.msra.mxu0 %v5259
      %5390 = vmatpush.msra.mxu0 %v5254
      %5391 = vmatpush.msra.mxu0 %v5249
      %5392 = vmatpush.msra.mxu0 %v5244
      %5393 = vmatpush.msra.mxu0 %v5239
      %5394 = vmatmul.f32.gmra.mxu0 %v5078
      %v5395 = vpop.f32.mrf.mxu0
      %v5396 = vadd.f32 %v5376, %v5395
      %5397 = vdwg.mxu0
      %5398 = vmatpush.msra.mxu0 %v5235
      %5399 = vmatpush.msra.mxu0 %v5230
      %5400 = vmatpush.msra.mxu0 %v5225
      %5401 = vmatpush.msra.mxu0 %v5220
      %5402 = vmatpush.msra.mxu0 %v5215
      %5403 = vmatpush.msra.mxu0 %v5210
      %5404 = vmatpush.msra.mxu0 %v5205
      %5405 = vmatpush.msra.mxu0 %v5200
      %5406 = vmatpush.msra.mxu0 %v5195
      %5407 = vmatpush.msra.mxu0 %v5190
      %5408 = vmatpush.msra.mxu0 %v5185
      %5409 = vmatpush.msra.mxu0 %v5180
      %5410 = vmatpush.msra.mxu0 %v5175
      %5411 = vmatpush.msra.mxu0 %v5170
      %5412 = vmatpush.msra.mxu0 %v5165
      %5413 = vmatpush.msra.mxu0 %v5160
      %5414 = vmatmul.f32.gmra.mxu0 %v5074
      %v5415 = vpop.f32.mrf.mxu0
      %v5416 = vadd.f32 %v303, %v5415
      %5417 = vdwg.mxu0
      %5418 = vmatpush.msra.mxu0 %v5315
      %5419 = vmatpush.msra.mxu0 %v5310
      %5420 = vmatpush.msra.mxu0 %v5305
      %5421 = vmatpush.msra.mxu0 %v5300
      %5422 = vmatpush.msra.mxu0 %v5295
      %5423 = vmatpush.msra.mxu0 %v5290
      %5424 = vmatpush.msra.mxu0 %v5285
      %5425 = vmatpush.msra.mxu0 %v5280
      %5426 = vmatpush.msra.mxu0 %v5275
      %5427 = vmatpush.msra.mxu0 %v5270
      %5428 = vmatpush.msra.mxu0 %v5265
      %5429 = vmatpush.msra.mxu0 %v5260
      %5430 = vmatpush.msra.mxu0 %v5255
      %5431 = vmatpush.msra.mxu0 %v5250
      %5432 = vmatpush.msra.mxu0 %v5245
      %5433 = vmatpush.msra.mxu0 %v5240
      %5434 = vmatmul.f32.gmra.mxu0 %v5078
      %v5435 = vpop.f32.mrf.mxu0
      %v5436 = vadd.f32 %v5416, %v5435
      %5437 = vdwg.mxu0
      %5438 = vmatpush.msra.mxu0 %v5236
      %5439 = vmatpush.msra.mxu0 %v5231
      %5440 = vmatpush.msra.mxu0 %v5226
      %5441 = vmatpush.msra.mxu0 %v5221
      %5442 = vmatpush.msra.mxu0 %v5216
      %5443 = vmatpush.msra.mxu0 %v5211
      %5444 = vmatpush.msra.mxu0 %v5206
      %5445 = vmatpush.msra.mxu0 %v5201
      %5446 = vmatpush.msra.mxu0 %v5196
      %5447 = vmatpush.msra.mxu0 %v5191
      %5448 = vmatpush.msra.mxu0 %v5186
      %5449 = vmatpush.msra.mxu0 %v5181
      %5450 = vmatpush.msra.mxu0 %v5176
      %5451 = vmatpush.msra.mxu0 %v5171
      %5452 = vmatpush.msra.mxu0 %v5166
      %5453 = vmatpush.msra.mxu0 %v5161
      %5454 = vmatmul.f32.gmra.mxu0 %v5074
      %v5455 = vpop.f32.mrf.mxu0
      %v5456 = vadd.f32 %v304, %v5455
      %5457 = vdwg.mxu0
      %5458 = vmatpush.msra.mxu0 %v5316
      %5459 = vmatpush.msra.mxu0 %v5311
      %5460 = vmatpush.msra.mxu0 %v5306
      %5461 = vmatpush.msra.mxu0 %v5301
      %5462 = vmatpush.msra.mxu0 %v5296
      %5463 = vmatpush.msra.mxu0 %v5291
      %5464 = vmatpush.msra.mxu0 %v5286
      %5465 = vmatpush.msra.mxu0 %v5281
      %5466 = vmatpush.msra.mxu0 %v5276
      %5467 = vmatpush.msra.mxu0 %v5271
      %5468 = vmatpush.msra.mxu0 %v5266
      %5469 = vmatpush.msra.mxu0 %v5261
      %5470 = vmatpush.msra.mxu0 %v5256
      %5471 = vmatpush.msra.mxu0 %v5251
      %5472 = vmatpush.msra.mxu0 %v5246
      %5473 = vmatpush.msra.mxu0 %v5241
      %5474 = vmatmul.f32.gmra.mxu0 %v5078
      %v5475 = vpop.f32.mrf.mxu0
      %v5476 = vadd.f32 %v5456, %v5475
      %5477 = vdwg.mxu0
      %5478 = vmatpush.msra.mxu0 %v5237
      %5479 = vmatpush.msra.mxu0 %v5232
      %5480 = vmatpush.msra.mxu0 %v5227
      %5481 = vmatpush.msra.mxu0 %v5222
      %5482 = vmatpush.msra.mxu0 %v5217
      %5483 = vmatpush.msra.mxu0 %v5212
      %5484 = vmatpush.msra.mxu0 %v5207
      %5485 = vmatpush.msra.mxu0 %v5202
      %5486 = vmatpush.msra.mxu0 %v5197
      %5487 = vmatpush.msra.mxu0 %v5192
      %5488 = vmatpush.msra.mxu0 %v5187
      %5489 = vmatpush.msra.mxu0 %v5182
      %5490 = vmatpush.msra.mxu0 %v5177
      %5491 = vmatpush.msra.mxu0 %v5172
      %5492 = vmatpush.msra.mxu0 %v5167
      %5493 = vmatpush.msra.mxu0 %v5162
      %5494 = vmatmul.f32.gmra.mxu0 %v5074
      %v5495 = vpop.f32.mrf.mxu0
      %v5496 = vadd.f32 %v305, %v5495
      %5497 = vdwg.mxu0
      %5498 = vmatpush.msra.mxu0 %v5317
      %5499 = vmatpush.msra.mxu0 %v5312
      %5500 = vmatpush.msra.mxu0 %v5307
      %5501 = vmatpush.msra.mxu0 %v5302
      %5502 = vmatpush.msra.mxu0 %v5297
      %5503 = vmatpush.msra.mxu0 %v5292
      %5504 = vmatpush.msra.mxu0 %v5287
      %5505 = vmatpush.msra.mxu0 %v5282
      %5506 = vmatpush.msra.mxu0 %v5277
      %5507 = vmatpush.msra.mxu0 %v5272
      %5508 = vmatpush.msra.mxu0 %v5267
      %5509 = vmatpush.msra.mxu0 %v5262
      %5510 = vmatpush.msra.mxu0 %v5257
      %5511 = vmatpush.msra.mxu0 %v5252
      %5512 = vmatpush.msra.mxu0 %v5247
      %5513 = vmatpush.msra.mxu0 %v5242
      %5514 = vmatmul.f32.gmra.mxu0 %v5078
      %v5515 = vpop.f32.mrf.mxu0
      %v5516 = vadd.f32 %v5496, %v5515
      %5517 = vdwg.mxu0
      %s5518 = scalar_lea.vmem %s275, 80
      %v5519 = vld [vmem:[%s5518] sm:$0xff]
      %v5524 = vrot.slane %v5436, 6
      %v5525 = vrot.slane %v5476, 4
      %v5526 = vrot.slane %v5516, 2
      %v5527 = vsel %vm685, %v5396, %v5524
      %v5528 = vsel %vm687, %v5525, %v5526
      %v5529 = vsel %vm689, %v5527, %v5528
      %v5531 = vadd.f32 %v5519, %v5529
      %v5532 = vxor.u32 %v5531, 2147483648
      %v5533 = vmul.f32 %v5532, 1.442695
      %v5534 = vpow.pop %v5533
      %v5535 = vadd.f32 %v5534, 1.0
      %v5536 = vrcp.pop %v5535
      %v5537 = vmul.f32 %v5535, %v5536
      %v5538 = vsub.f32 1.0, %v5537
      %v5539 = vmul.f32 %v5536, %v5538
      %v5540 = vadd.f32 %v5536, %v5539
      %vm5541 = vweird.f32 %v5535
      %vm5542 = vweird.f32 %v5536
      %vm5543 = vmor %vm5541, %vm5542
      %v5544 = vsel %vm5543, %v5536, %v5540
      %v5545 = vand.u32 2147483647, %v5535
      %vm5546 = vcmp.eq.f32.partialorder %v5545, 8.507059e+37
      %v5547 = vand.u32 %v5535, 2147483648
      %v5548 = vor.u32 1.1754944e-38, %v5547
      %v5549 = vsel %vm5546, %v5548, %v5544
      %v5550 = vmul.f32 1.0, %v5549
      %v5552 = vrot.slane %v5550, 4
      %v5554 = vmul.f32 %v5552, %v5356
      %v5555 = vrot.slane %v5550, 2
      %v5557 = vmul.f32 %v5550, %v5555
      %v5558 = vadd.f32 %v5554, %v5557
      %v5559 = vtanh.pop %v5558
      %v5560 = vrot.slane %v5550, 6
      %v5562 = vmul.f32 %v5560, %v5559
      %v5563 = vld [vmem:[%s289] sm:$0xff]
      %v5564 = vld [vmem:[%s289 + $0x8] sm:$0xff]
      %v5565 = vld [vmem:[%s289 + $0x10] sm:$0xff]
      %v5566 = vld [vmem:[%s289 + $0x18] sm:$0xff]
      %v5567 = vld [vmem:[%s289 + $0x20] sm:$0xff]
      %v5568 = vld [vmem:[%s289 + $0x28] sm:$0xff]
      %v5569 = vld [vmem:[%s289 + $0x30] sm:$0xff]
      %v5570 = vld [vmem:[%s289 + $0x38] sm:$0xff]
      %v5571 = vld [vmem:[%s289 + $0x40] sm:$0xff]
      %v5572 = vld [vmem:[%s289 + $0x48] sm:$0xff]
      %v5573 = vld [vmem:[%s289 + $0x50] sm:$0xff]
      %v5574 = vld [vmem:[%s289 + $0x58] sm:$0xff]
      %v5575 = vld [vmem:[%s289 + $0x60] sm:$0xff]
      %v5576 = vld [vmem:[%s289 + $0x68] sm:$0xff]
      %v5577 = vld [vmem:[%s289 + $0x70] sm:$0xff]
      %v5578 = vld [vmem:[%s289 + $0x78] sm:$0xff]
      %v5579 = vld [vmem:[%s289 + $0x80] sm:$0xff]
      %v5580 = vld [vmem:[%s289 + $0x88] sm:$0xff]
      %v5581 = vld [vmem:[%s289 + $0x90] sm:$0xff]
      %v5582 = vld [vmem:[%s289 + $0x98] sm:$0xff]
      %v5583 = vld [vmem:[%s289 + $0xa0] sm:$0xff]
      %v5584 = vld [vmem:[%s289 + $0xa8] sm:$0xff]
      %v5585 = vld [vmem:[%s289 + $0xb0] sm:$0xff]
      %v5586 = vld [vmem:[%s289 + $0xb8] sm:$0xff]
      %v5587 = vld [vmem:[%s289 + $0xc0] sm:$0xff]
      %v5588 = vld [vmem:[%s289 + $0xc8] sm:$0xff]
      %v5589 = vld [vmem:[%s289 + $0xd0] sm:$0xff]
      %v5590 = vld [vmem:[%s289 + $0xd8] sm:$0xff]
      %v5591 = vld [vmem:[%s289 + $0xe0] sm:$0xff]
      %v5592 = vld [vmem:[%s289 + $0xe8] sm:$0xff]
      %v5593 = vld [vmem:[%s289 + $0xf0] sm:$0xff]
      %v5594 = vld [vmem:[%s289 + $0xf8] sm:$0xff]
      %5595 = vmatpush.msra.mxu0 %v5593
      %5596 = vmatpush.msra.mxu0 %v5591
      %5597 = vmatpush.msra.mxu0 %v5589
      %5598 = vmatpush.msra.mxu0 %v5587
      %5599 = vmatpush.msra.mxu0 %v5585
      %5600 = vmatpush.msra.mxu0 %v5583
      %5601 = vmatpush.msra.mxu0 %v5581
      %5602 = vmatpush.msra.mxu0 %v5579
      %5603 = vmatpush.msra.mxu0 %v5577
      %5604 = vmatpush.msra.mxu0 %v5575
      %5605 = vmatpush.msra.mxu0 %v5573
      %5606 = vmatpush.msra.mxu0 %v5571
      %5607 = vmatpush.msra.mxu0 %v5569
      %5608 = vmatpush.msra.mxu0 %v5567
      %5609 = vmatpush.msra.mxu0 %v5565
      %5610 = vmatpush.msra.mxu0 %v5563
      %5611 = vmatmul.f32.gmra.mxu0 %v5562
      %v5612 = vpop.f32.mrf.mxu0
      %v5613 = vadd.f32 %v313, %v5612
      %5614 = vdwg.mxu0
      %5615 = vmatpush.msra.mxu0 %v5594
      %5616 = vmatpush.msra.mxu0 %v5592
      %5617 = vmatpush.msra.mxu0 %v5590
      %5618 = vmatpush.msra.mxu0 %v5588
      %5619 = vmatpush.msra.mxu0 %v5586
      %5620 = vmatpush.msra.mxu0 %v5584
      %5621 = vmatpush.msra.mxu0 %v5582
      %5622 = vmatpush.msra.mxu0 %v5580
      %5623 = vmatpush.msra.mxu0 %v5578
      %5624 = vmatpush.msra.mxu0 %v5576
      %5625 = vmatpush.msra.mxu0 %v5574
      %5626 = vmatpush.msra.mxu0 %v5572
      %5627 = vmatpush.msra.mxu0 %v5570
      %5628 = vmatpush.msra.mxu0 %v5568
      %5629 = vmatpush.msra.mxu0 %v5566
      %5630 = vmatpush.msra.mxu0 %v5564
      %5631 = vmatmul.f32.gmra.mxu0 %v5562
      %v5632 = vpop.f32.mrf.mxu0
      %v5633 = vadd.f32 %v314, %v5632
      %5634 = vdwg.mxu0
      %v5637 = vrot.slane %v5633, 6
      %v5638 = vsel %vm685, %v5613, %v5637
      %s5640 = scalar_lea.vmem %s298, 40
      %5641 = vst [vmem:[%s5640] sm:$0xf] %v5638
      %v5642 = vld [vmem:[%s280] sm:$0xff]
      %v5643 = vld [vmem:[%s280 + $0x8] sm:$0xff]
      %v5644 = vld [vmem:[%s280 + $0x10] sm:$0xff]
      %v5645 = vld [vmem:[%s280 + $0x18] sm:$0xff]
      %v5646 = vld [vmem:[%s280 + $0x20] sm:$0xff]
      %v5647 = vld [vmem:[%s280 + $0x28] sm:$0xff]
      %v5648 = vld [vmem:[%s280 + $0x30] sm:$0xff]
      %v5649 = vld [vmem:[%s280 + $0x38] sm:$0xff]
      %v5650 = vld [vmem:[%s280 + $0x40] sm:$0xff]
      %v5651 = vld [vmem:[%s280 + $0x48] sm:$0xff]
      %v5652 = vld [vmem:[%s280 + $0x50] sm:$0xff]
      %v5653 = vld [vmem:[%s280 + $0x58] sm:$0xff]
      %v5654 = vld [vmem:[%s280 + $0x60] sm:$0xff]
      %v5655 = vld [vmem:[%s280 + $0x68] sm:$0xff]
      %v5656 = vld [vmem:[%s280 + $0x70] sm:$0xff]
      %v5657 = vld [vmem:[%s280 + $0x78] sm:$0xff]
      %v5658 = vld [vmem:[%s280 + $0x80] sm:$0xff]
      %v5659 = vld [vmem:[%s280 + $0x88] sm:$0xff]
      %v5660 = vld [vmem:[%s280 + $0x90] sm:$0xff]
      %v5661 = vld [vmem:[%s280 + $0x98] sm:$0xff]
      %v5662 = vld [vmem:[%s280 + $0xa0] sm:$0xff]
      %v5663 = vld [vmem:[%s280 + $0xa8] sm:$0xff]
      %v5664 = vld [vmem:[%s280 + $0xb0] sm:$0xff]
      %v5665 = vld [vmem:[%s280 + $0xb8] sm:$0xff]
      %v5666 = vld [vmem:[%s280 + $0xc0] sm:$0xff]
      %v5667 = vld [vmem:[%s280 + $0xc8] sm:$0xff]
      %v5668 = vld [vmem:[%s280 + $0xd0] sm:$0xff]
      %v5669 = vld [vmem:[%s280 + $0xd8] sm:$0xff]
      %v5670 = vld [vmem:[%s280 + $0xe0] sm:$0xff]
      %v5671 = vld [vmem:[%s280 + $0xe8] sm:$0xff]
      %v5672 = vld [vmem:[%s280 + $0xf0] sm:$0xff]
      %v5673 = vld [vmem:[%s280 + $0xf8] sm:$0xff]
      %v5674 = vld [vmem:[%s280 + $0x100] sm:$0xff]
      %v5675 = vld [vmem:[%s280 + $0x108] sm:$0xff]
      %v5676 = vld [vmem:[%s280 + $0x110] sm:$0xff]
      %v5677 = vld [vmem:[%s280 + $0x118] sm:$0xff]
      %v5678 = vld [vmem:[%s280 + $0x120] sm:$0xff]
      %v5679 = vld [vmem:[%s280 + $0x128] sm:$0xff]
      %v5680 = vld [vmem:[%s280 + $0x130] sm:$0xff]
      %v5681 = vld [vmem:[%s280 + $0x138] sm:$0xff]
      %v5682 = vld [vmem:[%s280 + $0x140] sm:$0xff]
      %v5683 = vld [vmem:[%s280 + $0x148] sm:$0xff]
      %v5684 = vld [vmem:[%s280 + $0x150] sm:$0xff]
      %v5685 = vld [vmem:[%s280 + $0x158] sm:$0xff]
      %v5686 = vld [vmem:[%s280 + $0x160] sm:$0xff]
      %v5687 = vld [vmem:[%s280 + $0x168] sm:$0xff]
      %v5688 = vld [vmem:[%s280 + $0x170] sm:$0xff]
      %v5689 = vld [vmem:[%s280 + $0x178] sm:$0xff]
      %v5690 = vld [vmem:[%s280 + $0x180] sm:$0xff]
      %v5691 = vld [vmem:[%s280 + $0x188] sm:$0xff]
      %v5692 = vld [vmem:[%s280 + $0x190] sm:$0xff]
      %v5693 = vld [vmem:[%s280 + $0x198] sm:$0xff]
      %v5694 = vld [vmem:[%s280 + $0x1a0] sm:$0xff]
      %v5695 = vld [vmem:[%s280 + $0x1a8] sm:$0xff]
      %v5696 = vld [vmem:[%s280 + $0x1b0] sm:$0xff]
      %v5697 = vld [vmem:[%s280 + $0x1b8] sm:$0xff]
      %v5698 = vld [vmem:[%s280 + $0x1c0] sm:$0xff]
      %v5699 = vld [vmem:[%s280 + $0x1c8] sm:$0xff]
      %v5700 = vld [vmem:[%s280 + $0x1d0] sm:$0xff]
      %v5701 = vld [vmem:[%s280 + $0x1d8] sm:$0xff]
      %v5702 = vld [vmem:[%s280 + $0x1e0] sm:$0xff]
      %v5703 = vld [vmem:[%s280 + $0x1e8] sm:$0xff]
      %v5704 = vld [vmem:[%s280 + $0x1f0] sm:$0xff]
      %v5705 = vld [vmem:[%s280 + $0x1f8] sm:$0xff]
      %v5706 = vld [vmem:[%s280 + $0x200] sm:$0xff]
      %v5707 = vld [vmem:[%s280 + $0x208] sm:$0xff]
      %v5708 = vld [vmem:[%s280 + $0x210] sm:$0xff]
      %v5709 = vld [vmem:[%s280 + $0x218] sm:$0xff]
      %v5710 = vld [vmem:[%s280 + $0x220] sm:$0xff]
      %v5711 = vld [vmem:[%s280 + $0x228] sm:$0xff]
      %v5712 = vld [vmem:[%s280 + $0x230] sm:$0xff]
      %v5713 = vld [vmem:[%s280 + $0x238] sm:$0xff]
      %v5714 = vld [vmem:[%s280 + $0x240] sm:$0xff]
      %v5715 = vld [vmem:[%s280 + $0x248] sm:$0xff]
      %v5716 = vld [vmem:[%s280 + $0x250] sm:$0xff]
      %v5717 = vld [vmem:[%s280 + $0x258] sm:$0xff]
      %v5718 = vld [vmem:[%s280 + $0x260] sm:$0xff]
      %v5719 = vld [vmem:[%s280 + $0x268] sm:$0xff]
      %v5720 = vld [vmem:[%s280 + $0x270] sm:$0xff]
      %v5721 = vld [vmem:[%s280 + $0x278] sm:$0xff]
      %v5722 = vld [vmem:[%s280 + $0x280] sm:$0xff]
      %v5723 = vld [vmem:[%s280 + $0x288] sm:$0xff]
      %v5724 = vld [vmem:[%s280 + $0x290] sm:$0xff]
      %v5725 = vld [vmem:[%s280 + $0x298] sm:$0xff]
      %v5726 = vld [vmem:[%s280 + $0x2a0] sm:$0xff]
      %v5727 = vld [vmem:[%s280 + $0x2a8] sm:$0xff]
      %v5728 = vld [vmem:[%s280 + $0x2b0] sm:$0xff]
      %v5729 = vld [vmem:[%s280 + $0x2b8] sm:$0xff]
      %v5730 = vld [vmem:[%s280 + $0x2c0] sm:$0xff]
      %v5731 = vld [vmem:[%s280 + $0x2c8] sm:$0xff]
      %v5732 = vld [vmem:[%s280 + $0x2d0] sm:$0xff]
      %v5733 = vld [vmem:[%s280 + $0x2d8] sm:$0xff]
      %v5734 = vld [vmem:[%s280 + $0x2e0] sm:$0xff]
      %v5735 = vld [vmem:[%s280 + $0x2e8] sm:$0xff]
      %v5736 = vld [vmem:[%s280 + $0x2f0] sm:$0xff]
      %v5737 = vld [vmem:[%s280 + $0x2f8] sm:$0xff]
      %v5738 = vld [vmem:[%s280 + $0x300] sm:$0xff]
      %v5739 = vld [vmem:[%s280 + $0x308] sm:$0xff]
      %v5740 = vld [vmem:[%s280 + $0x310] sm:$0xff]
      %v5741 = vld [vmem:[%s280 + $0x318] sm:$0xff]
      %v5742 = vld [vmem:[%s280 + $0x320] sm:$0xff]
      %v5743 = vld [vmem:[%s280 + $0x328] sm:$0xff]
      %v5744 = vld [vmem:[%s280 + $0x330] sm:$0xff]
      %v5745 = vld [vmem:[%s280 + $0x338] sm:$0xff]
      %v5746 = vld [vmem:[%s280 + $0x340] sm:$0xff]
      %v5747 = vld [vmem:[%s280 + $0x348] sm:$0xff]
      %v5748 = vld [vmem:[%s280 + $0x350] sm:$0xff]
      %v5749 = vld [vmem:[%s280 + $0x358] sm:$0xff]
      %v5750 = vld [vmem:[%s280 + $0x360] sm:$0xff]
      %v5751 = vld [vmem:[%s280 + $0x368] sm:$0xff]
      %v5752 = vld [vmem:[%s280 + $0x370] sm:$0xff]
      %v5753 = vld [vmem:[%s280 + $0x378] sm:$0xff]
      %v5754 = vld [vmem:[%s280 + $0x380] sm:$0xff]
      %v5755 = vld [vmem:[%s280 + $0x388] sm:$0xff]
      %v5756 = vld [vmem:[%s280 + $0x390] sm:$0xff]
      %v5757 = vld [vmem:[%s280 + $0x398] sm:$0xff]
      %v5758 = vld [vmem:[%s280 + $0x3a0] sm:$0xff]
      %v5759 = vld [vmem:[%s280 + $0x3a8] sm:$0xff]
      %v5760 = vld [vmem:[%s280 + $0x3b0] sm:$0xff]
      %v5761 = vld [vmem:[%s280 + $0x3b8] sm:$0xff]
      %v5762 = vld [vmem:[%s280 + $0x3c0] sm:$0xff]
      %v5763 = vld [vmem:[%s280 + $0x3c8] sm:$0xff]
      %v5764 = vld [vmem:[%s280 + $0x3d0] sm:$0xff]
      %v5765 = vld [vmem:[%s280 + $0x3d8] sm:$0xff]
      %v5766 = vld [vmem:[%s280 + $0x3e0] sm:$0xff]
      %v5767 = vld [vmem:[%s280 + $0x3e8] sm:$0xff]
      %v5768 = vld [vmem:[%s280 + $0x3f0] sm:$0xff]
      %v5769 = vld [vmem:[%s280 + $0x3f8] sm:$0xff]
      %v5770 = vld [vmem:[%s280 + $0x400] sm:$0xff]
      %v5771 = vld [vmem:[%s280 + $0x408] sm:$0xff]
      %v5772 = vld [vmem:[%s280 + $0x410] sm:$0xff]
      %v5773 = vld [vmem:[%s280 + $0x418] sm:$0xff]
      %v5774 = vld [vmem:[%s280 + $0x420] sm:$0xff]
      %v5775 = vld [vmem:[%s280 + $0x428] sm:$0xff]
      %v5776 = vld [vmem:[%s280 + $0x430] sm:$0xff]
      %v5777 = vld [vmem:[%s280 + $0x438] sm:$0xff]
      %v5778 = vld [vmem:[%s280 + $0x440] sm:$0xff]
      %v5779 = vld [vmem:[%s280 + $0x448] sm:$0xff]
      %v5780 = vld [vmem:[%s280 + $0x450] sm:$0xff]
      %v5781 = vld [vmem:[%s280 + $0x458] sm:$0xff]
      %v5782 = vld [vmem:[%s280 + $0x460] sm:$0xff]
      %v5783 = vld [vmem:[%s280 + $0x468] sm:$0xff]
      %v5784 = vld [vmem:[%s280 + $0x470] sm:$0xff]
      %v5785 = vld [vmem:[%s280 + $0x478] sm:$0xff]
      %v5786 = vld [vmem:[%s280 + $0x480] sm:$0xff]
      %v5787 = vld [vmem:[%s280 + $0x488] sm:$0xff]
      %v5788 = vld [vmem:[%s280 + $0x490] sm:$0xff]
      %v5789 = vld [vmem:[%s280 + $0x498] sm:$0xff]
      %v5790 = vld [vmem:[%s280 + $0x4a0] sm:$0xff]
      %v5791 = vld [vmem:[%s280 + $0x4a8] sm:$0xff]
      %v5792 = vld [vmem:[%s280 + $0x4b0] sm:$0xff]
      %v5793 = vld [vmem:[%s280 + $0x4b8] sm:$0xff]
      %v5794 = vld [vmem:[%s280 + $0x4c0] sm:$0xff]
      %v5795 = vld [vmem:[%s280 + $0x4c8] sm:$0xff]
      %v5796 = vld [vmem:[%s280 + $0x4d0] sm:$0xff]
      %v5797 = vld [vmem:[%s280 + $0x4d8] sm:$0xff]
      %v5798 = vld [vmem:[%s280 + $0x4e0] sm:$0xff]
      %v5799 = vld [vmem:[%s280 + $0x4e8] sm:$0xff]
      %v5800 = vld [vmem:[%s280 + $0x4f0] sm:$0xff]
      %v5801 = vld [vmem:[%s280 + $0x4f8] sm:$0xff]
      %5802 = vmatpush.msra.mxu0 %v5717
      %5803 = vmatpush.msra.mxu0 %v5712
      %5804 = vmatpush.msra.mxu0 %v5707
      %5805 = vmatpush.msra.mxu0 %v5702
      %5806 = vmatpush.msra.mxu0 %v5697
      %5807 = vmatpush.msra.mxu0 %v5692
      %5808 = vmatpush.msra.mxu0 %v5687
      %5809 = vmatpush.msra.mxu0 %v5682
      %5810 = vmatpush.msra.mxu0 %v5677
      %5811 = vmatpush.msra.mxu0 %v5672
      %5812 = vmatpush.msra.mxu0 %v5667
      %5813 = vmatpush.msra.mxu0 %v5662
      %5814 = vmatpush.msra.mxu0 %v5657
      %5815 = vmatpush.msra.mxu0 %v5652
      %5816 = vmatpush.msra.mxu0 %v5647
      %5817 = vmatpush.msra.mxu0 %v5642
      %5818 = vmatmul.f32.gmra.mxu0 %v5558
      %v5819 = vpop.f32.mrf.mxu0
      %v5820 = vadd.f32 %v301, %v5819
      %5821 = vdwg.mxu0
      %5822 = vmatpush.msra.mxu0 %v5797
      %5823 = vmatpush.msra.mxu0 %v5792
      %5824 = vmatpush.msra.mxu0 %v5787
      %5825 = vmatpush.msra.mxu0 %v5782
      %5826 = vmatpush.msra.mxu0 %v5777
      %5827 = vmatpush.msra.mxu0 %v5772
      %5828 = vmatpush.msra.mxu0 %v5767
      %5829 = vmatpush.msra.mxu0 %v5762
      %5830 = vmatpush.msra.mxu0 %v5757
      %5831 = vmatpush.msra.mxu0 %v5752
      %5832 = vmatpush.msra.mxu0 %v5747
      %5833 = vmatpush.msra.mxu0 %v5742
      %5834 = vmatpush.msra.mxu0 %v5737
      %5835 = vmatpush.msra.mxu0 %v5732
      %5836 = vmatpush.msra.mxu0 %v5727
      %5837 = vmatpush.msra.mxu0 %v5722
      %5838 = vmatmul.f32.gmra.mxu0 %v5562
      %v5839 = vpop.f32.mrf.mxu0
      %v5840 = vadd.f32 %v5820, %v5839
      %5841 = vdwg.mxu0
      %5842 = vmatpush.msra.mxu0 %v5718
      %5843 = vmatpush.msra.mxu0 %v5713
      %5844 = vmatpush.msra.mxu0 %v5708
      %5845 = vmatpush.msra.mxu0 %v5703
      %5846 = vmatpush.msra.mxu0 %v5698
      %5847 = vmatpush.msra.mxu0 %v5693
      %5848 = vmatpush.msra.mxu0 %v5688
      %5849 = vmatpush.msra.mxu0 %v5683
      %5850 = vmatpush.msra.mxu0 %v5678
      %5851 = vmatpush.msra.mxu0 %v5673
      %5852 = vmatpush.msra.mxu0 %v5668
      %5853 = vmatpush.msra.mxu0 %v5663
      %5854 = vmatpush.msra.mxu0 %v5658
      %5855 = vmatpush.msra.mxu0 %v5653
      %5856 = vmatpush.msra.mxu0 %v5648
      %5857 = vmatpush.msra.mxu0 %v5643
      %5858 = vmatmul.f32.gmra.mxu0 %v5558
      %v5859 = vpop.f32.mrf.mxu0
      %v5860 = vadd.f32 %v302, %v5859
      %5861 = vdwg.mxu0
      %5862 = vmatpush.msra.mxu0 %v5798
      %5863 = vmatpush.msra.mxu0 %v5793
      %5864 = vmatpush.msra.mxu0 %v5788
      %5865 = vmatpush.msra.mxu0 %v5783
      %5866 = vmatpush.msra.mxu0 %v5778
      %5867 = vmatpush.msra.mxu0 %v5773
      %5868 = vmatpush.msra.mxu0 %v5768
      %5869 = vmatpush.msra.mxu0 %v5763
      %5870 = vmatpush.msra.mxu0 %v5758
      %5871 = vmatpush.msra.mxu0 %v5753
      %5872 = vmatpush.msra.mxu0 %v5748
      %5873 = vmatpush.msra.mxu0 %v5743
      %5874 = vmatpush.msra.mxu0 %v5738
      %5875 = vmatpush.msra.mxu0 %v5733
      %5876 = vmatpush.msra.mxu0 %v5728
      %5877 = vmatpush.msra.mxu0 %v5723
      %5878 = vmatmul.f32.gmra.mxu0 %v5562
      %v5879 = vpop.f32.mrf.mxu0
      %v5880 = vadd.f32 %v5860, %v5879
      %5881 = vdwg.mxu0
      %5882 = vmatpush.msra.mxu0 %v5719
      %5883 = vmatpush.msra.mxu0 %v5714
      %5884 = vmatpush.msra.mxu0 %v5709
      %5885 = vmatpush.msra.mxu0 %v5704
      %5886 = vmatpush.msra.mxu0 %v5699
      %5887 = vmatpush.msra.mxu0 %v5694
      %5888 = vmatpush.msra.mxu0 %v5689
      %5889 = vmatpush.msra.mxu0 %v5684
      %5890 = vmatpush.msra.mxu0 %v5679
      %5891 = vmatpush.msra.mxu0 %v5674
      %5892 = vmatpush.msra.mxu0 %v5669
      %5893 = vmatpush.msra.mxu0 %v5664
      %5894 = vmatpush.msra.mxu0 %v5659
      %5895 = vmatpush.msra.mxu0 %v5654
      %5896 = vmatpush.msra.mxu0 %v5649
      %5897 = vmatpush.msra.mxu0 %v5644
      %5898 = vmatmul.f32.gmra.mxu0 %v5558
      %v5899 = vpop.f32.mrf.mxu0
      %v5900 = vadd.f32 %v303, %v5899
      %5901 = vdwg.mxu0
      %5902 = vmatpush.msra.mxu0 %v5799
      %5903 = vmatpush.msra.mxu0 %v5794
      %5904 = vmatpush.msra.mxu0 %v5789
      %5905 = vmatpush.msra.mxu0 %v5784
      %5906 = vmatpush.msra.mxu0 %v5779
      %5907 = vmatpush.msra.mxu0 %v5774
      %5908 = vmatpush.msra.mxu0 %v5769
      %5909 = vmatpush.msra.mxu0 %v5764
      %5910 = vmatpush.msra.mxu0 %v5759
      %5911 = vmatpush.msra.mxu0 %v5754
      %5912 = vmatpush.msra.mxu0 %v5749
      %5913 = vmatpush.msra.mxu0 %v5744
      %5914 = vmatpush.msra.mxu0 %v5739
      %5915 = vmatpush.msra.mxu0 %v5734
      %5916 = vmatpush.msra.mxu0 %v5729
      %5917 = vmatpush.msra.mxu0 %v5724
      %5918 = vmatmul.f32.gmra.mxu0 %v5562
      %v5919 = vpop.f32.mrf.mxu0
      %v5920 = vadd.f32 %v5900, %v5919
      %5921 = vdwg.mxu0
      %5922 = vmatpush.msra.mxu0 %v5720
      %5923 = vmatpush.msra.mxu0 %v5715
      %5924 = vmatpush.msra.mxu0 %v5710
      %5925 = vmatpush.msra.mxu0 %v5705
      %5926 = vmatpush.msra.mxu0 %v5700
      %5927 = vmatpush.msra.mxu0 %v5695
      %5928 = vmatpush.msra.mxu0 %v5690
      %5929 = vmatpush.msra.mxu0 %v5685
      %5930 = vmatpush.msra.mxu0 %v5680
      %5931 = vmatpush.msra.mxu0 %v5675
      %5932 = vmatpush.msra.mxu0 %v5670
      %5933 = vmatpush.msra.mxu0 %v5665
      %5934 = vmatpush.msra.mxu0 %v5660
      %5935 = vmatpush.msra.mxu0 %v5655
      %5936 = vmatpush.msra.mxu0 %v5650
      %5937 = vmatpush.msra.mxu0 %v5645
      %5938 = vmatmul.f32.gmra.mxu0 %v5558
      %v5939 = vpop.f32.mrf.mxu0
      %v5940 = vadd.f32 %v304, %v5939
      %5941 = vdwg.mxu0
      %5942 = vmatpush.msra.mxu0 %v5800
      %5943 = vmatpush.msra.mxu0 %v5795
      %5944 = vmatpush.msra.mxu0 %v5790
      %5945 = vmatpush.msra.mxu0 %v5785
      %5946 = vmatpush.msra.mxu0 %v5780
      %5947 = vmatpush.msra.mxu0 %v5775
      %5948 = vmatpush.msra.mxu0 %v5770
      %5949 = vmatpush.msra.mxu0 %v5765
      %5950 = vmatpush.msra.mxu0 %v5760
      %5951 = vmatpush.msra.mxu0 %v5755
      %5952 = vmatpush.msra.mxu0 %v5750
      %5953 = vmatpush.msra.mxu0 %v5745
      %5954 = vmatpush.msra.mxu0 %v5740
      %5955 = vmatpush.msra.mxu0 %v5735
      %5956 = vmatpush.msra.mxu0 %v5730
      %5957 = vmatpush.msra.mxu0 %v5725
      %5958 = vmatmul.f32.gmra.mxu0 %v5562
      %v5959 = vpop.f32.mrf.mxu0
      %v5960 = vadd.f32 %v5940, %v5959
      %5961 = vdwg.mxu0
      %5962 = vmatpush.msra.mxu0 %v5721
      %5963 = vmatpush.msra.mxu0 %v5716
      %5964 = vmatpush.msra.mxu0 %v5711
      %5965 = vmatpush.msra.mxu0 %v5706
      %5966 = vmatpush.msra.mxu0 %v5701
      %5967 = vmatpush.msra.mxu0 %v5696
      %5968 = vmatpush.msra.mxu0 %v5691
      %5969 = vmatpush.msra.mxu0 %v5686
      %5970 = vmatpush.msra.mxu0 %v5681
      %5971 = vmatpush.msra.mxu0 %v5676
      %5972 = vmatpush.msra.mxu0 %v5671
      %5973 = vmatpush.msra.mxu0 %v5666
      %5974 = vmatpush.msra.mxu0 %v5661
      %5975 = vmatpush.msra.mxu0 %v5656
      %5976 = vmatpush.msra.mxu0 %v5651
      %5977 = vmatpush.msra.mxu0 %v5646
      %5978 = vmatmul.f32.gmra.mxu0 %v5558
      %v5979 = vpop.f32.mrf.mxu0
      %v5980 = vadd.f32 %v305, %v5979
      %5981 = vdwg.mxu0
      %5982 = vmatpush.msra.mxu0 %v5801
      %5983 = vmatpush.msra.mxu0 %v5796
      %5984 = vmatpush.msra.mxu0 %v5791
      %5985 = vmatpush.msra.mxu0 %v5786
      %5986 = vmatpush.msra.mxu0 %v5781
      %5987 = vmatpush.msra.mxu0 %v5776
      %5988 = vmatpush.msra.mxu0 %v5771
      %5989 = vmatpush.msra.mxu0 %v5766
      %5990 = vmatpush.msra.mxu0 %v5761
      %5991 = vmatpush.msra.mxu0 %v5756
      %5992 = vmatpush.msra.mxu0 %v5751
      %5993 = vmatpush.msra.mxu0 %v5746
      %5994 = vmatpush.msra.mxu0 %v5741
      %5995 = vmatpush.msra.mxu0 %v5736
      %5996 = vmatpush.msra.mxu0 %v5731
      %5997 = vmatpush.msra.mxu0 %v5726
      %5998 = vmatmul.f32.gmra.mxu0 %v5562
      %v5999 = vpop.f32.mrf.mxu0
      %v6000 = vadd.f32 %v5980, %v5999
      %6001 = vdwg.mxu0
      %s6002 = scalar_lea.vmem %s275, 88
      %v6003 = vld [vmem:[%s6002] sm:$0xff]
      %v6008 = vrot.slane %v5920, 6
      %v6009 = vrot.slane %v5960, 4
      %v6010 = vrot.slane %v6000, 2
      %v6011 = vsel %vm685, %v5880, %v6008
      %v6012 = vsel %vm687, %v6009, %v6010
      %v6013 = vsel %vm689, %v6011, %v6012
      %v6015 = vadd.f32 %v6003, %v6013
      %v6016 = vxor.u32 %v6015, 2147483648
      %v6017 = vmul.f32 %v6016, 1.442695
      %v6018 = vpow.pop %v6017
      %v6019 = vadd.f32 %v6018, 1.0
      %v6020 = vrcp.pop %v6019
      %v6021 = vmul.f32 %v6019, %v6020
      %v6022 = vsub.f32 1.0, %v6021
      %v6023 = vmul.f32 %v6020, %v6022
      %v6024 = vadd.f32 %v6020, %v6023
      %vm6025 = vweird.f32 %v6019
      %vm6026 = vweird.f32 %v6020
      %vm6027 = vmor %vm6025, %vm6026
      %v6028 = vsel %vm6027, %v6020, %v6024
      %v6029 = vand.u32 2147483647, %v6019
      %vm6030 = vcmp.eq.f32.partialorder %v6029, 8.507059e+37
      %v6031 = vand.u32 %v6019, 2147483648
      %v6032 = vor.u32 1.1754944e-38, %v6031
      %v6033 = vsel %vm6030, %v6032, %v6028
      %v6034 = vmul.f32 1.0, %v6033
      %v6036 = vrot.slane %v6034, 4
      %v6038 = vmul.f32 %v6036, %v5840
      %v6039 = vrot.slane %v6034, 2
      %v6041 = vmul.f32 %v6034, %v6039
      %v6042 = vadd.f32 %v6038, %v6041
      %v6043 = vtanh.pop %v6042
      %v6044 = vrot.slane %v6034, 6
      %v6046 = vmul.f32 %v6044, %v6043
      %v6047 = vld [vmem:[%s289] sm:$0xff]
      %v6048 = vld [vmem:[%s289 + $0x8] sm:$0xff]
      %v6049 = vld [vmem:[%s289 + $0x10] sm:$0xff]
      %v6050 = vld [vmem:[%s289 + $0x18] sm:$0xff]
      %v6051 = vld [vmem:[%s289 + $0x20] sm:$0xff]
      %v6052 = vld [vmem:[%s289 + $0x28] sm:$0xff]
      %v6053 = vld [vmem:[%s289 + $0x30] sm:$0xff]
      %v6054 = vld [vmem:[%s289 + $0x38] sm:$0xff]
      %v6055 = vld [vmem:[%s289 + $0x40] sm:$0xff]
      %v6056 = vld [vmem:[%s289 + $0x48] sm:$0xff]
      %v6057 = vld [vmem:[%s289 + $0x50] sm:$0xff]
      %v6058 = vld [vmem:[%s289 + $0x58] sm:$0xff]
      %v6059 = vld [vmem:[%s289 + $0x60] sm:$0xff]
      %v6060 = vld [vmem:[%s289 + $0x68] sm:$0xff]
      %v6061 = vld [vmem:[%s289 + $0x70] sm:$0xff]
      %v6062 = vld [vmem:[%s289 + $0x78] sm:$0xff]
      %v6063 = vld [vmem:[%s289 + $0x80] sm:$0xff]
      %v6064 = vld [vmem:[%s289 + $0x88] sm:$0xff]
      %v6065 = vld [vmem:[%s289 + $0x90] sm:$0xff]
      %v6066 = vld [vmem:[%s289 + $0x98] sm:$0xff]
      %v6067 = vld [vmem:[%s289 + $0xa0] sm:$0xff]
      %v6068 = vld [vmem:[%s289 + $0xa8] sm:$0xff]
      %v6069 = vld [vmem:[%s289 + $0xb0] sm:$0xff]
      %v6070 = vld [vmem:[%s289 + $0xb8] sm:$0xff]
      %v6071 = vld [vmem:[%s289 + $0xc0] sm:$0xff]
      %v6072 = vld [vmem:[%s289 + $0xc8] sm:$0xff]
      %v6073 = vld [vmem:[%s289 + $0xd0] sm:$0xff]
      %v6074 = vld [vmem:[%s289 + $0xd8] sm:$0xff]
      %v6075 = vld [vmem:[%s289 + $0xe0] sm:$0xff]
      %v6076 = vld [vmem:[%s289 + $0xe8] sm:$0xff]
      %v6077 = vld [vmem:[%s289 + $0xf0] sm:$0xff]
      %v6078 = vld [vmem:[%s289 + $0xf8] sm:$0xff]
      %6079 = vmatpush.msra.mxu0 %v6077
      %6080 = vmatpush.msra.mxu0 %v6075
      %6081 = vmatpush.msra.mxu0 %v6073
      %6082 = vmatpush.msra.mxu0 %v6071
      %6083 = vmatpush.msra.mxu0 %v6069
      %6084 = vmatpush.msra.mxu0 %v6067
      %6085 = vmatpush.msra.mxu0 %v6065
      %6086 = vmatpush.msra.mxu0 %v6063
      %6087 = vmatpush.msra.mxu0 %v6061
      %6088 = vmatpush.msra.mxu0 %v6059
      %6089 = vmatpush.msra.mxu0 %v6057
      %6090 = vmatpush.msra.mxu0 %v6055
      %6091 = vmatpush.msra.mxu0 %v6053
      %6092 = vmatpush.msra.mxu0 %v6051
      %6093 = vmatpush.msra.mxu0 %v6049
      %6094 = vmatpush.msra.mxu0 %v6047
      %6095 = vmatmul.f32.gmra.mxu0 %v6046
      %v6096 = vpop.f32.mrf.mxu0
      %v6097 = vadd.f32 %v313, %v6096
      %6098 = vdwg.mxu0
      %6099 = vmatpush.msra.mxu0 %v6078
      %6100 = vmatpush.msra.mxu0 %v6076
      %6101 = vmatpush.msra.mxu0 %v6074
      %6102 = vmatpush.msra.mxu0 %v6072
      %6103 = vmatpush.msra.mxu0 %v6070
      %6104 = vmatpush.msra.mxu0 %v6068
      %6105 = vmatpush.msra.mxu0 %v6066
      %6106 = vmatpush.msra.mxu0 %v6064
      %6107 = vmatpush.msra.mxu0 %v6062
      %6108 = vmatpush.msra.mxu0 %v6060
      %6109 = vmatpush.msra.mxu0 %v6058
      %6110 = vmatpush.msra.mxu0 %v6056
      %6111 = vmatpush.msra.mxu0 %v6054
      %6112 = vmatpush.msra.mxu0 %v6052
      %6113 = vmatpush.msra.mxu0 %v6050
      %6114 = vmatpush.msra.mxu0 %v6048
      %6115 = vmatmul.f32.gmra.mxu0 %v6046
      %v6116 = vpop.f32.mrf.mxu0
      %v6117 = vadd.f32 %v314, %v6116
      %6118 = vdwg.mxu0
      %v6121 = vrot.slane %v6117, 6
      %v6122 = vsel %vm685, %v6097, %v6121
      %s6124 = scalar_lea.vmem %s298, 44
      %6125 = vst [vmem:[%s6124] sm:$0xf] %v6122
      %v6126 = vld [vmem:[%s280] sm:$0xff]
      %v6127 = vld [vmem:[%s280 + $0x8] sm:$0xff]
      %v6128 = vld [vmem:[%s280 + $0x10] sm:$0xff]
      %v6129 = vld [vmem:[%s280 + $0x18] sm:$0xff]
      %v6130 = vld [vmem:[%s280 + $0x20] sm:$0xff]
      %v6131 = vld [vmem:[%s280 + $0x28] sm:$0xff]
      %v6132 = vld [vmem:[%s280 + $0x30] sm:$0xff]
      %v6133 = vld [vmem:[%s280 + $0x38] sm:$0xff]
      %v6134 = vld [vmem:[%s280 + $0x40] sm:$0xff]
      %v6135 = vld [vmem:[%s280 + $0x48] sm:$0xff]
      %v6136 = vld [vmem:[%s280 + $0x50] sm:$0xff]
      %v6137 = vld [vmem:[%s280 + $0x58] sm:$0xff]
      %v6138 = vld [vmem:[%s280 + $0x60] sm:$0xff]
      %v6139 = vld [vmem:[%s280 + $0x68] sm:$0xff]
      %v6140 = vld [vmem:[%s280 + $0x70] sm:$0xff]
      %v6141 = vld [vmem:[%s280 + $0x78] sm:$0xff]
      %v6142 = vld [vmem:[%s280 + $0x80] sm:$0xff]
      %v6143 = vld [vmem:[%s280 + $0x88] sm:$0xff]
      %v6144 = vld [vmem:[%s280 + $0x90] sm:$0xff]
      %v6145 = vld [vmem:[%s280 + $0x98] sm:$0xff]
      %v6146 = vld [vmem:[%s280 + $0xa0] sm:$0xff]
      %v6147 = vld [vmem:[%s280 + $0xa8] sm:$0xff]
      %v6148 = vld [vmem:[%s280 + $0xb0] sm:$0xff]
      %v6149 = vld [vmem:[%s280 + $0xb8] sm:$0xff]
      %v6150 = vld [vmem:[%s280 + $0xc0] sm:$0xff]
      %v6151 = vld [vmem:[%s280 + $0xc8] sm:$0xff]
      %v6152 = vld [vmem:[%s280 + $0xd0] sm:$0xff]
      %v6153 = vld [vmem:[%s280 + $0xd8] sm:$0xff]
      %v6154 = vld [vmem:[%s280 + $0xe0] sm:$0xff]
      %v6155 = vld [vmem:[%s280 + $0xe8] sm:$0xff]
      %v6156 = vld [vmem:[%s280 + $0xf0] sm:$0xff]
      %v6157 = vld [vmem:[%s280 + $0xf8] sm:$0xff]
      %v6158 = vld [vmem:[%s280 + $0x100] sm:$0xff]
      %v6159 = vld [vmem:[%s280 + $0x108] sm:$0xff]
      %v6160 = vld [vmem:[%s280 + $0x110] sm:$0xff]
      %v6161 = vld [vmem:[%s280 + $0x118] sm:$0xff]
      %v6162 = vld [vmem:[%s280 + $0x120] sm:$0xff]
      %v6163 = vld [vmem:[%s280 + $0x128] sm:$0xff]
      %v6164 = vld [vmem:[%s280 + $0x130] sm:$0xff]
      %v6165 = vld [vmem:[%s280 + $0x138] sm:$0xff]
      %v6166 = vld [vmem:[%s280 + $0x140] sm:$0xff]
      %v6167 = vld [vmem:[%s280 + $0x148] sm:$0xff]
      %v6168 = vld [vmem:[%s280 + $0x150] sm:$0xff]
      %v6169 = vld [vmem:[%s280 + $0x158] sm:$0xff]
      %v6170 = vld [vmem:[%s280 + $0x160] sm:$0xff]
      %v6171 = vld [vmem:[%s280 + $0x168] sm:$0xff]
      %v6172 = vld [vmem:[%s280 + $0x170] sm:$0xff]
      %v6173 = vld [vmem:[%s280 + $0x178] sm:$0xff]
      %v6174 = vld [vmem:[%s280 + $0x180] sm:$0xff]
      %v6175 = vld [vmem:[%s280 + $0x188] sm:$0xff]
      %v6176 = vld [vmem:[%s280 + $0x190] sm:$0xff]
      %v6177 = vld [vmem:[%s280 + $0x198] sm:$0xff]
      %v6178 = vld [vmem:[%s280 + $0x1a0] sm:$0xff]
      %v6179 = vld [vmem:[%s280 + $0x1a8] sm:$0xff]
      %v6180 = vld [vmem:[%s280 + $0x1b0] sm:$0xff]
      %v6181 = vld [vmem:[%s280 + $0x1b8] sm:$0xff]
      %v6182 = vld [vmem:[%s280 + $0x1c0] sm:$0xff]
      %v6183 = vld [vmem:[%s280 + $0x1c8] sm:$0xff]
      %v6184 = vld [vmem:[%s280 + $0x1d0] sm:$0xff]
      %v6185 = vld [vmem:[%s280 + $0x1d8] sm:$0xff]
      %v6186 = vld [vmem:[%s280 + $0x1e0] sm:$0xff]
      %v6187 = vld [vmem:[%s280 + $0x1e8] sm:$0xff]
      %v6188 = vld [vmem:[%s280 + $0x1f0] sm:$0xff]
      %v6189 = vld [vmem:[%s280 + $0x1f8] sm:$0xff]
      %v6190 = vld [vmem:[%s280 + $0x200] sm:$0xff]
      %v6191 = vld [vmem:[%s280 + $0x208] sm:$0xff]
      %v6192 = vld [vmem:[%s280 + $0x210] sm:$0xff]
      %v6193 = vld [vmem:[%s280 + $0x218] sm:$0xff]
      %v6194 = vld [vmem:[%s280 + $0x220] sm:$0xff]
      %v6195 = vld [vmem:[%s280 + $0x228] sm:$0xff]
      %v6196 = vld [vmem:[%s280 + $0x230] sm:$0xff]
      %v6197 = vld [vmem:[%s280 + $0x238] sm:$0xff]
      %v6198 = vld [vmem:[%s280 + $0x240] sm:$0xff]
      %v6199 = vld [vmem:[%s280 + $0x248] sm:$0xff]
      %v6200 = vld [vmem:[%s280 + $0x250] sm:$0xff]
      %v6201 = vld [vmem:[%s280 + $0x258] sm:$0xff]
      %v6202 = vld [vmem:[%s280 + $0x260] sm:$0xff]
      %v6203 = vld [vmem:[%s280 + $0x268] sm:$0xff]
      %v6204 = vld [vmem:[%s280 + $0x270] sm:$0xff]
      %v6205 = vld [vmem:[%s280 + $0x278] sm:$0xff]
      %v6206 = vld [vmem:[%s280 + $0x280] sm:$0xff]
      %v6207 = vld [vmem:[%s280 + $0x288] sm:$0xff]
      %v6208 = vld [vmem:[%s280 + $0x290] sm:$0xff]
      %v6209 = vld [vmem:[%s280 + $0x298] sm:$0xff]
      %v6210 = vld [vmem:[%s280 + $0x2a0] sm:$0xff]
      %v6211 = vld [vmem:[%s280 + $0x2a8] sm:$0xff]
      %v6212 = vld [vmem:[%s280 + $0x2b0] sm:$0xff]
      %v6213 = vld [vmem:[%s280 + $0x2b8] sm:$0xff]
      %v6214 = vld [vmem:[%s280 + $0x2c0] sm:$0xff]
      %v6215 = vld [vmem:[%s280 + $0x2c8] sm:$0xff]
      %v6216 = vld [vmem:[%s280 + $0x2d0] sm:$0xff]
      %v6217 = vld [vmem:[%s280 + $0x2d8] sm:$0xff]
      %v6218 = vld [vmem:[%s280 + $0x2e0] sm:$0xff]
      %v6219 = vld [vmem:[%s280 + $0x2e8] sm:$0xff]
      %v6220 = vld [vmem:[%s280 + $0x2f0] sm:$0xff]
      %v6221 = vld [vmem:[%s280 + $0x2f8] sm:$0xff]
      %v6222 = vld [vmem:[%s280 + $0x300] sm:$0xff]
      %v6223 = vld [vmem:[%s280 + $0x308] sm:$0xff]
      %v6224 = vld [vmem:[%s280 + $0x310] sm:$0xff]
      %v6225 = vld [vmem:[%s280 + $0x318] sm:$0xff]
      %v6226 = vld [vmem:[%s280 + $0x320] sm:$0xff]
      %v6227 = vld [vmem:[%s280 + $0x328] sm:$0xff]
      %v6228 = vld [vmem:[%s280 + $0x330] sm:$0xff]
      %v6229 = vld [vmem:[%s280 + $0x338] sm:$0xff]
      %v6230 = vld [vmem:[%s280 + $0x340] sm:$0xff]
      %v6231 = vld [vmem:[%s280 + $0x348] sm:$0xff]
      %v6232 = vld [vmem:[%s280 + $0x350] sm:$0xff]
      %v6233 = vld [vmem:[%s280 + $0x358] sm:$0xff]
      %v6234 = vld [vmem:[%s280 + $0x360] sm:$0xff]
      %v6235 = vld [vmem:[%s280 + $0x368] sm:$0xff]
      %v6236 = vld [vmem:[%s280 + $0x370] sm:$0xff]
      %v6237 = vld [vmem:[%s280 + $0x378] sm:$0xff]
      %v6238 = vld [vmem:[%s280 + $0x380] sm:$0xff]
      %v6239 = vld [vmem:[%s280 + $0x388] sm:$0xff]
      %v6240 = vld [vmem:[%s280 + $0x390] sm:$0xff]
      %v6241 = vld [vmem:[%s280 + $0x398] sm:$0xff]
      %v6242 = vld [vmem:[%s280 + $0x3a0] sm:$0xff]
      %v6243 = vld [vmem:[%s280 + $0x3a8] sm:$0xff]
      %v6244 = vld [vmem:[%s280 + $0x3b0] sm:$0xff]
      %v6245 = vld [vmem:[%s280 + $0x3b8] sm:$0xff]
      %v6246 = vld [vmem:[%s280 + $0x3c0] sm:$0xff]
      %v6247 = vld [vmem:[%s280 + $0x3c8] sm:$0xff]
      %v6248 = vld [vmem:[%s280 + $0x3d0] sm:$0xff]
      %v6249 = vld [vmem:[%s280 + $0x3d8] sm:$0xff]
      %v6250 = vld [vmem:[%s280 + $0x3e0] sm:$0xff]
      %v6251 = vld [vmem:[%s280 + $0x3e8] sm:$0xff]
      %v6252 = vld [vmem:[%s280 + $0x3f0] sm:$0xff]
      %v6253 = vld [vmem:[%s280 + $0x3f8] sm:$0xff]
      %v6254 = vld [vmem:[%s280 + $0x400] sm:$0xff]
      %v6255 = vld [vmem:[%s280 + $0x408] sm:$0xff]
      %v6256 = vld [vmem:[%s280 + $0x410] sm:$0xff]
      %v6257 = vld [vmem:[%s280 + $0x418] sm:$0xff]
      %v6258 = vld [vmem:[%s280 + $0x420] sm:$0xff]
      %v6259 = vld [vmem:[%s280 + $0x428] sm:$0xff]
      %v6260 = vld [vmem:[%s280 + $0x430] sm:$0xff]
      %v6261 = vld [vmem:[%s280 + $0x438] sm:$0xff]
      %v6262 = vld [vmem:[%s280 + $0x440] sm:$0xff]
      %v6263 = vld [vmem:[%s280 + $0x448] sm:$0xff]
      %v6264 = vld [vmem:[%s280 + $0x450] sm:$0xff]
      %v6265 = vld [vmem:[%s280 + $0x458] sm:$0xff]
      %v6266 = vld [vmem:[%s280 + $0x460] sm:$0xff]
      %v6267 = vld [vmem:[%s280 + $0x468] sm:$0xff]
      %v6268 = vld [vmem:[%s280 + $0x470] sm:$0xff]
      %v6269 = vld [vmem:[%s280 + $0x478] sm:$0xff]
      %v6270 = vld [vmem:[%s280 + $0x480] sm:$0xff]
      %v6271 = vld [vmem:[%s280 + $0x488] sm:$0xff]
      %v6272 = vld [vmem:[%s280 + $0x490] sm:$0xff]
      %v6273 = vld [vmem:[%s280 + $0x498] sm:$0xff]
      %v6274 = vld [vmem:[%s280 + $0x4a0] sm:$0xff]
      %v6275 = vld [vmem:[%s280 + $0x4a8] sm:$0xff]
      %v6276 = vld [vmem:[%s280 + $0x4b0] sm:$0xff]
      %v6277 = vld [vmem:[%s280 + $0x4b8] sm:$0xff]
      %v6278 = vld [vmem:[%s280 + $0x4c0] sm:$0xff]
      %v6279 = vld [vmem:[%s280 + $0x4c8] sm:$0xff]
      %v6280 = vld [vmem:[%s280 + $0x4d0] sm:$0xff]
      %v6281 = vld [vmem:[%s280 + $0x4d8] sm:$0xff]
      %v6282 = vld [vmem:[%s280 + $0x4e0] sm:$0xff]
      %v6283 = vld [vmem:[%s280 + $0x4e8] sm:$0xff]
      %v6284 = vld [vmem:[%s280 + $0x4f0] sm:$0xff]
      %v6285 = vld [vmem:[%s280 + $0x4f8] sm:$0xff]
      %6286 = vmatpush.msra.mxu0 %v6201
      %6287 = vmatpush.msra.mxu0 %v6196
      %6288 = vmatpush.msra.mxu0 %v6191
      %6289 = vmatpush.msra.mxu0 %v6186
      %6290 = vmatpush.msra.mxu0 %v6181
      %6291 = vmatpush.msra.mxu0 %v6176
      %6292 = vmatpush.msra.mxu0 %v6171
      %6293 = vmatpush.msra.mxu0 %v6166
      %6294 = vmatpush.msra.mxu0 %v6161
      %6295 = vmatpush.msra.mxu0 %v6156
      %6296 = vmatpush.msra.mxu0 %v6151
      %6297 = vmatpush.msra.mxu0 %v6146
      %6298 = vmatpush.msra.mxu0 %v6141
      %6299 = vmatpush.msra.mxu0 %v6136
      %6300 = vmatpush.msra.mxu0 %v6131
      %6301 = vmatpush.msra.mxu0 %v6126
      %6302 = vmatmul.f32.gmra.mxu0 %v6042
      %v6303 = vpop.f32.mrf.mxu0
      %v6304 = vadd.f32 %v301, %v6303
      %6305 = vdwg.mxu0
      %6306 = vmatpush.msra.mxu0 %v6281
      %6307 = vmatpush.msra.mxu0 %v6276
      %6308 = vmatpush.msra.mxu0 %v6271
      %6309 = vmatpush.msra.mxu0 %v6266
      %6310 = vmatpush.msra.mxu0 %v6261
      %6311 = vmatpush.msra.mxu0 %v6256
      %6312 = vmatpush.msra.mxu0 %v6251
      %6313 = vmatpush.msra.mxu0 %v6246
      %6314 = vmatpush.msra.mxu0 %v6241
      %6315 = vmatpush.msra.mxu0 %v6236
      %6316 = vmatpush.msra.mxu0 %v6231
      %6317 = vmatpush.msra.mxu0 %v6226
      %6318 = vmatpush.msra.mxu0 %v6221
      %6319 = vmatpush.msra.mxu0 %v6216
      %6320 = vmatpush.msra.mxu0 %v6211
      %6321 = vmatpush.msra.mxu0 %v6206
      %6322 = vmatmul.f32.gmra.mxu0 %v6046
      %v6323 = vpop.f32.mrf.mxu0
      %v6324 = vadd.f32 %v6304, %v6323
      %6325 = vdwg.mxu0
      %6326 = vmatpush.msra.mxu0 %v6202
      %6327 = vmatpush.msra.mxu0 %v6197
      %6328 = vmatpush.msra.mxu0 %v6192
      %6329 = vmatpush.msra.mxu0 %v6187
      %6330 = vmatpush.msra.mxu0 %v6182
      %6331 = vmatpush.msra.mxu0 %v6177
      %6332 = vmatpush.msra.mxu0 %v6172
      %6333 = vmatpush.msra.mxu0 %v6167
      %6334 = vmatpush.msra.mxu0 %v6162
      %6335 = vmatpush.msra.mxu0 %v6157
      %6336 = vmatpush.msra.mxu0 %v6152
      %6337 = vmatpush.msra.mxu0 %v6147
      %6338 = vmatpush.msra.mxu0 %v6142
      %6339 = vmatpush.msra.mxu0 %v6137
      %6340 = vmatpush.msra.mxu0 %v6132
      %6341 = vmatpush.msra.mxu0 %v6127
      %6342 = vmatmul.f32.gmra.mxu0 %v6042
      %v6343 = vpop.f32.mrf.mxu0
      %v6344 = vadd.f32 %v302, %v6343
      %6345 = vdwg.mxu0
      %6346 = vmatpush.msra.mxu0 %v6282
      %6347 = vmatpush.msra.mxu0 %v6277
      %6348 = vmatpush.msra.mxu0 %v6272
      %6349 = vmatpush.msra.mxu0 %v6267
      %6350 = vmatpush.msra.mxu0 %v6262
      %6351 = vmatpush.msra.mxu0 %v6257
      %6352 = vmatpush.msra.mxu0 %v6252
      %6353 = vmatpush.msra.mxu0 %v6247
      %6354 = vmatpush.msra.mxu0 %v6242
      %6355 = vmatpush.msra.mxu0 %v6237
      %6356 = vmatpush.msra.mxu0 %v6232
      %6357 = vmatpush.msra.mxu0 %v6227
      %6358 = vmatpush.msra.mxu0 %v6222
      %6359 = vmatpush.msra.mxu0 %v6217
      %6360 = vmatpush.msra.mxu0 %v6212
      %6361 = vmatpush.msra.mxu0 %v6207
      %6362 = vmatmul.f32.gmra.mxu0 %v6046
      %v6363 = vpop.f32.mrf.mxu0
      %v6364 = vadd.f32 %v6344, %v6363
      %6365 = vdwg.mxu0
      %6366 = vmatpush.msra.mxu0 %v6203
      %6367 = vmatpush.msra.mxu0 %v6198
      %6368 = vmatpush.msra.mxu0 %v6193
      %6369 = vmatpush.msra.mxu0 %v6188
      %6370 = vmatpush.msra.mxu0 %v6183
      %6371 = vmatpush.msra.mxu0 %v6178
      %6372 = vmatpush.msra.mxu0 %v6173
      %6373 = vmatpush.msra.mxu0 %v6168
      %6374 = vmatpush.msra.mxu0 %v6163
      %6375 = vmatpush.msra.mxu0 %v6158
      %6376 = vmatpush.msra.mxu0 %v6153
      %6377 = vmatpush.msra.mxu0 %v6148
      %6378 = vmatpush.msra.mxu0 %v6143
      %6379 = vmatpush.msra.mxu0 %v6138
      %6380 = vmatpush.msra.mxu0 %v6133
      %6381 = vmatpush.msra.mxu0 %v6128
      %6382 = vmatmul.f32.gmra.mxu0 %v6042
      %v6383 = vpop.f32.mrf.mxu0
      %v6384 = vadd.f32 %v303, %v6383
      %6385 = vdwg.mxu0
      %6386 = vmatpush.msra.mxu0 %v6283
      %6387 = vmatpush.msra.mxu0 %v6278
      %6388 = vmatpush.msra.mxu0 %v6273
      %6389 = vmatpush.msra.mxu0 %v6268
      %6390 = vmatpush.msra.mxu0 %v6263
      %6391 = vmatpush.msra.mxu0 %v6258
      %6392 = vmatpush.msra.mxu0 %v6253
      %6393 = vmatpush.msra.mxu0 %v6248
      %6394 = vmatpush.msra.mxu0 %v6243
      %6395 = vmatpush.msra.mxu0 %v6238
      %6396 = vmatpush.msra.mxu0 %v6233
      %6397 = vmatpush.msra.mxu0 %v6228
      %6398 = vmatpush.msra.mxu0 %v6223
      %6399 = vmatpush.msra.mxu0 %v6218
      %6400 = vmatpush.msra.mxu0 %v6213
      %6401 = vmatpush.msra.mxu0 %v6208
      %6402 = vmatmul.f32.gmra.mxu0 %v6046
      %v6403 = vpop.f32.mrf.mxu0
      %v6404 = vadd.f32 %v6384, %v6403
      %6405 = vdwg.mxu0
      %6406 = vmatpush.msra.mxu0 %v6204
      %6407 = vmatpush.msra.mxu0 %v6199
      %6408 = vmatpush.msra.mxu0 %v6194
      %6409 = vmatpush.msra.mxu0 %v6189
      %6410 = vmatpush.msra.mxu0 %v6184
      %6411 = vmatpush.msra.mxu0 %v6179
      %6412 = vmatpush.msra.mxu0 %v6174
      %6413 = vmatpush.msra.mxu0 %v6169
      %6414 = vmatpush.msra.mxu0 %v6164
      %6415 = vmatpush.msra.mxu0 %v6159
      %6416 = vmatpush.msra.mxu0 %v6154
      %6417 = vmatpush.msra.mxu0 %v6149
      %6418 = vmatpush.msra.mxu0 %v6144
      %6419 = vmatpush.msra.mxu0 %v6139
      %6420 = vmatpush.msra.mxu0 %v6134
      %6421 = vmatpush.msra.mxu0 %v6129
      %6422 = vmatmul.f32.gmra.mxu0 %v6042
      %v6423 = vpop.f32.mrf.mxu0
      %v6424 = vadd.f32 %v304, %v6423
      %6425 = vdwg.mxu0
      %6426 = vmatpush.msra.mxu0 %v6284
      %6427 = vmatpush.msra.mxu0 %v6279
      %6428 = vmatpush.msra.mxu0 %v6274
      %6429 = vmatpush.msra.mxu0 %v6269
      %6430 = vmatpush.msra.mxu0 %v6264
      %6431 = vmatpush.msra.mxu0 %v6259
      %6432 = vmatpush.msra.mxu0 %v6254
      %6433 = vmatpush.msra.mxu0 %v6249
      %6434 = vmatpush.msra.mxu0 %v6244
      %6435 = vmatpush.msra.mxu0 %v6239
      %6436 = vmatpush.msra.mxu0 %v6234
      %6437 = vmatpush.msra.mxu0 %v6229
      %6438 = vmatpush.msra.mxu0 %v6224
      %6439 = vmatpush.msra.mxu0 %v6219
      %6440 = vmatpush.msra.mxu0 %v6214
      %6441 = vmatpush.msra.mxu0 %v6209
      %6442 = vmatmul.f32.gmra.mxu0 %v6046
      %v6443 = vpop.f32.mrf.mxu0
      %v6444 = vadd.f32 %v6424, %v6443
      %6445 = vdwg.mxu0
      %6446 = vmatpush.msra.mxu0 %v6205
      %6447 = vmatpush.msra.mxu0 %v6200
      %6448 = vmatpush.msra.mxu0 %v6195
      %6449 = vmatpush.msra.mxu0 %v6190
      %6450 = vmatpush.msra.mxu0 %v6185
      %6451 = vmatpush.msra.mxu0 %v6180
      %6452 = vmatpush.msra.mxu0 %v6175
      %6453 = vmatpush.msra.mxu0 %v6170
      %6454 = vmatpush.msra.mxu0 %v6165
      %6455 = vmatpush.msra.mxu0 %v6160
      %6456 = vmatpush.msra.mxu0 %v6155
      %6457 = vmatpush.msra.mxu0 %v6150
      %6458 = vmatpush.msra.mxu0 %v6145
      %6459 = vmatpush.msra.mxu0 %v6140
      %6460 = vmatpush.msra.mxu0 %v6135
      %6461 = vmatpush.msra.mxu0 %v6130
      %6462 = vmatmul.f32.gmra.mxu0 %v6042
      %v6463 = vpop.f32.mrf.mxu0
      %v6464 = vadd.f32 %v305, %v6463
      %6465 = vdwg.mxu0
      %6466 = vmatpush.msra.mxu0 %v6285
      %6467 = vmatpush.msra.mxu0 %v6280
      %6468 = vmatpush.msra.mxu0 %v6275
      %6469 = vmatpush.msra.mxu0 %v6270
      %6470 = vmatpush.msra.mxu0 %v6265
      %6471 = vmatpush.msra.mxu0 %v6260
      %6472 = vmatpush.msra.mxu0 %v6255
      %6473 = vmatpush.msra.mxu0 %v6250
      %6474 = vmatpush.msra.mxu0 %v6245
      %6475 = vmatpush.msra.mxu0 %v6240
      %6476 = vmatpush.msra.mxu0 %v6235
      %6477 = vmatpush.msra.mxu0 %v6230
      %6478 = vmatpush.msra.mxu0 %v6225
      %6479 = vmatpush.msra.mxu0 %v6220
      %6480 = vmatpush.msra.mxu0 %v6215
      %6481 = vmatpush.msra.mxu0 %v6210
      %6482 = vmatmul.f32.gmra.mxu0 %v6046
      %v6483 = vpop.f32.mrf.mxu0
      %v6484 = vadd.f32 %v6464, %v6483
      %6485 = vdwg.mxu0
      %s6486 = scalar_lea.vmem %s275, 96
      %v6487 = vld [vmem:[%s6486] sm:$0xff]
      %v6492 = vrot.slane %v6404, 6
      %v6493 = vrot.slane %v6444, 4
      %v6494 = vrot.slane %v6484, 2
      %v6495 = vsel %vm685, %v6364, %v6492
      %v6496 = vsel %vm687, %v6493, %v6494
      %v6497 = vsel %vm689, %v6495, %v6496
      %v6499 = vadd.f32 %v6487, %v6497
      %v6500 = vxor.u32 %v6499, 2147483648
      %v6501 = vmul.f32 %v6500, 1.442695
      %v6502 = vpow.pop %v6501
      %v6503 = vadd.f32 %v6502, 1.0
      %v6504 = vrcp.pop %v6503
      %v6505 = vmul.f32 %v6503, %v6504
      %v6506 = vsub.f32 1.0, %v6505
      %v6507 = vmul.f32 %v6504, %v6506
      %v6508 = vadd.f32 %v6504, %v6507
      %vm6509 = vweird.f32 %v6503
      %vm6510 = vweird.f32 %v6504
      %vm6511 = vmor %vm6509, %vm6510
      %v6512 = vsel %vm6511, %v6504, %v6508
      %v6513 = vand.u32 2147483647, %v6503
      %vm6514 = vcmp.eq.f32.partialorder %v6513, 8.507059e+37
      %v6515 = vand.u32 %v6503, 2147483648
      %v6516 = vor.u32 1.1754944e-38, %v6515
      %v6517 = vsel %vm6514, %v6516, %v6512
      %v6518 = vmul.f32 1.0, %v6517
      %v6520 = vrot.slane %v6518, 4
      %v6522 = vmul.f32 %v6520, %v6324
      %v6523 = vrot.slane %v6518, 2
      %v6525 = vmul.f32 %v6518, %v6523
      %v6526 = vadd.f32 %v6522, %v6525
      %v6527 = vtanh.pop %v6526
      %v6528 = vrot.slane %v6518, 6
      %v6530 = vmul.f32 %v6528, %v6527
      %v6531 = vld [vmem:[%s289] sm:$0xff]
      %v6532 = vld [vmem:[%s289 + $0x8] sm:$0xff]
      %v6533 = vld [vmem:[%s289 + $0x10] sm:$0xff]
      %v6534 = vld [vmem:[%s289 + $0x18] sm:$0xff]
      %v6535 = vld [vmem:[%s289 + $0x20] sm:$0xff]
      %v6536 = vld [vmem:[%s289 + $0x28] sm:$0xff]
      %v6537 = vld [vmem:[%s289 + $0x30] sm:$0xff]
      %v6538 = vld [vmem:[%s289 + $0x38] sm:$0xff]
      %v6539 = vld [vmem:[%s289 + $0x40] sm:$0xff]
      %v6540 = vld [vmem:[%s289 + $0x48] sm:$0xff]
      %v6541 = vld [vmem:[%s289 + $0x50] sm:$0xff]
      %v6542 = vld [vmem:[%s289 + $0x58] sm:$0xff]
      %v6543 = vld [vmem:[%s289 + $0x60] sm:$0xff]
      %v6544 = vld [vmem:[%s289 + $0x68] sm:$0xff]
      %v6545 = vld [vmem:[%s289 + $0x70] sm:$0xff]
      %v6546 = vld [vmem:[%s289 + $0x78] sm:$0xff]
      %v6547 = vld [vmem:[%s289 + $0x80] sm:$0xff]
      %v6548 = vld [vmem:[%s289 + $0x88] sm:$0xff]
      %v6549 = vld [vmem:[%s289 + $0x90] sm:$0xff]
      %v6550 = vld [vmem:[%s289 + $0x98] sm:$0xff]
      %v6551 = vld [vmem:[%s289 + $0xa0] sm:$0xff]
      %v6552 = vld [vmem:[%s289 + $0xa8] sm:$0xff]
      %v6553 = vld [vmem:[%s289 + $0xb0] sm:$0xff]
      %v6554 = vld [vmem:[%s289 + $0xb8] sm:$0xff]
      %v6555 = vld [vmem:[%s289 + $0xc0] sm:$0xff]
      %v6556 = vld [vmem:[%s289 + $0xc8] sm:$0xff]
      %v6557 = vld [vmem:[%s289 + $0xd0] sm:$0xff]
      %v6558 = vld [vmem:[%s289 + $0xd8] sm:$0xff]
      %v6559 = vld [vmem:[%s289 + $0xe0] sm:$0xff]
      %v6560 = vld [vmem:[%s289 + $0xe8] sm:$0xff]
      %v6561 = vld [vmem:[%s289 + $0xf0] sm:$0xff]
      %v6562 = vld [vmem:[%s289 + $0xf8] sm:$0xff]
      %6563 = vmatpush.msra.mxu0 %v6561
      %6564 = vmatpush.msra.mxu0 %v6559
      %6565 = vmatpush.msra.mxu0 %v6557
      %6566 = vmatpush.msra.mxu0 %v6555
      %6567 = vmatpush.msra.mxu0 %v6553
      %6568 = vmatpush.msra.mxu0 %v6551
      %6569 = vmatpush.msra.mxu0 %v6549
      %6570 = vmatpush.msra.mxu0 %v6547
      %6571 = vmatpush.msra.mxu0 %v6545
      %6572 = vmatpush.msra.mxu0 %v6543
      %6573 = vmatpush.msra.mxu0 %v6541
      %6574 = vmatpush.msra.mxu0 %v6539
      %6575 = vmatpush.msra.mxu0 %v6537
      %6576 = vmatpush.msra.mxu0 %v6535
      %6577 = vmatpush.msra.mxu0 %v6533
      %6578 = vmatpush.msra.mxu0 %v6531
      %6579 = vmatmul.f32.gmra.mxu0 %v6530
      %v6580 = vpop.f32.mrf.mxu0
      %v6581 = vadd.f32 %v313, %v6580
      %6582 = vdwg.mxu0
      %6583 = vmatpush.msra.mxu0 %v6562
      %6584 = vmatpush.msra.mxu0 %v6560
      %6585 = vmatpush.msra.mxu0 %v6558
      %6586 = vmatpush.msra.mxu0 %v6556
      %6587 = vmatpush.msra.mxu0 %v6554
      %6588 = vmatpush.msra.mxu0 %v6552
      %6589 = vmatpush.msra.mxu0 %v6550
      %6590 = vmatpush.msra.mxu0 %v6548
      %6591 = vmatpush.msra.mxu0 %v6546
      %6592 = vmatpush.msra.mxu0 %v6544
      %6593 = vmatpush.msra.mxu0 %v6542
      %6594 = vmatpush.msra.mxu0 %v6540
      %6595 = vmatpush.msra.mxu0 %v6538
      %6596 = vmatpush.msra.mxu0 %v6536
      %6597 = vmatpush.msra.mxu0 %v6534
      %6598 = vmatpush.msra.mxu0 %v6532
      %6599 = vmatmul.f32.gmra.mxu0 %v6530
      %v6600 = vpop.f32.mrf.mxu0
      %v6601 = vadd.f32 %v314, %v6600
      %6602 = vdwg.mxu0
      %v6605 = vrot.slane %v6601, 6
      %v6606 = vsel %vm685, %v6581, %v6605
      %s6608 = scalar_lea.vmem %s298, 48
      %6609 = vst [vmem:[%s6608] sm:$0xf] %v6606
      %v6610 = vld [vmem:[%s280] sm:$0xff]
      %v6611 = vld [vmem:[%s280 + $0x8] sm:$0xff]
      %v6612 = vld [vmem:[%s280 + $0x10] sm:$0xff]
      %v6613 = vld [vmem:[%s280 + $0x18] sm:$0xff]
      %v6614 = vld [vmem:[%s280 + $0x20] sm:$0xff]
      %v6615 = vld [vmem:[%s280 + $0x28] sm:$0xff]
      %v6616 = vld [vmem:[%s280 + $0x30] sm:$0xff]
      %v6617 = vld [vmem:[%s280 + $0x38] sm:$0xff]
      %v6618 = vld [vmem:[%s280 + $0x40] sm:$0xff]
      %v6619 = vld [vmem:[%s280 + $0x48] sm:$0xff]
      %v6620 = vld [vmem:[%s280 + $0x50] sm:$0xff]
      %v6621 = vld [vmem:[%s280 + $0x58] sm:$0xff]
      %v6622 = vld [vmem:[%s280 + $0x60] sm:$0xff]
      %v6623 = vld [vmem:[%s280 + $0x68] sm:$0xff]
      %v6624 = vld [vmem:[%s280 + $0x70] sm:$0xff]
      %v6625 = vld [vmem:[%s280 + $0x78] sm:$0xff]
      %v6626 = vld [vmem:[%s280 + $0x80] sm:$0xff]
      %v6627 = vld [vmem:[%s280 + $0x88] sm:$0xff]
      %v6628 = vld [vmem:[%s280 + $0x90] sm:$0xff]
      %v6629 = vld [vmem:[%s280 + $0x98] sm:$0xff]
      %v6630 = vld [vmem:[%s280 + $0xa0] sm:$0xff]
      %v6631 = vld [vmem:[%s280 + $0xa8] sm:$0xff]
      %v6632 = vld [vmem:[%s280 + $0xb0] sm:$0xff]
      %v6633 = vld [vmem:[%s280 + $0xb8] sm:$0xff]
      %v6634 = vld [vmem:[%s280 + $0xc0] sm:$0xff]
      %v6635 = vld [vmem:[%s280 + $0xc8] sm:$0xff]
      %v6636 = vld [vmem:[%s280 + $0xd0] sm:$0xff]
      %v6637 = vld [vmem:[%s280 + $0xd8] sm:$0xff]
      %v6638 = vld [vmem:[%s280 + $0xe0] sm:$0xff]
      %v6639 = vld [vmem:[%s280 + $0xe8] sm:$0xff]
      %v6640 = vld [vmem:[%s280 + $0xf0] sm:$0xff]
      %v6641 = vld [vmem:[%s280 + $0xf8] sm:$0xff]
      %v6642 = vld [vmem:[%s280 + $0x100] sm:$0xff]
      %v6643 = vld [vmem:[%s280 + $0x108] sm:$0xff]
      %v6644 = vld [vmem:[%s280 + $0x110] sm:$0xff]
      %v6645 = vld [vmem:[%s280 + $0x118] sm:$0xff]
      %v6646 = vld [vmem:[%s280 + $0x120] sm:$0xff]
      %v6647 = vld [vmem:[%s280 + $0x128] sm:$0xff]
      %v6648 = vld [vmem:[%s280 + $0x130] sm:$0xff]
      %v6649 = vld [vmem:[%s280 + $0x138] sm:$0xff]
      %v6650 = vld [vmem:[%s280 + $0x140] sm:$0xff]
      %v6651 = vld [vmem:[%s280 + $0x148] sm:$0xff]
      %v6652 = vld [vmem:[%s280 + $0x150] sm:$0xff]
      %v6653 = vld [vmem:[%s280 + $0x158] sm:$0xff]
      %v6654 = vld [vmem:[%s280 + $0x160] sm:$0xff]
      %v6655 = vld [vmem:[%s280 + $0x168] sm:$0xff]
      %v6656 = vld [vmem:[%s280 + $0x170] sm:$0xff]
      %v6657 = vld [vmem:[%s280 + $0x178] sm:$0xff]
      %v6658 = vld [vmem:[%s280 + $0x180] sm:$0xff]
      %v6659 = vld [vmem:[%s280 + $0x188] sm:$0xff]
      %v6660 = vld [vmem:[%s280 + $0x190] sm:$0xff]
      %v6661 = vld [vmem:[%s280 + $0x198] sm:$0xff]
      %v6662 = vld [vmem:[%s280 + $0x1a0] sm:$0xff]
      %v6663 = vld [vmem:[%s280 + $0x1a8] sm:$0xff]
      %v6664 = vld [vmem:[%s280 + $0x1b0] sm:$0xff]
      %v6665 = vld [vmem:[%s280 + $0x1b8] sm:$0xff]
      %v6666 = vld [vmem:[%s280 + $0x1c0] sm:$0xff]
      %v6667 = vld [vmem:[%s280 + $0x1c8] sm:$0xff]
      %v6668 = vld [vmem:[%s280 + $0x1d0] sm:$0xff]
      %v6669 = vld [vmem:[%s280 + $0x1d8] sm:$0xff]
      %v6670 = vld [vmem:[%s280 + $0x1e0] sm:$0xff]
      %v6671 = vld [vmem:[%s280 + $0x1e8] sm:$0xff]
      %v6672 = vld [vmem:[%s280 + $0x1f0] sm:$0xff]
      %v6673 = vld [vmem:[%s280 + $0x1f8] sm:$0xff]
      %v6674 = vld [vmem:[%s280 + $0x200] sm:$0xff]
      %v6675 = vld [vmem:[%s280 + $0x208] sm:$0xff]
      %v6676 = vld [vmem:[%s280 + $0x210] sm:$0xff]
      %v6677 = vld [vmem:[%s280 + $0x218] sm:$0xff]
      %v6678 = vld [vmem:[%s280 + $0x220] sm:$0xff]
      %v6679 = vld [vmem:[%s280 + $0x228] sm:$0xff]
      %v6680 = vld [vmem:[%s280 + $0x230] sm:$0xff]
      %v6681 = vld [vmem:[%s280 + $0x238] sm:$0xff]
      %v6682 = vld [vmem:[%s280 + $0x240] sm:$0xff]
      %v6683 = vld [vmem:[%s280 + $0x248] sm:$0xff]
      %v6684 = vld [vmem:[%s280 + $0x250] sm:$0xff]
      %v6685 = vld [vmem:[%s280 + $0x258] sm:$0xff]
      %v6686 = vld [vmem:[%s280 + $0x260] sm:$0xff]
      %v6687 = vld [vmem:[%s280 + $0x268] sm:$0xff]
      %v6688 = vld [vmem:[%s280 + $0x270] sm:$0xff]
      %v6689 = vld [vmem:[%s280 + $0x278] sm:$0xff]
      %v6690 = vld [vmem:[%s280 + $0x280] sm:$0xff]
      %v6691 = vld [vmem:[%s280 + $0x288] sm:$0xff]
      %v6692 = vld [vmem:[%s280 + $0x290] sm:$0xff]
      %v6693 = vld [vmem:[%s280 + $0x298] sm:$0xff]
      %v6694 = vld [vmem:[%s280 + $0x2a0] sm:$0xff]
      %v6695 = vld [vmem:[%s280 + $0x2a8] sm:$0xff]
      %v6696 = vld [vmem:[%s280 + $0x2b0] sm:$0xff]
      %v6697 = vld [vmem:[%s280 + $0x2b8] sm:$0xff]
      %v6698 = vld [vmem:[%s280 + $0x2c0] sm:$0xff]
      %v6699 = vld [vmem:[%s280 + $0x2c8] sm:$0xff]
      %v6700 = vld [vmem:[%s280 + $0x2d0] sm:$0xff]
      %v6701 = vld [vmem:[%s280 + $0x2d8] sm:$0xff]
      %v6702 = vld [vmem:[%s280 + $0x2e0] sm:$0xff]
      %v6703 = vld [vmem:[%s280 + $0x2e8] sm:$0xff]
      %v6704 = vld [vmem:[%s280 + $0x2f0] sm:$0xff]
      %v6705 = vld [vmem:[%s280 + $0x2f8] sm:$0xff]
      %v6706 = vld [vmem:[%s280 + $0x300] sm:$0xff]
      %v6707 = vld [vmem:[%s280 + $0x308] sm:$0xff]
      %v6708 = vld [vmem:[%s280 + $0x310] sm:$0xff]
      %v6709 = vld [vmem:[%s280 + $0x318] sm:$0xff]
      %v6710 = vld [vmem:[%s280 + $0x320] sm:$0xff]
      %v6711 = vld [vmem:[%s280 + $0x328] sm:$0xff]
      %v6712 = vld [vmem:[%s280 + $0x330] sm:$0xff]
      %v6713 = vld [vmem:[%s280 + $0x338] sm:$0xff]
      %v6714 = vld [vmem:[%s280 + $0x340] sm:$0xff]
      %v6715 = vld [vmem:[%s280 + $0x348] sm:$0xff]
      %v6716 = vld [vmem:[%s280 + $0x350] sm:$0xff]
      %v6717 = vld [vmem:[%s280 + $0x358] sm:$0xff]
      %v6718 = vld [vmem:[%s280 + $0x360] sm:$0xff]
      %v6719 = vld [vmem:[%s280 + $0x368] sm:$0xff]
      %v6720 = vld [vmem:[%s280 + $0x370] sm:$0xff]
      %v6721 = vld [vmem:[%s280 + $0x378] sm:$0xff]
      %v6722 = vld [vmem:[%s280 + $0x380] sm:$0xff]
      %v6723 = vld [vmem:[%s280 + $0x388] sm:$0xff]
      %v6724 = vld [vmem:[%s280 + $0x390] sm:$0xff]
      %v6725 = vld [vmem:[%s280 + $0x398] sm:$0xff]
      %v6726 = vld [vmem:[%s280 + $0x3a0] sm:$0xff]
      %v6727 = vld [vmem:[%s280 + $0x3a8] sm:$0xff]
      %v6728 = vld [vmem:[%s280 + $0x3b0] sm:$0xff]
      %v6729 = vld [vmem:[%s280 + $0x3b8] sm:$0xff]
      %v6730 = vld [vmem:[%s280 + $0x3c0] sm:$0xff]
      %v6731 = vld [vmem:[%s280 + $0x3c8] sm:$0xff]
      %v6732 = vld [vmem:[%s280 + $0x3d0] sm:$0xff]
      %v6733 = vld [vmem:[%s280 + $0x3d8] sm:$0xff]
      %v6734 = vld [vmem:[%s280 + $0x3e0] sm:$0xff]
      %v6735 = vld [vmem:[%s280 + $0x3e8] sm:$0xff]
      %v6736 = vld [vmem:[%s280 + $0x3f0] sm:$0xff]
      %v6737 = vld [vmem:[%s280 + $0x3f8] sm:$0xff]
      %v6738 = vld [vmem:[%s280 + $0x400] sm:$0xff]
      %v6739 = vld [vmem:[%s280 + $0x408] sm:$0xff]
      %v6740 = vld [vmem:[%s280 + $0x410] sm:$0xff]
      %v6741 = vld [vmem:[%s280 + $0x418] sm:$0xff]
      %v6742 = vld [vmem:[%s280 + $0x420] sm:$0xff]
      %v6743 = vld [vmem:[%s280 + $0x428] sm:$0xff]
      %v6744 = vld [vmem:[%s280 + $0x430] sm:$0xff]
      %v6745 = vld [vmem:[%s280 + $0x438] sm:$0xff]
      %v6746 = vld [vmem:[%s280 + $0x440] sm:$0xff]
      %v6747 = vld [vmem:[%s280 + $0x448] sm:$0xff]
      %v6748 = vld [vmem:[%s280 + $0x450] sm:$0xff]
      %v6749 = vld [vmem:[%s280 + $0x458] sm:$0xff]
      %v6750 = vld [vmem:[%s280 + $0x460] sm:$0xff]
      %v6751 = vld [vmem:[%s280 + $0x468] sm:$0xff]
      %v6752 = vld [vmem:[%s280 + $0x470] sm:$0xff]
      %v6753 = vld [vmem:[%s280 + $0x478] sm:$0xff]
      %v6754 = vld [vmem:[%s280 + $0x480] sm:$0xff]
      %v6755 = vld [vmem:[%s280 + $0x488] sm:$0xff]
      %v6756 = vld [vmem:[%s280 + $0x490] sm:$0xff]
      %v6757 = vld [vmem:[%s280 + $0x498] sm:$0xff]
      %v6758 = vld [vmem:[%s280 + $0x4a0] sm:$0xff]
      %v6759 = vld [vmem:[%s280 + $0x4a8] sm:$0xff]
      %v6760 = vld [vmem:[%s280 + $0x4b0] sm:$0xff]
      %v6761 = vld [vmem:[%s280 + $0x4b8] sm:$0xff]
      %v6762 = vld [vmem:[%s280 + $0x4c0] sm:$0xff]
      %v6763 = vld [vmem:[%s280 + $0x4c8] sm:$0xff]
      %v6764 = vld [vmem:[%s280 + $0x4d0] sm:$0xff]
      %v6765 = vld [vmem:[%s280 + $0x4d8] sm:$0xff]
      %v6766 = vld [vmem:[%s280 + $0x4e0] sm:$0xff]
      %v6767 = vld [vmem:[%s280 + $0x4e8] sm:$0xff]
      %v6768 = vld [vmem:[%s280 + $0x4f0] sm:$0xff]
      %v6769 = vld [vmem:[%s280 + $0x4f8] sm:$0xff]
      %6770 = vmatpush.msra.mxu0 %v6685
      %6771 = vmatpush.msra.mxu0 %v6680
      %6772 = vmatpush.msra.mxu0 %v6675
      %6773 = vmatpush.msra.mxu0 %v6670
      %6774 = vmatpush.msra.mxu0 %v6665
      %6775 = vmatpush.msra.mxu0 %v6660
      %6776 = vmatpush.msra.mxu0 %v6655
      %6777 = vmatpush.msra.mxu0 %v6650
      %6778 = vmatpush.msra.mxu0 %v6645
      %6779 = vmatpush.msra.mxu0 %v6640
      %6780 = vmatpush.msra.mxu0 %v6635
      %6781 = vmatpush.msra.mxu0 %v6630
      %6782 = vmatpush.msra.mxu0 %v6625
      %6783 = vmatpush.msra.mxu0 %v6620
      %6784 = vmatpush.msra.mxu0 %v6615
      %6785 = vmatpush.msra.mxu0 %v6610
      %6786 = vmatmul.f32.gmra.mxu0 %v6526
      %v6787 = vpop.f32.mrf.mxu0
      %v6788 = vadd.f32 %v301, %v6787
      %6789 = vdwg.mxu0
      %6790 = vmatpush.msra.mxu0 %v6765
      %6791 = vmatpush.msra.mxu0 %v6760
      %6792 = vmatpush.msra.mxu0 %v6755
      %6793 = vmatpush.msra.mxu0 %v6750
      %6794 = vmatpush.msra.mxu0 %v6745
      %6795 = vmatpush.msra.mxu0 %v6740
      %6796 = vmatpush.msra.mxu0 %v6735
      %6797 = vmatpush.msra.mxu0 %v6730
      %6798 = vmatpush.msra.mxu0 %v6725
      %6799 = vmatpush.msra.mxu0 %v6720
      %6800 = vmatpush.msra.mxu0 %v6715
      %6801 = vmatpush.msra.mxu0 %v6710
      %6802 = vmatpush.msra.mxu0 %v6705
      %6803 = vmatpush.msra.mxu0 %v6700
      %6804 = vmatpush.msra.mxu0 %v6695
      %6805 = vmatpush.msra.mxu0 %v6690
      %6806 = vmatmul.f32.gmra.mxu0 %v6530
      %v6807 = vpop.f32.mrf.mxu0
      %v6808 = vadd.f32 %v6788, %v6807
      %6809 = vdwg.mxu0
      %6810 = vmatpush.msra.mxu0 %v6686
      %6811 = vmatpush.msra.mxu0 %v6681
      %6812 = vmatpush.msra.mxu0 %v6676
      %6813 = vmatpush.msra.mxu0 %v6671
      %6814 = vmatpush.msra.mxu0 %v6666
      %6815 = vmatpush.msra.mxu0 %v6661
      %6816 = vmatpush.msra.mxu0 %v6656
      %6817 = vmatpush.msra.mxu0 %v6651
      %6818 = vmatpush.msra.mxu0 %v6646
      %6819 = vmatpush.msra.mxu0 %v6641
      %6820 = vmatpush.msra.mxu0 %v6636
      %6821 = vmatpush.msra.mxu0 %v6631
      %6822 = vmatpush.msra.mxu0 %v6626
      %6823 = vmatpush.msra.mxu0 %v6621
      %6824 = vmatpush.msra.mxu0 %v6616
      %6825 = vmatpush.msra.mxu0 %v6611
      %6826 = vmatmul.f32.gmra.mxu0 %v6526
      %v6827 = vpop.f32.mrf.mxu0
      %v6828 = vadd.f32 %v302, %v6827
      %6829 = vdwg.mxu0
      %6830 = vmatpush.msra.mxu0 %v6766
      %6831 = vmatpush.msra.mxu0 %v6761
      %6832 = vmatpush.msra.mxu0 %v6756
      %6833 = vmatpush.msra.mxu0 %v6751
      %6834 = vmatpush.msra.mxu0 %v6746
      %6835 = vmatpush.msra.mxu0 %v6741
      %6836 = vmatpush.msra.mxu0 %v6736
      %6837 = vmatpush.msra.mxu0 %v6731
      %6838 = vmatpush.msra.mxu0 %v6726
      %6839 = vmatpush.msra.mxu0 %v6721
      %6840 = vmatpush.msra.mxu0 %v6716
      %6841 = vmatpush.msra.mxu0 %v6711
      %6842 = vmatpush.msra.mxu0 %v6706
      %6843 = vmatpush.msra.mxu0 %v6701
      %6844 = vmatpush.msra.mxu0 %v6696
      %6845 = vmatpush.msra.mxu0 %v6691
      %6846 = vmatmul.f32.gmra.mxu0 %v6530
      %v6847 = vpop.f32.mrf.mxu0
      %v6848 = vadd.f32 %v6828, %v6847
      %6849 = vdwg.mxu0
      %6850 = vmatpush.msra.mxu0 %v6687
      %6851 = vmatpush.msra.mxu0 %v6682
      %6852 = vmatpush.msra.mxu0 %v6677
      %6853 = vmatpush.msra.mxu0 %v6672
      %6854 = vmatpush.msra.mxu0 %v6667
      %6855 = vmatpush.msra.mxu0 %v6662
      %6856 = vmatpush.msra.mxu0 %v6657
      %6857 = vmatpush.msra.mxu0 %v6652
      %6858 = vmatpush.msra.mxu0 %v6647
      %6859 = vmatpush.msra.mxu0 %v6642
      %6860 = vmatpush.msra.mxu0 %v6637
      %6861 = vmatpush.msra.mxu0 %v6632
      %6862 = vmatpush.msra.mxu0 %v6627
      %6863 = vmatpush.msra.mxu0 %v6622
      %6864 = vmatpush.msra.mxu0 %v6617
      %6865 = vmatpush.msra.mxu0 %v6612
      %6866 = vmatmul.f32.gmra.mxu0 %v6526
      %v6867 = vpop.f32.mrf.mxu0
      %v6868 = vadd.f32 %v303, %v6867
      %6869 = vdwg.mxu0
      %6870 = vmatpush.msra.mxu0 %v6767
      %6871 = vmatpush.msra.mxu0 %v6762
      %6872 = vmatpush.msra.mxu0 %v6757
      %6873 = vmatpush.msra.mxu0 %v6752
      %6874 = vmatpush.msra.mxu0 %v6747
      %6875 = vmatpush.msra.mxu0 %v6742
      %6876 = vmatpush.msra.mxu0 %v6737
      %6877 = vmatpush.msra.mxu0 %v6732
      %6878 = vmatpush.msra.mxu0 %v6727
      %6879 = vmatpush.msra.mxu0 %v6722
      %6880 = vmatpush.msra.mxu0 %v6717
      %6881 = vmatpush.msra.mxu0 %v6712
      %6882 = vmatpush.msra.mxu0 %v6707
      %6883 = vmatpush.msra.mxu0 %v6702
      %6884 = vmatpush.msra.mxu0 %v6697
      %6885 = vmatpush.msra.mxu0 %v6692
      %6886 = vmatmul.f32.gmra.mxu0 %v6530
      %v6887 = vpop.f32.mrf.mxu0
      %v6888 = vadd.f32 %v6868, %v6887
      %6889 = vdwg.mxu0
      %6890 = vmatpush.msra.mxu0 %v6688
      %6891 = vmatpush.msra.mxu0 %v6683
      %6892 = vmatpush.msra.mxu0 %v6678
      %6893 = vmatpush.msra.mxu0 %v6673
      %6894 = vmatpush.msra.mxu0 %v6668
      %6895 = vmatpush.msra.mxu0 %v6663
      %6896 = vmatpush.msra.mxu0 %v6658
      %6897 = vmatpush.msra.mxu0 %v6653
      %6898 = vmatpush.msra.mxu0 %v6648
      %6899 = vmatpush.msra.mxu0 %v6643
      %6900 = vmatpush.msra.mxu0 %v6638
      %6901 = vmatpush.msra.mxu0 %v6633
      %6902 = vmatpush.msra.mxu0 %v6628
      %6903 = vmatpush.msra.mxu0 %v6623
      %6904 = vmatpush.msra.mxu0 %v6618
      %6905 = vmatpush.msra.mxu0 %v6613
      %6906 = vmatmul.f32.gmra.mxu0 %v6526
      %v6907 = vpop.f32.mrf.mxu0
      %v6908 = vadd.f32 %v304, %v6907
      %6909 = vdwg.mxu0
      %6910 = vmatpush.msra.mxu0 %v6768
      %6911 = vmatpush.msra.mxu0 %v6763
      %6912 = vmatpush.msra.mxu0 %v6758
      %6913 = vmatpush.msra.mxu0 %v6753
      %6914 = vmatpush.msra.mxu0 %v6748
      %6915 = vmatpush.msra.mxu0 %v6743
      %6916 = vmatpush.msra.mxu0 %v6738
      %6917 = vmatpush.msra.mxu0 %v6733
      %6918 = vmatpush.msra.mxu0 %v6728
      %6919 = vmatpush.msra.mxu0 %v6723
      %6920 = vmatpush.msra.mxu0 %v6718
      %6921 = vmatpush.msra.mxu0 %v6713
      %6922 = vmatpush.msra.mxu0 %v6708
      %6923 = vmatpush.msra.mxu0 %v6703
      %6924 = vmatpush.msra.mxu0 %v6698
      %6925 = vmatpush.msra.mxu0 %v6693
      %6926 = vmatmul.f32.gmra.mxu0 %v6530
      %v6927 = vpop.f32.mrf.mxu0
      %v6928 = vadd.f32 %v6908, %v6927
      %6929 = vdwg.mxu0
      %6930 = vmatpush.msra.mxu0 %v6689
      %6931 = vmatpush.msra.mxu0 %v6684
      %6932 = vmatpush.msra.mxu0 %v6679
      %6933 = vmatpush.msra.mxu0 %v6674
      %6934 = vmatpush.msra.mxu0 %v6669
      %6935 = vmatpush.msra.mxu0 %v6664
      %6936 = vmatpush.msra.mxu0 %v6659
      %6937 = vmatpush.msra.mxu0 %v6654
      %6938 = vmatpush.msra.mxu0 %v6649
      %6939 = vmatpush.msra.mxu0 %v6644
      %6940 = vmatpush.msra.mxu0 %v6639
      %6941 = vmatpush.msra.mxu0 %v6634
      %6942 = vmatpush.msra.mxu0 %v6629
      %6943 = vmatpush.msra.mxu0 %v6624
      %6944 = vmatpush.msra.mxu0 %v6619
      %6945 = vmatpush.msra.mxu0 %v6614
      %6946 = vmatmul.f32.gmra.mxu0 %v6526
      %v6947 = vpop.f32.mrf.mxu0
      %v6948 = vadd.f32 %v305, %v6947
      %6949 = vdwg.mxu0
      %6950 = vmatpush.msra.mxu0 %v6769
      %6951 = vmatpush.msra.mxu0 %v6764
      %6952 = vmatpush.msra.mxu0 %v6759
      %6953 = vmatpush.msra.mxu0 %v6754
      %6954 = vmatpush.msra.mxu0 %v6749
      %6955 = vmatpush.msra.mxu0 %v6744
      %6956 = vmatpush.msra.mxu0 %v6739
      %6957 = vmatpush.msra.mxu0 %v6734
      %6958 = vmatpush.msra.mxu0 %v6729
      %6959 = vmatpush.msra.mxu0 %v6724
      %6960 = vmatpush.msra.mxu0 %v6719
      %6961 = vmatpush.msra.mxu0 %v6714
      %6962 = vmatpush.msra.mxu0 %v6709
      %6963 = vmatpush.msra.mxu0 %v6704
      %6964 = vmatpush.msra.mxu0 %v6699
      %6965 = vmatpush.msra.mxu0 %v6694
      %6966 = vmatmul.f32.gmra.mxu0 %v6530
      %v6967 = vpop.f32.mrf.mxu0
      %v6968 = vadd.f32 %v6948, %v6967
      %6969 = vdwg.mxu0
      %s6970 = scalar_lea.vmem %s275, 104
      %v6971 = vld [vmem:[%s6970] sm:$0xff]
      %v6976 = vrot.slane %v6888, 6
      %v6977 = vrot.slane %v6928, 4
      %v6978 = vrot.slane %v6968, 2
      %v6979 = vsel %vm685, %v6848, %v6976
      %v6980 = vsel %vm687, %v6977, %v6978
      %v6981 = vsel %vm689, %v6979, %v6980
      %v6983 = vadd.f32 %v6971, %v6981
      %v6984 = vxor.u32 %v6983, 2147483648
      %v6985 = vmul.f32 %v6984, 1.442695
      %v6986 = vpow.pop %v6985
      %v6987 = vadd.f32 %v6986, 1.0
      %v6988 = vrcp.pop %v6987
      %v6989 = vmul.f32 %v6987, %v6988
      %v6990 = vsub.f32 1.0, %v6989
      %v6991 = vmul.f32 %v6988, %v6990
      %v6992 = vadd.f32 %v6988, %v6991
      %vm6993 = vweird.f32 %v6987
      %vm6994 = vweird.f32 %v6988
      %vm6995 = vmor %vm6993, %vm6994
      %v6996 = vsel %vm6995, %v6988, %v6992
      %v6997 = vand.u32 2147483647, %v6987
      %vm6998 = vcmp.eq.f32.partialorder %v6997, 8.507059e+37
      %v6999 = vand.u32 %v6987, 2147483648
      %v7000 = vor.u32 1.1754944e-38, %v6999
      %v7001 = vsel %vm6998, %v7000, %v6996
      %v7002 = vmul.f32 1.0, %v7001
      %v7004 = vrot.slane %v7002, 4
      %v7006 = vmul.f32 %v7004, %v6808
      %v7007 = vrot.slane %v7002, 2
      %v7009 = vmul.f32 %v7002, %v7007
      %v7010 = vadd.f32 %v7006, %v7009
      %v7011 = vtanh.pop %v7010
      %v7012 = vrot.slane %v7002, 6
      %v7014 = vmul.f32 %v7012, %v7011
      %v7015 = vld [vmem:[%s289] sm:$0xff]
      %v7016 = vld [vmem:[%s289 + $0x8] sm:$0xff]
      %v7017 = vld [vmem:[%s289 + $0x10] sm:$0xff]
      %v7018 = vld [vmem:[%s289 + $0x18] sm:$0xff]
      %v7019 = vld [vmem:[%s289 + $0x20] sm:$0xff]
      %v7020 = vld [vmem:[%s289 + $0x28] sm:$0xff]
      %v7021 = vld [vmem:[%s289 + $0x30] sm:$0xff]
      %v7022 = vld [vmem:[%s289 + $0x38] sm:$0xff]
      %v7023 = vld [vmem:[%s289 + $0x40] sm:$0xff]
      %v7024 = vld [vmem:[%s289 + $0x48] sm:$0xff]
      %v7025 = vld [vmem:[%s289 + $0x50] sm:$0xff]
      %v7026 = vld [vmem:[%s289 + $0x58] sm:$0xff]
      %v7027 = vld [vmem:[%s289 + $0x60] sm:$0xff]
      %v7028 = vld [vmem:[%s289 + $0x68] sm:$0xff]
      %v7029 = vld [vmem:[%s289 + $0x70] sm:$0xff]
      %v7030 = vld [vmem:[%s289 + $0x78] sm:$0xff]
      %v7031 = vld [vmem:[%s289 + $0x80] sm:$0xff]
      %v7032 = vld [vmem:[%s289 + $0x88] sm:$0xff]
      %v7033 = vld [vmem:[%s289 + $0x90] sm:$0xff]
      %v7034 = vld [vmem:[%s289 + $0x98] sm:$0xff]
      %v7035 = vld [vmem:[%s289 + $0xa0] sm:$0xff]
      %v7036 = vld [vmem:[%s289 + $0xa8] sm:$0xff]
      %v7037 = vld [vmem:[%s289 + $0xb0] sm:$0xff]
      %v7038 = vld [vmem:[%s289 + $0xb8] sm:$0xff]
      %v7039 = vld [vmem:[%s289 + $0xc0] sm:$0xff]
      %v7040 = vld [vmem:[%s289 + $0xc8] sm:$0xff]
      %v7041 = vld [vmem:[%s289 + $0xd0] sm:$0xff]
      %v7042 = vld [vmem:[%s289 + $0xd8] sm:$0xff]
      %v7043 = vld [vmem:[%s289 + $0xe0] sm:$0xff]
      %v7044 = vld [vmem:[%s289 + $0xe8] sm:$0xff]
      %v7045 = vld [vmem:[%s289 + $0xf0] sm:$0xff]
      %v7046 = vld [vmem:[%s289 + $0xf8] sm:$0xff]
      %7047 = vmatpush.msra.mxu0 %v7045
      %7048 = vmatpush.msra.mxu0 %v7043
      %7049 = vmatpush.msra.mxu0 %v7041
      %7050 = vmatpush.msra.mxu0 %v7039
      %7051 = vmatpush.msra.mxu0 %v7037
      %7052 = vmatpush.msra.mxu0 %v7035
      %7053 = vmatpush.msra.mxu0 %v7033
      %7054 = vmatpush.msra.mxu0 %v7031
      %7055 = vmatpush.msra.mxu0 %v7029
      %7056 = vmatpush.msra.mxu0 %v7027
      %7057 = vmatpush.msra.mxu0 %v7025
      %7058 = vmatpush.msra.mxu0 %v7023
      %7059 = vmatpush.msra.mxu0 %v7021
      %7060 = vmatpush.msra.mxu0 %v7019
      %7061 = vmatpush.msra.mxu0 %v7017
      %7062 = vmatpush.msra.mxu0 %v7015
      %7063 = vmatmul.f32.gmra.mxu0 %v7014
      %v7064 = vpop.f32.mrf.mxu0
      %v7065 = vadd.f32 %v313, %v7064
      %7066 = vdwg.mxu0
      %7067 = vmatpush.msra.mxu0 %v7046
      %7068 = vmatpush.msra.mxu0 %v7044
      %7069 = vmatpush.msra.mxu0 %v7042
      %7070 = vmatpush.msra.mxu0 %v7040
      %7071 = vmatpush.msra.mxu0 %v7038
      %7072 = vmatpush.msra.mxu0 %v7036
      %7073 = vmatpush.msra.mxu0 %v7034
      %7074 = vmatpush.msra.mxu0 %v7032
      %7075 = vmatpush.msra.mxu0 %v7030
      %7076 = vmatpush.msra.mxu0 %v7028
      %7077 = vmatpush.msra.mxu0 %v7026
      %7078 = vmatpush.msra.mxu0 %v7024
      %7079 = vmatpush.msra.mxu0 %v7022
      %7080 = vmatpush.msra.mxu0 %v7020
      %7081 = vmatpush.msra.mxu0 %v7018
      %7082 = vmatpush.msra.mxu0 %v7016
      %7083 = vmatmul.f32.gmra.mxu0 %v7014
      %v7084 = vpop.f32.mrf.mxu0
      %v7085 = vadd.f32 %v314, %v7084
      %7086 = vdwg.mxu0
      %v7089 = vrot.slane %v7085, 6
      %v7090 = vsel %vm685, %v7065, %v7089
      %s7092 = scalar_lea.vmem %s298, 52
      %7093 = vst [vmem:[%s7092] sm:$0xf] %v7090
      %v7094 = vld [vmem:[%s280] sm:$0xff]
      %v7095 = vld [vmem:[%s280 + $0x8] sm:$0xff]
      %v7096 = vld [vmem:[%s280 + $0x10] sm:$0xff]
      %v7097 = vld [vmem:[%s280 + $0x18] sm:$0xff]
      %v7098 = vld [vmem:[%s280 + $0x20] sm:$0xff]
      %v7099 = vld [vmem:[%s280 + $0x28] sm:$0xff]
      %v7100 = vld [vmem:[%s280 + $0x30] sm:$0xff]
      %v7101 = vld [vmem:[%s280 + $0x38] sm:$0xff]
      %v7102 = vld [vmem:[%s280 + $0x40] sm:$0xff]
      %v7103 = vld [vmem:[%s280 + $0x48] sm:$0xff]
      %v7104 = vld [vmem:[%s280 + $0x50] sm:$0xff]
      %v7105 = vld [vmem:[%s280 + $0x58] sm:$0xff]
      %v7106 = vld [vmem:[%s280 + $0x60] sm:$0xff]
      %v7107 = vld [vmem:[%s280 + $0x68] sm:$0xff]
      %v7108 = vld [vmem:[%s280 + $0x70] sm:$0xff]
      %v7109 = vld [vmem:[%s280 + $0x78] sm:$0xff]
      %v7110 = vld [vmem:[%s280 + $0x80] sm:$0xff]
      %v7111 = vld [vmem:[%s280 + $0x88] sm:$0xff]
      %v7112 = vld [vmem:[%s280 + $0x90] sm:$0xff]
      %v7113 = vld [vmem:[%s280 + $0x98] sm:$0xff]
      %v7114 = vld [vmem:[%s280 + $0xa0] sm:$0xff]
      %v7115 = vld [vmem:[%s280 + $0xa8] sm:$0xff]
      %v7116 = vld [vmem:[%s280 + $0xb0] sm:$0xff]
      %v7117 = vld [vmem:[%s280 + $0xb8] sm:$0xff]
      %v7118 = vld [vmem:[%s280 + $0xc0] sm:$0xff]
      %v7119 = vld [vmem:[%s280 + $0xc8] sm:$0xff]
      %v7120 = vld [vmem:[%s280 + $0xd0] sm:$0xff]
      %v7121 = vld [vmem:[%s280 + $0xd8] sm:$0xff]
      %v7122 = vld [vmem:[%s280 + $0xe0] sm:$0xff]
      %v7123 = vld [vmem:[%s280 + $0xe8] sm:$0xff]
      %v7124 = vld [vmem:[%s280 + $0xf0] sm:$0xff]
      %v7125 = vld [vmem:[%s280 + $0xf8] sm:$0xff]
      %v7126 = vld [vmem:[%s280 + $0x100] sm:$0xff]
      %v7127 = vld [vmem:[%s280 + $0x108] sm:$0xff]
      %v7128 = vld [vmem:[%s280 + $0x110] sm:$0xff]
      %v7129 = vld [vmem:[%s280 + $0x118] sm:$0xff]
      %v7130 = vld [vmem:[%s280 + $0x120] sm:$0xff]
      %v7131 = vld [vmem:[%s280 + $0x128] sm:$0xff]
      %v7132 = vld [vmem:[%s280 + $0x130] sm:$0xff]
      %v7133 = vld [vmem:[%s280 + $0x138] sm:$0xff]
      %v7134 = vld [vmem:[%s280 + $0x140] sm:$0xff]
      %v7135 = vld [vmem:[%s280 + $0x148] sm:$0xff]
      %v7136 = vld [vmem:[%s280 + $0x150] sm:$0xff]
      %v7137 = vld [vmem:[%s280 + $0x158] sm:$0xff]
      %v7138 = vld [vmem:[%s280 + $0x160] sm:$0xff]
      %v7139 = vld [vmem:[%s280 + $0x168] sm:$0xff]
      %v7140 = vld [vmem:[%s280 + $0x170] sm:$0xff]
      %v7141 = vld [vmem:[%s280 + $0x178] sm:$0xff]
      %v7142 = vld [vmem:[%s280 + $0x180] sm:$0xff]
      %v7143 = vld [vmem:[%s280 + $0x188] sm:$0xff]
      %v7144 = vld [vmem:[%s280 + $0x190] sm:$0xff]
      %v7145 = vld [vmem:[%s280 + $0x198] sm:$0xff]
      %v7146 = vld [vmem:[%s280 + $0x1a0] sm:$0xff]
      %v7147 = vld [vmem:[%s280 + $0x1a8] sm:$0xff]
      %v7148 = vld [vmem:[%s280 + $0x1b0] sm:$0xff]
      %v7149 = vld [vmem:[%s280 + $0x1b8] sm:$0xff]
      %v7150 = vld [vmem:[%s280 + $0x1c0] sm:$0xff]
      %v7151 = vld [vmem:[%s280 + $0x1c8] sm:$0xff]
      %v7152 = vld [vmem:[%s280 + $0x1d0] sm:$0xff]
      %v7153 = vld [vmem:[%s280 + $0x1d8] sm:$0xff]
      %v7154 = vld [vmem:[%s280 + $0x1e0] sm:$0xff]
      %v7155 = vld [vmem:[%s280 + $0x1e8] sm:$0xff]
      %v7156 = vld [vmem:[%s280 + $0x1f0] sm:$0xff]
      %v7157 = vld [vmem:[%s280 + $0x1f8] sm:$0xff]
      %v7158 = vld [vmem:[%s280 + $0x200] sm:$0xff]
      %v7159 = vld [vmem:[%s280 + $0x208] sm:$0xff]
      %v7160 = vld [vmem:[%s280 + $0x210] sm:$0xff]
      %v7161 = vld [vmem:[%s280 + $0x218] sm:$0xff]
      %v7162 = vld [vmem:[%s280 + $0x220] sm:$0xff]
      %v7163 = vld [vmem:[%s280 + $0x228] sm:$0xff]
      %v7164 = vld [vmem:[%s280 + $0x230] sm:$0xff]
      %v7165 = vld [vmem:[%s280 + $0x238] sm:$0xff]
      %v7166 = vld [vmem:[%s280 + $0x240] sm:$0xff]
      %v7167 = vld [vmem:[%s280 + $0x248] sm:$0xff]
      %v7168 = vld [vmem:[%s280 + $0x250] sm:$0xff]
      %v7169 = vld [vmem:[%s280 + $0x258] sm:$0xff]
      %v7170 = vld [vmem:[%s280 + $0x260] sm:$0xff]
      %v7171 = vld [vmem:[%s280 + $0x268] sm:$0xff]
      %v7172 = vld [vmem:[%s280 + $0x270] sm:$0xff]
      %v7173 = vld [vmem:[%s280 + $0x278] sm:$0xff]
      %v7174 = vld [vmem:[%s280 + $0x280] sm:$0xff]
      %v7175 = vld [vmem:[%s280 + $0x288] sm:$0xff]
      %v7176 = vld [vmem:[%s280 + $0x290] sm:$0xff]
      %v7177 = vld [vmem:[%s280 + $0x298] sm:$0xff]
      %v7178 = vld [vmem:[%s280 + $0x2a0] sm:$0xff]
      %v7179 = vld [vmem:[%s280 + $0x2a8] sm:$0xff]
      %v7180 = vld [vmem:[%s280 + $0x2b0] sm:$0xff]
      %v7181 = vld [vmem:[%s280 + $0x2b8] sm:$0xff]
      %v7182 = vld [vmem:[%s280 + $0x2c0] sm:$0xff]
      %v7183 = vld [vmem:[%s280 + $0x2c8] sm:$0xff]
      %v7184 = vld [vmem:[%s280 + $0x2d0] sm:$0xff]
      %v7185 = vld [vmem:[%s280 + $0x2d8] sm:$0xff]
      %v7186 = vld [vmem:[%s280 + $0x2e0] sm:$0xff]
      %v7187 = vld [vmem:[%s280 + $0x2e8] sm:$0xff]
      %v7188 = vld [vmem:[%s280 + $0x2f0] sm:$0xff]
      %v7189 = vld [vmem:[%s280 + $0x2f8] sm:$0xff]
      %v7190 = vld [vmem:[%s280 + $0x300] sm:$0xff]
      %v7191 = vld [vmem:[%s280 + $0x308] sm:$0xff]
      %v7192 = vld [vmem:[%s280 + $0x310] sm:$0xff]
      %v7193 = vld [vmem:[%s280 + $0x318] sm:$0xff]
      %v7194 = vld [vmem:[%s280 + $0x320] sm:$0xff]
      %v7195 = vld [vmem:[%s280 + $0x328] sm:$0xff]
      %v7196 = vld [vmem:[%s280 + $0x330] sm:$0xff]
      %v7197 = vld [vmem:[%s280 + $0x338] sm:$0xff]
      %v7198 = vld [vmem:[%s280 + $0x340] sm:$0xff]
      %v7199 = vld [vmem:[%s280 + $0x348] sm:$0xff]
      %v7200 = vld [vmem:[%s280 + $0x350] sm:$0xff]
      %v7201 = vld [vmem:[%s280 + $0x358] sm:$0xff]
      %v7202 = vld [vmem:[%s280 + $0x360] sm:$0xff]
      %v7203 = vld [vmem:[%s280 + $0x368] sm:$0xff]
      %v7204 = vld [vmem:[%s280 + $0x370] sm:$0xff]
      %v7205 = vld [vmem:[%s280 + $0x378] sm:$0xff]
      %v7206 = vld [vmem:[%s280 + $0x380] sm:$0xff]
      %v7207 = vld [vmem:[%s280 + $0x388] sm:$0xff]
      %v7208 = vld [vmem:[%s280 + $0x390] sm:$0xff]
      %v7209 = vld [vmem:[%s280 + $0x398] sm:$0xff]
      %v7210 = vld [vmem:[%s280 + $0x3a0] sm:$0xff]
      %v7211 = vld [vmem:[%s280 + $0x3a8] sm:$0xff]
      %v7212 = vld [vmem:[%s280 + $0x3b0] sm:$0xff]
      %v7213 = vld [vmem:[%s280 + $0x3b8] sm:$0xff]
      %v7214 = vld [vmem:[%s280 + $0x3c0] sm:$0xff]
      %v7215 = vld [vmem:[%s280 + $0x3c8] sm:$0xff]
      %v7216 = vld [vmem:[%s280 + $0x3d0] sm:$0xff]
      %v7217 = vld [vmem:[%s280 + $0x3d8] sm:$0xff]
      %v7218 = vld [vmem:[%s280 + $0x3e0] sm:$0xff]
      %v7219 = vld [vmem:[%s280 + $0x3e8] sm:$0xff]
      %v7220 = vld [vmem:[%s280 + $0x3f0] sm:$0xff]
      %v7221 = vld [vmem:[%s280 + $0x3f8] sm:$0xff]
      %v7222 = vld [vmem:[%s280 + $0x400] sm:$0xff]
      %v7223 = vld [vmem:[%s280 + $0x408] sm:$0xff]
      %v7224 = vld [vmem:[%s280 + $0x410] sm:$0xff]
      %v7225 = vld [vmem:[%s280 + $0x418] sm:$0xff]
      %v7226 = vld [vmem:[%s280 + $0x420] sm:$0xff]
      %v7227 = vld [vmem:[%s280 + $0x428] sm:$0xff]
      %v7228 = vld [vmem:[%s280 + $0x430] sm:$0xff]
      %v7229 = vld [vmem:[%s280 + $0x438] sm:$0xff]
      %v7230 = vld [vmem:[%s280 + $0x440] sm:$0xff]
      %v7231 = vld [vmem:[%s280 + $0x448] sm:$0xff]
      %v7232 = vld [vmem:[%s280 + $0x450] sm:$0xff]
      %v7233 = vld [vmem:[%s280 + $0x458] sm:$0xff]
      %v7234 = vld [vmem:[%s280 + $0x460] sm:$0xff]
      %v7235 = vld [vmem:[%s280 + $0x468] sm:$0xff]
      %v7236 = vld [vmem:[%s280 + $0x470] sm:$0xff]
      %v7237 = vld [vmem:[%s280 + $0x478] sm:$0xff]
      %v7238 = vld [vmem:[%s280 + $0x480] sm:$0xff]
      %v7239 = vld [vmem:[%s280 + $0x488] sm:$0xff]
      %v7240 = vld [vmem:[%s280 + $0x490] sm:$0xff]
      %v7241 = vld [vmem:[%s280 + $0x498] sm:$0xff]
      %v7242 = vld [vmem:[%s280 + $0x4a0] sm:$0xff]
      %v7243 = vld [vmem:[%s280 + $0x4a8] sm:$0xff]
      %v7244 = vld [vmem:[%s280 + $0x4b0] sm:$0xff]
      %v7245 = vld [vmem:[%s280 + $0x4b8] sm:$0xff]
      %v7246 = vld [vmem:[%s280 + $0x4c0] sm:$0xff]
      %v7247 = vld [vmem:[%s280 + $0x4c8] sm:$0xff]
      %v7248 = vld [vmem:[%s280 + $0x4d0] sm:$0xff]
      %v7249 = vld [vmem:[%s280 + $0x4d8] sm:$0xff]
      %v7250 = vld [vmem:[%s280 + $0x4e0] sm:$0xff]
      %v7251 = vld [vmem:[%s280 + $0x4e8] sm:$0xff]
      %v7252 = vld [vmem:[%s280 + $0x4f0] sm:$0xff]
      %v7253 = vld [vmem:[%s280 + $0x4f8] sm:$0xff]
      %7254 = vmatpush.msra.mxu0 %v7169
      %7255 = vmatpush.msra.mxu0 %v7164
      %7256 = vmatpush.msra.mxu0 %v7159
      %7257 = vmatpush.msra.mxu0 %v7154
      %7258 = vmatpush.msra.mxu0 %v7149
      %7259 = vmatpush.msra.mxu0 %v7144
      %7260 = vmatpush.msra.mxu0 %v7139
      %7261 = vmatpush.msra.mxu0 %v7134
      %7262 = vmatpush.msra.mxu0 %v7129
      %7263 = vmatpush.msra.mxu0 %v7124
      %7264 = vmatpush.msra.mxu0 %v7119
      %7265 = vmatpush.msra.mxu0 %v7114
      %7266 = vmatpush.msra.mxu0 %v7109
      %7267 = vmatpush.msra.mxu0 %v7104
      %7268 = vmatpush.msra.mxu0 %v7099
      %7269 = vmatpush.msra.mxu0 %v7094
      %7270 = vmatmul.f32.gmra.mxu0 %v7010
      %v7271 = vpop.f32.mrf.mxu0
      %v7272 = vadd.f32 %v301, %v7271
      %7273 = vdwg.mxu0
      %7274 = vmatpush.msra.mxu0 %v7249
      %7275 = vmatpush.msra.mxu0 %v7244
      %7276 = vmatpush.msra.mxu0 %v7239
      %7277 = vmatpush.msra.mxu0 %v7234
      %7278 = vmatpush.msra.mxu0 %v7229
      %7279 = vmatpush.msra.mxu0 %v7224
      %7280 = vmatpush.msra.mxu0 %v7219
      %7281 = vmatpush.msra.mxu0 %v7214
      %7282 = vmatpush.msra.mxu0 %v7209
      %7283 = vmatpush.msra.mxu0 %v7204
      %7284 = vmatpush.msra.mxu0 %v7199
      %7285 = vmatpush.msra.mxu0 %v7194
      %7286 = vmatpush.msra.mxu0 %v7189
      %7287 = vmatpush.msra.mxu0 %v7184
      %7288 = vmatpush.msra.mxu0 %v7179
      %7289 = vmatpush.msra.mxu0 %v7174
      %7290 = vmatmul.f32.gmra.mxu0 %v7014
      %v7291 = vpop.f32.mrf.mxu0
      %v7292 = vadd.f32 %v7272, %v7291
      %7293 = vdwg.mxu0
      %7294 = vmatpush.msra.mxu0 %v7170
      %7295 = vmatpush.msra.mxu0 %v7165
      %7296 = vmatpush.msra.mxu0 %v7160
      %7297 = vmatpush.msra.mxu0 %v7155
      %7298 = vmatpush.msra.mxu0 %v7150
      %7299 = vmatpush.msra.mxu0 %v7145
      %7300 = vmatpush.msra.mxu0 %v7140
      %7301 = vmatpush.msra.mxu0 %v7135
      %7302 = vmatpush.msra.mxu0 %v7130
      %7303 = vmatpush.msra.mxu0 %v7125
      %7304 = vmatpush.msra.mxu0 %v7120
      %7305 = vmatpush.msra.mxu0 %v7115
      %7306 = vmatpush.msra.mxu0 %v7110
      %7307 = vmatpush.msra.mxu0 %v7105
      %7308 = vmatpush.msra.mxu0 %v7100
      %7309 = vmatpush.msra.mxu0 %v7095
      %7310 = vmatmul.f32.gmra.mxu0 %v7010
      %v7311 = vpop.f32.mrf.mxu0
      %v7312 = vadd.f32 %v302, %v7311
      %7313 = vdwg.mxu0
      %7314 = vmatpush.msra.mxu0 %v7250
      %7315 = vmatpush.msra.mxu0 %v7245
      %7316 = vmatpush.msra.mxu0 %v7240
      %7317 = vmatpush.msra.mxu0 %v7235
      %7318 = vmatpush.msra.mxu0 %v7230
      %7319 = vmatpush.msra.mxu0 %v7225
      %7320 = vmatpush.msra.mxu0 %v7220
      %7321 = vmatpush.msra.mxu0 %v7215
      %7322 = vmatpush.msra.mxu0 %v7210
      %7323 = vmatpush.msra.mxu0 %v7205
      %7324 = vmatpush.msra.mxu0 %v7200
      %7325 = vmatpush.msra.mxu0 %v7195
      %7326 = vmatpush.msra.mxu0 %v7190
      %7327 = vmatpush.msra.mxu0 %v7185
      %7328 = vmatpush.msra.mxu0 %v7180
      %7329 = vmatpush.msra.mxu0 %v7175
      %7330 = vmatmul.f32.gmra.mxu0 %v7014
      %v7331 = vpop.f32.mrf.mxu0
      %v7332 = vadd.f32 %v7312, %v7331
      %7333 = vdwg.mxu0
      %7334 = vmatpush.msra.mxu0 %v7171
      %7335 = vmatpush.msra.mxu0 %v7166
      %7336 = vmatpush.msra.mxu0 %v7161
      %7337 = vmatpush.msra.mxu0 %v7156
      %7338 = vmatpush.msra.mxu0 %v7151
      %7339 = vmatpush.msra.mxu0 %v7146
      %7340 = vmatpush.msra.mxu0 %v7141
      %7341 = vmatpush.msra.mxu0 %v7136
      %7342 = vmatpush.msra.mxu0 %v7131
      %7343 = vmatpush.msra.mxu0 %v7126
      %7344 = vmatpush.msra.mxu0 %v7121
      %7345 = vmatpush.msra.mxu0 %v7116
      %7346 = vmatpush.msra.mxu0 %v7111
      %7347 = vmatpush.msra.mxu0 %v7106
      %7348 = vmatpush.msra.mxu0 %v7101
      %7349 = vmatpush.msra.mxu0 %v7096
      %7350 = vmatmul.f32.gmra.mxu0 %v7010
      %v7351 = vpop.f32.mrf.mxu0
      %v7352 = vadd.f32 %v303, %v7351
      %7353 = vdwg.mxu0
      %7354 = vmatpush.msra.mxu0 %v7251
      %7355 = vmatpush.msra.mxu0 %v7246
      %7356 = vmatpush.msra.mxu0 %v7241
      %7357 = vmatpush.msra.mxu0 %v7236
      %7358 = vmatpush.msra.mxu0 %v7231
      %7359 = vmatpush.msra.mxu0 %v7226
      %7360 = vmatpush.msra.mxu0 %v7221
      %7361 = vmatpush.msra.mxu0 %v7216
      %7362 = vmatpush.msra.mxu0 %v7211
      %7363 = vmatpush.msra.mxu0 %v7206
      %7364 = vmatpush.msra.mxu0 %v7201
      %7365 = vmatpush.msra.mxu0 %v7196
      %7366 = vmatpush.msra.mxu0 %v7191
      %7367 = vmatpush.msra.mxu0 %v7186
      %7368 = vmatpush.msra.mxu0 %v7181
      %7369 = vmatpush.msra.mxu0 %v7176
      %7370 = vmatmul.f32.gmra.mxu0 %v7014
      %v7371 = vpop.f32.mrf.mxu0
      %v7372 = vadd.f32 %v7352, %v7371
      %7373 = vdwg.mxu0
      %7374 = vmatpush.msra.mxu0 %v7172
      %7375 = vmatpush.msra.mxu0 %v7167
      %7376 = vmatpush.msra.mxu0 %v7162
      %7377 = vmatpush.msra.mxu0 %v7157
      %7378 = vmatpush.msra.mxu0 %v7152
      %7379 = vmatpush.msra.mxu0 %v7147
      %7380 = vmatpush.msra.mxu0 %v7142
      %7381 = vmatpush.msra.mxu0 %v7137
      %7382 = vmatpush.msra.mxu0 %v7132
      %7383 = vmatpush.msra.mxu0 %v7127
      %7384 = vmatpush.msra.mxu0 %v7122
      %7385 = vmatpush.msra.mxu0 %v7117
      %7386 = vmatpush.msra.mxu0 %v7112
      %7387 = vmatpush.msra.mxu0 %v7107
      %7388 = vmatpush.msra.mxu0 %v7102
      %7389 = vmatpush.msra.mxu0 %v7097
      %7390 = vmatmul.f32.gmra.mxu0 %v7010
      %v7391 = vpop.f32.mrf.mxu0
      %v7392 = vadd.f32 %v304, %v7391
      %7393 = vdwg.mxu0
      %7394 = vmatpush.msra.mxu0 %v7252
      %7395 = vmatpush.msra.mxu0 %v7247
      %7396 = vmatpush.msra.mxu0 %v7242
      %7397 = vmatpush.msra.mxu0 %v7237
      %7398 = vmatpush.msra.mxu0 %v7232
      %7399 = vmatpush.msra.mxu0 %v7227
      %7400 = vmatpush.msra.mxu0 %v7222
      %7401 = vmatpush.msra.mxu0 %v7217
      %7402 = vmatpush.msra.mxu0 %v7212
      %7403 = vmatpush.msra.mxu0 %v7207
      %7404 = vmatpush.msra.mxu0 %v7202
      %7405 = vmatpush.msra.mxu0 %v7197
      %7406 = vmatpush.msra.mxu0 %v7192
      %7407 = vmatpush.msra.mxu0 %v7187
      %7408 = vmatpush.msra.mxu0 %v7182
      %7409 = vmatpush.msra.mxu0 %v7177
      %7410 = vmatmul.f32.gmra.mxu0 %v7014
      %v7411 = vpop.f32.mrf.mxu0
      %v7412 = vadd.f32 %v7392, %v7411
      %7413 = vdwg.mxu0
      %7414 = vmatpush.msra.mxu0 %v7173
      %7415 = vmatpush.msra.mxu0 %v7168
      %7416 = vmatpush.msra.mxu0 %v7163
      %7417 = vmatpush.msra.mxu0 %v7158
      %7418 = vmatpush.msra.mxu0 %v7153
      %7419 = vmatpush.msra.mxu0 %v7148
      %7420 = vmatpush.msra.mxu0 %v7143
      %7421 = vmatpush.msra.mxu0 %v7138
      %7422 = vmatpush.msra.mxu0 %v7133
      %7423 = vmatpush.msra.mxu0 %v7128
      %7424 = vmatpush.msra.mxu0 %v7123
      %7425 = vmatpush.msra.mxu0 %v7118
      %7426 = vmatpush.msra.mxu0 %v7113
      %7427 = vmatpush.msra.mxu0 %v7108
      %7428 = vmatpush.msra.mxu0 %v7103
      %7429 = vmatpush.msra.mxu0 %v7098
      %7430 = vmatmul.f32.gmra.mxu0 %v7010
      %v7431 = vpop.f32.mrf.mxu0
      %v7432 = vadd.f32 %v305, %v7431
      %7433 = vdwg.mxu0
      %7434 = vmatpush.msra.mxu0 %v7253
      %7435 = vmatpush.msra.mxu0 %v7248
      %7436 = vmatpush.msra.mxu0 %v7243
      %7437 = vmatpush.msra.mxu0 %v7238
      %7438 = vmatpush.msra.mxu0 %v7233
      %7439 = vmatpush.msra.mxu0 %v7228
      %7440 = vmatpush.msra.mxu0 %v7223
      %7441 = vmatpush.msra.mxu0 %v7218
      %7442 = vmatpush.msra.mxu0 %v7213
      %7443 = vmatpush.msra.mxu0 %v7208
      %7444 = vmatpush.msra.mxu0 %v7203
      %7445 = vmatpush.msra.mxu0 %v7198
      %7446 = vmatpush.msra.mxu0 %v7193
      %7447 = vmatpush.msra.mxu0 %v7188
      %7448 = vmatpush.msra.mxu0 %v7183
      %7449 = vmatpush.msra.mxu0 %v7178
      %7450 = vmatmul.f32.gmra.mxu0 %v7014
      %v7451 = vpop.f32.mrf.mxu0
      %v7452 = vadd.f32 %v7432, %v7451
      %7453 = vdwg.mxu0
      %s7454 = scalar_lea.vmem %s275, 112
      %v7455 = vld [vmem:[%s7454] sm:$0xff]
      %v7460 = vrot.slane %v7372, 6
      %v7461 = vrot.slane %v7412, 4
      %v7462 = vrot.slane %v7452, 2
      %v7463 = vsel %vm685, %v7332, %v7460
      %v7464 = vsel %vm687, %v7461, %v7462
      %v7465 = vsel %vm689, %v7463, %v7464
      %v7467 = vadd.f32 %v7455, %v7465
      %v7468 = vxor.u32 %v7467, 2147483648
      %v7469 = vmul.f32 %v7468, 1.442695
      %v7470 = vpow.pop %v7469
      %v7471 = vadd.f32 %v7470, 1.0
      %v7472 = vrcp.pop %v7471
      %v7473 = vmul.f32 %v7471, %v7472
      %v7474 = vsub.f32 1.0, %v7473
      %v7475 = vmul.f32 %v7472, %v7474
      %v7476 = vadd.f32 %v7472, %v7475
      %vm7477 = vweird.f32 %v7471
      %vm7478 = vweird.f32 %v7472
      %vm7479 = vmor %vm7477, %vm7478
      %v7480 = vsel %vm7479, %v7472, %v7476
      %v7481 = vand.u32 2147483647, %v7471
      %vm7482 = vcmp.eq.f32.partialorder %v7481, 8.507059e+37
      %v7483 = vand.u32 %v7471, 2147483648
      %v7484 = vor.u32 1.1754944e-38, %v7483
      %v7485 = vsel %vm7482, %v7484, %v7480
      %v7486 = vmul.f32 1.0, %v7485
      %v7488 = vrot.slane %v7486, 4
      %v7490 = vmul.f32 %v7488, %v7292
      %v7491 = vrot.slane %v7486, 2
      %v7493 = vmul.f32 %v7486, %v7491
      %v7494 = vadd.f32 %v7490, %v7493
      %v7495 = vtanh.pop %v7494
      %v7496 = vrot.slane %v7486, 6
      %v7498 = vmul.f32 %v7496, %v7495
      %v7499 = vld [vmem:[%s289] sm:$0xff]
      %v7500 = vld [vmem:[%s289 + $0x8] sm:$0xff]
      %v7501 = vld [vmem:[%s289 + $0x10] sm:$0xff]
      %v7502 = vld [vmem:[%s289 + $0x18] sm:$0xff]
      %v7503 = vld [vmem:[%s289 + $0x20] sm:$0xff]
      %v7504 = vld [vmem:[%s289 + $0x28] sm:$0xff]
      %v7505 = vld [vmem:[%s289 + $0x30] sm:$0xff]
      %v7506 = vld [vmem:[%s289 + $0x38] sm:$0xff]
      %v7507 = vld [vmem:[%s289 + $0x40] sm:$0xff]
      %v7508 = vld [vmem:[%s289 + $0x48] sm:$0xff]
      %v7509 = vld [vmem:[%s289 + $0x50] sm:$0xff]
      %v7510 = vld [vmem:[%s289 + $0x58] sm:$0xff]
      %v7511 = vld [vmem:[%s289 + $0x60] sm:$0xff]
      %v7512 = vld [vmem:[%s289 + $0x68] sm:$0xff]
      %v7513 = vld [vmem:[%s289 + $0x70] sm:$0xff]
      %v7514 = vld [vmem:[%s289 + $0x78] sm:$0xff]
      %v7515 = vld [vmem:[%s289 + $0x80] sm:$0xff]
      %v7516 = vld [vmem:[%s289 + $0x88] sm:$0xff]
      %v7517 = vld [vmem:[%s289 + $0x90] sm:$0xff]
      %v7518 = vld [vmem:[%s289 + $0x98] sm:$0xff]
      %v7519 = vld [vmem:[%s289 + $0xa0] sm:$0xff]
      %v7520 = vld [vmem:[%s289 + $0xa8] sm:$0xff]
      %v7521 = vld [vmem:[%s289 + $0xb0] sm:$0xff]
      %v7522 = vld [vmem:[%s289 + $0xb8] sm:$0xff]
      %v7523 = vld [vmem:[%s289 + $0xc0] sm:$0xff]
      %v7524 = vld [vmem:[%s289 + $0xc8] sm:$0xff]
      %v7525 = vld [vmem:[%s289 + $0xd0] sm:$0xff]
      %v7526 = vld [vmem:[%s289 + $0xd8] sm:$0xff]
      %v7527 = vld [vmem:[%s289 + $0xe0] sm:$0xff]
      %v7528 = vld [vmem:[%s289 + $0xe8] sm:$0xff]
      %v7529 = vld [vmem:[%s289 + $0xf0] sm:$0xff]
      %v7530 = vld [vmem:[%s289 + $0xf8] sm:$0xff]
      %7531 = vmatpush.msra.mxu0 %v7529
      %7532 = vmatpush.msra.mxu0 %v7527
      %7533 = vmatpush.msra.mxu0 %v7525
      %7534 = vmatpush.msra.mxu0 %v7523
      %7535 = vmatpush.msra.mxu0 %v7521
      %7536 = vmatpush.msra.mxu0 %v7519
      %7537 = vmatpush.msra.mxu0 %v7517
      %7538 = vmatpush.msra.mxu0 %v7515
      %7539 = vmatpush.msra.mxu0 %v7513
      %7540 = vmatpush.msra.mxu0 %v7511
      %7541 = vmatpush.msra.mxu0 %v7509
      %7542 = vmatpush.msra.mxu0 %v7507
      %7543 = vmatpush.msra.mxu0 %v7505
      %7544 = vmatpush.msra.mxu0 %v7503
      %7545 = vmatpush.msra.mxu0 %v7501
      %7546 = vmatpush.msra.mxu0 %v7499
      %7547 = vmatmul.f32.gmra.mxu0 %v7498
      %v7548 = vpop.f32.mrf.mxu0
      %v7549 = vadd.f32 %v313, %v7548
      %7550 = vdwg.mxu0
      %7551 = vmatpush.msra.mxu0 %v7530
      %7552 = vmatpush.msra.mxu0 %v7528
      %7553 = vmatpush.msra.mxu0 %v7526
      %7554 = vmatpush.msra.mxu0 %v7524
      %7555 = vmatpush.msra.mxu0 %v7522
      %7556 = vmatpush.msra.mxu0 %v7520
      %7557 = vmatpush.msra.mxu0 %v7518
      %7558 = vmatpush.msra.mxu0 %v7516
      %7559 = vmatpush.msra.mxu0 %v7514
      %7560 = vmatpush.msra.mxu0 %v7512
      %7561 = vmatpush.msra.mxu0 %v7510
      %7562 = vmatpush.msra.mxu0 %v7508
      %7563 = vmatpush.msra.mxu0 %v7506
      %7564 = vmatpush.msra.mxu0 %v7504
      %7565 = vmatpush.msra.mxu0 %v7502
      %7566 = vmatpush.msra.mxu0 %v7500
      %7567 = vmatmul.f32.gmra.mxu0 %v7498
      %v7568 = vpop.f32.mrf.mxu0
      %v7569 = vadd.f32 %v314, %v7568
      %7570 = vdwg.mxu0
      %v7573 = vrot.slane %v7569, 6
      %v7574 = vsel %vm685, %v7549, %v7573
      %s7576 = scalar_lea.vmem %s298, 56
      %7577 = vst [vmem:[%s7576] sm:$0xf] %v7574
      %p7578 = scmp.lt.s32.totalorder %s16, 3
      %s7579 = scalar_select %p7578, %s16, 3
      %s7580 = smul.addr %s7579, 30
      %s7581 = smul.addr %s7580, 2
      %s7582 = scalar_lea.vmem %s5, %s7581
      // Predicated region
      $region41: #{_lambda_.3} parent=39 // pred_check
        %p7583 = pneg %p164
      $region42: #{_lambda_.3} parent=39 // pred_check_branch
        %7585 = sbr.rel (%p7583) target = $region44
      $region43: #{_lambda_.3} parent=39 // pred_region
        _
      $region44: #{_lambda_.3} parent=39 // pred_fallthru
        _
    $region40: #{_lambda_.3} parent=5 // pred_fallthru
      _
    %p7586 = scmp.le.s32.totalorder 2, %s11
    // Predicated region
    $region45: #{_lambda_.3} parent=5 // pred_check
      %p7587 = pneg %p7586
    $region46: #{_lambda_.3} parent=5 // pred_check_branch
      %7589 = sbr.rel (%p7587) target = $region48
    $region47: #{_lambda_.3} parent=5 // pred_region
      %s7590 = ssub.s32 %s11, 2
      // Predicated region
      $region49: #{_lambda_.3} parent=47 // pred_check
        %p7591 = pneg %p170
      $region50: #{_lambda_.3} parent=47 // pred_check_branch
        %7593 = sbr.rel (%p7591) target = $region52
      $region51: #{_lambda_.3} parent=47 // pred_region
        %p7594 = scmp.lt.s32.totalorder %s17, 3
        %s7595 = scalar_select %p7594, %s17, 3
        %s7596 = smul.addr %s7595, 30
        %s7597 = smul.addr %s7596, 2
        %s7598 = scalar_lea.vmem %s5, %s7597
      $region52: #{_lambda_.3} parent=47 // pred_fallthru
        _
    $region48: #{_lambda_.3} parent=5 // pred_fallthru
      _
  $region6: #{_lambda_.3} parent=0 // loop_footer
    %s15 = sadd.s32 1, %s11
  $region7: #{_lambda_.3} parent=0 // loop_footer_branch
    %10 = sbr.rel target = $region3
  $region8: #{_lambda_.3} parent=0 // loop_exit
    _

</llo_original>
